<compile_context>
chip_gen: v7x
topology: tpu7x:2x2x1
jax: 0.10.0
libtpu: 0.0.40
codegen_flags: <defaults>
</compile_context>

<pallas_src>
import functools

import jax
import jax.numpy as jnp
from jax import lax
from jax.experimental import pallas as pl
from jax.experimental.pallas import tpu as pltpu


def _round_up(x, m):
    return (x + m - 1) // m * m


def _lstm_kernel(x_ref, *refs, n_layers, hidden_pad, t_block, seq_len,
                 compute_dtype):
    """One grid step == one (batch_block, t_block) tile of the stacked LSTM.

    refs layout: [w_0, b_0, ..., w_{L-1}, b_{L-1}, cell_out_ref, hid_out_ref]
      w_l : (in_pad_l + Hp, 4*Hp) fused [Wx; Wh] in compute_dtype (VMEM resident)
      b_l : (1, 4*Hp) float32
    Gate column order: [forget | input_sig | output | input_tanh].
    """
    w_refs = refs[: 2 * n_layers]
    cell_ref = refs[2 * n_layers]
    hid_ref = refs[2 * n_layers + 1]

    Hp = hidden_pad
    tb = pl.program_id(1)  # time-block index (axis 0 is the parallel batch axis)

    # cell/hidden start at zeros (torch.zeros in LSTMEncoder.forward)
    @pl.when(tb == 0)
    def _():
        cell_ref[...] = jnp.zeros_like(cell_ref)
        hid_ref[...] = jnp.zeros_like(hid_ref)

    def step(s, carry):
        t = tb * t_block + s
        valid = t < seq_len            # mask padded timesteps (Tp >= seq_len)
        x = x_ref[s]                   # (B_blk, in_pad) compute_dtype
        for layer in range(n_layers):
            w = w_refs[2 * layer]
            b = w_refs[2 * layer + 1][...]          # (1, 4*Hp) f32
            h_prev = hid_ref[layer]                 # (B_blk, Hp) f32
            c_prev = cell_ref[layer]                # (B_blk, Hp) f32

            # one fused MXU matmul per layer: concat([x, h]) @ [Wx; Wh]
            xh = jnp.concatenate([x, h_prev.astype(compute_dtype)], axis=-1)
            gates = jnp.dot(xh, w[...],
                            preferred_element_type=jnp.float32) + b  # (B,4Hp) f32

            # fused sigmoid over [forget | input_sig | output], tanh on candidate
            sig = jax.nn.sigmoid(gates[:, : 3 * Hp])
            f_t = sig[:, 0 * Hp:1 * Hp]
            i_t = sig[:, 1 * Hp:2 * Hp]
            o_t = sig[:, 2 * Hp:3 * Hp]
            c_tld = jnp.tanh(gates[:, 3 * Hp:4 * Hp])

            c_new = c_prev * f_t + i_t * c_tld
            h_new = o_t * jnp.tanh(c_new)

            # keep old state on padded timesteps
            c_new = jnp.where(valid, c_new, c_prev)
            h_new = jnp.where(valid, h_new, h_prev)

            cell_ref[layer] = c_new
            hid_ref[layer] = h_new

            # next layer consumes this layer's hidden state
            x = h_new.astype(compute_dtype)
        return carry

    lax.fori_loop(0, t_block, step, 0, unroll=True)


def _pad_gates(w, Hp):
    """(K, 4*H) -> (K, 4*Hp): pad each of the 4 gate column blocks to Hp lanes."""
    K, H4 = w.shape
    H = H4 // 4
    w4 = w.reshape(K, 4, H)
    w4 = jnp.pad(w4, ((0, 0), (0, 0), (0, Hp - H)))
    return w4.reshape(K, 4 * Hp)


def _fuse_layer(wx, wh, b, in_pad, Hp, compute_dtype):
    """Fuse (Wx, Wh, b) into a single padded [Wx; Wh] weight + padded bias."""
    in_dim = wx.shape[0]
    H = wh.shape[0]
    wx_p = jnp.pad(_pad_gates(wx, Hp), ((0, in_pad - in_dim), (0, 0)))
    wh_p = jnp.pad(_pad_gates(wh, Hp), ((0, Hp - H), (0, 0)))
    w = jnp.concatenate([wx_p, wh_p], axis=0).astype(compute_dtype)
    b_p = _pad_gates(b, Hp).astype(jnp.float32)
    return w, b_p


def lstm_encoder_forward(sequence, params, *, n_layers, hidden_dim,
                         t_block=8, batch_block=None,
                         compute_dtype=jnp.bfloat16):
    """sequence: (batch, seq_len, input_dim) float32 (PyTorch convention).

    params[l] = (wx (in_dim, 4H), wh (H, 4H), b (1, 4H)), gate column order
    [forget | input_sig | output | input_tanh].
    Returns (cell_state, hidden_state), each (n_layers, batch, hidden_dim) f32.
    """
    B, T, Din = sequence.shape
    H = hidden_dim

    Bp = _round_up(B, 8)                 # sublane-full batch
    Hp = _round_up(max(H, 1), 128)       # lane-aligned hidden
    Dp = _round_up(max(Din, 1), 128)     # lane-aligned input
    t_block = max(1, min(t_block, T))
    Tp = _round_up(T, t_block)

    if batch_block is None:
        # split batch across 2 TensorCores (v7x / megacore) when big enough
        batch_block = Bp // 2 if (Bp % 32 == 0) else Bp
    assert Bp % batch_block == 0 and batch_block % 8 == 0

    # Pad to aligned tiles and go time-major so each in-kernel timestep read is a
    # contiguous (batch=sublane, feature=lane) slab. (The pad already forces one
    # copy pass over the input; the transpose fuses into it.)
    x = jnp.pad(sequence.astype(jnp.float32),
                ((0, Bp - B), (0, Tp - T), (0, Dp - Din)))
    x = jnp.transpose(x, (1, 0, 2)).astype(compute_dtype)   # (Tp, Bp, Dp)

    flat_w = []
    w_specs = []
    for l in range(n_layers):
        wx, wh, b = params[l]
        in_pad = Dp if l == 0 else Hp
        w_f, b_f = _fuse_layer(wx, wh, b, in_pad, Hp, compute_dtype)
        flat_w += [w_f, b_f]
        # whole array resident in VMEM, copied once (no per-step double-buffer)
        w_specs += [pl.BlockSpec(memory_space=pltpu.MemorySpace.VMEM),
                    pl.BlockSpec(memory_space=pltpu.MemorySpace.VMEM)]

    x_spec = pl.BlockSpec((t_block, batch_block, Dp), lambda bb, tt: (tt, bb, 0))
    state_shape = jax.ShapeDtypeStruct((n_layers, Bp, Hp), jnp.float32)
    state_spec = pl.BlockSpec((n_layers, batch_block, Hp),
                              lambda bb, tt: (0, bb, 0))

    kernel = functools.partial(
        _lstm_kernel, n_layers=n_layers, hidden_pad=Hp, t_block=t_block,
        seq_len=T, compute_dtype=compute_dtype)

    cell, hid = pl.pallas_call(
        kernel,
        out_shape=(state_shape, state_shape),
        grid_spec=pltpu.PrefetchScalarGridSpec(
            num_scalar_prefetch=0,
            grid=(Bp // batch_block, Tp // t_block),
            in_specs=[x_spec] + w_specs,
            out_specs=(state_spec, state_spec),
        ),
        compiler_params=pltpu.CompilerParams(
            # batch blocks are independent (megacore-parallel); time is the
            # sequential recurrence axis.
            dimension_semantics=("parallel", "arbitrary"),
        ),
    )(x, *flat_w)

    return cell[:, :B, :H], hid[:, :B, :H]


def make_params(key, n_layers, input_dim, hidden_dim):
    """Deterministic synthetic weights, fused per layer into (Wx, Wh, b).

    Gate column order: [forget | input_sig | output | input_tanh].
    (Note: differs from nn.LSTM's (i,f,g,o); weights imported from a stock
    nn.LSTM must be permuted accordingly.)
    """
    params = []
    for l in range(n_layers):
        in_dim = input_dim if l == 0 else hidden_dim
        key, k1, k2, k3, k4 = jax.random.split(key, 5)
        scale_x = 1.0 / jnp.sqrt(in_dim)
        scale_h = 1.0 / jnp.sqrt(hidden_dim)
        wx = jax.random.uniform(k1, (in_dim, 4 * hidden_dim), jnp.float32,
                                -scale_x, scale_x)
        wh = jax.random.uniform(k2, (hidden_dim, 4 * hidden_dim), jnp.float32,
                                -scale_h, scale_h)
        bx = jax.random.uniform(k3, (1, 4 * hidden_dim), jnp.float32,
                                -scale_x, scale_x)
        bh = jax.random.uniform(k4, (1, 4 * hidden_dim), jnp.float32,
                                -scale_h, scale_h)
        params.append((wx, wh, bx + bh))
    return params


def lstm_encoder_ref(sequence, params, *, n_layers, hidden_dim):
    """Pure-JAX reference mirroring the PyTorch forward exactly."""
    B, T, _ = sequence.shape
    H = hidden_dim
    c = jnp.zeros((n_layers, B, H), jnp.float32)
    h = jnp.zeros((n_layers, B, H), jnp.float32)
    for t in range(T):
        x = sequence[:, t]
        new_c, new_h = [], []
        for l in range(n_layers):
            wx, wh, b = params[l]
            gates = x @ wx + h[l] @ wh + b
            f_t = jax.nn.sigmoid(gates[:, 0 * H:1 * H])
            i_t = jax.nn.sigmoid(gates[:, 1 * H:2 * H])
            o_t = jax.nn.sigmoid(gates[:, 2 * H:3 * H])
            c_tld = jnp.tanh(gates[:, 3 * H:4 * H])
            c_l = c[l] * f_t + i_t * c_tld
            h_l = o_t * jnp.tanh(c_l)
            new_c.append(c_l)
            new_h.append(h_l)
            x = h_l
        c = jnp.stack(new_c)
        h = jnp.stack(new_h)
    return c, h


if __name__ == "__main__":
    n_layers = 2
    input_dim = 16
    hidden_dim = 32
    batch = 4
    seq_len = 8

    key = jax.random.PRNGKey(0)
    k_seq, k_par = jax.random.split(key)
    sequence = jax.random.normal(k_seq, (batch, seq_len, input_dim), jnp.float32)
    params = make_params(k_par, n_layers, input_dim, hidden_dim)

    c_ref, h_ref = lstm_encoder_ref(
        sequence, params, n_layers=n_layers, hidden_dim=hidden_dim)

    # f32 matmul path: tight check against the reference.
    c32, h32 = lstm_encoder_forward(
        sequence, params, n_layers=n_layers, hidden_dim=hidden_dim,
        t_block=8, compute_dtype=jnp.float32)
    jax.block_until_ready((c32, h32))
    assert c32.shape == (n_layers, batch, hidden_dim)
    assert h32.shape == (n_layers, batch, hidden_dim)
    assert jnp.allclose(c32, c_ref, atol=1e-4, rtol=1e-4)
    assert jnp.allclose(h32, h_ref, atol=1e-4, rtol=1e-4)

    # bf16 matmul path (f32 state / elementwise math): looser tolerance.
    cbf, hbf = lstm_encoder_forward(
        sequence, params, n_layers=n_layers, hidden_dim=hidden_dim,
        t_block=8, compute_dtype=jnp.bfloat16)
    jax.block_until_ready((cbf, hbf))
    assert jnp.allclose(cbf, c_ref, atol=3e-2, rtol=3e-2)
    assert jnp.allclose(hbf, h_ref, atol=3e-2, rtol=3e-2)

    print("KERNEL_OK")
</pallas_src>

<mosaic_0001>
module attributes {stable_mosaic.version = 11 : i64} {
  func.func @_lstm_kernel(%arg0: i32, %arg1: i32, %arg2: memref<8x8x128xf32, #tpu.memory_space<vmem>>, %arg3: memref<256x512xf32, #tpu.memory_space<vmem>>, %arg4: memref<1x512xf32, #tpu.memory_space<vmem>>, %arg5: memref<256x512xf32, #tpu.memory_space<vmem>>, %arg6: memref<1x512xf32, #tpu.memory_space<vmem>>, %arg7: memref<2x8x128xf32, #tpu.memory_space<vmem>>, %arg8: memref<2x8x128xf32, #tpu.memory_space<vmem>>) attributes {dimension_semantics = [#tpu.dimension_semantics<parallel>, #tpu.dimension_semantics<arbitrary>], iteration_bounds = array<i64: 1, 1>, scalar_prefetch = 0 : i64, scratch_operands = 0 : i64, tpu.core_type = #tpu.core_type<tc>, window_params = [{transform_indices = @transform_0, window_bounds = array<i64: 8, 8, 128>}, {pipeline_mode = #tpu.pipeline_mode<synchronous>, transform_indices = @transform_1, window_bounds = array<i64: 256, 512>}, {pipeline_mode = #tpu.pipeline_mode<synchronous>, transform_indices = @transform_2, window_bounds = array<i64: 1, 512>}, {pipeline_mode = #tpu.pipeline_mode<synchronous>, transform_indices = @transform_3, window_bounds = array<i64: 256, 512>}, {pipeline_mode = #tpu.pipeline_mode<synchronous>, transform_indices = @transform_4, window_bounds = array<i64: 1, 512>}, {transform_indices = @transform_5, window_bounds = array<i64: 2, 8, 128>}, {transform_indices = @transform_6, window_bounds = array<i64: 2, 8, 128>}]} {
    %c0_i32 = arith.constant 0 : i32
    %0 = arith.cmpi eq, %arg1, %c0_i32 : i32
    %1 = arith.extui %0 : i1 to i32
    %c0_i32_0 = arith.constant 0 : i32
    %2 = arith.cmpi ne, %1, %c0_i32_0 : i32
    scf.if %2 {
      %cst_319 = arith.constant 0.000000e+00 : f32
      %595 = vector.broadcast %cst_319 : f32 to vector<2x8x128xf32>
      %c0_320 = arith.constant 0 : index
      %c0_321 = arith.constant 0 : index
      %c0_322 = arith.constant 0 : index
      %596 = vector.load %arg7[%c0_320, %c0_321, %c0_322] : memref<2x8x128xf32, #tpu.memory_space<vmem>>, vector<2x8x128xf32>
      tpu.vector_store %arg7[%c0_320, %c0_321, %c0_322], %595 {strides = array<i32>} : memref<2x8x128xf32, #tpu.memory_space<vmem>>, vector<2x8x128xf32>,
      %cst_323 = arith.constant 0.000000e+00 : f32
      %597 = vector.broadcast %cst_323 : f32 to vector<2x8x128xf32>
      %c0_324 = arith.constant 0 : index
      %c0_325 = arith.constant 0 : index
      %c0_326 = arith.constant 0 : index
      %598 = vector.load %arg8[%c0_324, %c0_325, %c0_326] : memref<2x8x128xf32, #tpu.memory_space<vmem>>, vector<2x8x128xf32>
      tpu.vector_store %arg8[%c0_324, %c0_325, %c0_326], %597 {strides = array<i32>} : memref<2x8x128xf32, #tpu.memory_space<vmem>>, vector<2x8x128xf32>,
    } else {
    }
    %c0_i32_1 = arith.constant 0 : i32
    %c8_i32 = arith.constant 8 : i32
    %3 = arith.muli %arg1, %c8_i32 : i32
    %4 = arith.addi %3, %c0_i32_1 : i32
    %c8_i32_2 = arith.constant 8 : i32
    %5 = arith.cmpi slt, %4, %c8_i32_2 : i32
    %6 = arith.index_cast %c0_i32_1 : i32 to index
    %c0 = arith.constant 0 : index
    %c0_3 = arith.constant 0 : index
    %7 = vector.load %arg2[%6, %c0, %c0_3] : memref<8x8x128xf32, #tpu.memory_space<vmem>>, vector<1x8x128xf32>
    %8 = vector.shape_cast %7 : vector<1x8x128xf32> to vector<8x128xf32>
    %c0_4 = arith.constant 0 : index
    %c0_5 = arith.constant 0 : index
    %9 = vector.load %arg4[%c0_4, %c0_5] : memref<1x512xf32, #tpu.memory_space<vmem>>, vector<1x512xf32>
    %c0_6 = arith.constant 0 : index
    %c0_7 = arith.constant 0 : index
    %c0_8 = arith.constant 0 : index
    %10 = vector.load %arg8[%c0_6, %c0_7, %c0_8] : memref<2x8x128xf32, #tpu.memory_space<vmem>>, vector<1x8x128xf32>
    %11 = vector.shape_cast %10 : vector<1x8x128xf32> to vector<8x128xf32>
    %c0_9 = arith.constant 0 : index
    %c0_10 = arith.constant 0 : index
    %c0_11 = arith.constant 0 : index
    %12 = vector.load %arg7[%c0_9, %c0_10, %c0_11] : memref<2x8x128xf32, #tpu.memory_space<vmem>>, vector<1x8x128xf32>
    %13 = vector.shape_cast %12 : vector<1x8x128xf32> to vector<8x128xf32>
    %14 = tpu.concatenate %8, %11 in 1 : vector<8x128xf32>, vector<8x128xf32> -> vector<8x256xf32>
    %c0_12 = arith.constant 0 : index
    %c0_13 = arith.constant 0 : index
    %15 = vector.load %arg3[%c0_12, %c0_13] : memref<256x512xf32, #tpu.memory_space<vmem>>, vector<256x512xf32>
    %cst = arith.constant dense<0.000000e+00> : vector<8x512xf32>
    %16 = tpu.matmul %14, %15, %cst {dimension_numbers = #tpu.dot_dimension_numbers<[1], [0], [0], [1], [0, 0, 1, 1], [], []>} : vector<8x256xf32>, vector<256x512xf32>, vector<8x512xf32> -> vector<8x512xf32>
    %17 = vector.broadcast %9 : vector<1x512xf32> to vector<8x512xf32>
    %18 = arith.addf %16, %17 : vector<8x512xf32>
    %19 = vector.extract_strided_slice %18 {offsets = [0, 0], sizes = [8, 384], strides = [1, 1]} : vector<8x512xf32> to vector<8x384xf32>
    %20 = arith.negf %19 : vector<8x384xf32>
    %21 = math.exp %20 : vector<8x384xf32>
    %cst_14 = arith.constant 1.000000e+00 : f32
    %22 = vector.broadcast %cst_14 : f32 to vector<8x384xf32>
    %23 = arith.addf %22, %21 : vector<8x384xf32>
    %24 = arith.divf %22, %23 : vector<8x384xf32>
    %25 = vector.extract_strided_slice %24 {offsets = [0, 0], sizes = [8, 128], strides = [1, 1]} : vector<8x384xf32> to vector<8x128xf32>
    %26 = vector.extract_strided_slice %24 {offsets = [0, 128], sizes = [8, 128], strides = [1, 1]} : vector<8x384xf32> to vector<8x128xf32>
    %27 = vector.extract_strided_slice %24 {offsets = [0, 256], sizes = [8, 128], strides = [1, 1]} : vector<8x384xf32> to vector<8x128xf32>
    %28 = vector.extract_strided_slice %18 {offsets = [0, 384], sizes = [8, 128], strides = [1, 1]} : vector<8x512xf32> to vector<8x128xf32>
    %29 = math.tanh %28 : vector<8x128xf32>
    %30 = arith.mulf %13, %25 : vector<8x128xf32>
    %31 = arith.mulf %26, %29 : vector<8x128xf32>
    %32 = arith.addf %30, %31 : vector<8x128xf32>
    %33 = math.tanh %32 : vector<8x128xf32>
    %34 = arith.mulf %27, %33 : vector<8x128xf32>
    %35 = arith.select %5, %32, %13 : vector<8x128xf32>
    %36 = arith.select %5, %34, %11 : vector<8x128xf32>
    %c0_15 = arith.constant 0 : index
    %c0_16 = arith.constant 0 : index
    %c0_17 = arith.constant 0 : index
    %37 = vector.load %arg7[%c0_15, %c0_16, %c0_17] : memref<2x8x128xf32, #tpu.memory_space<vmem>>, vector<1x8x128xf32>
    %38 = vector.shape_cast %37 : vector<1x8x128xf32> to vector<8x128xf32>
    %39 = vector.shape_cast %35 : vector<8x128xf32> to vector<1x8x128xf32>
    tpu.vector_store %arg7[%c0_15, %c0_16, %c0_17], %39 {strides = array<i32>} : memref<2x8x128xf32, #tpu.memory_space<vmem>>, vector<1x8x128xf32>,
    %c0_18 = arith.constant 0 : index
    %c0_19 = arith.constant 0 : index
    %c0_20 = arith.constant 0 : index
    %40 = vector.load %arg8[%c0_18, %c0_19, %c0_20] : memref<2x8x128xf32, #tpu.memory_space<vmem>>, vector<1x8x128xf32>
    %41 = vector.shape_cast %40 : vector<1x8x128xf32> to vector<8x128xf32>
    %42 = vector.shape_cast %36 : vector<8x128xf32> to vector<1x8x128xf32>
    tpu.vector_store %arg8[%c0_18, %c0_19, %c0_20], %42 {strides = array<i32>} : memref<2x8x128xf32, #tpu.memory_space<vmem>>, vector<1x8x128xf32>,
    %c0_21 = arith.constant 0 : index
    %c0_22 = arith.constant 0 : index
    %43 = vector.load %arg6[%c0_21, %c0_22] : memref<1x512xf32, #tpu.memory_space<vmem>>, vector<1x512xf32>
    %c1 = arith.constant 1 : index
    %c0_23 = arith.constant 0 : index
    %c0_24 = arith.constant 0 : index
    %44 = vector.load %arg8[%c1, %c0_23, %c0_24] : memref<2x8x128xf32, #tpu.memory_space<vmem>>, vector<1x8x128xf32>
    %45 = vector.shape_cast %44 : vector<1x8x128xf32> to vector<8x128xf32>
    %c1_25 = arith.constant 1 : index
    %c0_26 = arith.constant 0 : index
    %c0_27 = arith.constant 0 : index
    %46 = vector.load %arg7[%c1_25, %c0_26, %c0_27] : memref<2x8x128xf32, #tpu.memory_space<vmem>>, vector<1x8x128xf32>
    %47 = vector.shape_cast %46 : vector<1x8x128xf32> to vector<8x128xf32>
    %48 = tpu.concatenate %36, %45 in 1 : vector<8x128xf32>, vector<8x128xf32> -> vector<8x256xf32>
    %c0_28 = arith.constant 0 : index
    %c0_29 = arith.constant 0 : index
    %49 = vector.load %arg5[%c0_28, %c0_29] : memref<256x512xf32, #tpu.memory_space<vmem>>, vector<256x512xf32>
    %cst_30 = arith.constant dense<0.000000e+00> : vector<8x512xf32>
    %50 = tpu.matmul %48, %49, %cst_30 {dimension_numbers = #tpu.dot_dimension_numbers<[1], [0], [0], [1], [0, 0, 1, 1], [], []>} : vector<8x256xf32>, vector<256x512xf32>, vector<8x512xf32> -> vector<8x512xf32>
    %51 = vector.broadcast %43 : vector<1x512xf32> to vector<8x512xf32>
    %52 = arith.addf %50, %51 : vector<8x512xf32>
    %53 = vector.extract_strided_slice %52 {offsets = [0, 0], sizes = [8, 384], strides = [1, 1]} : vector<8x512xf32> to vector<8x384xf32>
    %54 = arith.negf %53 : vector<8x384xf32>
    %55 = math.exp %54 : vector<8x384xf32>
    %cst_31 = arith.constant 1.000000e+00 : f32
    %56 = vector.broadcast %cst_31 : f32 to vector<8x384xf32>
    %57 = arith.addf %56, %55 : vector<8x384xf32>
    %58 = arith.divf %56, %57 : vector<8x384xf32>
    %59 = vector.extract_strided_slice %58 {offsets = [0, 0], sizes = [8, 128], strides = [1, 1]} : vector<8x384xf32> to vector<8x128xf32>
    %60 = vector.extract_strided_slice %58 {offsets = [0, 128], sizes = [8, 128], strides = [1, 1]} : vector<8x384xf32> to vector<8x128xf32>
    %61 = vector.extract_strided_slice %58 {offsets = [0, 256], sizes = [8, 128], strides = [1, 1]} : vector<8x384xf32> to vector<8x128xf32>
    %62 = vector.extract_strided_slice %52 {offsets = [0, 384], sizes = [8, 128], strides = [1, 1]} : vector<8x512xf32> to vector<8x128xf32>
    %63 = math.tanh %62 : vector<8x128xf32>
    %64 = arith.mulf %47, %59 : vector<8x128xf32>
    %65 = arith.mulf %60, %63 : vector<8x128xf32>
    %66 = arith.addf %64, %65 : vector<8x128xf32>
    %67 = math.tanh %66 : vector<8x128xf32>
    %68 = arith.mulf %61, %67 : vector<8x128xf32>
    %69 = arith.select %5, %66, %47 : vector<8x128xf32>
    %70 = arith.select %5, %68, %45 : vector<8x128xf32>
    %c1_32 = arith.constant 1 : index
    %c0_33 = arith.constant 0 : index
    %c0_34 = arith.constant 0 : index
    %71 = vector.load %arg7[%c1_32, %c0_33, %c0_34] : memref<2x8x128xf32, #tpu.memory_space<vmem>>, vector<1x8x128xf32>
    %72 = vector.shape_cast %71 : vector<1x8x128xf32> to vector<8x128xf32>
    %73 = vector.shape_cast %69 : vector<8x128xf32> to vector<1x8x128xf32>
    tpu.vector_store %arg7[%c1_32, %c0_33, %c0_34], %73 {strides = array<i32>} : memref<2x8x128xf32, #tpu.memory_space<vmem>>, vector<1x8x128xf32>,
    %c1_35 = arith.constant 1 : index
    %c0_36 = arith.constant 0 : index
    %c0_37 = arith.constant 0 : index
    %74 = vector.load %arg8[%c1_35, %c0_36, %c0_37] : memref<2x8x128xf32, #tpu.memory_space<vmem>>, vector<1x8x128xf32>
    %75 = vector.shape_cast %74 : vector<1x8x128xf32> to vector<8x128xf32>
    %76 = vector.shape_cast %70 : vector<8x128xf32> to vector<1x8x128xf32>
    tpu.vector_store %arg8[%c1_35, %c0_36, %c0_37], %76 {strides = array<i32>} : memref<2x8x128xf32, #tpu.memory_space<vmem>>, vector<1x8x128xf32>,
    %c1_i32 = arith.constant 1 : i32
    %c8_i32_38 = arith.constant 8 : i32
    %77 = arith.muli %arg1, %c8_i32_38 : i32
    %78 = arith.addi %77, %c1_i32 : i32
    %c8_i32_39 = arith.constant 8 : i32
    %79 = arith.cmpi slt, %78, %c8_i32_39 : i32
    %80 = arith.index_cast %c1_i32 : i32 to index
    %c0_40 = arith.constant 0 : index
    %c0_41 = arith.constant 0 : index
    %81 = vector.load %arg2[%80, %c0_40, %c0_41] : memref<8x8x128xf32, #tpu.memory_space<vmem>>, vector<1x8x128xf32>
    %82 = vector.shape_cast %81 : vector<1x8x128xf32> to vector<8x128xf32>
    %c0_42 = arith.constant 0 : index
    %c0_43 = arith.constant 0 : index
    %83 = vector.load %arg4[%c0_42, %c0_43] : memref<1x512xf32, #tpu.memory_space<vmem>>, vector<1x512xf32>
    %c0_44 = arith.constant 0 : index
    %c0_45 = arith.constant 0 : index
    %c0_46 = arith.constant 0 : index
    %84 = vector.load %arg8[%c0_44, %c0_45, %c0_46] : memref<2x8x128xf32, #tpu.memory_space<vmem>>, vector<1x8x128xf32>
    %85 = vector.shape_cast %84 : vector<1x8x128xf32> to vector<8x128xf32>
    %c0_47 = arith.constant 0 : index
    %c0_48 = arith.constant 0 : index
    %c0_49 = arith.constant 0 : index
    %86 = vector.load %arg7[%c0_47, %c0_48, %c0_49] : memref<2x8x128xf32, #tpu.memory_space<vmem>>, vector<1x8x128xf32>
    %87 = vector.shape_cast %86 : vector<1x8x128xf32> to vector<8x128xf32>
    %88 = tpu.concatenate %82, %85 in 1 : vector<8x128xf32>, vector<8x128xf32> -> vector<8x256xf32>
    %c0_50 = arith.constant 0 : index
    %c0_51 = arith.constant 0 : index
    %89 = vector.load %arg3[%c0_50, %c0_51] : memref<256x512xf32, #tpu.memory_space<vmem>>, vector<256x512xf32>
    %cst_52 = arith.constant dense<0.000000e+00> : vector<8x512xf32>
    %90 = tpu.matmul %88, %89, %cst_52 {dimension_numbers = #tpu.dot_dimension_numbers<[1], [0], [0], [1], [0, 0, 1, 1], [], []>} : vector<8x256xf32>, vector<256x512xf32>, vector<8x512xf32> -> vector<8x512xf32>
    %91 = vector.broadcast %83 : vector<1x512xf32> to vector<8x512xf32>
    %92 = arith.addf %90, %91 : vector<8x512xf32>
    %93 = vector.extract_strided_slice %92 {offsets = [0, 0], sizes = [8, 384], strides = [1, 1]} : vector<8x512xf32> to vector<8x384xf32>
    %94 = arith.negf %93 : vector<8x384xf32>
    %95 = math.exp %94 : vector<8x384xf32>
    %cst_53 = arith.constant 1.000000e+00 : f32
    %96 = vector.broadcast %cst_53 : f32 to vector<8x384xf32>
    %97 = arith.addf %96, %95 : vector<8x384xf32>
    %98 = arith.divf %96, %97 : vector<8x384xf32>
    %99 = vector.extract_strided_slice %98 {offsets = [0, 0], sizes = [8, 128], strides = [1, 1]} : vector<8x384xf32> to vector<8x128xf32>
    %100 = vector.extract_strided_slice %98 {offsets = [0, 128], sizes = [8, 128], strides = [1, 1]} : vector<8x384xf32> to vector<8x128xf32>
    %101 = vector.extract_strided_slice %98 {offsets = [0, 256], sizes = [8, 128], strides = [1, 1]} : vector<8x384xf32> to vector<8x128xf32>
    %102 = vector.extract_strided_slice %92 {offsets = [0, 384], sizes = [8, 128], strides = [1, 1]} : vector<8x512xf32> to vector<8x128xf32>
    %103 = math.tanh %102 : vector<8x128xf32>
    %104 = arith.mulf %87, %99 : vector<8x128xf32>
    %105 = arith.mulf %100, %103 : vector<8x128xf32>
    %106 = arith.addf %104, %105 : vector<8x128xf32>
    %107 = math.tanh %106 : vector<8x128xf32>
    %108 = arith.mulf %101, %107 : vector<8x128xf32>
    %109 = arith.select %79, %106, %87 : vector<8x128xf32>
    %110 = arith.select %79, %108, %85 : vector<8x128xf32>
    %c0_54 = arith.constant 0 : index
    %c0_55 = arith.constant 0 : index
    %c0_56 = arith.constant 0 : index
    %111 = vector.load %arg7[%c0_54, %c0_55, %c0_56] : memref<2x8x128xf32, #tpu.memory_space<vmem>>, vector<1x8x128xf32>
    %112 = vector.shape_cast %111 : vector<1x8x128xf32> to vector<8x128xf32>
    %113 = vector.shape_cast %109 : vector<8x128xf32> to vector<1x8x128xf32>
    tpu.vector_store %arg7[%c0_54, %c0_55, %c0_56], %113 {strides = array<i32>} : memref<2x8x128xf32, #tpu.memory_space<vmem>>, vector<1x8x128xf32>,
    %c0_57 = arith.constant 0 : index
    %c0_58 = arith.constant 0 : index
    %c0_59 = arith.constant 0 : index
    %114 = vector.load %arg8[%c0_57, %c0_58, %c0_59] : memref<2x8x128xf32, #tpu.memory_space<vmem>>, vector<1x8x128xf32>
    %115 = vector.shape_cast %114 : vector<1x8x128xf32> to vector<8x128xf32>
    %116 = vector.shape_cast %110 : vector<8x128xf32> to vector<1x8x128xf32>
    tpu.vector_store %arg8[%c0_57, %c0_58, %c0_59], %116 {strides = array<i32>} : memref<2x8x128xf32, #tpu.memory_space<vmem>>, vector<1x8x128xf32>,
    %c0_60 = arith.constant 0 : index
    %c0_61 = arith.constant 0 : index
    %117 = vector.load %arg6[%c0_60, %c0_61] : memref<1x512xf32, #tpu.memory_space<vmem>>, vector<1x512xf32>
    %c1_62 = arith.constant 1 : index
    %c0_63 = arith.constant 0 : index
    %c0_64 = arith.constant 0 : index
    %118 = vector.load %arg8[%c1_62, %c0_63, %c0_64] : memref<2x8x128xf32, #tpu.memory_space<vmem>>, vector<1x8x128xf32>
    %119 = vector.shape_cast %118 : vector<1x8x128xf32> to vector<8x128xf32>
    %c1_65 = arith.constant 1 : index
    %c0_66 = arith.constant 0 : index
    %c0_67 = arith.constant 0 : index
    %120 = vector.load %arg7[%c1_65, %c0_66, %c0_67] : memref<2x8x128xf32, #tpu.memory_space<vmem>>, vector<1x8x128xf32>
    %121 = vector.shape_cast %120 : vector<1x8x128xf32> to vector<8x128xf32>
    %122 = tpu.concatenate %110, %119 in 1 : vector<8x128xf32>, vector<8x128xf32> -> vector<8x256xf32>
    %c0_68 = arith.constant 0 : index
    %c0_69 = arith.constant 0 : index
    %123 = vector.load %arg5[%c0_68, %c0_69] : memref<256x512xf32, #tpu.memory_space<vmem>>, vector<256x512xf32>
    %cst_70 = arith.constant dense<0.000000e+00> : vector<8x512xf32>
    %124 = tpu.matmul %122, %123, %cst_70 {dimension_numbers = #tpu.dot_dimension_numbers<[1], [0], [0], [1], [0, 0, 1, 1], [], []>} : vector<8x256xf32>, vector<256x512xf32>, vector<8x512xf32> -> vector<8x512xf32>
    %125 = vector.broadcast %117 : vector<1x512xf32> to vector<8x512xf32>
    %126 = arith.addf %124, %125 : vector<8x512xf32>
    %127 = vector.extract_strided_slice %126 {offsets = [0, 0], sizes = [8, 384], strides = [1, 1]} : vector<8x512xf32> to vector<8x384xf32>
    %128 = arith.negf %127 : vector<8x384xf32>
    %129 = math.exp %128 : vector<8x384xf32>
    %cst_71 = arith.constant 1.000000e+00 : f32
    %130 = vector.broadcast %cst_71 : f32 to vector<8x384xf32>
    %131 = arith.addf %130, %129 : vector<8x384xf32>
    %132 = arith.divf %130, %131 : vector<8x384xf32>
    %133 = vector.extract_strided_slice %132 {offsets = [0, 0], sizes = [8, 128], strides = [1, 1]} : vector<8x384xf32> to vector<8x128xf32>
    %134 = vector.extract_strided_slice %132 {offsets = [0, 128], sizes = [8, 128], strides = [1, 1]} : vector<8x384xf32> to vector<8x128xf32>
    %135 = vector.extract_strided_slice %132 {offsets = [0, 256], sizes = [8, 128], strides = [1, 1]} : vector<8x384xf32> to vector<8x128xf32>
    %136 = vector.extract_strided_slice %126 {offsets = [0, 384], sizes = [8, 128], strides = [1, 1]} : vector<8x512xf32> to vector<8x128xf32>
    %137 = math.tanh %136 : vector<8x128xf32>
    %138 = arith.mulf %121, %133 : vector<8x128xf32>
    %139 = arith.mulf %134, %137 : vector<8x128xf32>
    %140 = arith.addf %138, %139 : vector<8x128xf32>
    %141 = math.tanh %140 : vector<8x128xf32>
    %142 = arith.mulf %135, %141 : vector<8x128xf32>
    %143 = arith.select %79, %140, %121 : vector<8x128xf32>
    %144 = arith.select %79, %142, %119 : vector<8x128xf32>
    %c1_72 = arith.constant 1 : index
    %c0_73 = arith.constant 0 : index
    %c0_74 = arith.constant 0 : index
    %145 = vector.load %arg7[%c1_72, %c0_73, %c0_74] : memref<2x8x128xf32, #tpu.memory_space<vmem>>, vector<1x8x128xf32>
    %146 = vector.shape_cast %145 : vector<1x8x128xf32> to vector<8x128xf32>
    %147 = vector.shape_cast %143 : vector<8x128xf32> to vector<1x8x128xf32>
    tpu.vector_store %arg7[%c1_72, %c0_73, %c0_74], %147 {strides = array<i32>} : memref<2x8x128xf32, #tpu.memory_space<vmem>>, vector<1x8x128xf32>,
    %c1_75 = arith.constant 1 : index
    %c0_76 = arith.constant 0 : index
    %c0_77 = arith.constant 0 : index
    %148 = vector.load %arg8[%c1_75, %c0_76, %c0_77] : memref<2x8x128xf32, #tpu.memory_space<vmem>>, vector<1x8x128xf32>
    %149 = vector.shape_cast %148 : vector<1x8x128xf32> to vector<8x128xf32>
    %150 = vector.shape_cast %144 : vector<8x128xf32> to vector<1x8x128xf32>
    tpu.vector_store %arg8[%c1_75, %c0_76, %c0_77], %150 {strides = array<i32>} : memref<2x8x128xf32, #tpu.memory_space<vmem>>, vector<1x8x128xf32>,
    %c2_i32 = arith.constant 2 : i32
    %c8_i32_78 = arith.constant 8 : i32
    %151 = arith.muli %arg1, %c8_i32_78 : i32
    %152 = arith.addi %151, %c2_i32 : i32
    %c8_i32_79 = arith.constant 8 : i32
    %153 = arith.cmpi slt, %152, %c8_i32_79 : i32
    %154 = arith.index_cast %c2_i32 : i32 to index
    %c0_80 = arith.constant 0 : index
    %c0_81 = arith.constant 0 : index
    %155 = vector.load %arg2[%154, %c0_80, %c0_81] : memref<8x8x128xf32, #tpu.memory_space<vmem>>, vector<1x8x128xf32>
    %156 = vector.shape_cast %155 : vector<1x8x128xf32> to vector<8x128xf32>
    %c0_82 = arith.constant 0 : index
    %c0_83 = arith.constant 0 : index
    %157 = vector.load %arg4[%c0_82, %c0_83] : memref<1x512xf32, #tpu.memory_space<vmem>>, vector<1x512xf32>
    %c0_84 = arith.constant 0 : index
    %c0_85 = arith.constant 0 : index
    %c0_86 = arith.constant 0 : index
    %158 = vector.load %arg8[%c0_84, %c0_85, %c0_86] : memref<2x8x128xf32, #tpu.memory_space<vmem>>, vector<1x8x128xf32>
    %159 = vector.shape_cast %158 : vector<1x8x128xf32> to vector<8x128xf32>
    %c0_87 = arith.constant 0 : index
    %c0_88 = arith.constant 0 : index
    %c0_89 = arith.constant 0 : index
    %160 = vector.load %arg7[%c0_87, %c0_88, %c0_89] : memref<2x8x128xf32, #tpu.memory_space<vmem>>, vector<1x8x128xf32>
    %161 = vector.shape_cast %160 : vector<1x8x128xf32> to vector<8x128xf32>
    %162 = tpu.concatenate %156, %159 in 1 : vector<8x128xf32>, vector<8x128xf32> -> vector<8x256xf32>
    %c0_90 = arith.constant 0 : index
    %c0_91 = arith.constant 0 : index
    %163 = vector.load %arg3[%c0_90, %c0_91] : memref<256x512xf32, #tpu.memory_space<vmem>>, vector<256x512xf32>
    %cst_92 = arith.constant dense<0.000000e+00> : vector<8x512xf32>
    %164 = tpu.matmul %162, %163, %cst_92 {dimension_numbers = #tpu.dot_dimension_numbers<[1], [0], [0], [1], [0, 0, 1, 1], [], []>} : vector<8x256xf32>, vector<256x512xf32>, vector<8x512xf32> -> vector<8x512xf32>
    %165 = vector.broadcast %157 : vector<1x512xf32> to vector<8x512xf32>
    %166 = arith.addf %164, %165 : vector<8x512xf32>
    %167 = vector.extract_strided_slice %166 {offsets = [0, 0], sizes = [8, 384], strides = [1, 1]} : vector<8x512xf32> to vector<8x384xf32>
    %168 = arith.negf %167 : vector<8x384xf32>
    %169 = math.exp %168 : vector<8x384xf32>
    %cst_93 = arith.constant 1.000000e+00 : f32
    %170 = vector.broadcast %cst_93 : f32 to vector<8x384xf32>
    %171 = arith.addf %170, %169 : vector<8x384xf32>
    %172 = arith.divf %170, %171 : vector<8x384xf32>
    %173 = vector.extract_strided_slice %172 {offsets = [0, 0], sizes = [8, 128], strides = [1, 1]} : vector<8x384xf32> to vector<8x128xf32>
    %174 = vector.extract_strided_slice %172 {offsets = [0, 128], sizes = [8, 128], strides = [1, 1]} : vector<8x384xf32> to vector<8x128xf32>
    %175 = vector.extract_strided_slice %172 {offsets = [0, 256], sizes = [8, 128], strides = [1, 1]} : vector<8x384xf32> to vector<8x128xf32>
    %176 = vector.extract_strided_slice %166 {offsets = [0, 384], sizes = [8, 128], strides = [1, 1]} : vector<8x512xf32> to vector<8x128xf32>
    %177 = math.tanh %176 : vector<8x128xf32>
    %178 = arith.mulf %161, %173 : vector<8x128xf32>
    %179 = arith.mulf %174, %177 : vector<8x128xf32>
    %180 = arith.addf %178, %179 : vector<8x128xf32>
    %181 = math.tanh %180 : vector<8x128xf32>
    %182 = arith.mulf %175, %181 : vector<8x128xf32>
    %183 = arith.select %153, %180, %161 : vector<8x128xf32>
    %184 = arith.select %153, %182, %159 : vector<8x128xf32>
    %c0_94 = arith.constant 0 : index
    %c0_95 = arith.constant 0 : index
    %c0_96 = arith.constant 0 : index
    %185 = vector.load %arg7[%c0_94, %c0_95, %c0_96] : memref<2x8x128xf32, #tpu.memory_space<vmem>>, vector<1x8x128xf32>
    %186 = vector.shape_cast %185 : vector<1x8x128xf32> to vector<8x128xf32>
    %187 = vector.shape_cast %183 : vector<8x128xf32> to vector<1x8x128xf32>
    tpu.vector_store %arg7[%c0_94, %c0_95, %c0_96], %187 {strides = array<i32>} : memref<2x8x128xf32, #tpu.memory_space<vmem>>, vector<1x8x128xf32>,
    %c0_97 = arith.constant 0 : index
    %c0_98 = arith.constant 0 : index
    %c0_99 = arith.constant 0 : index
    %188 = vector.load %arg8[%c0_97, %c0_98, %c0_99] : memref<2x8x128xf32, #tpu.memory_space<vmem>>, vector<1x8x128xf32>
    %189 = vector.shape_cast %188 : vector<1x8x128xf32> to vector<8x128xf32>
    %190 = vector.shape_cast %184 : vector<8x128xf32> to vector<1x8x128xf32>
    tpu.vector_store %arg8[%c0_97, %c0_98, %c0_99], %190 {strides = array<i32>} : memref<2x8x128xf32, #tpu.memory_space<vmem>>, vector<1x8x128xf32>,
    %c0_100 = arith.constant 0 : index
    %c0_101 = arith.constant 0 : index
    %191 = vector.load %arg6[%c0_100, %c0_101] : memref<1x512xf32, #tpu.memory_space<vmem>>, vector<1x512xf32>
    %c1_102 = arith.constant 1 : index
    %c0_103 = arith.constant 0 : index
    %c0_104 = arith.constant 0 : index
    %192 = vector.load %arg8[%c1_102, %c0_103, %c0_104] : memref<2x8x128xf32, #tpu.memory_space<vmem>>, vector<1x8x128xf32>
    %193 = vector.shape_cast %192 : vector<1x8x128xf32> to vector<8x128xf32>
    %c1_105 = arith.constant 1 : index
    %c0_106 = arith.constant 0 : index
    %c0_107 = arith.constant 0 : index
    %194 = vector.load %arg7[%c1_105, %c0_106, %c0_107] : memref<2x8x128xf32, #tpu.memory_space<vmem>>, vector<1x8x128xf32>
    %195 = vector.shape_cast %194 : vector<1x8x128xf32> to vector<8x128xf32>
    %196 = tpu.concatenate %184, %193 in 1 : vector<8x128xf32>, vector<8x128xf32> -> vector<8x256xf32>
    %c0_108 = arith.constant 0 : index
    %c0_109 = arith.constant 0 : index
    %197 = vector.load %arg5[%c0_108, %c0_109] : memref<256x512xf32, #tpu.memory_space<vmem>>, vector<256x512xf32>
    %cst_110 = arith.constant dense<0.000000e+00> : vector<8x512xf32>
    %198 = tpu.matmul %196, %197, %cst_110 {dimension_numbers = #tpu.dot_dimension_numbers<[1], [0], [0], [1], [0, 0, 1, 1], [], []>} : vector<8x256xf32>, vector<256x512xf32>, vector<8x512xf32> -> vector<8x512xf32>
    %199 = vector.broadcast %191 : vector<1x512xf32> to vector<8x512xf32>
    %200 = arith.addf %198, %199 : vector<8x512xf32>
    %201 = vector.extract_strided_slice %200 {offsets = [0, 0], sizes = [8, 384], strides = [1, 1]} : vector<8x512xf32> to vector<8x384xf32>
    %202 = arith.negf %201 : vector<8x384xf32>
    %203 = math.exp %202 : vector<8x384xf32>
    %cst_111 = arith.constant 1.000000e+00 : f32
    %204 = vector.broadcast %cst_111 : f32 to vector<8x384xf32>
    %205 = arith.addf %204, %203 : vector<8x384xf32>
    %206 = arith.divf %204, %205 : vector<8x384xf32>
    %207 = vector.extract_strided_slice %206 {offsets = [0, 0], sizes = [8, 128], strides = [1, 1]} : vector<8x384xf32> to vector<8x128xf32>
    %208 = vector.extract_strided_slice %206 {offsets = [0, 128], sizes = [8, 128], strides = [1, 1]} : vector<8x384xf32> to vector<8x128xf32>
    %209 = vector.extract_strided_slice %206 {offsets = [0, 256], sizes = [8, 128], strides = [1, 1]} : vector<8x384xf32> to vector<8x128xf32>
    %210 = vector.extract_strided_slice %200 {offsets = [0, 384], sizes = [8, 128], strides = [1, 1]} : vector<8x512xf32> to vector<8x128xf32>
    %211 = math.tanh %210 : vector<8x128xf32>
    %212 = arith.mulf %195, %207 : vector<8x128xf32>
    %213 = arith.mulf %208, %211 : vector<8x128xf32>
    %214 = arith.addf %212, %213 : vector<8x128xf32>
    %215 = math.tanh %214 : vector<8x128xf32>
    %216 = arith.mulf %209, %215 : vector<8x128xf32>
    %217 = arith.select %153, %214, %195 : vector<8x128xf32>
    %218 = arith.select %153, %216, %193 : vector<8x128xf32>
    %c1_112 = arith.constant 1 : index
    %c0_113 = arith.constant 0 : index
    %c0_114 = arith.constant 0 : index
    %219 = vector.load %arg7[%c1_112, %c0_113, %c0_114] : memref<2x8x128xf32, #tpu.memory_space<vmem>>, vector<1x8x128xf32>
    %220 = vector.shape_cast %219 : vector<1x8x128xf32> to vector<8x128xf32>
    %221 = vector.shape_cast %217 : vector<8x128xf32> to vector<1x8x128xf32>
    tpu.vector_store %arg7[%c1_112, %c0_113, %c0_114], %221 {strides = array<i32>} : memref<2x8x128xf32, #tpu.memory_space<vmem>>, vector<1x8x128xf32>,
    %c1_115 = arith.constant 1 : index
    %c0_116 = arith.constant 0 : index
    %c0_117 = arith.constant 0 : index
    %222 = vector.load %arg8[%c1_115, %c0_116, %c0_117] : memref<2x8x128xf32, #tpu.memory_space<vmem>>, vector<1x8x128xf32>
    %223 = vector.shape_cast %222 : vector<1x8x128xf32> to vector<8x128xf32>
    %224 = vector.shape_cast %218 : vector<8x128xf32> to vector<1x8x128xf32>
    tpu.vector_store %arg8[%c1_115, %c0_116, %c0_117], %224 {strides = array<i32>} : memref<2x8x128xf32, #tpu.memory_space<vmem>>, vector<1x8x128xf32>,
    %c3_i32 = arith.constant 3 : i32
    %c8_i32_118 = arith.constant 8 : i32
    %225 = arith.muli %arg1, %c8_i32_118 : i32
    %226 = arith.addi %225, %c3_i32 : i32
    %c8_i32_119 = arith.constant 8 : i32
    %227 = arith.cmpi slt, %226, %c8_i32_119 : i32
    %228 = arith.index_cast %c3_i32 : i32 to index
    %c0_120 = arith.constant 0 : index
    %c0_121 = arith.constant 0 : index
    %229 = vector.load %arg2[%228, %c0_120, %c0_121] : memref<8x8x128xf32, #tpu.memory_space<vmem>>, vector<1x8x128xf32>
    %230 = vector.shape_cast %229 : vector<1x8x128xf32> to vector<8x128xf32>
    %c0_122 = arith.constant 0 : index
    %c0_123 = arith.constant 0 : index
    %231 = vector.load %arg4[%c0_122, %c0_123] : memref<1x512xf32, #tpu.memory_space<vmem>>, vector<1x512xf32>
    %c0_124 = arith.constant 0 : index
    %c0_125 = arith.constant 0 : index
    %c0_126 = arith.constant 0 : index
    %232 = vector.load %arg8[%c0_124, %c0_125, %c0_126] : memref<2x8x128xf32, #tpu.memory_space<vmem>>, vector<1x8x128xf32>
    %233 = vector.shape_cast %232 : vector<1x8x128xf32> to vector<8x128xf32>
    %c0_127 = arith.constant 0 : index
    %c0_128 = arith.constant 0 : index
    %c0_129 = arith.constant 0 : index
    %234 = vector.load %arg7[%c0_127, %c0_128, %c0_129] : memref<2x8x128xf32, #tpu.memory_space<vmem>>, vector<1x8x128xf32>
    %235 = vector.shape_cast %234 : vector<1x8x128xf32> to vector<8x128xf32>
    %236 = tpu.concatenate %230, %233 in 1 : vector<8x128xf32>, vector<8x128xf32> -> vector<8x256xf32>
    %c0_130 = arith.constant 0 : index
    %c0_131 = arith.constant 0 : index
    %237 = vector.load %arg3[%c0_130, %c0_131] : memref<256x512xf32, #tpu.memory_space<vmem>>, vector<256x512xf32>
    %cst_132 = arith.constant dense<0.000000e+00> : vector<8x512xf32>
    %238 = tpu.matmul %236, %237, %cst_132 {dimension_numbers = #tpu.dot_dimension_numbers<[1], [0], [0], [1], [0, 0, 1, 1], [], []>} : vector<8x256xf32>, vector<256x512xf32>, vector<8x512xf32> -> vector<8x512xf32>
    %239 = vector.broadcast %231 : vector<1x512xf32> to vector<8x512xf32>
    %240 = arith.addf %238, %239 : vector<8x512xf32>
    %241 = vector.extract_strided_slice %240 {offsets = [0, 0], sizes = [8, 384], strides = [1, 1]} : vector<8x512xf32> to vector<8x384xf32>
    %242 = arith.negf %241 : vector<8x384xf32>
    %243 = math.exp %242 : vector<8x384xf32>
    %cst_133 = arith.constant 1.000000e+00 : f32
    %244 = vector.broadcast %cst_133 : f32 to vector<8x384xf32>
    %245 = arith.addf %244, %243 : vector<8x384xf32>
    %246 = arith.divf %244, %245 : vector<8x384xf32>
    %247 = vector.extract_strided_slice %246 {offsets = [0, 0], sizes = [8, 128], strides = [1, 1]} : vector<8x384xf32> to vector<8x128xf32>
    %248 = vector.extract_strided_slice %246 {offsets = [0, 128], sizes = [8, 128], strides = [1, 1]} : vector<8x384xf32> to vector<8x128xf32>
    %249 = vector.extract_strided_slice %246 {offsets = [0, 256], sizes = [8, 128], strides = [1, 1]} : vector<8x384xf32> to vector<8x128xf32>
    %250 = vector.extract_strided_slice %240 {offsets = [0, 384], sizes = [8, 128], strides = [1, 1]} : vector<8x512xf32> to vector<8x128xf32>
    %251 = math.tanh %250 : vector<8x128xf32>
    %252 = arith.mulf %235, %247 : vector<8x128xf32>
    %253 = arith.mulf %248, %251 : vector<8x128xf32>
    %254 = arith.addf %252, %253 : vector<8x128xf32>
    %255 = math.tanh %254 : vector<8x128xf32>
    %256 = arith.mulf %249, %255 : vector<8x128xf32>
    %257 = arith.select %227, %254, %235 : vector<8x128xf32>
    %258 = arith.select %227, %256, %233 : vector<8x128xf32>
    %c0_134 = arith.constant 0 : index
    %c0_135 = arith.constant 0 : index
    %c0_136 = arith.constant 0 : index
    %259 = vector.load %arg7[%c0_134, %c0_135, %c0_136] : memref<2x8x128xf32, #tpu.memory_space<vmem>>, vector<1x8x128xf32>
    %260 = vector.shape_cast %259 : vector<1x8x128xf32> to vector<8x128xf32>
    %261 = vector.shape_cast %257 : vector<8x128xf32> to vector<1x8x128xf32>
    tpu.vector_store %arg7[%c0_134, %c0_135, %c0_136], %261 {strides = array<i32>} : memref<2x8x128xf32, #tpu.memory_space<vmem>>, vector<1x8x128xf32>,
    %c0_137 = arith.constant 0 : index
    %c0_138 = arith.constant 0 : index
    %c0_139 = arith.constant 0 : index
    %262 = vector.load %arg8[%c0_137, %c0_138, %c0_139] : memref<2x8x128xf32, #tpu.memory_space<vmem>>, vector<1x8x128xf32>
    %263 = vector.shape_cast %262 : vector<1x8x128xf32> to vector<8x128xf32>
    %264 = vector.shape_cast %258 : vector<8x128xf32> to vector<1x8x128xf32>
    tpu.vector_store %arg8[%c0_137, %c0_138, %c0_139], %264 {strides = array<i32>} : memref<2x8x128xf32, #tpu.memory_space<vmem>>, vector<1x8x128xf32>,
    %c0_140 = arith.constant 0 : index
    %c0_141 = arith.constant 0 : index
    %265 = vector.load %arg6[%c0_140, %c0_141] : memref<1x512xf32, #tpu.memory_space<vmem>>, vector<1x512xf32>
    %c1_142 = arith.constant 1 : index
    %c0_143 = arith.constant 0 : index
    %c0_144 = arith.constant 0 : index
    %266 = vector.load %arg8[%c1_142, %c0_143, %c0_144] : memref<2x8x128xf32, #tpu.memory_space<vmem>>, vector<1x8x128xf32>
    %267 = vector.shape_cast %266 : vector<1x8x128xf32> to vector<8x128xf32>
    %c1_145 = arith.constant 1 : index
    %c0_146 = arith.constant 0 : index
    %c0_147 = arith.constant 0 : index
    %268 = vector.load %arg7[%c1_145, %c0_146, %c0_147] : memref<2x8x128xf32, #tpu.memory_space<vmem>>, vector<1x8x128xf32>
    %269 = vector.shape_cast %268 : vector<1x8x128xf32> to vector<8x128xf32>
    %270 = tpu.concatenate %258, %267 in 1 : vector<8x128xf32>, vector<8x128xf32> -> vector<8x256xf32>
    %c0_148 = arith.constant 0 : index
    %c0_149 = arith.constant 0 : index
    %271 = vector.load %arg5[%c0_148, %c0_149] : memref<256x512xf32, #tpu.memory_space<vmem>>, vector<256x512xf32>
    %cst_150 = arith.constant dense<0.000000e+00> : vector<8x512xf32>
    %272 = tpu.matmul %270, %271, %cst_150 {dimension_numbers = #tpu.dot_dimension_numbers<[1], [0], [0], [1], [0, 0, 1, 1], [], []>} : vector<8x256xf32>, vector<256x512xf32>, vector<8x512xf32> -> vector<8x512xf32>
    %273 = vector.broadcast %265 : vector<1x512xf32> to vector<8x512xf32>
    %274 = arith.addf %272, %273 : vector<8x512xf32>
    %275 = vector.extract_strided_slice %274 {offsets = [0, 0], sizes = [8, 384], strides = [1, 1]} : vector<8x512xf32> to vector<8x384xf32>
    %276 = arith.negf %275 : vector<8x384xf32>
    %277 = math.exp %276 : vector<8x384xf32>
    %cst_151 = arith.constant 1.000000e+00 : f32
    %278 = vector.broadcast %cst_151 : f32 to vector<8x384xf32>
    %279 = arith.addf %278, %277 : vector<8x384xf32>
    %280 = arith.divf %278, %279 : vector<8x384xf32>
    %281 = vector.extract_strided_slice %280 {offsets = [0, 0], sizes = [8, 128], strides = [1, 1]} : vector<8x384xf32> to vector<8x128xf32>
    %282 = vector.extract_strided_slice %280 {offsets = [0, 128], sizes = [8, 128], strides = [1, 1]} : vector<8x384xf32> to vector<8x128xf32>
    %283 = vector.extract_strided_slice %280 {offsets = [0, 256], sizes = [8, 128], strides = [1, 1]} : vector<8x384xf32> to vector<8x128xf32>
    %284 = vector.extract_strided_slice %274 {offsets = [0, 384], sizes = [8, 128], strides = [1, 1]} : vector<8x512xf32> to vector<8x128xf32>
    %285 = math.tanh %284 : vector<8x128xf32>
    %286 = arith.mulf %269, %281 : vector<8x128xf32>
    %287 = arith.mulf %282, %285 : vector<8x128xf32>
    %288 = arith.addf %286, %287 : vector<8x128xf32>
    %289 = math.tanh %288 : vector<8x128xf32>
    %290 = arith.mulf %283, %289 : vector<8x128xf32>
    %291 = arith.select %227, %288, %269 : vector<8x128xf32>
    %292 = arith.select %227, %290, %267 : vector<8x128xf32>
    %c1_152 = arith.constant 1 : index
    %c0_153 = arith.constant 0 : index
    %c0_154 = arith.constant 0 : index
    %293 = vector.load %arg7[%c1_152, %c0_153, %c0_154] : memref<2x8x128xf32, #tpu.memory_space<vmem>>, vector<1x8x128xf32>
    %294 = vector.shape_cast %293 : vector<1x8x128xf32> to vector<8x128xf32>
    %295 = vector.shape_cast %291 : vector<8x128xf32> to vector<1x8x128xf32>
    tpu.vector_store %arg7[%c1_152, %c0_153, %c0_154], %295 {strides = array<i32>} : memref<2x8x128xf32, #tpu.memory_space<vmem>>, vector<1x8x128xf32>,
    %c1_155 = arith.constant 1 : index
    %c0_156 = arith.constant 0 : index
    %c0_157 = arith.constant 0 : index
    %296 = vector.load %arg8[%c1_155, %c0_156, %c0_157] : memref<2x8x128xf32, #tpu.memory_space<vmem>>, vector<1x8x128xf32>
    %297 = vector.shape_cast %296 : vector<1x8x128xf32> to vector<8x128xf32>
    %298 = vector.shape_cast %292 : vector<8x128xf32> to vector<1x8x128xf32>
    tpu.vector_store %arg8[%c1_155, %c0_156, %c0_157], %298 {strides = array<i32>} : memref<2x8x128xf32, #tpu.memory_space<vmem>>, vector<1x8x128xf32>,
    %c4_i32 = arith.constant 4 : i32
    %c8_i32_158 = arith.constant 8 : i32
    %299 = arith.muli %arg1, %c8_i32_158 : i32
    %300 = arith.addi %299, %c4_i32 : i32
    %c8_i32_159 = arith.constant 8 : i32
    %301 = arith.cmpi slt, %300, %c8_i32_159 : i32
    %302 = arith.index_cast %c4_i32 : i32 to index
    %c0_160 = arith.constant 0 : index
    %c0_161 = arith.constant 0 : index
    %303 = vector.load %arg2[%302, %c0_160, %c0_161] : memref<8x8x128xf32, #tpu.memory_space<vmem>>, vector<1x8x128xf32>
    %304 = vector.shape_cast %303 : vector<1x8x128xf32> to vector<8x128xf32>
    %c0_162 = arith.constant 0 : index
    %c0_163 = arith.constant 0 : index
    %305 = vector.load %arg4[%c0_162, %c0_163] : memref<1x512xf32, #tpu.memory_space<vmem>>, vector<1x512xf32>
    %c0_164 = arith.constant 0 : index
    %c0_165 = arith.constant 0 : index
    %c0_166 = arith.constant 0 : index
    %306 = vector.load %arg8[%c0_164, %c0_165, %c0_166] : memref<2x8x128xf32, #tpu.memory_space<vmem>>, vector<1x8x128xf32>
    %307 = vector.shape_cast %306 : vector<1x8x128xf32> to vector<8x128xf32>
    %c0_167 = arith.constant 0 : index
    %c0_168 = arith.constant 0 : index
    %c0_169 = arith.constant 0 : index
    %308 = vector.load %arg7[%c0_167, %c0_168, %c0_169] : memref<2x8x128xf32, #tpu.memory_space<vmem>>, vector<1x8x128xf32>
    %309 = vector.shape_cast %308 : vector<1x8x128xf32> to vector<8x128xf32>
    %310 = tpu.concatenate %304, %307 in 1 : vector<8x128xf32>, vector<8x128xf32> -> vector<8x256xf32>
    %c0_170 = arith.constant 0 : index
    %c0_171 = arith.constant 0 : index
    %311 = vector.load %arg3[%c0_170, %c0_171] : memref<256x512xf32, #tpu.memory_space<vmem>>, vector<256x512xf32>
    %cst_172 = arith.constant dense<0.000000e+00> : vector<8x512xf32>
    %312 = tpu.matmul %310, %311, %cst_172 {dimension_numbers = #tpu.dot_dimension_numbers<[1], [0], [0], [1], [0, 0, 1, 1], [], []>} : vector<8x256xf32>, vector<256x512xf32>, vector<8x512xf32> -> vector<8x512xf32>
    %313 = vector.broadcast %305 : vector<1x512xf32> to vector<8x512xf32>
    %314 = arith.addf %312, %313 : vector<8x512xf32>
    %315 = vector.extract_strided_slice %314 {offsets = [0, 0], sizes = [8, 384], strides = [1, 1]} : vector<8x512xf32> to vector<8x384xf32>
    %316 = arith.negf %315 : vector<8x384xf32>
    %317 = math.exp %316 : vector<8x384xf32>
    %cst_173 = arith.constant 1.000000e+00 : f32
    %318 = vector.broadcast %cst_173 : f32 to vector<8x384xf32>
    %319 = arith.addf %318, %317 : vector<8x384xf32>
    %320 = arith.divf %318, %319 : vector<8x384xf32>
    %321 = vector.extract_strided_slice %320 {offsets = [0, 0], sizes = [8, 128], strides = [1, 1]} : vector<8x384xf32> to vector<8x128xf32>
    %322 = vector.extract_strided_slice %320 {offsets = [0, 128], sizes = [8, 128], strides = [1, 1]} : vector<8x384xf32> to vector<8x128xf32>
    %323 = vector.extract_strided_slice %320 {offsets = [0, 256], sizes = [8, 128], strides = [1, 1]} : vector<8x384xf32> to vector<8x128xf32>
    %324 = vector.extract_strided_slice %314 {offsets = [0, 384], sizes = [8, 128], strides = [1, 1]} : vector<8x512xf32> to vector<8x128xf32>
    %325 = math.tanh %324 : vector<8x128xf32>
    %326 = arith.mulf %309, %321 : vector<8x128xf32>
    %327 = arith.mulf %322, %325 : vector<8x128xf32>
    %328 = arith.addf %326, %327 : vector<8x128xf32>
    %329 = math.tanh %328 : vector<8x128xf32>
    %330 = arith.mulf %323, %329 : vector<8x128xf32>
    %331 = arith.select %301, %328, %309 : vector<8x128xf32>
    %332 = arith.select %301, %330, %307 : vector<8x128xf32>
    %c0_174 = arith.constant 0 : index
    %c0_175 = arith.constant 0 : index
    %c0_176 = arith.constant 0 : index
    %333 = vector.load %arg7[%c0_174, %c0_175, %c0_176] : memref<2x8x128xf32, #tpu.memory_space<vmem>>, vector<1x8x128xf32>
    %334 = vector.shape_cast %333 : vector<1x8x128xf32> to vector<8x128xf32>
    %335 = vector.shape_cast %331 : vector<8x128xf32> to vector<1x8x128xf32>
    tpu.vector_store %arg7[%c0_174, %c0_175, %c0_176], %335 {strides = array<i32>} : memref<2x8x128xf32, #tpu.memory_space<vmem>>, vector<1x8x128xf32>,
    %c0_177 = arith.constant 0 : index
    %c0_178 = arith.constant 0 : index
    %c0_179 = arith.constant 0 : index
    %336 = vector.load %arg8[%c0_177, %c0_178, %c0_179] : memref<2x8x128xf32, #tpu.memory_space<vmem>>, vector<1x8x128xf32>
    %337 = vector.shape_cast %336 : vector<1x8x128xf32> to vector<8x128xf32>
    %338 = vector.shape_cast %332 : vector<8x128xf32> to vector<1x8x128xf32>
    tpu.vector_store %arg8[%c0_177, %c0_178, %c0_179], %338 {strides = array<i32>} : memref<2x8x128xf32, #tpu.memory_space<vmem>>, vector<1x8x128xf32>,
    %c0_180 = arith.constant 0 : index
    %c0_181 = arith.constant 0 : index
    %339 = vector.load %arg6[%c0_180, %c0_181] : memref<1x512xf32, #tpu.memory_space<vmem>>, vector<1x512xf32>
    %c1_182 = arith.constant 1 : index
    %c0_183 = arith.constant 0 : index
    %c0_184 = arith.constant 0 : index
    %340 = vector.load %arg8[%c1_182, %c0_183, %c0_184] : memref<2x8x128xf32, #tpu.memory_space<vmem>>, vector<1x8x128xf32>
    %341 = vector.shape_cast %340 : vector<1x8x128xf32> to vector<8x128xf32>
    %c1_185 = arith.constant 1 : index
    %c0_186 = arith.constant 0 : index
    %c0_187 = arith.constant 0 : index
    %342 = vector.load %arg7[%c1_185, %c0_186, %c0_187] : memref<2x8x128xf32, #tpu.memory_space<vmem>>, vector<1x8x128xf32>
    %343 = vector.shape_cast %342 : vector<1x8x128xf32> to vector<8x128xf32>
    %344 = tpu.concatenate %332, %341 in 1 : vector<8x128xf32>, vector<8x128xf32> -> vector<8x256xf32>
    %c0_188 = arith.constant 0 : index
    %c0_189 = arith.constant 0 : index
    %345 = vector.load %arg5[%c0_188, %c0_189] : memref<256x512xf32, #tpu.memory_space<vmem>>, vector<256x512xf32>
    %cst_190 = arith.constant dense<0.000000e+00> : vector<8x512xf32>
    %346 = tpu.matmul %344, %345, %cst_190 {dimension_numbers = #tpu.dot_dimension_numbers<[1], [0], [0], [1], [0, 0, 1, 1], [], []>} : vector<8x256xf32>, vector<256x512xf32>, vector<8x512xf32> -> vector<8x512xf32>
    %347 = vector.broadcast %339 : vector<1x512xf32> to vector<8x512xf32>
    %348 = arith.addf %346, %347 : vector<8x512xf32>
    %349 = vector.extract_strided_slice %348 {offsets = [0, 0], sizes = [8, 384], strides = [1, 1]} : vector<8x512xf32> to vector<8x384xf32>
    %350 = arith.negf %349 : vector<8x384xf32>
    %351 = math.exp %350 : vector<8x384xf32>
    %cst_191 = arith.constant 1.000000e+00 : f32
    %352 = vector.broadcast %cst_191 : f32 to vector<8x384xf32>
    %353 = arith.addf %352, %351 : vector<8x384xf32>
    %354 = arith.divf %352, %353 : vector<8x384xf32>
    %355 = vector.extract_strided_slice %354 {offsets = [0, 0], sizes = [8, 128], strides = [1, 1]} : vector<8x384xf32> to vector<8x128xf32>
    %356 = vector.extract_strided_slice %354 {offsets = [0, 128], sizes = [8, 128], strides = [1, 1]} : vector<8x384xf32> to vector<8x128xf32>
    %357 = vector.extract_strided_slice %354 {offsets = [0, 256], sizes = [8, 128], strides = [1, 1]} : vector<8x384xf32> to vector<8x128xf32>
    %358 = vector.extract_strided_slice %348 {offsets = [0, 384], sizes = [8, 128], strides = [1, 1]} : vector<8x512xf32> to vector<8x128xf32>
    %359 = math.tanh %358 : vector<8x128xf32>
    %360 = arith.mulf %343, %355 : vector<8x128xf32>
    %361 = arith.mulf %356, %359 : vector<8x128xf32>
    %362 = arith.addf %360, %361 : vector<8x128xf32>
    %363 = math.tanh %362 : vector<8x128xf32>
    %364 = arith.mulf %357, %363 : vector<8x128xf32>
    %365 = arith.select %301, %362, %343 : vector<8x128xf32>
    %366 = arith.select %301, %364, %341 : vector<8x128xf32>
    %c1_192 = arith.constant 1 : index
    %c0_193 = arith.constant 0 : index
    %c0_194 = arith.constant 0 : index
    %367 = vector.load %arg7[%c1_192, %c0_193, %c0_194] : memref<2x8x128xf32, #tpu.memory_space<vmem>>, vector<1x8x128xf32>
    %368 = vector.shape_cast %367 : vector<1x8x128xf32> to vector<8x128xf32>
    %369 = vector.shape_cast %365 : vector<8x128xf32> to vector<1x8x128xf32>
    tpu.vector_store %arg7[%c1_192, %c0_193, %c0_194], %369 {strides = array<i32>} : memref<2x8x128xf32, #tpu.memory_space<vmem>>, vector<1x8x128xf32>,
    %c1_195 = arith.constant 1 : index
    %c0_196 = arith.constant 0 : index
    %c0_197 = arith.constant 0 : index
    %370 = vector.load %arg8[%c1_195, %c0_196, %c0_197] : memref<2x8x128xf32, #tpu.memory_space<vmem>>, vector<1x8x128xf32>
    %371 = vector.shape_cast %370 : vector<1x8x128xf32> to vector<8x128xf32>
    %372 = vector.shape_cast %366 : vector<8x128xf32> to vector<1x8x128xf32>
    tpu.vector_store %arg8[%c1_195, %c0_196, %c0_197], %372 {strides = array<i32>} : memref<2x8x128xf32, #tpu.memory_space<vmem>>, vector<1x8x128xf32>,
    %c5_i32 = arith.constant 5 : i32
    %c8_i32_198 = arith.constant 8 : i32
    %373 = arith.muli %arg1, %c8_i32_198 : i32
    %374 = arith.addi %373, %c5_i32 : i32
    %c8_i32_199 = arith.constant 8 : i32
    %375 = arith.cmpi slt, %374, %c8_i32_199 : i32
    %376 = arith.index_cast %c5_i32 : i32 to index
    %c0_200 = arith.constant 0 : index
    %c0_201 = arith.constant 0 : index
    %377 = vector.load %arg2[%376, %c0_200, %c0_201] : memref<8x8x128xf32, #tpu.memory_space<vmem>>, vector<1x8x128xf32>
    %378 = vector.shape_cast %377 : vector<1x8x128xf32> to vector<8x128xf32>
    %c0_202 = arith.constant 0 : index
    %c0_203 = arith.constant 0 : index
    %379 = vector.load %arg4[%c0_202, %c0_203] : memref<1x512xf32, #tpu.memory_space<vmem>>, vector<1x512xf32>
    %c0_204 = arith.constant 0 : index
    %c0_205 = arith.constant 0 : index
    %c0_206 = arith.constant 0 : index
    %380 = vector.load %arg8[%c0_204, %c0_205, %c0_206] : memref<2x8x128xf32, #tpu.memory_space<vmem>>, vector<1x8x128xf32>
    %381 = vector.shape_cast %380 : vector<1x8x128xf32> to vector<8x128xf32>
    %c0_207 = arith.constant 0 : index
    %c0_208 = arith.constant 0 : index
    %c0_209 = arith.constant 0 : index
    %382 = vector.load %arg7[%c0_207, %c0_208, %c0_209] : memref<2x8x128xf32, #tpu.memory_space<vmem>>, vector<1x8x128xf32>
    %383 = vector.shape_cast %382 : vector<1x8x128xf32> to vector<8x128xf32>
    %384 = tpu.concatenate %378, %381 in 1 : vector<8x128xf32>, vector<8x128xf32> -> vector<8x256xf32>
    %c0_210 = arith.constant 0 : index
    %c0_211 = arith.constant 0 : index
    %385 = vector.load %arg3[%c0_210, %c0_211] : memref<256x512xf32, #tpu.memory_space<vmem>>, vector<256x512xf32>
    %cst_212 = arith.constant dense<0.000000e+00> : vector<8x512xf32>
    %386 = tpu.matmul %384, %385, %cst_212 {dimension_numbers = #tpu.dot_dimension_numbers<[1], [0], [0], [1], [0, 0, 1, 1], [], []>} : vector<8x256xf32>, vector<256x512xf32>, vector<8x512xf32> -> vector<8x512xf32>
    %387 = vector.broadcast %379 : vector<1x512xf32> to vector<8x512xf32>
    %388 = arith.addf %386, %387 : vector<8x512xf32>
    %389 = vector.extract_strided_slice %388 {offsets = [0, 0], sizes = [8, 384], strides = [1, 1]} : vector<8x512xf32> to vector<8x384xf32>
    %390 = arith.negf %389 : vector<8x384xf32>
    %391 = math.exp %390 : vector<8x384xf32>
    %cst_213 = arith.constant 1.000000e+00 : f32
    %392 = vector.broadcast %cst_213 : f32 to vector<8x384xf32>
    %393 = arith.addf %392, %391 : vector<8x384xf32>
    %394 = arith.divf %392, %393 : vector<8x384xf32>
    %395 = vector.extract_strided_slice %394 {offsets = [0, 0], sizes = [8, 128], strides = [1, 1]} : vector<8x384xf32> to vector<8x128xf32>
    %396 = vector.extract_strided_slice %394 {offsets = [0, 128], sizes = [8, 128], strides = [1, 1]} : vector<8x384xf32> to vector<8x128xf32>
    %397 = vector.extract_strided_slice %394 {offsets = [0, 256], sizes = [8, 128], strides = [1, 1]} : vector<8x384xf32> to vector<8x128xf32>
    %398 = vector.extract_strided_slice %388 {offsets = [0, 384], sizes = [8, 128], strides = [1, 1]} : vector<8x512xf32> to vector<8x128xf32>
    %399 = math.tanh %398 : vector<8x128xf32>
    %400 = arith.mulf %383, %395 : vector<8x128xf32>
    %401 = arith.mulf %396, %399 : vector<8x128xf32>
    %402 = arith.addf %400, %401 : vector<8x128xf32>
    %403 = math.tanh %402 : vector<8x128xf32>
    %404 = arith.mulf %397, %403 : vector<8x128xf32>
    %405 = arith.select %375, %402, %383 : vector<8x128xf32>
    %406 = arith.select %375, %404, %381 : vector<8x128xf32>
    %c0_214 = arith.constant 0 : index
    %c0_215 = arith.constant 0 : index
    %c0_216 = arith.constant 0 : index
    %407 = vector.load %arg7[%c0_214, %c0_215, %c0_216] : memref<2x8x128xf32, #tpu.memory_space<vmem>>, vector<1x8x128xf32>
    %408 = vector.shape_cast %407 : vector<1x8x128xf32> to vector<8x128xf32>
    %409 = vector.shape_cast %405 : vector<8x128xf32> to vector<1x8x128xf32>
    tpu.vector_store %arg7[%c0_214, %c0_215, %c0_216], %409 {strides = array<i32>} : memref<2x8x128xf32, #tpu.memory_space<vmem>>, vector<1x8x128xf32>,
    %c0_217 = arith.constant 0 : index
    %c0_218 = arith.constant 0 : index
    %c0_219 = arith.constant 0 : index
    %410 = vector.load %arg8[%c0_217, %c0_218, %c0_219] : memref<2x8x128xf32, #tpu.memory_space<vmem>>, vector<1x8x128xf32>
    %411 = vector.shape_cast %410 : vector<1x8x128xf32> to vector<8x128xf32>
    %412 = vector.shape_cast %406 : vector<8x128xf32> to vector<1x8x128xf32>
    tpu.vector_store %arg8[%c0_217, %c0_218, %c0_219], %412 {strides = array<i32>} : memref<2x8x128xf32, #tpu.memory_space<vmem>>, vector<1x8x128xf32>,
    %c0_220 = arith.constant 0 : index
    %c0_221 = arith.constant 0 : index
    %413 = vector.load %arg6[%c0_220, %c0_221] : memref<1x512xf32, #tpu.memory_space<vmem>>, vector<1x512xf32>
    %c1_222 = arith.constant 1 : index
    %c0_223 = arith.constant 0 : index
    %c0_224 = arith.constant 0 : index
    %414 = vector.load %arg8[%c1_222, %c0_223, %c0_224] : memref<2x8x128xf32, #tpu.memory_space<vmem>>, vector<1x8x128xf32>
    %415 = vector.shape_cast %414 : vector<1x8x128xf32> to vector<8x128xf32>
    %c1_225 = arith.constant 1 : index
    %c0_226 = arith.constant 0 : index
    %c0_227 = arith.constant 0 : index
    %416 = vector.load %arg7[%c1_225, %c0_226, %c0_227] : memref<2x8x128xf32, #tpu.memory_space<vmem>>, vector<1x8x128xf32>
    %417 = vector.shape_cast %416 : vector<1x8x128xf32> to vector<8x128xf32>
    %418 = tpu.concatenate %406, %415 in 1 : vector<8x128xf32>, vector<8x128xf32> -> vector<8x256xf32>
    %c0_228 = arith.constant 0 : index
    %c0_229 = arith.constant 0 : index
    %419 = vector.load %arg5[%c0_228, %c0_229] : memref<256x512xf32, #tpu.memory_space<vmem>>, vector<256x512xf32>
    %cst_230 = arith.constant dense<0.000000e+00> : vector<8x512xf32>
    %420 = tpu.matmul %418, %419, %cst_230 {dimension_numbers = #tpu.dot_dimension_numbers<[1], [0], [0], [1], [0, 0, 1, 1], [], []>} : vector<8x256xf32>, vector<256x512xf32>, vector<8x512xf32> -> vector<8x512xf32>
    %421 = vector.broadcast %413 : vector<1x512xf32> to vector<8x512xf32>
    %422 = arith.addf %420, %421 : vector<8x512xf32>
    %423 = vector.extract_strided_slice %422 {offsets = [0, 0], sizes = [8, 384], strides = [1, 1]} : vector<8x512xf32> to vector<8x384xf32>
    %424 = arith.negf %423 : vector<8x384xf32>
    %425 = math.exp %424 : vector<8x384xf32>
    %cst_231 = arith.constant 1.000000e+00 : f32
    %426 = vector.broadcast %cst_231 : f32 to vector<8x384xf32>
    %427 = arith.addf %426, %425 : vector<8x384xf32>
    %428 = arith.divf %426, %427 : vector<8x384xf32>
    %429 = vector.extract_strided_slice %428 {offsets = [0, 0], sizes = [8, 128], strides = [1, 1]} : vector<8x384xf32> to vector<8x128xf32>
    %430 = vector.extract_strided_slice %428 {offsets = [0, 128], sizes = [8, 128], strides = [1, 1]} : vector<8x384xf32> to vector<8x128xf32>
    %431 = vector.extract_strided_slice %428 {offsets = [0, 256], sizes = [8, 128], strides = [1, 1]} : vector<8x384xf32> to vector<8x128xf32>
    %432 = vector.extract_strided_slice %422 {offsets = [0, 384], sizes = [8, 128], strides = [1, 1]} : vector<8x512xf32> to vector<8x128xf32>
    %433 = math.tanh %432 : vector<8x128xf32>
    %434 = arith.mulf %417, %429 : vector<8x128xf32>
    %435 = arith.mulf %430, %433 : vector<8x128xf32>
    %436 = arith.addf %434, %435 : vector<8x128xf32>
    %437 = math.tanh %436 : vector<8x128xf32>
    %438 = arith.mulf %431, %437 : vector<8x128xf32>
    %439 = arith.select %375, %436, %417 : vector<8x128xf32>
    %440 = arith.select %375, %438, %415 : vector<8x128xf32>
    %c1_232 = arith.constant 1 : index
    %c0_233 = arith.constant 0 : index
    %c0_234 = arith.constant 0 : index
    %441 = vector.load %arg7[%c1_232, %c0_233, %c0_234] : memref<2x8x128xf32, #tpu.memory_space<vmem>>, vector<1x8x128xf32>
    %442 = vector.shape_cast %441 : vector<1x8x128xf32> to vector<8x128xf32>
    %443 = vector.shape_cast %439 : vector<8x128xf32> to vector<1x8x128xf32>
    tpu.vector_store %arg7[%c1_232, %c0_233, %c0_234], %443 {strides = array<i32>} : memref<2x8x128xf32, #tpu.memory_space<vmem>>, vector<1x8x128xf32>,
    %c1_235 = arith.constant 1 : index
    %c0_236 = arith.constant 0 : index
    %c0_237 = arith.constant 0 : index
    %444 = vector.load %arg8[%c1_235, %c0_236, %c0_237] : memref<2x8x128xf32, #tpu.memory_space<vmem>>, vector<1x8x128xf32>
    %445 = vector.shape_cast %444 : vector<1x8x128xf32> to vector<8x128xf32>
    %446 = vector.shape_cast %440 : vector<8x128xf32> to vector<1x8x128xf32>
    tpu.vector_store %arg8[%c1_235, %c0_236, %c0_237], %446 {strides = array<i32>} : memref<2x8x128xf32, #tpu.memory_space<vmem>>, vector<1x8x128xf32>,
    %c6_i32 = arith.constant 6 : i32
    %c8_i32_238 = arith.constant 8 : i32
    %447 = arith.muli %arg1, %c8_i32_238 : i32
    %448 = arith.addi %447, %c6_i32 : i32
    %c8_i32_239 = arith.constant 8 : i32
    %449 = arith.cmpi slt, %448, %c8_i32_239 : i32
    %450 = arith.index_cast %c6_i32 : i32 to index
    %c0_240 = arith.constant 0 : index
    %c0_241 = arith.constant 0 : index
    %451 = vector.load %arg2[%450, %c0_240, %c0_241] : memref<8x8x128xf32, #tpu.memory_space<vmem>>, vector<1x8x128xf32>
    %452 = vector.shape_cast %451 : vector<1x8x128xf32> to vector<8x128xf32>
    %c0_242 = arith.constant 0 : index
    %c0_243 = arith.constant 0 : index
    %453 = vector.load %arg4[%c0_242, %c0_243] : memref<1x512xf32, #tpu.memory_space<vmem>>, vector<1x512xf32>
    %c0_244 = arith.constant 0 : index
    %c0_245 = arith.constant 0 : index
    %c0_246 = arith.constant 0 : index
    %454 = vector.load %arg8[%c0_244, %c0_245, %c0_246] : memref<2x8x128xf32, #tpu.memory_space<vmem>>, vector<1x8x128xf32>
    %455 = vector.shape_cast %454 : vector<1x8x128xf32> to vector<8x128xf32>
    %c0_247 = arith.constant 0 : index
    %c0_248 = arith.constant 0 : index
    %c0_249 = arith.constant 0 : index
    %456 = vector.load %arg7[%c0_247, %c0_248, %c0_249] : memref<2x8x128xf32, #tpu.memory_space<vmem>>, vector<1x8x128xf32>
    %457 = vector.shape_cast %456 : vector<1x8x128xf32> to vector<8x128xf32>
    %458 = tpu.concatenate %452, %455 in 1 : vector<8x128xf32>, vector<8x128xf32> -> vector<8x256xf32>
    %c0_250 = arith.constant 0 : index
    %c0_251 = arith.constant 0 : index
    %459 = vector.load %arg3[%c0_250, %c0_251] : memref<256x512xf32, #tpu.memory_space<vmem>>, vector<256x512xf32>
    %cst_252 = arith.constant dense<0.000000e+00> : vector<8x512xf32>
    %460 = tpu.matmul %458, %459, %cst_252 {dimension_numbers = #tpu.dot_dimension_numbers<[1], [0], [0], [1], [0, 0, 1, 1], [], []>} : vector<8x256xf32>, vector<256x512xf32>, vector<8x512xf32> -> vector<8x512xf32>
    %461 = vector.broadcast %453 : vector<1x512xf32> to vector<8x512xf32>
    %462 = arith.addf %460, %461 : vector<8x512xf32>
    %463 = vector.extract_strided_slice %462 {offsets = [0, 0], sizes = [8, 384], strides = [1, 1]} : vector<8x512xf32> to vector<8x384xf32>
    %464 = arith.negf %463 : vector<8x384xf32>
    %465 = math.exp %464 : vector<8x384xf32>
    %cst_253 = arith.constant 1.000000e+00 : f32
    %466 = vector.broadcast %cst_253 : f32 to vector<8x384xf32>
    %467 = arith.addf %466, %465 : vector<8x384xf32>
    %468 = arith.divf %466, %467 : vector<8x384xf32>
    %469 = vector.extract_strided_slice %468 {offsets = [0, 0], sizes = [8, 128], strides = [1, 1]} : vector<8x384xf32> to vector<8x128xf32>
    %470 = vector.extract_strided_slice %468 {offsets = [0, 128], sizes = [8, 128], strides = [1, 1]} : vector<8x384xf32> to vector<8x128xf32>
    %471 = vector.extract_strided_slice %468 {offsets = [0, 256], sizes = [8, 128], strides = [1, 1]} : vector<8x384xf32> to vector<8x128xf32>
    %472 = vector.extract_strided_slice %462 {offsets = [0, 384], sizes = [8, 128], strides = [1, 1]} : vector<8x512xf32> to vector<8x128xf32>
    %473 = math.tanh %472 : vector<8x128xf32>
    %474 = arith.mulf %457, %469 : vector<8x128xf32>
    %475 = arith.mulf %470, %473 : vector<8x128xf32>
    %476 = arith.addf %474, %475 : vector<8x128xf32>
    %477 = math.tanh %476 : vector<8x128xf32>
    %478 = arith.mulf %471, %477 : vector<8x128xf32>
    %479 = arith.select %449, %476, %457 : vector<8x128xf32>
    %480 = arith.select %449, %478, %455 : vector<8x128xf32>
    %c0_254 = arith.constant 0 : index
    %c0_255 = arith.constant 0 : index
    %c0_256 = arith.constant 0 : index
    %481 = vector.load %arg7[%c0_254, %c0_255, %c0_256] : memref<2x8x128xf32, #tpu.memory_space<vmem>>, vector<1x8x128xf32>
    %482 = vector.shape_cast %481 : vector<1x8x128xf32> to vector<8x128xf32>
    %483 = vector.shape_cast %479 : vector<8x128xf32> to vector<1x8x128xf32>
    tpu.vector_store %arg7[%c0_254, %c0_255, %c0_256], %483 {strides = array<i32>} : memref<2x8x128xf32, #tpu.memory_space<vmem>>, vector<1x8x128xf32>,
    %c0_257 = arith.constant 0 : index
    %c0_258 = arith.constant 0 : index
    %c0_259 = arith.constant 0 : index
    %484 = vector.load %arg8[%c0_257, %c0_258, %c0_259] : memref<2x8x128xf32, #tpu.memory_space<vmem>>, vector<1x8x128xf32>
    %485 = vector.shape_cast %484 : vector<1x8x128xf32> to vector<8x128xf32>
    %486 = vector.shape_cast %480 : vector<8x128xf32> to vector<1x8x128xf32>
    tpu.vector_store %arg8[%c0_257, %c0_258, %c0_259], %486 {strides = array<i32>} : memref<2x8x128xf32, #tpu.memory_space<vmem>>, vector<1x8x128xf32>,
    %c0_260 = arith.constant 0 : index
    %c0_261 = arith.constant 0 : index
    %487 = vector.load %arg6[%c0_260, %c0_261] : memref<1x512xf32, #tpu.memory_space<vmem>>, vector<1x512xf32>
    %c1_262 = arith.constant 1 : index
    %c0_263 = arith.constant 0 : index
    %c0_264 = arith.constant 0 : index
    %488 = vector.load %arg8[%c1_262, %c0_263, %c0_264] : memref<2x8x128xf32, #tpu.memory_space<vmem>>, vector<1x8x128xf32>
    %489 = vector.shape_cast %488 : vector<1x8x128xf32> to vector<8x128xf32>
    %c1_265 = arith.constant 1 : index
    %c0_266 = arith.constant 0 : index
    %c0_267 = arith.constant 0 : index
    %490 = vector.load %arg7[%c1_265, %c0_266, %c0_267] : memref<2x8x128xf32, #tpu.memory_space<vmem>>, vector<1x8x128xf32>
    %491 = vector.shape_cast %490 : vector<1x8x128xf32> to vector<8x128xf32>
    %492 = tpu.concatenate %480, %489 in 1 : vector<8x128xf32>, vector<8x128xf32> -> vector<8x256xf32>
    %c0_268 = arith.constant 0 : index
    %c0_269 = arith.constant 0 : index
    %493 = vector.load %arg5[%c0_268, %c0_269] : memref<256x512xf32, #tpu.memory_space<vmem>>, vector<256x512xf32>
    %cst_270 = arith.constant dense<0.000000e+00> : vector<8x512xf32>
    %494 = tpu.matmul %492, %493, %cst_270 {dimension_numbers = #tpu.dot_dimension_numbers<[1], [0], [0], [1], [0, 0, 1, 1], [], []>} : vector<8x256xf32>, vector<256x512xf32>, vector<8x512xf32> -> vector<8x512xf32>
    %495 = vector.broadcast %487 : vector<1x512xf32> to vector<8x512xf32>
    %496 = arith.addf %494, %495 : vector<8x512xf32>
    %497 = vector.extract_strided_slice %496 {offsets = [0, 0], sizes = [8, 384], strides = [1, 1]} : vector<8x512xf32> to vector<8x384xf32>
    %498 = arith.negf %497 : vector<8x384xf32>
    %499 = math.exp %498 : vector<8x384xf32>
    %cst_271 = arith.constant 1.000000e+00 : f32
    %500 = vector.broadcast %cst_271 : f32 to vector<8x384xf32>
    %501 = arith.addf %500, %499 : vector<8x384xf32>
    %502 = arith.divf %500, %501 : vector<8x384xf32>
    %503 = vector.extract_strided_slice %502 {offsets = [0, 0], sizes = [8, 128], strides = [1, 1]} : vector<8x384xf32> to vector<8x128xf32>
    %504 = vector.extract_strided_slice %502 {offsets = [0, 128], sizes = [8, 128], strides = [1, 1]} : vector<8x384xf32> to vector<8x128xf32>
    %505 = vector.extract_strided_slice %502 {offsets = [0, 256], sizes = [8, 128], strides = [1, 1]} : vector<8x384xf32> to vector<8x128xf32>
    %506 = vector.extract_strided_slice %496 {offsets = [0, 384], sizes = [8, 128], strides = [1, 1]} : vector<8x512xf32> to vector<8x128xf32>
    %507 = math.tanh %506 : vector<8x128xf32>
    %508 = arith.mulf %491, %503 : vector<8x128xf32>
    %509 = arith.mulf %504, %507 : vector<8x128xf32>
    %510 = arith.addf %508, %509 : vector<8x128xf32>
    %511 = math.tanh %510 : vector<8x128xf32>
    %512 = arith.mulf %505, %511 : vector<8x128xf32>
    %513 = arith.select %449, %510, %491 : vector<8x128xf32>
    %514 = arith.select %449, %512, %489 : vector<8x128xf32>
    %c1_272 = arith.constant 1 : index
    %c0_273 = arith.constant 0 : index
    %c0_274 = arith.constant 0 : index
    %515 = vector.load %arg7[%c1_272, %c0_273, %c0_274] : memref<2x8x128xf32, #tpu.memory_space<vmem>>, vector<1x8x128xf32>
    %516 = vector.shape_cast %515 : vector<1x8x128xf32> to vector<8x128xf32>
    %517 = vector.shape_cast %513 : vector<8x128xf32> to vector<1x8x128xf32>
    tpu.vector_store %arg7[%c1_272, %c0_273, %c0_274], %517 {strides = array<i32>} : memref<2x8x128xf32, #tpu.memory_space<vmem>>, vector<1x8x128xf32>,
    %c1_275 = arith.constant 1 : index
    %c0_276 = arith.constant 0 : index
    %c0_277 = arith.constant 0 : index
    %518 = vector.load %arg8[%c1_275, %c0_276, %c0_277] : memref<2x8x128xf32, #tpu.memory_space<vmem>>, vector<1x8x128xf32>
    %519 = vector.shape_cast %518 : vector<1x8x128xf32> to vector<8x128xf32>
    %520 = vector.shape_cast %514 : vector<8x128xf32> to vector<1x8x128xf32>
    tpu.vector_store %arg8[%c1_275, %c0_276, %c0_277], %520 {strides = array<i32>} : memref<2x8x128xf32, #tpu.memory_space<vmem>>, vector<1x8x128xf32>,
    %c7_i32 = arith.constant 7 : i32
    %c8_i32_278 = arith.constant 8 : i32
    %521 = arith.muli %arg1, %c8_i32_278 : i32
    %522 = arith.addi %521, %c7_i32 : i32
    %c8_i32_279 = arith.constant 8 : i32
    %523 = arith.cmpi slt, %522, %c8_i32_279 : i32
    %524 = arith.index_cast %c7_i32 : i32 to index
    %c0_280 = arith.constant 0 : index
    %c0_281 = arith.constant 0 : index
    %525 = vector.load %arg2[%524, %c0_280, %c0_281] : memref<8x8x128xf32, #tpu.memory_space<vmem>>, vector<1x8x128xf32>
    %526 = vector.shape_cast %525 : vector<1x8x128xf32> to vector<8x128xf32>
    %c0_282 = arith.constant 0 : index
    %c0_283 = arith.constant 0 : index
    %527 = vector.load %arg4[%c0_282, %c0_283] : memref<1x512xf32, #tpu.memory_space<vmem>>, vector<1x512xf32>
    %c0_284 = arith.constant 0 : index
    %c0_285 = arith.constant 0 : index
    %c0_286 = arith.constant 0 : index
    %528 = vector.load %arg8[%c0_284, %c0_285, %c0_286] : memref<2x8x128xf32, #tpu.memory_space<vmem>>, vector<1x8x128xf32>
    %529 = vector.shape_cast %528 : vector<1x8x128xf32> to vector<8x128xf32>
    %c0_287 = arith.constant 0 : index
    %c0_288 = arith.constant 0 : index
    %c0_289 = arith.constant 0 : index
    %530 = vector.load %arg7[%c0_287, %c0_288, %c0_289] : memref<2x8x128xf32, #tpu.memory_space<vmem>>, vector<1x8x128xf32>
    %531 = vector.shape_cast %530 : vector<1x8x128xf32> to vector<8x128xf32>
    %532 = tpu.concatenate %526, %529 in 1 : vector<8x128xf32>, vector<8x128xf32> -> vector<8x256xf32>
    %c0_290 = arith.constant 0 : index
    %c0_291 = arith.constant 0 : index
    %533 = vector.load %arg3[%c0_290, %c0_291] : memref<256x512xf32, #tpu.memory_space<vmem>>, vector<256x512xf32>
    %cst_292 = arith.constant dense<0.000000e+00> : vector<8x512xf32>
    %534 = tpu.matmul %532, %533, %cst_292 {dimension_numbers = #tpu.dot_dimension_numbers<[1], [0], [0], [1], [0, 0, 1, 1], [], []>} : vector<8x256xf32>, vector<256x512xf32>, vector<8x512xf32> -> vector<8x512xf32>
    %535 = vector.broadcast %527 : vector<1x512xf32> to vector<8x512xf32>
    %536 = arith.addf %534, %535 : vector<8x512xf32>
    %537 = vector.extract_strided_slice %536 {offsets = [0, 0], sizes = [8, 384], strides = [1, 1]} : vector<8x512xf32> to vector<8x384xf32>
    %538 = arith.negf %537 : vector<8x384xf32>
    %539 = math.exp %538 : vector<8x384xf32>
    %cst_293 = arith.constant 1.000000e+00 : f32
    %540 = vector.broadcast %cst_293 : f32 to vector<8x384xf32>
    %541 = arith.addf %540, %539 : vector<8x384xf32>
    %542 = arith.divf %540, %541 : vector<8x384xf32>
    %543 = vector.extract_strided_slice %542 {offsets = [0, 0], sizes = [8, 128], strides = [1, 1]} : vector<8x384xf32> to vector<8x128xf32>
    %544 = vector.extract_strided_slice %542 {offsets = [0, 128], sizes = [8, 128], strides = [1, 1]} : vector<8x384xf32> to vector<8x128xf32>
    %545 = vector.extract_strided_slice %542 {offsets = [0, 256], sizes = [8, 128], strides = [1, 1]} : vector<8x384xf32> to vector<8x128xf32>
    %546 = vector.extract_strided_slice %536 {offsets = [0, 384], sizes = [8, 128], strides = [1, 1]} : vector<8x512xf32> to vector<8x128xf32>
    %547 = math.tanh %546 : vector<8x128xf32>
    %548 = arith.mulf %531, %543 : vector<8x128xf32>
    %549 = arith.mulf %544, %547 : vector<8x128xf32>
    %550 = arith.addf %548, %549 : vector<8x128xf32>
    %551 = math.tanh %550 : vector<8x128xf32>
    %552 = arith.mulf %545, %551 : vector<8x128xf32>
    %553 = arith.select %523, %550, %531 : vector<8x128xf32>
    %554 = arith.select %523, %552, %529 : vector<8x128xf32>
    %c0_294 = arith.constant 0 : index
    %c0_295 = arith.constant 0 : index
    %c0_296 = arith.constant 0 : index
    %555 = vector.load %arg7[%c0_294, %c0_295, %c0_296] : memref<2x8x128xf32, #tpu.memory_space<vmem>>, vector<1x8x128xf32>
    %556 = vector.shape_cast %555 : vector<1x8x128xf32> to vector<8x128xf32>
    %557 = vector.shape_cast %553 : vector<8x128xf32> to vector<1x8x128xf32>
    tpu.vector_store %arg7[%c0_294, %c0_295, %c0_296], %557 {strides = array<i32>} : memref<2x8x128xf32, #tpu.memory_space<vmem>>, vector<1x8x128xf32>,
    %c0_297 = arith.constant 0 : index
    %c0_298 = arith.constant 0 : index
    %c0_299 = arith.constant 0 : index
    %558 = vector.load %arg8[%c0_297, %c0_298, %c0_299] : memref<2x8x128xf32, #tpu.memory_space<vmem>>, vector<1x8x128xf32>
    %559 = vector.shape_cast %558 : vector<1x8x128xf32> to vector<8x128xf32>
    %560 = vector.shape_cast %554 : vector<8x128xf32> to vector<1x8x128xf32>
    tpu.vector_store %arg8[%c0_297, %c0_298, %c0_299], %560 {strides = array<i32>} : memref<2x8x128xf32, #tpu.memory_space<vmem>>, vector<1x8x128xf32>,
    %c0_300 = arith.constant 0 : index
    %c0_301 = arith.constant 0 : index
    %561 = vector.load %arg6[%c0_300, %c0_301] : memref<1x512xf32, #tpu.memory_space<vmem>>, vector<1x512xf32>
    %c1_302 = arith.constant 1 : index
    %c0_303 = arith.constant 0 : index
    %c0_304 = arith.constant 0 : index
    %562 = vector.load %arg8[%c1_302, %c0_303, %c0_304] : memref<2x8x128xf32, #tpu.memory_space<vmem>>, vector<1x8x128xf32>
    %563 = vector.shape_cast %562 : vector<1x8x128xf32> to vector<8x128xf32>
    %c1_305 = arith.constant 1 : index
    %c0_306 = arith.constant 0 : index
    %c0_307 = arith.constant 0 : index
    %564 = vector.load %arg7[%c1_305, %c0_306, %c0_307] : memref<2x8x128xf32, #tpu.memory_space<vmem>>, vector<1x8x128xf32>
    %565 = vector.shape_cast %564 : vector<1x8x128xf32> to vector<8x128xf32>
    %566 = tpu.concatenate %554, %563 in 1 : vector<8x128xf32>, vector<8x128xf32> -> vector<8x256xf32>
    %c0_308 = arith.constant 0 : index
    %c0_309 = arith.constant 0 : index
    %567 = vector.load %arg5[%c0_308, %c0_309] : memref<256x512xf32, #tpu.memory_space<vmem>>, vector<256x512xf32>
    %cst_310 = arith.constant dense<0.000000e+00> : vector<8x512xf32>
    %568 = tpu.matmul %566, %567, %cst_310 {dimension_numbers = #tpu.dot_dimension_numbers<[1], [0], [0], [1], [0, 0, 1, 1], [], []>} : vector<8x256xf32>, vector<256x512xf32>, vector<8x512xf32> -> vector<8x512xf32>
    %569 = vector.broadcast %561 : vector<1x512xf32> to vector<8x512xf32>
    %570 = arith.addf %568, %569 : vector<8x512xf32>
    %571 = vector.extract_strided_slice %570 {offsets = [0, 0], sizes = [8, 384], strides = [1, 1]} : vector<8x512xf32> to vector<8x384xf32>
    %572 = arith.negf %571 : vector<8x384xf32>
    %573 = math.exp %572 : vector<8x384xf32>
    %cst_311 = arith.constant 1.000000e+00 : f32
    %574 = vector.broadcast %cst_311 : f32 to vector<8x384xf32>
    %575 = arith.addf %574, %573 : vector<8x384xf32>
    %576 = arith.divf %574, %575 : vector<8x384xf32>
    %577 = vector.extract_strided_slice %576 {offsets = [0, 0], sizes = [8, 128], strides = [1, 1]} : vector<8x384xf32> to vector<8x128xf32>
    %578 = vector.extract_strided_slice %576 {offsets = [0, 128], sizes = [8, 128], strides = [1, 1]} : vector<8x384xf32> to vector<8x128xf32>
    %579 = vector.extract_strided_slice %576 {offsets = [0, 256], sizes = [8, 128], strides = [1, 1]} : vector<8x384xf32> to vector<8x128xf32>
    %580 = vector.extract_strided_slice %570 {offsets = [0, 384], sizes = [8, 128], strides = [1, 1]} : vector<8x512xf32> to vector<8x128xf32>
    %581 = math.tanh %580 : vector<8x128xf32>
    %582 = arith.mulf %565, %577 : vector<8x128xf32>
    %583 = arith.mulf %578, %581 : vector<8x128xf32>
    %584 = arith.addf %582, %583 : vector<8x128xf32>
    %585 = math.tanh %584 : vector<8x128xf32>
    %586 = arith.mulf %579, %585 : vector<8x128xf32>
    %587 = arith.select %523, %584, %565 : vector<8x128xf32>
    %588 = arith.select %523, %586, %563 : vector<8x128xf32>
    %c1_312 = arith.constant 1 : index
    %c0_313 = arith.constant 0 : index
    %c0_314 = arith.constant 0 : index
    %589 = vector.load %arg7[%c1_312, %c0_313, %c0_314] : memref<2x8x128xf32, #tpu.memory_space<vmem>>, vector<1x8x128xf32>
    %590 = vector.shape_cast %589 : vector<1x8x128xf32> to vector<8x128xf32>
    %591 = vector.shape_cast %587 : vector<8x128xf32> to vector<1x8x128xf32>
    tpu.vector_store %arg7[%c1_312, %c0_313, %c0_314], %591 {strides = array<i32>} : memref<2x8x128xf32, #tpu.memory_space<vmem>>, vector<1x8x128xf32>,
    %c1_315 = arith.constant 1 : index
    %c0_316 = arith.constant 0 : index
    %c0_317 = arith.constant 0 : index
    %592 = vector.load %arg8[%c1_315, %c0_316, %c0_317] : memref<2x8x128xf32, #tpu.memory_space<vmem>>, vector<1x8x128xf32>
    %593 = vector.shape_cast %592 : vector<1x8x128xf32> to vector<8x128xf32>
    %594 = vector.shape_cast %588 : vector<8x128xf32> to vector<1x8x128xf32>
    tpu.vector_store %arg8[%c1_315, %c0_316, %c0_317], %594 {strides = array<i32>} : memref<2x8x128xf32, #tpu.memory_space<vmem>>, vector<1x8x128xf32>,
    %c8_i32_318 = arith.constant 8 : i32
    return
  }
  func.func @transform_0(%arg0: i32, %arg1: i32) -> (i32, i32, i32) {
    %c0_i32 = arith.constant 0 : i32
    %c0_i32_0 = arith.constant 0 : i32
    return %arg1, %arg0, %c0_i32 : i32, i32, i32
  }
  func.func @transform_1(%arg0: i32, %arg1: i32) -> (i32, i32) {
    %c0_i32 = arith.constant 0 : i32
    %c0_i32_0 = arith.constant 0 : i32
    %c0_i32_1 = arith.constant 0 : i32
    return %c0_i32, %c0_i32_0 : i32, i32
  }
  func.func @transform_2(%arg0: i32, %arg1: i32) -> (i32, i32) {
    %c0_i32 = arith.constant 0 : i32
    %c0_i32_0 = arith.constant 0 : i32
    %c0_i32_1 = arith.constant 0 : i32
    return %c0_i32, %c0_i32_0 : i32, i32
  }
  func.func @transform_3(%arg0: i32, %arg1: i32) -> (i32, i32) {
    %c0_i32 = arith.constant 0 : i32
    %c0_i32_0 = arith.constant 0 : i32
    %c0_i32_1 = arith.constant 0 : i32
    return %c0_i32, %c0_i32_0 : i32, i32
  }
  func.func @transform_4(%arg0: i32, %arg1: i32) -> (i32, i32) {
    %c0_i32 = arith.constant 0 : i32
    %c0_i32_0 = arith.constant 0 : i32
    %c0_i32_1 = arith.constant 0 : i32
    return %c0_i32, %c0_i32_0 : i32, i32
  }
  func.func @transform_5(%arg0: i32, %arg1: i32) -> (i32, i32, i32) {
    %c0_i32 = arith.constant 0 : i32
    %c0_i32_0 = arith.constant 0 : i32
    %c0_i32_1 = arith.constant 0 : i32
    return %c0_i32, %arg0, %c0_i32_0 : i32, i32, i32
  }
  func.func @transform_6(%arg0: i32, %arg1: i32) -> (i32, i32, i32) {
    %c0_i32 = arith.constant 0 : i32
    %c0_i32_0 = arith.constant 0 : i32
    %c0_i32_1 = arith.constant 0 : i32
    return %c0_i32, %arg0, %c0_i32_0 : i32, i32, i32
  }
}

</mosaic_0001>

<llo_original>
// kernel: tpu_custom_call.1
$region0: #{tpu_custom_call.1}
  #allocation0 [shape = 'u32[]', space=smem, size = 0x4, offset = 0x4, fixed_abs, tag = 'smem constant byte address 0x4 - core index']
  #allocation1 [shape = 'u32[144,128]{1,0:T(1,128)}', space=vmem, size = 0x12000, scoped, tag = 'internal scratch']
  %s0 = inlined_call_operand.hbm [shape: f32[8,8,128], index: 0, kind: input, shape index: {}]
  %s1 = inlined_call_operand.hbm [shape: f32[256,512], index: 1, kind: input, shape index: {}]
  %s2 = inlined_call_operand.vmem [shape: f32[1,512], index: 2, kind: input, shape index: {}]
  %s3 = inlined_call_operand.hbm [shape: f32[256,512], index: 3, kind: input, shape index: {}]
  %s4 = inlined_call_operand.vmem [shape: f32[1,512], index: 4, kind: input, shape index: {}]
  %s5 = inlined_call_operand.hbm [shape: f32[2,8,128], index: 5, kind: output, shape index: {0}]
  %s6 = inlined_call_operand.hbm [shape: f32[2,8,128], index: 6, kind: output, shape index: {1}]
  %7 = xla_tuple %s5, %s6
  %s8 = sld [smem:[#allocation0]]
  $region54: #{tpu_custom_call.1} parent=0
    _
  %s10 = ssub.s32 1, %s8
  %s11 = scalar_select 0, %s10, %s8
  $region1: #{tpu_custom_call.1} parent=0
    #allocation2 [shape = 'u8[32768]{0}', space=vmem, size = 0x8000, scoped, tag = 'input window, operand 0, single buffered']
    #allocation3 [shape = 's32[1]{0}', space=sflag, size = 0x4, scoped, tag = 'scoped memory for tpu_custom_call.1']
    #allocation4 [shape = 's32[1]{0}', space=sflag, size = 0x4, scoped, tag = 'scoped memory for tpu_custom_call.1']
    #allocation5 [shape = 'u8[524288]{0}', space=vmem, size = 0x80000, scoped, tag = 'input window, operand 1, single buffered']
    #allocation6 [shape = 's32[1]{0}', space=sflag, size = 0x4, scoped, tag = 'scoped memory for tpu_custom_call.1']
    #allocation7 [shape = 'u8[524288]{0}', space=vmem, size = 0x80000, scoped, tag = 'input window, operand 3, single buffered']
    #allocation8 [shape = 'u8[8192]{0}', space=vmem, size = 0x2000, scoped, tag = 'output window, operand 0, single buffered']
    #allocation9 [shape = 'u8[8192]{0}', space=vmem, size = 0x2000, scoped, tag = 'output window, operand 1, single buffered']
    #allocation10 [shape = 's32[1]{0}', space=sflag, size = 0x4, scoped, tag = 'scoped memory for tpu_custom_call.1']
    %12 = vsyncpa [#allocation3], 0
    %13 = vsyncpa [#allocation6], 0
    %14 = vsyncpa [#allocation4], 0
    %15 = vsyncpa [#allocation10], 0
    // Predicated region
    $region2: #{tpu_custom_call.1} parent=1 // pred_check
      _
    $region3: #{tpu_custom_call.1} parent=1 // pred_check_branch
      %17 = sbr.rel (0) target = $region5
    $region4: #{tpu_custom_call.1} parent=1 // pred_region
      %s19 = ssub.s32 1024, 1024
      %20 = vsyncadd [#allocation3], %s19
      %s21 = sshll.u32 [#allocation2], 4
      %s22 = int_to_ptr.vmem [resolvable:$true] %s21
      %27 = dma.hbm_to_vmem [thread:$0]  %s0, 1024, %s22, [#allocation3], 128, 128, 8
    $region5: #{tpu_custom_call.1} parent=1 // pred_fallthru
      _
    // Predicated region
    $region6: #{tpu_custom_call.1} parent=1 // pred_check
      _
    $region7: #{tpu_custom_call.1} parent=1 // pred_check_branch
      %29 = sbr.rel (0) target = $region9
    $region8: #{tpu_custom_call.1} parent=1 // pred_region
      %s31 = ssub.s32 16384, 16384
      %32 = vsyncadd [#allocation6], %s31
      %s33 = sshll.u32 [#allocation5], 4
      %s34 = int_to_ptr.vmem [resolvable:$true] %s33
      %39 = dma.hbm_to_vmem [thread:$0]  %s1, 16384, %s34, [#allocation6], 512, 512, 32
    $region9: #{tpu_custom_call.1} parent=1 // pred_fallthru
      _
    // Predicated region
    $region10: #{tpu_custom_call.1} parent=1 // pred_check
      _
    $region11: #{tpu_custom_call.1} parent=1 // pred_check_branch
      %41 = sbr.rel (0) target = $region13
    $region12: #{tpu_custom_call.1} parent=1 // pred_region
      _
    $region13: #{tpu_custom_call.1} parent=1 // pred_fallthru
      _
    // Predicated region
    $region14: #{tpu_custom_call.1} parent=1 // pred_check
      _
    $region15: #{tpu_custom_call.1} parent=1 // pred_check_branch
      %43 = sbr.rel (0) target = $region17
    $region16: #{tpu_custom_call.1} parent=1 // pred_region
      %s45 = ssub.s32 16384, 16384
      %46 = vsyncadd [#allocation6], %s45
      %s47 = sshll.u32 [#allocation7], 4
      %s48 = int_to_ptr.vmem [resolvable:$true] %s47
      %53 = dma.hbm_to_vmem [thread:$0]  %s3, 16384, %s48, [#allocation6], 512, 512, 32
    $region17: #{tpu_custom_call.1} parent=1 // pred_fallthru
      _
    // Predicated region
    $region18: #{tpu_custom_call.1} parent=1 // pred_check
      _
    $region19: #{tpu_custom_call.1} parent=1 // pred_check_branch
      %55 = sbr.rel (0) target = $region21
    $region20: #{tpu_custom_call.1} parent=1 // pred_region
      _
    $region21: #{tpu_custom_call.1} parent=1 // pred_fallthru
      _
    // Predicated region
    $region22: #{tpu_custom_call.1} parent=1 // pred_check
      _
    $region23: #{tpu_custom_call.1} parent=1 // pred_check_branch
      %57 = sbr.rel (0) target = $region25
    $region24: #{tpu_custom_call.1} parent=1 // pred_region
      %58 = dma.done [#allocation3], 1024
    $region25: #{tpu_custom_call.1} parent=1 // pred_fallthru
      _
    // Predicated region
    $region26: #{tpu_custom_call.1} parent=1 // pred_check
      _
    $region27: #{tpu_custom_call.1} parent=1 // pred_check_branch
      %60 = sbr.rel (0) target = $region29
    $region28: #{tpu_custom_call.1} parent=1 // pred_region
      %61 = dma.done [#allocation6], 16384
    $region29: #{tpu_custom_call.1} parent=1 // pred_fallthru
      _
    // Predicated region
    $region30: #{tpu_custom_call.1} parent=1 // pred_check
      _
    $region31: #{tpu_custom_call.1} parent=1 // pred_check_branch
      %63 = sbr.rel (0) target = $region33
    $region32: #{tpu_custom_call.1} parent=1 // pred_region
      %64 = dma.done [#allocation6], 16384
    $region33: #{tpu_custom_call.1} parent=1 // pred_fallthru
      _
    %p65 = scmp.eq.s32.totalorder 0, 0
    // Predicated region
    $region34: #{tpu_custom_call.1} parent=1 // pred_check
      %p66 = pneg %p65
    $region35: #{tpu_custom_call.1} parent=1 // pred_check_branch
      %68 = sbr.rel (%p66) target = $region37
    $region36: #{tpu_custom_call.1} parent=1 // pred_region
      %69 = vst [vmem:[#allocation8] sm:$0xff] 0.0
      %70 = vst [vmem:[#allocation8 + $0x8] sm:$0xff] 0.0
      %71 = vst [vmem:[#allocation9] sm:$0xff] 0.0
      %72 = vst [vmem:[#allocation9 + $0x8] sm:$0xff] 0.0
    $region37: #{tpu_custom_call.1} parent=1 // pred_fallthru
      _
    %s73 = smul.u32 0, 8
    %p74 = scmp.lt.s32.totalorder %s73, 8
    %v75 = vld [vmem:[#allocation2] sm:$0xff]
    %v76 = vld [vmem:[%s2] sm:$0xf]
    %v77 = vld [vmem:[#allocation9] sm:$0xff]
    %v78 = vld [vmem:[#allocation8] sm:$0xff]
    %v79 = vld [vmem:[#allocation5] sm:$0xff]
    %v80 = vld [vmem:[#allocation5 + $0x8] sm:$0xff]
    %v81 = vld [vmem:[#allocation5 + $0x10] sm:$0xff]
    %v82 = vld [vmem:[#allocation5 + $0x18] sm:$0xff]
    %v83 = vld [vmem:[#allocation5 + $0x20] sm:$0xff]
    %v84 = vld [vmem:[#allocation5 + $0x28] sm:$0xff]
    %v85 = vld [vmem:[#allocation5 + $0x30] sm:$0xff]
    %v86 = vld [vmem:[#allocation5 + $0x38] sm:$0xff]
    %v87 = vld [vmem:[#allocation5 + $0x40] sm:$0xff]
    %v88 = vld [vmem:[#allocation5 + $0x48] sm:$0xff]
    %v89 = vld [vmem:[#allocation5 + $0x50] sm:$0xff]
    %v90 = vld [vmem:[#allocation5 + $0x58] sm:$0xff]
    %v91 = vld [vmem:[#allocation5 + $0x60] sm:$0xff]
    %v92 = vld [vmem:[#allocation5 + $0x68] sm:$0xff]
    %v93 = vld [vmem:[#allocation5 + $0x70] sm:$0xff]
    %v94 = vld [vmem:[#allocation5 + $0x78] sm:$0xff]
    %v95 = vld [vmem:[#allocation5 + $0x80] sm:$0xff]
    %v96 = vld [vmem:[#allocation5 + $0x88] sm:$0xff]
    %v97 = vld [vmem:[#allocation5 + $0x90] sm:$0xff]
    %v98 = vld [vmem:[#allocation5 + $0x98] sm:$0xff]
    %v99 = vld [vmem:[#allocation5 + $0xa0] sm:$0xff]
    %v100 = vld [vmem:[#allocation5 + $0xa8] sm:$0xff]
    %v101 = vld [vmem:[#allocation5 + $0xb0] sm:$0xff]
    %v102 = vld [vmem:[#allocation5 + $0xb8] sm:$0xff]
    %v103 = vld [vmem:[#allocation5 + $0xc0] sm:$0xff]
    %v104 = vld [vmem:[#allocation5 + $0xc8] sm:$0xff]
    %v105 = vld [vmem:[#allocation5 + $0xd0] sm:$0xff]
    %v106 = vld [vmem:[#allocation5 + $0xd8] sm:$0xff]
    %v107 = vld [vmem:[#allocation5 + $0xe0] sm:$0xff]
    %v108 = vld [vmem:[#allocation5 + $0xe8] sm:$0xff]
    %v109 = vld [vmem:[#allocation5 + $0xf0] sm:$0xff]
    %v110 = vld [vmem:[#allocation5 + $0xf8] sm:$0xff]
    %v111 = vld [vmem:[#allocation5 + $0x100] sm:$0xff]
    %v112 = vld [vmem:[#allocation5 + $0x108] sm:$0xff]
    %v113 = vld [vmem:[#allocation5 + $0x110] sm:$0xff]
    %v114 = vld [vmem:[#allocation5 + $0x118] sm:$0xff]
    %v115 = vld [vmem:[#allocation5 + $0x120] sm:$0xff]
    %v116 = vld [vmem:[#allocation5 + $0x128] sm:$0xff]
    %v117 = vld [vmem:[#allocation5 + $0x130] sm:$0xff]
    %v118 = vld [vmem:[#allocation5 + $0x138] sm:$0xff]
    %v119 = vld [vmem:[#allocation5 + $0x140] sm:$0xff]
    %v120 = vld [vmem:[#allocation5 + $0x148] sm:$0xff]
    %v121 = vld [vmem:[#allocation5 + $0x150] sm:$0xff]
    %v122 = vld [vmem:[#allocation5 + $0x158] sm:$0xff]
    %v123 = vld [vmem:[#allocation5 + $0x160] sm:$0xff]
    %v124 = vld [vmem:[#allocation5 + $0x168] sm:$0xff]
    %v125 = vld [vmem:[#allocation5 + $0x170] sm:$0xff]
    %v126 = vld [vmem:[#allocation5 + $0x178] sm:$0xff]
    %v127 = vld [vmem:[#allocation5 + $0x180] sm:$0xff]
    %v128 = vld [vmem:[#allocation5 + $0x188] sm:$0xff]
    %v129 = vld [vmem:[#allocation5 + $0x190] sm:$0xff]
    %v130 = vld [vmem:[#allocation5 + $0x198] sm:$0xff]
    %v131 = vld [vmem:[#allocation5 + $0x1a0] sm:$0xff]
    %v132 = vld [vmem:[#allocation5 + $0x1a8] sm:$0xff]
    %v133 = vld [vmem:[#allocation5 + $0x1b0] sm:$0xff]
    %v134 = vld [vmem:[#allocation5 + $0x1b8] sm:$0xff]
    %v135 = vld [vmem:[#allocation5 + $0x1c0] sm:$0xff]
    %v136 = vld [vmem:[#allocation5 + $0x1c8] sm:$0xff]
    %v137 = vld [vmem:[#allocation5 + $0x1d0] sm:$0xff]
    %v138 = vld [vmem:[#allocation5 + $0x1d8] sm:$0xff]
    %v139 = vld [vmem:[#allocation5 + $0x1e0] sm:$0xff]
    %v140 = vld [vmem:[#allocation5 + $0x1e8] sm:$0xff]
    %v141 = vld [vmem:[#allocation5 + $0x1f0] sm:$0xff]
    %v142 = vld [vmem:[#allocation5 + $0x1f8] sm:$0xff]
    %v143 = vld [vmem:[#allocation5 + $0x200] sm:$0xff]
    %v144 = vld [vmem:[#allocation5 + $0x208] sm:$0xff]
    %v145 = vld [vmem:[#allocation5 + $0x210] sm:$0xff]
    %v146 = vld [vmem:[#allocation5 + $0x218] sm:$0xff]
    %v147 = vld [vmem:[#allocation5 + $0x220] sm:$0xff]
    %v148 = vld [vmem:[#allocation5 + $0x228] sm:$0xff]
    %v149 = vld [vmem:[#allocation5 + $0x230] sm:$0xff]
    %v150 = vld [vmem:[#allocation5 + $0x238] sm:$0xff]
    %v151 = vld [vmem:[#allocation5 + $0x240] sm:$0xff]
    %v152 = vld [vmem:[#allocation5 + $0x248] sm:$0xff]
    %v153 = vld [vmem:[#allocation5 + $0x250] sm:$0xff]
    %v154 = vld [vmem:[#allocation5 + $0x258] sm:$0xff]
    %v155 = vld [vmem:[#allocation5 + $0x260] sm:$0xff]
    %v156 = vld [vmem:[#allocation5 + $0x268] sm:$0xff]
    %v157 = vld [vmem:[#allocation5 + $0x270] sm:$0xff]
    %v158 = vld [vmem:[#allocation5 + $0x278] sm:$0xff]
    %v159 = vld [vmem:[#allocation5 + $0x280] sm:$0xff]
    %v160 = vld [vmem:[#allocation5 + $0x288] sm:$0xff]
    %v161 = vld [vmem:[#allocation5 + $0x290] sm:$0xff]
    %v162 = vld [vmem:[#allocation5 + $0x298] sm:$0xff]
    %v163 = vld [vmem:[#allocation5 + $0x2a0] sm:$0xff]
    %v164 = vld [vmem:[#allocation5 + $0x2a8] sm:$0xff]
    %v165 = vld [vmem:[#allocation5 + $0x2b0] sm:$0xff]
    %v166 = vld [vmem:[#allocation5 + $0x2b8] sm:$0xff]
    %v167 = vld [vmem:[#allocation5 + $0x2c0] sm:$0xff]
    %v168 = vld [vmem:[#allocation5 + $0x2c8] sm:$0xff]
    %v169 = vld [vmem:[#allocation5 + $0x2d0] sm:$0xff]
    %v170 = vld [vmem:[#allocation5 + $0x2d8] sm:$0xff]
    %v171 = vld [vmem:[#allocation5 + $0x2e0] sm:$0xff]
    %v172 = vld [vmem:[#allocation5 + $0x2e8] sm:$0xff]
    %v173 = vld [vmem:[#allocation5 + $0x2f0] sm:$0xff]
    %v174 = vld [vmem:[#allocation5 + $0x2f8] sm:$0xff]
    %v175 = vld [vmem:[#allocation5 + $0x300] sm:$0xff]
    %v176 = vld [vmem:[#allocation5 + $0x308] sm:$0xff]
    %v177 = vld [vmem:[#allocation5 + $0x310] sm:$0xff]
    %v178 = vld [vmem:[#allocation5 + $0x318] sm:$0xff]
    %v179 = vld [vmem:[#allocation5 + $0x320] sm:$0xff]
    %v180 = vld [vmem:[#allocation5 + $0x328] sm:$0xff]
    %v181 = vld [vmem:[#allocation5 + $0x330] sm:$0xff]
    %v182 = vld [vmem:[#allocation5 + $0x338] sm:$0xff]
    %v183 = vld [vmem:[#allocation5 + $0x340] sm:$0xff]
    %v184 = vld [vmem:[#allocation5 + $0x348] sm:$0xff]
    %v185 = vld [vmem:[#allocation5 + $0x350] sm:$0xff]
    %v186 = vld [vmem:[#allocation5 + $0x358] sm:$0xff]
    %v187 = vld [vmem:[#allocation5 + $0x360] sm:$0xff]
    %v188 = vld [vmem:[#allocation5 + $0x368] sm:$0xff]
    %v189 = vld [vmem:[#allocation5 + $0x370] sm:$0xff]
    %v190 = vld [vmem:[#allocation5 + $0x378] sm:$0xff]
    %v191 = vld [vmem:[#allocation5 + $0x380] sm:$0xff]
    %v192 = vld [vmem:[#allocation5 + $0x388] sm:$0xff]
    %v193 = vld [vmem:[#allocation5 + $0x390] sm:$0xff]
    %v194 = vld [vmem:[#allocation5 + $0x398] sm:$0xff]
    %v195 = vld [vmem:[#allocation5 + $0x3a0] sm:$0xff]
    %v196 = vld [vmem:[#allocation5 + $0x3a8] sm:$0xff]
    %v197 = vld [vmem:[#allocation5 + $0x3b0] sm:$0xff]
    %v198 = vld [vmem:[#allocation5 + $0x3b8] sm:$0xff]
    %v199 = vld [vmem:[#allocation5 + $0x3c0] sm:$0xff]
    %v200 = vld [vmem:[#allocation5 + $0x3c8] sm:$0xff]
    %v201 = vld [vmem:[#allocation5 + $0x3d0] sm:$0xff]
    %v202 = vld [vmem:[#allocation5 + $0x3d8] sm:$0xff]
    %v203 = vld [vmem:[#allocation5 + $0x3e0] sm:$0xff]
    %v204 = vld [vmem:[#allocation5 + $0x3e8] sm:$0xff]
    %v205 = vld [vmem:[#allocation5 + $0x3f0] sm:$0xff]
    %v206 = vld [vmem:[#allocation5 + $0x3f8] sm:$0xff]
    %v208 = vlaneseq
    %v209 = vshrl.u32 %v208, 7
    %v210 = vsub.s32 0, %v209
    %v211 = vrot.slane %v76, %v210
    %v212 = vlaneseq
    %v213 = vshrl.u32 %v212, 7
    %v214 = vsub.s32 1, %v213
    %v215 = vrot.slane %v76, %v214
    %v216 = vlaneseq
    %v217 = vshrl.u32 %v216, 7
    %v218 = vsub.s32 2, %v217
    %v219 = vrot.slane %v76, %v218
    %v220 = vlaneseq
    %v221 = vshrl.u32 %v220, 7
    %v222 = vsub.s32 3, %v221
    %v223 = vrot.slane %v76, %v222
    %228 = vmatprep.subr.mxu0 %v80
    %229 = vmatpush1.msra.mxu0 %v79
    %230 = vmatprep.subr.mxu0 %v84
    %231 = vmatpush1.msra.mxu0 %v83
    %232 = vmatprep.subr.mxu0 %v88
    %233 = vmatpush1.msra.mxu0 %v87
    %234 = vmatprep.subr.mxu0 %v92
    %235 = vmatpush1.msra.mxu0 %v91
    %236 = vmatprep.subr.mxu0 %v96
    %237 = vmatpush1.msra.mxu0 %v95
    %238 = vmatprep.subr.mxu0 %v100
    %239 = vmatpush1.msra.mxu0 %v99
    %240 = vmatprep.subr.mxu0 %v104
    %241 = vmatpush1.msra.mxu0 %v103
    %242 = vmatprep.subr.mxu0 %v108
    %243 = vmatpush1.msra.mxu0 %v107
    %244 = vmatprep.subr.mxu0 %v112
    %245 = vmatpush1.msra.mxu0 %v111
    %246 = vmatprep.subr.mxu0 %v116
    %247 = vmatpush1.msra.mxu0 %v115
    %248 = vmatprep.subr.mxu0 %v120
    %249 = vmatpush1.msra.mxu0 %v119
    %250 = vmatprep.subr.mxu0 %v124
    %251 = vmatpush1.msra.mxu0 %v123
    %252 = vmatprep.subr.mxu0 %v128
    %253 = vmatpush1.msra.mxu0 %v127
    %254 = vmatprep.subr.mxu0 %v132
    %255 = vmatpush1.msra.mxu0 %v131
    %256 = vmatprep.subr.mxu0 %v136
    %257 = vmatpush1.msra.mxu0 %v135
    %258 = vmatprep.subr.mxu0 %v140
    %259 = vmatpush1.msra.mxu0 %v139
    %260 = vmatprep.subr.mxu0 %v144
    %261 = vmatpush1.msra.mxu0 %v143
    %262 = vmatprep.subr.mxu0 %v148
    %263 = vmatpush1.msra.mxu0 %v147
    %264 = vmatprep.subr.mxu0 %v152
    %265 = vmatpush1.msra.mxu0 %v151
    %266 = vmatprep.subr.mxu0 %v156
    %267 = vmatpush1.msra.mxu0 %v155
    %268 = vmatprep.subr.mxu0 %v160
    %269 = vmatpush1.msra.mxu0 %v159
    %270 = vmatprep.subr.mxu0 %v164
    %271 = vmatpush1.msra.mxu0 %v163
    %272 = vmatprep.subr.mxu0 %v168
    %273 = vmatpush1.msra.mxu0 %v167
    %274 = vmatprep.subr.mxu0 %v172
    %275 = vmatpush1.msra.mxu0 %v171
    %276 = vmatprep.subr.mxu0 %v176
    %277 = vmatpush1.msra.mxu0 %v175
    %278 = vmatprep.subr.mxu0 %v180
    %279 = vmatpush1.msra.mxu0 %v179
    %280 = vmatprep.subr.mxu0 %v184
    %281 = vmatpush1.msra.mxu0 %v183
    %282 = vmatprep.subr.mxu0 %v188
    %283 = vmatpush1.msra.mxu0 %v187
    %284 = vmatprep.subr.mxu0 %v192
    %285 = vmatpush1.msra.mxu0 %v191
    %286 = vmatprep.subr.mxu0 %v196
    %287 = vmatpush1.msra.mxu0 %v195
    %288 = vmatprep.subr.mxu0 %v200
    %289 = vmatpush1.msra.mxu0 %v199
    %290 = vmatprep.subr.mxu0 %v204
    %291 = vmatpush1.msra.mxu0 %v203
    %292 = vmatprep.mubr.f32.mxu0 %v77
    %293 = vmatmul.mubr.f32.gmra.mrb[0].mxu0 %v75
    %v294 = vpop.f32.mrb[0].mxu0
    %v295 = vadd.f32 %v211, %v294
    %v296 = vpop.f32.mrb[0].mxu0
    %v297 = vadd.f32 %v215, %v296
    %298 = vdwg.mxu0
    %299 = vmatprep.subr.mxu0 %v82
    %300 = vmatpush1.msra.mxu0 %v81
    %301 = vmatprep.subr.mxu0 %v86
    %302 = vmatpush1.msra.mxu0 %v85
    %303 = vmatprep.subr.mxu0 %v90
    %304 = vmatpush1.msra.mxu0 %v89
    %305 = vmatprep.subr.mxu0 %v94
    %306 = vmatpush1.msra.mxu0 %v93
    %307 = vmatprep.subr.mxu0 %v98
    %308 = vmatpush1.msra.mxu0 %v97
    %309 = vmatprep.subr.mxu0 %v102
    %310 = vmatpush1.msra.mxu0 %v101
    %311 = vmatprep.subr.mxu0 %v106
    %312 = vmatpush1.msra.mxu0 %v105
    %313 = vmatprep.subr.mxu0 %v110
    %314 = vmatpush1.msra.mxu0 %v109
    %315 = vmatprep.subr.mxu0 %v114
    %316 = vmatpush1.msra.mxu0 %v113
    %317 = vmatprep.subr.mxu0 %v118
    %318 = vmatpush1.msra.mxu0 %v117
    %319 = vmatprep.subr.mxu0 %v122
    %320 = vmatpush1.msra.mxu0 %v121
    %321 = vmatprep.subr.mxu0 %v126
    %322 = vmatpush1.msra.mxu0 %v125
    %323 = vmatprep.subr.mxu0 %v130
    %324 = vmatpush1.msra.mxu0 %v129
    %325 = vmatprep.subr.mxu0 %v134
    %326 = vmatpush1.msra.mxu0 %v133
    %327 = vmatprep.subr.mxu0 %v138
    %328 = vmatpush1.msra.mxu0 %v137
    %329 = vmatprep.subr.mxu0 %v142
    %330 = vmatpush1.msra.mxu0 %v141
    %331 = vmatprep.subr.mxu0 %v146
    %332 = vmatpush1.msra.mxu0 %v145
    %333 = vmatprep.subr.mxu0 %v150
    %334 = vmatpush1.msra.mxu0 %v149
    %335 = vmatprep.subr.mxu0 %v154
    %336 = vmatpush1.msra.mxu0 %v153
    %337 = vmatprep.subr.mxu0 %v158
    %338 = vmatpush1.msra.mxu0 %v157
    %339 = vmatprep.subr.mxu0 %v162
    %340 = vmatpush1.msra.mxu0 %v161
    %341 = vmatprep.subr.mxu0 %v166
    %342 = vmatpush1.msra.mxu0 %v165
    %343 = vmatprep.subr.mxu0 %v170
    %344 = vmatpush1.msra.mxu0 %v169
    %345 = vmatprep.subr.mxu0 %v174
    %346 = vmatpush1.msra.mxu0 %v173
    %347 = vmatprep.subr.mxu0 %v178
    %348 = vmatpush1.msra.mxu0 %v177
    %349 = vmatprep.subr.mxu0 %v182
    %350 = vmatpush1.msra.mxu0 %v181
    %351 = vmatprep.subr.mxu0 %v186
    %352 = vmatpush1.msra.mxu0 %v185
    %353 = vmatprep.subr.mxu0 %v190
    %354 = vmatpush1.msra.mxu0 %v189
    %355 = vmatprep.subr.mxu0 %v194
    %356 = vmatpush1.msra.mxu0 %v193
    %357 = vmatprep.subr.mxu0 %v198
    %358 = vmatpush1.msra.mxu0 %v197
    %359 = vmatprep.subr.mxu0 %v202
    %360 = vmatpush1.msra.mxu0 %v201
    %361 = vmatprep.subr.mxu0 %v206
    %362 = vmatpush1.msra.mxu0 %v205
    %363 = vmatprep.mubr.f32.mxu0 %v77
    %364 = vmatmul.mubr.f32.gmra.mrb[0].mxu0 %v75
    %v365 = vpop.f32.mrb[0].mxu0
    %v366 = vadd.f32 %v219, %v365
    %v367 = vpop.f32.mrb[0].mxu0
    %v368 = vadd.f32 %v223, %v367
    %369 = vdwg.mxu0
    %v370 = vxor.u32 %v295, 2147483648
    %v371 = vxor.u32 %v297, 2147483648
    %v372 = vxor.u32 %v366, 2147483648
    %v373 = vmul.f32 %v370, 1.442695
    %v374 = vpow.pop %v373
    %v375 = vmul.f32 %v371, 1.442695
    %v376 = vpow.pop %v375
    %v377 = vmul.f32 %v372, 1.442695
    %v378 = vpow.pop %v377
    %v379 = vadd.f32 %v374, 1.0
    %v380 = vadd.f32 %v376, 1.0
    %v381 = vadd.f32 %v378, 1.0
    %v382 = vrcp.pop %v379
    %v383 = vmul.f32 1.0, %v382
    %v384 = vrcp.pop %v380
    %v385 = vmul.f32 1.0, %v384
    %v386 = vrcp.pop %v381
    %v387 = vmul.f32 1.0, %v386
    %v388 = vtanh.pop %v368
    %v389 = vmul.f32 %v78, %v383
    %v390 = vmul.f32 %v385, %v388
    %v391 = vadd.f32 %v389, %v390
    %v392 = vtanh.pop %v391
    %v393 = vmul.f32 %v387, %v392
    %s394 = scalar_select %p74, 1, 0
    %v395 = vstv %s394
    %vm396 = vcmp.eq.s32.totalorder %v395, 1
    %v397 = vsel %vm396, %v391, %v78
    %v398 = vsel %vm396, %v393, %v77
    %399 = vst [vmem:[#allocation8] sm:$0xff] %v397
    %400 = vst [vmem:[#allocation9] sm:$0xff] %v398
    %v401 = vld [vmem:[%s4] sm:$0xf]
    %s402 = scalar_lea.vmem [#allocation9], 8
    %v403 = vld [vmem:[%s402] sm:$0xff]
    %s404 = scalar_lea.vmem [#allocation8], 8
    %v405 = vld [vmem:[%s404] sm:$0xff]
    %v406 = vld [vmem:[#allocation7] sm:$0xff]
    %v407 = vld [vmem:[#allocation7 + $0x8] sm:$0xff]
    %v408 = vld [vmem:[#allocation7 + $0x10] sm:$0xff]
    %v409 = vld [vmem:[#allocation7 + $0x18] sm:$0xff]
    %v410 = vld [vmem:[#allocation7 + $0x20] sm:$0xff]
    %v411 = vld [vmem:[#allocation7 + $0x28] sm:$0xff]
    %v412 = vld [vmem:[#allocation7 + $0x30] sm:$0xff]
    %v413 = vld [vmem:[#allocation7 + $0x38] sm:$0xff]
    %v414 = vld [vmem:[#allocation7 + $0x40] sm:$0xff]
    %v415 = vld [vmem:[#allocation7 + $0x48] sm:$0xff]
    %v416 = vld [vmem:[#allocation7 + $0x50] sm:$0xff]
    %v417 = vld [vmem:[#allocation7 + $0x58] sm:$0xff]
    %v418 = vld [vmem:[#allocation7 + $0x60] sm:$0xff]
    %v419 = vld [vmem:[#allocation7 + $0x68] sm:$0xff]
    %v420 = vld [vmem:[#allocation7 + $0x70] sm:$0xff]
    %v421 = vld [vmem:[#allocation7 + $0x78] sm:$0xff]
    %v422 = vld [vmem:[#allocation7 + $0x80] sm:$0xff]
    %v423 = vld [vmem:[#allocation7 + $0x88] sm:$0xff]
    %v424 = vld [vmem:[#allocation7 + $0x90] sm:$0xff]
    %v425 = vld [vmem:[#allocation7 + $0x98] sm:$0xff]
    %v426 = vld [vmem:[#allocation7 + $0xa0] sm:$0xff]
    %v427 = vld [vmem:[#allocation7 + $0xa8] sm:$0xff]
    %v428 = vld [vmem:[#allocation7 + $0xb0] sm:$0xff]
    %v429 = vld [vmem:[#allocation7 + $0xb8] sm:$0xff]
    %v430 = vld [vmem:[#allocation7 + $0xc0] sm:$0xff]
    %v431 = vld [vmem:[#allocation7 + $0xc8] sm:$0xff]
    %v432 = vld [vmem:[#allocation7 + $0xd0] sm:$0xff]
    %v433 = vld [vmem:[#allocation7 + $0xd8] sm:$0xff]
    %v434 = vld [vmem:[#allocation7 + $0xe0] sm:$0xff]
    %v435 = vld [vmem:[#allocation7 + $0xe8] sm:$0xff]
    %v436 = vld [vmem:[#allocation7 + $0xf0] sm:$0xff]
    %v437 = vld [vmem:[#allocation7 + $0xf8] sm:$0xff]
    %v438 = vld [vmem:[#allocation7 + $0x100] sm:$0xff]
    %v439 = vld [vmem:[#allocation7 + $0x108] sm:$0xff]
    %v440 = vld [vmem:[#allocation7 + $0x110] sm:$0xff]
    %v441 = vld [vmem:[#allocation7 + $0x118] sm:$0xff]
    %v442 = vld [vmem:[#allocation7 + $0x120] sm:$0xff]
    %v443 = vld [vmem:[#allocation7 + $0x128] sm:$0xff]
    %v444 = vld [vmem:[#allocation7 + $0x130] sm:$0xff]
    %v445 = vld [vmem:[#allocation7 + $0x138] sm:$0xff]
    %v446 = vld [vmem:[#allocation7 + $0x140] sm:$0xff]
    %v447 = vld [vmem:[#allocation7 + $0x148] sm:$0xff]
    %v448 = vld [vmem:[#allocation7 + $0x150] sm:$0xff]
    %v449 = vld [vmem:[#allocation7 + $0x158] sm:$0xff]
    %v450 = vld [vmem:[#allocation7 + $0x160] sm:$0xff]
    %v451 = vld [vmem:[#allocation7 + $0x168] sm:$0xff]
    %v452 = vld [vmem:[#allocation7 + $0x170] sm:$0xff]
    %v453 = vld [vmem:[#allocation7 + $0x178] sm:$0xff]
    %v454 = vld [vmem:[#allocation7 + $0x180] sm:$0xff]
    %v455 = vld [vmem:[#allocation7 + $0x188] sm:$0xff]
    %v456 = vld [vmem:[#allocation7 + $0x190] sm:$0xff]
    %v457 = vld [vmem:[#allocation7 + $0x198] sm:$0xff]
    %v458 = vld [vmem:[#allocation7 + $0x1a0] sm:$0xff]
    %v459 = vld [vmem:[#allocation7 + $0x1a8] sm:$0xff]
    %v460 = vld [vmem:[#allocation7 + $0x1b0] sm:$0xff]
    %v461 = vld [vmem:[#allocation7 + $0x1b8] sm:$0xff]
    %v462 = vld [vmem:[#allocation7 + $0x1c0] sm:$0xff]
    %v463 = vld [vmem:[#allocation7 + $0x1c8] sm:$0xff]
    %v464 = vld [vmem:[#allocation7 + $0x1d0] sm:$0xff]
    %v465 = vld [vmem:[#allocation7 + $0x1d8] sm:$0xff]
    %v466 = vld [vmem:[#allocation7 + $0x1e0] sm:$0xff]
    %v467 = vld [vmem:[#allocation7 + $0x1e8] sm:$0xff]
    %v468 = vld [vmem:[#allocation7 + $0x1f0] sm:$0xff]
    %v469 = vld [vmem:[#allocation7 + $0x1f8] sm:$0xff]
    %v470 = vld [vmem:[#allocation7 + $0x200] sm:$0xff]
    %v471 = vld [vmem:[#allocation7 + $0x208] sm:$0xff]
    %v472 = vld [vmem:[#allocation7 + $0x210] sm:$0xff]
    %v473 = vld [vmem:[#allocation7 + $0x218] sm:$0xff]
    %v474 = vld [vmem:[#allocation7 + $0x220] sm:$0xff]
    %v475 = vld [vmem:[#allocation7 + $0x228] sm:$0xff]
    %v476 = vld [vmem:[#allocation7 + $0x230] sm:$0xff]
    %v477 = vld [vmem:[#allocation7 + $0x238] sm:$0xff]
    %v478 = vld [vmem:[#allocation7 + $0x240] sm:$0xff]
    %v479 = vld [vmem:[#allocation7 + $0x248] sm:$0xff]
    %v480 = vld [vmem:[#allocation7 + $0x250] sm:$0xff]
    %v481 = vld [vmem:[#allocation7 + $0x258] sm:$0xff]
    %v482 = vld [vmem:[#allocation7 + $0x260] sm:$0xff]
    %v483 = vld [vmem:[#allocation7 + $0x268] sm:$0xff]
    %v484 = vld [vmem:[#allocation7 + $0x270] sm:$0xff]
    %v485 = vld [vmem:[#allocation7 + $0x278] sm:$0xff]
    %v486 = vld [vmem:[#allocation7 + $0x280] sm:$0xff]
    %v487 = vld [vmem:[#allocation7 + $0x288] sm:$0xff]
    %v488 = vld [vmem:[#allocation7 + $0x290] sm:$0xff]
    %v489 = vld [vmem:[#allocation7 + $0x298] sm:$0xff]
    %v490 = vld [vmem:[#allocation7 + $0x2a0] sm:$0xff]
    %v491 = vld [vmem:[#allocation7 + $0x2a8] sm:$0xff]
    %v492 = vld [vmem:[#allocation7 + $0x2b0] sm:$0xff]
    %v493 = vld [vmem:[#allocation7 + $0x2b8] sm:$0xff]
    %v494 = vld [vmem:[#allocation7 + $0x2c0] sm:$0xff]
    %v495 = vld [vmem:[#allocation7 + $0x2c8] sm:$0xff]
    %v496 = vld [vmem:[#allocation7 + $0x2d0] sm:$0xff]
    %v497 = vld [vmem:[#allocation7 + $0x2d8] sm:$0xff]
    %v498 = vld [vmem:[#allocation7 + $0x2e0] sm:$0xff]
    %v499 = vld [vmem:[#allocation7 + $0x2e8] sm:$0xff]
    %v500 = vld [vmem:[#allocation7 + $0x2f0] sm:$0xff]
    %v501 = vld [vmem:[#allocation7 + $0x2f8] sm:$0xff]
    %v502 = vld [vmem:[#allocation7 + $0x300] sm:$0xff]
    %v503 = vld [vmem:[#allocation7 + $0x308] sm:$0xff]
    %v504 = vld [vmem:[#allocation7 + $0x310] sm:$0xff]
    %v505 = vld [vmem:[#allocation7 + $0x318] sm:$0xff]
    %v506 = vld [vmem:[#allocation7 + $0x320] sm:$0xff]
    %v507 = vld [vmem:[#allocation7 + $0x328] sm:$0xff]
    %v508 = vld [vmem:[#allocation7 + $0x330] sm:$0xff]
    %v509 = vld [vmem:[#allocation7 + $0x338] sm:$0xff]
    %v510 = vld [vmem:[#allocation7 + $0x340] sm:$0xff]
    %v511 = vld [vmem:[#allocation7 + $0x348] sm:$0xff]
    %v512 = vld [vmem:[#allocation7 + $0x350] sm:$0xff]
    %v513 = vld [vmem:[#allocation7 + $0x358] sm:$0xff]
    %v514 = vld [vmem:[#allocation7 + $0x360] sm:$0xff]
    %v515 = vld [vmem:[#allocation7 + $0x368] sm:$0xff]
    %v516 = vld [vmem:[#allocation7 + $0x370] sm:$0xff]
    %v517 = vld [vmem:[#allocation7 + $0x378] sm:$0xff]
    %v518 = vld [vmem:[#allocation7 + $0x380] sm:$0xff]
    %v519 = vld [vmem:[#allocation7 + $0x388] sm:$0xff]
    %v520 = vld [vmem:[#allocation7 + $0x390] sm:$0xff]
    %v521 = vld [vmem:[#allocation7 + $0x398] sm:$0xff]
    %v522 = vld [vmem:[#allocation7 + $0x3a0] sm:$0xff]
    %v523 = vld [vmem:[#allocation7 + $0x3a8] sm:$0xff]
    %v524 = vld [vmem:[#allocation7 + $0x3b0] sm:$0xff]
    %v525 = vld [vmem:[#allocation7 + $0x3b8] sm:$0xff]
    %v526 = vld [vmem:[#allocation7 + $0x3c0] sm:$0xff]
    %v527 = vld [vmem:[#allocation7 + $0x3c8] sm:$0xff]
    %v528 = vld [vmem:[#allocation7 + $0x3d0] sm:$0xff]
    %v529 = vld [vmem:[#allocation7 + $0x3d8] sm:$0xff]
    %v530 = vld [vmem:[#allocation7 + $0x3e0] sm:$0xff]
    %v531 = vld [vmem:[#allocation7 + $0x3e8] sm:$0xff]
    %v532 = vld [vmem:[#allocation7 + $0x3f0] sm:$0xff]
    %v533 = vld [vmem:[#allocation7 + $0x3f8] sm:$0xff]
    %v535 = vlaneseq
    %v536 = vshrl.u32 %v535, 7
    %v537 = vsub.s32 0, %v536
    %v538 = vrot.slane %v401, %v537
    %v539 = vlaneseq
    %v540 = vshrl.u32 %v539, 7
    %v541 = vsub.s32 1, %v540
    %v542 = vrot.slane %v401, %v541
    %v543 = vlaneseq
    %v544 = vshrl.u32 %v543, 7
    %v545 = vsub.s32 2, %v544
    %v546 = vrot.slane %v401, %v545
    %v547 = vlaneseq
    %v548 = vshrl.u32 %v547, 7
    %v549 = vsub.s32 3, %v548
    %v550 = vrot.slane %v401, %v549
    %555 = vmatprep.subr.mxu0 %v407
    %556 = vmatpush1.msra.mxu0 %v406
    %557 = vmatprep.subr.mxu0 %v411
    %558 = vmatpush1.msra.mxu0 %v410
    %559 = vmatprep.subr.mxu0 %v415
    %560 = vmatpush1.msra.mxu0 %v414
    %561 = vmatprep.subr.mxu0 %v419
    %562 = vmatpush1.msra.mxu0 %v418
    %563 = vmatprep.subr.mxu0 %v423
    %564 = vmatpush1.msra.mxu0 %v422
    %565 = vmatprep.subr.mxu0 %v427
    %566 = vmatpush1.msra.mxu0 %v426
    %567 = vmatprep.subr.mxu0 %v431
    %568 = vmatpush1.msra.mxu0 %v430
    %569 = vmatprep.subr.mxu0 %v435
    %570 = vmatpush1.msra.mxu0 %v434
    %571 = vmatprep.subr.mxu0 %v439
    %572 = vmatpush1.msra.mxu0 %v438
    %573 = vmatprep.subr.mxu0 %v443
    %574 = vmatpush1.msra.mxu0 %v442
    %575 = vmatprep.subr.mxu0 %v447
    %576 = vmatpush1.msra.mxu0 %v446
    %577 = vmatprep.subr.mxu0 %v451
    %578 = vmatpush1.msra.mxu0 %v450
    %579 = vmatprep.subr.mxu0 %v455
    %580 = vmatpush1.msra.mxu0 %v454
    %581 = vmatprep.subr.mxu0 %v459
    %582 = vmatpush1.msra.mxu0 %v458
    %583 = vmatprep.subr.mxu0 %v463
    %584 = vmatpush1.msra.mxu0 %v462
    %585 = vmatprep.subr.mxu0 %v467
    %586 = vmatpush1.msra.mxu0 %v466
    %587 = vmatprep.subr.mxu0 %v471
    %588 = vmatpush1.msra.mxu0 %v470
    %589 = vmatprep.subr.mxu0 %v475
    %590 = vmatpush1.msra.mxu0 %v474
    %591 = vmatprep.subr.mxu0 %v479
    %592 = vmatpush1.msra.mxu0 %v478
    %593 = vmatprep.subr.mxu0 %v483
    %594 = vmatpush1.msra.mxu0 %v482
    %595 = vmatprep.subr.mxu0 %v487
    %596 = vmatpush1.msra.mxu0 %v486
    %597 = vmatprep.subr.mxu0 %v491
    %598 = vmatpush1.msra.mxu0 %v490
    %599 = vmatprep.subr.mxu0 %v495
    %600 = vmatpush1.msra.mxu0 %v494
    %601 = vmatprep.subr.mxu0 %v499
    %602 = vmatpush1.msra.mxu0 %v498
    %603 = vmatprep.subr.mxu0 %v503
    %604 = vmatpush1.msra.mxu0 %v502
    %605 = vmatprep.subr.mxu0 %v507
    %606 = vmatpush1.msra.mxu0 %v506
    %607 = vmatprep.subr.mxu0 %v511
    %608 = vmatpush1.msra.mxu0 %v510
    %609 = vmatprep.subr.mxu0 %v515
    %610 = vmatpush1.msra.mxu0 %v514
    %611 = vmatprep.subr.mxu0 %v519
    %612 = vmatpush1.msra.mxu0 %v518
    %613 = vmatprep.subr.mxu0 %v523
    %614 = vmatpush1.msra.mxu0 %v522
    %615 = vmatprep.subr.mxu0 %v527
    %616 = vmatpush1.msra.mxu0 %v526
    %617 = vmatprep.subr.mxu0 %v531
    %618 = vmatpush1.msra.mxu0 %v530
    %619 = vmatprep.mubr.f32.mxu0 %v403
    %620 = vmatmul.mubr.f32.gmra.mrb[0].mxu0 %v398
    %v621 = vpop.f32.mrb[0].mxu0
    %v622 = vadd.f32 %v538, %v621
    %v623 = vpop.f32.mrb[0].mxu0
    %v624 = vadd.f32 %v542, %v623
    %625 = vdwg.mxu0
    %626 = vmatprep.subr.mxu0 %v409
    %627 = vmatpush1.msra.mxu0 %v408
    %628 = vmatprep.subr.mxu0 %v413
    %629 = vmatpush1.msra.mxu0 %v412
    %630 = vmatprep.subr.mxu0 %v417
    %631 = vmatpush1.msra.mxu0 %v416
    %632 = vmatprep.subr.mxu0 %v421
    %633 = vmatpush1.msra.mxu0 %v420
    %634 = vmatprep.subr.mxu0 %v425
    %635 = vmatpush1.msra.mxu0 %v424
    %636 = vmatprep.subr.mxu0 %v429
    %637 = vmatpush1.msra.mxu0 %v428
    %638 = vmatprep.subr.mxu0 %v433
    %639 = vmatpush1.msra.mxu0 %v432
    %640 = vmatprep.subr.mxu0 %v437
    %641 = vmatpush1.msra.mxu0 %v436
    %642 = vmatprep.subr.mxu0 %v441
    %643 = vmatpush1.msra.mxu0 %v440
    %644 = vmatprep.subr.mxu0 %v445
    %645 = vmatpush1.msra.mxu0 %v444
    %646 = vmatprep.subr.mxu0 %v449
    %647 = vmatpush1.msra.mxu0 %v448
    %648 = vmatprep.subr.mxu0 %v453
    %649 = vmatpush1.msra.mxu0 %v452
    %650 = vmatprep.subr.mxu0 %v457
    %651 = vmatpush1.msra.mxu0 %v456
    %652 = vmatprep.subr.mxu0 %v461
    %653 = vmatpush1.msra.mxu0 %v460
    %654 = vmatprep.subr.mxu0 %v465
    %655 = vmatpush1.msra.mxu0 %v464
    %656 = vmatprep.subr.mxu0 %v469
    %657 = vmatpush1.msra.mxu0 %v468
    %658 = vmatprep.subr.mxu0 %v473
    %659 = vmatpush1.msra.mxu0 %v472
    %660 = vmatprep.subr.mxu0 %v477
    %661 = vmatpush1.msra.mxu0 %v476
    %662 = vmatprep.subr.mxu0 %v481
    %663 = vmatpush1.msra.mxu0 %v480
    %664 = vmatprep.subr.mxu0 %v485
    %665 = vmatpush1.msra.mxu0 %v484
    %666 = vmatprep.subr.mxu0 %v489
    %667 = vmatpush1.msra.mxu0 %v488
    %668 = vmatprep.subr.mxu0 %v493
    %669 = vmatpush1.msra.mxu0 %v492
    %670 = vmatprep.subr.mxu0 %v497
    %671 = vmatpush1.msra.mxu0 %v496
    %672 = vmatprep.subr.mxu0 %v501
    %673 = vmatpush1.msra.mxu0 %v500
    %674 = vmatprep.subr.mxu0 %v505
    %675 = vmatpush1.msra.mxu0 %v504
    %676 = vmatprep.subr.mxu0 %v509
    %677 = vmatpush1.msra.mxu0 %v508
    %678 = vmatprep.subr.mxu0 %v513
    %679 = vmatpush1.msra.mxu0 %v512
    %680 = vmatprep.subr.mxu0 %v517
    %681 = vmatpush1.msra.mxu0 %v516
    %682 = vmatprep.subr.mxu0 %v521
    %683 = vmatpush1.msra.mxu0 %v520
    %684 = vmatprep.subr.mxu0 %v525
    %685 = vmatpush1.msra.mxu0 %v524
    %686 = vmatprep.subr.mxu0 %v529
    %687 = vmatpush1.msra.mxu0 %v528
    %688 = vmatprep.subr.mxu0 %v533
    %689 = vmatpush1.msra.mxu0 %v532
    %690 = vmatprep.mubr.f32.mxu0 %v403
    %691 = vmatmul.mubr.f32.gmra.mrb[0].mxu0 %v398
    %v692 = vpop.f32.mrb[0].mxu0
    %v693 = vadd.f32 %v546, %v692
    %v694 = vpop.f32.mrb[0].mxu0
    %v695 = vadd.f32 %v550, %v694
    %696 = vdwg.mxu0
    %v697 = vxor.u32 %v622, 2147483648
    %v698 = vxor.u32 %v624, 2147483648
    %v699 = vxor.u32 %v693, 2147483648
    %v700 = vmul.f32 %v697, 1.442695
    %v701 = vpow.pop %v700
    %v702 = vmul.f32 %v698, 1.442695
    %v703 = vpow.pop %v702
    %v704 = vmul.f32 %v699, 1.442695
    %v705 = vpow.pop %v704
    %v706 = vadd.f32 %v701, 1.0
    %v707 = vadd.f32 %v703, 1.0
    %v708 = vadd.f32 %v705, 1.0
    %v709 = vrcp.pop %v706
    %v710 = vmul.f32 1.0, %v709
    %v711 = vrcp.pop %v707
    %v712 = vmul.f32 1.0, %v711
    %v713 = vrcp.pop %v708
    %v714 = vmul.f32 1.0, %v713
    %v715 = vtanh.pop %v695
    %v716 = vmul.f32 %v405, %v710
    %v717 = vmul.f32 %v712, %v715
    %v718 = vadd.f32 %v716, %v717
    %v719 = vtanh.pop %v718
    %v720 = vmul.f32 %v714, %v719
    %v721 = vsel %vm396, %v718, %v405
    %v722 = vsel %vm396, %v720, %v403
    %723 = vst [vmem:[%s404] sm:$0xff] %v721
    %724 = vst [vmem:[%s402] sm:$0xff] %v722
    %s725 = sadd.s32 %s73, 1
    %p726 = scmp.lt.s32.totalorder %s725, 8
    %s727 = scalar_lea.vmem [#allocation2], 8
    %v728 = vld [vmem:[%s727] sm:$0xff]
    %v729 = vld [vmem:[%s2] sm:$0xf]
    %v730 = vld [vmem:[#allocation9] sm:$0xff]
    %v731 = vld [vmem:[#allocation8] sm:$0xff]
    %v732 = vld [vmem:[#allocation5] sm:$0xff]
    %v733 = vld [vmem:[#allocation5 + $0x8] sm:$0xff]
    %v734 = vld [vmem:[#allocation5 + $0x10] sm:$0xff]
    %v735 = vld [vmem:[#allocation5 + $0x18] sm:$0xff]
    %v736 = vld [vmem:[#allocation5 + $0x20] sm:$0xff]
    %v737 = vld [vmem:[#allocation5 + $0x28] sm:$0xff]
    %v738 = vld [vmem:[#allocation5 + $0x30] sm:$0xff]
    %v739 = vld [vmem:[#allocation5 + $0x38] sm:$0xff]
    %v740 = vld [vmem:[#allocation5 + $0x40] sm:$0xff]
    %v741 = vld [vmem:[#allocation5 + $0x48] sm:$0xff]
    %v742 = vld [vmem:[#allocation5 + $0x50] sm:$0xff]
    %v743 = vld [vmem:[#allocation5 + $0x58] sm:$0xff]
    %v744 = vld [vmem:[#allocation5 + $0x60] sm:$0xff]
    %v745 = vld [vmem:[#allocation5 + $0x68] sm:$0xff]
    %v746 = vld [vmem:[#allocation5 + $0x70] sm:$0xff]
    %v747 = vld [vmem:[#allocation5 + $0x78] sm:$0xff]
    %v748 = vld [vmem:[#allocation5 + $0x80] sm:$0xff]
    %v749 = vld [vmem:[#allocation5 + $0x88] sm:$0xff]
    %v750 = vld [vmem:[#allocation5 + $0x90] sm:$0xff]
    %v751 = vld [vmem:[#allocation5 + $0x98] sm:$0xff]
    %v752 = vld [vmem:[#allocation5 + $0xa0] sm:$0xff]
    %v753 = vld [vmem:[#allocation5 + $0xa8] sm:$0xff]
    %v754 = vld [vmem:[#allocation5 + $0xb0] sm:$0xff]
    %v755 = vld [vmem:[#allocation5 + $0xb8] sm:$0xff]
    %v756 = vld [vmem:[#allocation5 + $0xc0] sm:$0xff]
    %v757 = vld [vmem:[#allocation5 + $0xc8] sm:$0xff]
    %v758 = vld [vmem:[#allocation5 + $0xd0] sm:$0xff]
    %v759 = vld [vmem:[#allocation5 + $0xd8] sm:$0xff]
    %v760 = vld [vmem:[#allocation5 + $0xe0] sm:$0xff]
    %v761 = vld [vmem:[#allocation5 + $0xe8] sm:$0xff]
    %v762 = vld [vmem:[#allocation5 + $0xf0] sm:$0xff]
    %v763 = vld [vmem:[#allocation5 + $0xf8] sm:$0xff]
    %v764 = vld [vmem:[#allocation5 + $0x100] sm:$0xff]
    %v765 = vld [vmem:[#allocation5 + $0x108] sm:$0xff]
    %v766 = vld [vmem:[#allocation5 + $0x110] sm:$0xff]
    %v767 = vld [vmem:[#allocation5 + $0x118] sm:$0xff]
    %v768 = vld [vmem:[#allocation5 + $0x120] sm:$0xff]
    %v769 = vld [vmem:[#allocation5 + $0x128] sm:$0xff]
    %v770 = vld [vmem:[#allocation5 + $0x130] sm:$0xff]
    %v771 = vld [vmem:[#allocation5 + $0x138] sm:$0xff]
    %v772 = vld [vmem:[#allocation5 + $0x140] sm:$0xff]
    %v773 = vld [vmem:[#allocation5 + $0x148] sm:$0xff]
    %v774 = vld [vmem:[#allocation5 + $0x150] sm:$0xff]
    %v775 = vld [vmem:[#allocation5 + $0x158] sm:$0xff]
    %v776 = vld [vmem:[#allocation5 + $0x160] sm:$0xff]
    %v777 = vld [vmem:[#allocation5 + $0x168] sm:$0xff]
    %v778 = vld [vmem:[#allocation5 + $0x170] sm:$0xff]
    %v779 = vld [vmem:[#allocation5 + $0x178] sm:$0xff]
    %v780 = vld [vmem:[#allocation5 + $0x180] sm:$0xff]
    %v781 = vld [vmem:[#allocation5 + $0x188] sm:$0xff]
    %v782 = vld [vmem:[#allocation5 + $0x190] sm:$0xff]
    %v783 = vld [vmem:[#allocation5 + $0x198] sm:$0xff]
    %v784 = vld [vmem:[#allocation5 + $0x1a0] sm:$0xff]
    %v785 = vld [vmem:[#allocation5 + $0x1a8] sm:$0xff]
    %v786 = vld [vmem:[#allocation5 + $0x1b0] sm:$0xff]
    %v787 = vld [vmem:[#allocation5 + $0x1b8] sm:$0xff]
    %v788 = vld [vmem:[#allocation5 + $0x1c0] sm:$0xff]
    %v789 = vld [vmem:[#allocation5 + $0x1c8] sm:$0xff]
    %v790 = vld [vmem:[#allocation5 + $0x1d0] sm:$0xff]
    %v791 = vld [vmem:[#allocation5 + $0x1d8] sm:$0xff]
    %v792 = vld [vmem:[#allocation5 + $0x1e0] sm:$0xff]
    %v793 = vld [vmem:[#allocation5 + $0x1e8] sm:$0xff]
    %v794 = vld [vmem:[#allocation5 + $0x1f0] sm:$0xff]
    %v795 = vld [vmem:[#allocation5 + $0x1f8] sm:$0xff]
    %v796 = vld [vmem:[#allocation5 + $0x200] sm:$0xff]
    %v797 = vld [vmem:[#allocation5 + $0x208] sm:$0xff]
    %v798 = vld [vmem:[#allocation5 + $0x210] sm:$0xff]
    %v799 = vld [vmem:[#allocation5 + $0x218] sm:$0xff]
    %v800 = vld [vmem:[#allocation5 + $0x220] sm:$0xff]
    %v801 = vld [vmem:[#allocation5 + $0x228] sm:$0xff]
    %v802 = vld [vmem:[#allocation5 + $0x230] sm:$0xff]
    %v803 = vld [vmem:[#allocation5 + $0x238] sm:$0xff]
    %v804 = vld [vmem:[#allocation5 + $0x240] sm:$0xff]
    %v805 = vld [vmem:[#allocation5 + $0x248] sm:$0xff]
    %v806 = vld [vmem:[#allocation5 + $0x250] sm:$0xff]
    %v807 = vld [vmem:[#allocation5 + $0x258] sm:$0xff]
    %v808 = vld [vmem:[#allocation5 + $0x260] sm:$0xff]
    %v809 = vld [vmem:[#allocation5 + $0x268] sm:$0xff]
    %v810 = vld [vmem:[#allocation5 + $0x270] sm:$0xff]
    %v811 = vld [vmem:[#allocation5 + $0x278] sm:$0xff]
    %v812 = vld [vmem:[#allocation5 + $0x280] sm:$0xff]
    %v813 = vld [vmem:[#allocation5 + $0x288] sm:$0xff]
    %v814 = vld [vmem:[#allocation5 + $0x290] sm:$0xff]
    %v815 = vld [vmem:[#allocation5 + $0x298] sm:$0xff]
    %v816 = vld [vmem:[#allocation5 + $0x2a0] sm:$0xff]
    %v817 = vld [vmem:[#allocation5 + $0x2a8] sm:$0xff]
    %v818 = vld [vmem:[#allocation5 + $0x2b0] sm:$0xff]
    %v819 = vld [vmem:[#allocation5 + $0x2b8] sm:$0xff]
    %v820 = vld [vmem:[#allocation5 + $0x2c0] sm:$0xff]
    %v821 = vld [vmem:[#allocation5 + $0x2c8] sm:$0xff]
    %v822 = vld [vmem:[#allocation5 + $0x2d0] sm:$0xff]
    %v823 = vld [vmem:[#allocation5 + $0x2d8] sm:$0xff]
    %v824 = vld [vmem:[#allocation5 + $0x2e0] sm:$0xff]
    %v825 = vld [vmem:[#allocation5 + $0x2e8] sm:$0xff]
    %v826 = vld [vmem:[#allocation5 + $0x2f0] sm:$0xff]
    %v827 = vld [vmem:[#allocation5 + $0x2f8] sm:$0xff]
    %v828 = vld [vmem:[#allocation5 + $0x300] sm:$0xff]
    %v829 = vld [vmem:[#allocation5 + $0x308] sm:$0xff]
    %v830 = vld [vmem:[#allocation5 + $0x310] sm:$0xff]
    %v831 = vld [vmem:[#allocation5 + $0x318] sm:$0xff]
    %v832 = vld [vmem:[#allocation5 + $0x320] sm:$0xff]
    %v833 = vld [vmem:[#allocation5 + $0x328] sm:$0xff]
    %v834 = vld [vmem:[#allocation5 + $0x330] sm:$0xff]
    %v835 = vld [vmem:[#allocation5 + $0x338] sm:$0xff]
    %v836 = vld [vmem:[#allocation5 + $0x340] sm:$0xff]
    %v837 = vld [vmem:[#allocation5 + $0x348] sm:$0xff]
    %v838 = vld [vmem:[#allocation5 + $0x350] sm:$0xff]
    %v839 = vld [vmem:[#allocation5 + $0x358] sm:$0xff]
    %v840 = vld [vmem:[#allocation5 + $0x360] sm:$0xff]
    %v841 = vld [vmem:[#allocation5 + $0x368] sm:$0xff]
    %v842 = vld [vmem:[#allocation5 + $0x370] sm:$0xff]
    %v843 = vld [vmem:[#allocation5 + $0x378] sm:$0xff]
    %v844 = vld [vmem:[#allocation5 + $0x380] sm:$0xff]
    %v845 = vld [vmem:[#allocation5 + $0x388] sm:$0xff]
    %v846 = vld [vmem:[#allocation5 + $0x390] sm:$0xff]
    %v847 = vld [vmem:[#allocation5 + $0x398] sm:$0xff]
    %v848 = vld [vmem:[#allocation5 + $0x3a0] sm:$0xff]
    %v849 = vld [vmem:[#allocation5 + $0x3a8] sm:$0xff]
    %v850 = vld [vmem:[#allocation5 + $0x3b0] sm:$0xff]
    %v851 = vld [vmem:[#allocation5 + $0x3b8] sm:$0xff]
    %v852 = vld [vmem:[#allocation5 + $0x3c0] sm:$0xff]
    %v853 = vld [vmem:[#allocation5 + $0x3c8] sm:$0xff]
    %v854 = vld [vmem:[#allocation5 + $0x3d0] sm:$0xff]
    %v855 = vld [vmem:[#allocation5 + $0x3d8] sm:$0xff]
    %v856 = vld [vmem:[#allocation5 + $0x3e0] sm:$0xff]
    %v857 = vld [vmem:[#allocation5 + $0x3e8] sm:$0xff]
    %v858 = vld [vmem:[#allocation5 + $0x3f0] sm:$0xff]
    %v859 = vld [vmem:[#allocation5 + $0x3f8] sm:$0xff]
    %v861 = vlaneseq
    %v862 = vshrl.u32 %v861, 7
    %v863 = vsub.s32 0, %v862
    %v864 = vrot.slane %v729, %v863
    %v865 = vlaneseq
    %v866 = vshrl.u32 %v865, 7
    %v867 = vsub.s32 1, %v866
    %v868 = vrot.slane %v729, %v867
    %v869 = vlaneseq
    %v870 = vshrl.u32 %v869, 7
    %v871 = vsub.s32 2, %v870
    %v872 = vrot.slane %v729, %v871
    %v873 = vlaneseq
    %v874 = vshrl.u32 %v873, 7
    %v875 = vsub.s32 3, %v874
    %v876 = vrot.slane %v729, %v875
    %881 = vmatprep.subr.mxu0 %v733
    %882 = vmatpush1.msra.mxu0 %v732
    %883 = vmatprep.subr.mxu0 %v737
    %884 = vmatpush1.msra.mxu0 %v736
    %885 = vmatprep.subr.mxu0 %v741
    %886 = vmatpush1.msra.mxu0 %v740
    %887 = vmatprep.subr.mxu0 %v745
    %888 = vmatpush1.msra.mxu0 %v744
    %889 = vmatprep.subr.mxu0 %v749
    %890 = vmatpush1.msra.mxu0 %v748
    %891 = vmatprep.subr.mxu0 %v753
    %892 = vmatpush1.msra.mxu0 %v752
    %893 = vmatprep.subr.mxu0 %v757
    %894 = vmatpush1.msra.mxu0 %v756
    %895 = vmatprep.subr.mxu0 %v761
    %896 = vmatpush1.msra.mxu0 %v760
    %897 = vmatprep.subr.mxu0 %v765
    %898 = vmatpush1.msra.mxu0 %v764
    %899 = vmatprep.subr.mxu0 %v769
    %900 = vmatpush1.msra.mxu0 %v768
    %901 = vmatprep.subr.mxu0 %v773
    %902 = vmatpush1.msra.mxu0 %v772
    %903 = vmatprep.subr.mxu0 %v777
    %904 = vmatpush1.msra.mxu0 %v776
    %905 = vmatprep.subr.mxu0 %v781
    %906 = vmatpush1.msra.mxu0 %v780
    %907 = vmatprep.subr.mxu0 %v785
    %908 = vmatpush1.msra.mxu0 %v784
    %909 = vmatprep.subr.mxu0 %v789
    %910 = vmatpush1.msra.mxu0 %v788
    %911 = vmatprep.subr.mxu0 %v793
    %912 = vmatpush1.msra.mxu0 %v792
    %913 = vmatprep.subr.mxu0 %v797
    %914 = vmatpush1.msra.mxu0 %v796
    %915 = vmatprep.subr.mxu0 %v801
    %916 = vmatpush1.msra.mxu0 %v800
    %917 = vmatprep.subr.mxu0 %v805
    %918 = vmatpush1.msra.mxu0 %v804
    %919 = vmatprep.subr.mxu0 %v809
    %920 = vmatpush1.msra.mxu0 %v808
    %921 = vmatprep.subr.mxu0 %v813
    %922 = vmatpush1.msra.mxu0 %v812
    %923 = vmatprep.subr.mxu0 %v817
    %924 = vmatpush1.msra.mxu0 %v816
    %925 = vmatprep.subr.mxu0 %v821
    %926 = vmatpush1.msra.mxu0 %v820
    %927 = vmatprep.subr.mxu0 %v825
    %928 = vmatpush1.msra.mxu0 %v824
    %929 = vmatprep.subr.mxu0 %v829
    %930 = vmatpush1.msra.mxu0 %v828
    %931 = vmatprep.subr.mxu0 %v833
    %932 = vmatpush1.msra.mxu0 %v832
    %933 = vmatprep.subr.mxu0 %v837
    %934 = vmatpush1.msra.mxu0 %v836
    %935 = vmatprep.subr.mxu0 %v841
    %936 = vmatpush1.msra.mxu0 %v840
    %937 = vmatprep.subr.mxu0 %v845
    %938 = vmatpush1.msra.mxu0 %v844
    %939 = vmatprep.subr.mxu0 %v849
    %940 = vmatpush1.msra.mxu0 %v848
    %941 = vmatprep.subr.mxu0 %v853
    %942 = vmatpush1.msra.mxu0 %v852
    %943 = vmatprep.subr.mxu0 %v857
    %944 = vmatpush1.msra.mxu0 %v856
    %945 = vmatprep.mubr.f32.mxu0 %v730
    %946 = vmatmul.mubr.f32.gmra.mrb[0].mxu0 %v728
    %v947 = vpop.f32.mrb[0].mxu0
    %v948 = vadd.f32 %v864, %v947
    %v949 = vpop.f32.mrb[0].mxu0
    %v950 = vadd.f32 %v868, %v949
    %951 = vdwg.mxu0
    %952 = vmatprep.subr.mxu0 %v735
    %953 = vmatpush1.msra.mxu0 %v734
    %954 = vmatprep.subr.mxu0 %v739
    %955 = vmatpush1.msra.mxu0 %v738
    %956 = vmatprep.subr.mxu0 %v743
    %957 = vmatpush1.msra.mxu0 %v742
    %958 = vmatprep.subr.mxu0 %v747
    %959 = vmatpush1.msra.mxu0 %v746
    %960 = vmatprep.subr.mxu0 %v751
    %961 = vmatpush1.msra.mxu0 %v750
    %962 = vmatprep.subr.mxu0 %v755
    %963 = vmatpush1.msra.mxu0 %v754
    %964 = vmatprep.subr.mxu0 %v759
    %965 = vmatpush1.msra.mxu0 %v758
    %966 = vmatprep.subr.mxu0 %v763
    %967 = vmatpush1.msra.mxu0 %v762
    %968 = vmatprep.subr.mxu0 %v767
    %969 = vmatpush1.msra.mxu0 %v766
    %970 = vmatprep.subr.mxu0 %v771
    %971 = vmatpush1.msra.mxu0 %v770
    %972 = vmatprep.subr.mxu0 %v775
    %973 = vmatpush1.msra.mxu0 %v774
    %974 = vmatprep.subr.mxu0 %v779
    %975 = vmatpush1.msra.mxu0 %v778
    %976 = vmatprep.subr.mxu0 %v783
    %977 = vmatpush1.msra.mxu0 %v782
    %978 = vmatprep.subr.mxu0 %v787
    %979 = vmatpush1.msra.mxu0 %v786
    %980 = vmatprep.subr.mxu0 %v791
    %981 = vmatpush1.msra.mxu0 %v790
    %982 = vmatprep.subr.mxu0 %v795
    %983 = vmatpush1.msra.mxu0 %v794
    %984 = vmatprep.subr.mxu0 %v799
    %985 = vmatpush1.msra.mxu0 %v798
    %986 = vmatprep.subr.mxu0 %v803
    %987 = vmatpush1.msra.mxu0 %v802
    %988 = vmatprep.subr.mxu0 %v807
    %989 = vmatpush1.msra.mxu0 %v806
    %990 = vmatprep.subr.mxu0 %v811
    %991 = vmatpush1.msra.mxu0 %v810
    %992 = vmatprep.subr.mxu0 %v815
    %993 = vmatpush1.msra.mxu0 %v814
    %994 = vmatprep.subr.mxu0 %v819
    %995 = vmatpush1.msra.mxu0 %v818
    %996 = vmatprep.subr.mxu0 %v823
    %997 = vmatpush1.msra.mxu0 %v822
    %998 = vmatprep.subr.mxu0 %v827
    %999 = vmatpush1.msra.mxu0 %v826
    %1000 = vmatprep.subr.mxu0 %v831
    %1001 = vmatpush1.msra.mxu0 %v830
    %1002 = vmatprep.subr.mxu0 %v835
    %1003 = vmatpush1.msra.mxu0 %v834
    %1004 = vmatprep.subr.mxu0 %v839
    %1005 = vmatpush1.msra.mxu0 %v838
    %1006 = vmatprep.subr.mxu0 %v843
    %1007 = vmatpush1.msra.mxu0 %v842
    %1008 = vmatprep.subr.mxu0 %v847
    %1009 = vmatpush1.msra.mxu0 %v846
    %1010 = vmatprep.subr.mxu0 %v851
    %1011 = vmatpush1.msra.mxu0 %v850
    %1012 = vmatprep.subr.mxu0 %v855
    %1013 = vmatpush1.msra.mxu0 %v854
    %1014 = vmatprep.subr.mxu0 %v859
    %1015 = vmatpush1.msra.mxu0 %v858
    %1016 = vmatprep.mubr.f32.mxu0 %v730
    %1017 = vmatmul.mubr.f32.gmra.mrb[0].mxu0 %v728
    %v1018 = vpop.f32.mrb[0].mxu0
    %v1019 = vadd.f32 %v872, %v1018
    %v1020 = vpop.f32.mrb[0].mxu0
    %v1021 = vadd.f32 %v876, %v1020
    %1022 = vdwg.mxu0
    %v1023 = vxor.u32 %v948, 2147483648
    %v1024 = vxor.u32 %v950, 2147483648
    %v1025 = vxor.u32 %v1019, 2147483648
    %v1026 = vmul.f32 %v1023, 1.442695
    %v1027 = vpow.pop %v1026
    %v1028 = vmul.f32 %v1024, 1.442695
    %v1029 = vpow.pop %v1028
    %v1030 = vmul.f32 %v1025, 1.442695
    %v1031 = vpow.pop %v1030
    %v1032 = vadd.f32 %v1027, 1.0
    %v1033 = vadd.f32 %v1029, 1.0
    %v1034 = vadd.f32 %v1031, 1.0
    %v1035 = vrcp.pop %v1032
    %v1036 = vmul.f32 1.0, %v1035
    %v1037 = vrcp.pop %v1033
    %v1038 = vmul.f32 1.0, %v1037
    %v1039 = vrcp.pop %v1034
    %v1040 = vmul.f32 1.0, %v1039
    %v1041 = vtanh.pop %v1021
    %v1042 = vmul.f32 %v731, %v1036
    %v1043 = vmul.f32 %v1038, %v1041
    %v1044 = vadd.f32 %v1042, %v1043
    %v1045 = vtanh.pop %v1044
    %v1046 = vmul.f32 %v1040, %v1045
    %s1047 = scalar_select %p726, 1, 0
    %v1048 = vstv %s1047
    %vm1049 = vcmp.eq.s32.totalorder %v1048, 1
    %v1050 = vsel %vm1049, %v1044, %v731
    %v1051 = vsel %vm1049, %v1046, %v730
    %1052 = vst [vmem:[#allocation8] sm:$0xff] %v1050
    %1053 = vst [vmem:[#allocation9] sm:$0xff] %v1051
    %v1054 = vld [vmem:[%s4] sm:$0xf]
    %v1055 = vld [vmem:[%s402] sm:$0xff]
    %v1056 = vld [vmem:[%s404] sm:$0xff]
    %v1057 = vld [vmem:[#allocation7] sm:$0xff]
    %v1058 = vld [vmem:[#allocation7 + $0x8] sm:$0xff]
    %v1059 = vld [vmem:[#allocation7 + $0x10] sm:$0xff]
    %v1060 = vld [vmem:[#allocation7 + $0x18] sm:$0xff]
    %v1061 = vld [vmem:[#allocation7 + $0x20] sm:$0xff]
    %v1062 = vld [vmem:[#allocation7 + $0x28] sm:$0xff]
    %v1063 = vld [vmem:[#allocation7 + $0x30] sm:$0xff]
    %v1064 = vld [vmem:[#allocation7 + $0x38] sm:$0xff]
    %v1065 = vld [vmem:[#allocation7 + $0x40] sm:$0xff]
    %v1066 = vld [vmem:[#allocation7 + $0x48] sm:$0xff]
    %v1067 = vld [vmem:[#allocation7 + $0x50] sm:$0xff]
    %v1068 = vld [vmem:[#allocation7 + $0x58] sm:$0xff]
    %v1069 = vld [vmem:[#allocation7 + $0x60] sm:$0xff]
    %v1070 = vld [vmem:[#allocation7 + $0x68] sm:$0xff]
    %v1071 = vld [vmem:[#allocation7 + $0x70] sm:$0xff]
    %v1072 = vld [vmem:[#allocation7 + $0x78] sm:$0xff]
    %v1073 = vld [vmem:[#allocation7 + $0x80] sm:$0xff]
    %v1074 = vld [vmem:[#allocation7 + $0x88] sm:$0xff]
    %v1075 = vld [vmem:[#allocation7 + $0x90] sm:$0xff]
    %v1076 = vld [vmem:[#allocation7 + $0x98] sm:$0xff]
    %v1077 = vld [vmem:[#allocation7 + $0xa0] sm:$0xff]
    %v1078 = vld [vmem:[#allocation7 + $0xa8] sm:$0xff]
    %v1079 = vld [vmem:[#allocation7 + $0xb0] sm:$0xff]
    %v1080 = vld [vmem:[#allocation7 + $0xb8] sm:$0xff]
    %v1081 = vld [vmem:[#allocation7 + $0xc0] sm:$0xff]
    %v1082 = vld [vmem:[#allocation7 + $0xc8] sm:$0xff]
    %v1083 = vld [vmem:[#allocation7 + $0xd0] sm:$0xff]
    %v1084 = vld [vmem:[#allocation7 + $0xd8] sm:$0xff]
    %v1085 = vld [vmem:[#allocation7 + $0xe0] sm:$0xff]
    %v1086 = vld [vmem:[#allocation7 + $0xe8] sm:$0xff]
    %v1087 = vld [vmem:[#allocation7 + $0xf0] sm:$0xff]
    %v1088 = vld [vmem:[#allocation7 + $0xf8] sm:$0xff]
    %v1089 = vld [vmem:[#allocation7 + $0x100] sm:$0xff]
    %v1090 = vld [vmem:[#allocation7 + $0x108] sm:$0xff]
    %v1091 = vld [vmem:[#allocation7 + $0x110] sm:$0xff]
    %v1092 = vld [vmem:[#allocation7 + $0x118] sm:$0xff]
    %v1093 = vld [vmem:[#allocation7 + $0x120] sm:$0xff]
    %v1094 = vld [vmem:[#allocation7 + $0x128] sm:$0xff]
    %v1095 = vld [vmem:[#allocation7 + $0x130] sm:$0xff]
    %v1096 = vld [vmem:[#allocation7 + $0x138] sm:$0xff]
    %v1097 = vld [vmem:[#allocation7 + $0x140] sm:$0xff]
    %v1098 = vld [vmem:[#allocation7 + $0x148] sm:$0xff]
    %v1099 = vld [vmem:[#allocation7 + $0x150] sm:$0xff]
    %v1100 = vld [vmem:[#allocation7 + $0x158] sm:$0xff]
    %v1101 = vld [vmem:[#allocation7 + $0x160] sm:$0xff]
    %v1102 = vld [vmem:[#allocation7 + $0x168] sm:$0xff]
    %v1103 = vld [vmem:[#allocation7 + $0x170] sm:$0xff]
    %v1104 = vld [vmem:[#allocation7 + $0x178] sm:$0xff]
    %v1105 = vld [vmem:[#allocation7 + $0x180] sm:$0xff]
    %v1106 = vld [vmem:[#allocation7 + $0x188] sm:$0xff]
    %v1107 = vld [vmem:[#allocation7 + $0x190] sm:$0xff]
    %v1108 = vld [vmem:[#allocation7 + $0x198] sm:$0xff]
    %v1109 = vld [vmem:[#allocation7 + $0x1a0] sm:$0xff]
    %v1110 = vld [vmem:[#allocation7 + $0x1a8] sm:$0xff]
    %v1111 = vld [vmem:[#allocation7 + $0x1b0] sm:$0xff]
    %v1112 = vld [vmem:[#allocation7 + $0x1b8] sm:$0xff]
    %v1113 = vld [vmem:[#allocation7 + $0x1c0] sm:$0xff]
    %v1114 = vld [vmem:[#allocation7 + $0x1c8] sm:$0xff]
    %v1115 = vld [vmem:[#allocation7 + $0x1d0] sm:$0xff]
    %v1116 = vld [vmem:[#allocation7 + $0x1d8] sm:$0xff]
    %v1117 = vld [vmem:[#allocation7 + $0x1e0] sm:$0xff]
    %v1118 = vld [vmem:[#allocation7 + $0x1e8] sm:$0xff]
    %v1119 = vld [vmem:[#allocation7 + $0x1f0] sm:$0xff]
    %v1120 = vld [vmem:[#allocation7 + $0x1f8] sm:$0xff]
    %v1121 = vld [vmem:[#allocation7 + $0x200] sm:$0xff]
    %v1122 = vld [vmem:[#allocation7 + $0x208] sm:$0xff]
    %v1123 = vld [vmem:[#allocation7 + $0x210] sm:$0xff]
    %v1124 = vld [vmem:[#allocation7 + $0x218] sm:$0xff]
    %v1125 = vld [vmem:[#allocation7 + $0x220] sm:$0xff]
    %v1126 = vld [vmem:[#allocation7 + $0x228] sm:$0xff]
    %v1127 = vld [vmem:[#allocation7 + $0x230] sm:$0xff]
    %v1128 = vld [vmem:[#allocation7 + $0x238] sm:$0xff]
    %v1129 = vld [vmem:[#allocation7 + $0x240] sm:$0xff]
    %v1130 = vld [vmem:[#allocation7 + $0x248] sm:$0xff]
    %v1131 = vld [vmem:[#allocation7 + $0x250] sm:$0xff]
    %v1132 = vld [vmem:[#allocation7 + $0x258] sm:$0xff]
    %v1133 = vld [vmem:[#allocation7 + $0x260] sm:$0xff]
    %v1134 = vld [vmem:[#allocation7 + $0x268] sm:$0xff]
    %v1135 = vld [vmem:[#allocation7 + $0x270] sm:$0xff]
    %v1136 = vld [vmem:[#allocation7 + $0x278] sm:$0xff]
    %v1137 = vld [vmem:[#allocation7 + $0x280] sm:$0xff]
    %v1138 = vld [vmem:[#allocation7 + $0x288] sm:$0xff]
    %v1139 = vld [vmem:[#allocation7 + $0x290] sm:$0xff]
    %v1140 = vld [vmem:[#allocation7 + $0x298] sm:$0xff]
    %v1141 = vld [vmem:[#allocation7 + $0x2a0] sm:$0xff]
    %v1142 = vld [vmem:[#allocation7 + $0x2a8] sm:$0xff]
    %v1143 = vld [vmem:[#allocation7 + $0x2b0] sm:$0xff]
    %v1144 = vld [vmem:[#allocation7 + $0x2b8] sm:$0xff]
    %v1145 = vld [vmem:[#allocation7 + $0x2c0] sm:$0xff]
    %v1146 = vld [vmem:[#allocation7 + $0x2c8] sm:$0xff]
    %v1147 = vld [vmem:[#allocation7 + $0x2d0] sm:$0xff]
    %v1148 = vld [vmem:[#allocation7 + $0x2d8] sm:$0xff]
    %v1149 = vld [vmem:[#allocation7 + $0x2e0] sm:$0xff]
    %v1150 = vld [vmem:[#allocation7 + $0x2e8] sm:$0xff]
    %v1151 = vld [vmem:[#allocation7 + $0x2f0] sm:$0xff]
    %v1152 = vld [vmem:[#allocation7 + $0x2f8] sm:$0xff]
    %v1153 = vld [vmem:[#allocation7 + $0x300] sm:$0xff]
    %v1154 = vld [vmem:[#allocation7 + $0x308] sm:$0xff]
    %v1155 = vld [vmem:[#allocation7 + $0x310] sm:$0xff]
    %v1156 = vld [vmem:[#allocation7 + $0x318] sm:$0xff]
    %v1157 = vld [vmem:[#allocation7 + $0x320] sm:$0xff]
    %v1158 = vld [vmem:[#allocation7 + $0x328] sm:$0xff]
    %v1159 = vld [vmem:[#allocation7 + $0x330] sm:$0xff]
    %v1160 = vld [vmem:[#allocation7 + $0x338] sm:$0xff]
    %v1161 = vld [vmem:[#allocation7 + $0x340] sm:$0xff]
    %v1162 = vld [vmem:[#allocation7 + $0x348] sm:$0xff]
    %v1163 = vld [vmem:[#allocation7 + $0x350] sm:$0xff]
    %v1164 = vld [vmem:[#allocation7 + $0x358] sm:$0xff]
    %v1165 = vld [vmem:[#allocation7 + $0x360] sm:$0xff]
    %v1166 = vld [vmem:[#allocation7 + $0x368] sm:$0xff]
    %v1167 = vld [vmem:[#allocation7 + $0x370] sm:$0xff]
    %v1168 = vld [vmem:[#allocation7 + $0x378] sm:$0xff]
    %v1169 = vld [vmem:[#allocation7 + $0x380] sm:$0xff]
    %v1170 = vld [vmem:[#allocation7 + $0x388] sm:$0xff]
    %v1171 = vld [vmem:[#allocation7 + $0x390] sm:$0xff]
    %v1172 = vld [vmem:[#allocation7 + $0x398] sm:$0xff]
    %v1173 = vld [vmem:[#allocation7 + $0x3a0] sm:$0xff]
    %v1174 = vld [vmem:[#allocation7 + $0x3a8] sm:$0xff]
    %v1175 = vld [vmem:[#allocation7 + $0x3b0] sm:$0xff]
    %v1176 = vld [vmem:[#allocation7 + $0x3b8] sm:$0xff]
    %v1177 = vld [vmem:[#allocation7 + $0x3c0] sm:$0xff]
    %v1178 = vld [vmem:[#allocation7 + $0x3c8] sm:$0xff]
    %v1179 = vld [vmem:[#allocation7 + $0x3d0] sm:$0xff]
    %v1180 = vld [vmem:[#allocation7 + $0x3d8] sm:$0xff]
    %v1181 = vld [vmem:[#allocation7 + $0x3e0] sm:$0xff]
    %v1182 = vld [vmem:[#allocation7 + $0x3e8] sm:$0xff]
    %v1183 = vld [vmem:[#allocation7 + $0x3f0] sm:$0xff]
    %v1184 = vld [vmem:[#allocation7 + $0x3f8] sm:$0xff]
    %v1186 = vlaneseq
    %v1187 = vshrl.u32 %v1186, 7
    %v1188 = vsub.s32 0, %v1187
    %v1189 = vrot.slane %v1054, %v1188
    %v1190 = vlaneseq
    %v1191 = vshrl.u32 %v1190, 7
    %v1192 = vsub.s32 1, %v1191
    %v1193 = vrot.slane %v1054, %v1192
    %v1194 = vlaneseq
    %v1195 = vshrl.u32 %v1194, 7
    %v1196 = vsub.s32 2, %v1195
    %v1197 = vrot.slane %v1054, %v1196
    %v1198 = vlaneseq
    %v1199 = vshrl.u32 %v1198, 7
    %v1200 = vsub.s32 3, %v1199
    %v1201 = vrot.slane %v1054, %v1200
    %1206 = vmatprep.subr.mxu0 %v1058
    %1207 = vmatpush1.msra.mxu0 %v1057
    %1208 = vmatprep.subr.mxu0 %v1062
    %1209 = vmatpush1.msra.mxu0 %v1061
    %1210 = vmatprep.subr.mxu0 %v1066
    %1211 = vmatpush1.msra.mxu0 %v1065
    %1212 = vmatprep.subr.mxu0 %v1070
    %1213 = vmatpush1.msra.mxu0 %v1069
    %1214 = vmatprep.subr.mxu0 %v1074
    %1215 = vmatpush1.msra.mxu0 %v1073
    %1216 = vmatprep.subr.mxu0 %v1078
    %1217 = vmatpush1.msra.mxu0 %v1077
    %1218 = vmatprep.subr.mxu0 %v1082
    %1219 = vmatpush1.msra.mxu0 %v1081
    %1220 = vmatprep.subr.mxu0 %v1086
    %1221 = vmatpush1.msra.mxu0 %v1085
    %1222 = vmatprep.subr.mxu0 %v1090
    %1223 = vmatpush1.msra.mxu0 %v1089
    %1224 = vmatprep.subr.mxu0 %v1094
    %1225 = vmatpush1.msra.mxu0 %v1093
    %1226 = vmatprep.subr.mxu0 %v1098
    %1227 = vmatpush1.msra.mxu0 %v1097
    %1228 = vmatprep.subr.mxu0 %v1102
    %1229 = vmatpush1.msra.mxu0 %v1101
    %1230 = vmatprep.subr.mxu0 %v1106
    %1231 = vmatpush1.msra.mxu0 %v1105
    %1232 = vmatprep.subr.mxu0 %v1110
    %1233 = vmatpush1.msra.mxu0 %v1109
    %1234 = vmatprep.subr.mxu0 %v1114
    %1235 = vmatpush1.msra.mxu0 %v1113
    %1236 = vmatprep.subr.mxu0 %v1118
    %1237 = vmatpush1.msra.mxu0 %v1117
    %1238 = vmatprep.subr.mxu0 %v1122
    %1239 = vmatpush1.msra.mxu0 %v1121
    %1240 = vmatprep.subr.mxu0 %v1126
    %1241 = vmatpush1.msra.mxu0 %v1125
    %1242 = vmatprep.subr.mxu0 %v1130
    %1243 = vmatpush1.msra.mxu0 %v1129
    %1244 = vmatprep.subr.mxu0 %v1134
    %1245 = vmatpush1.msra.mxu0 %v1133
    %1246 = vmatprep.subr.mxu0 %v1138
    %1247 = vmatpush1.msra.mxu0 %v1137
    %1248 = vmatprep.subr.mxu0 %v1142
    %1249 = vmatpush1.msra.mxu0 %v1141
    %1250 = vmatprep.subr.mxu0 %v1146
    %1251 = vmatpush1.msra.mxu0 %v1145
    %1252 = vmatprep.subr.mxu0 %v1150
    %1253 = vmatpush1.msra.mxu0 %v1149
    %1254 = vmatprep.subr.mxu0 %v1154
    %1255 = vmatpush1.msra.mxu0 %v1153
    %1256 = vmatprep.subr.mxu0 %v1158
    %1257 = vmatpush1.msra.mxu0 %v1157
    %1258 = vmatprep.subr.mxu0 %v1162
    %1259 = vmatpush1.msra.mxu0 %v1161
    %1260 = vmatprep.subr.mxu0 %v1166
    %1261 = vmatpush1.msra.mxu0 %v1165
    %1262 = vmatprep.subr.mxu0 %v1170
    %1263 = vmatpush1.msra.mxu0 %v1169
    %1264 = vmatprep.subr.mxu0 %v1174
    %1265 = vmatpush1.msra.mxu0 %v1173
    %1266 = vmatprep.subr.mxu0 %v1178
    %1267 = vmatpush1.msra.mxu0 %v1177
    %1268 = vmatprep.subr.mxu0 %v1182
    %1269 = vmatpush1.msra.mxu0 %v1181
    %1270 = vmatprep.mubr.f32.mxu0 %v1055
    %1271 = vmatmul.mubr.f32.gmra.mrb[0].mxu0 %v1051
    %v1272 = vpop.f32.mrb[0].mxu0
    %v1273 = vadd.f32 %v1189, %v1272
    %v1274 = vpop.f32.mrb[0].mxu0
    %v1275 = vadd.f32 %v1193, %v1274
    %1276 = vdwg.mxu0
    %1277 = vmatprep.subr.mxu0 %v1060
    %1278 = vmatpush1.msra.mxu0 %v1059
    %1279 = vmatprep.subr.mxu0 %v1064
    %1280 = vmatpush1.msra.mxu0 %v1063
    %1281 = vmatprep.subr.mxu0 %v1068
    %1282 = vmatpush1.msra.mxu0 %v1067
    %1283 = vmatprep.subr.mxu0 %v1072
    %1284 = vmatpush1.msra.mxu0 %v1071
    %1285 = vmatprep.subr.mxu0 %v1076
    %1286 = vmatpush1.msra.mxu0 %v1075
    %1287 = vmatprep.subr.mxu0 %v1080
    %1288 = vmatpush1.msra.mxu0 %v1079
    %1289 = vmatprep.subr.mxu0 %v1084
    %1290 = vmatpush1.msra.mxu0 %v1083
    %1291 = vmatprep.subr.mxu0 %v1088
    %1292 = vmatpush1.msra.mxu0 %v1087
    %1293 = vmatprep.subr.mxu0 %v1092
    %1294 = vmatpush1.msra.mxu0 %v1091
    %1295 = vmatprep.subr.mxu0 %v1096
    %1296 = vmatpush1.msra.mxu0 %v1095
    %1297 = vmatprep.subr.mxu0 %v1100
    %1298 = vmatpush1.msra.mxu0 %v1099
    %1299 = vmatprep.subr.mxu0 %v1104
    %1300 = vmatpush1.msra.mxu0 %v1103
    %1301 = vmatprep.subr.mxu0 %v1108
    %1302 = vmatpush1.msra.mxu0 %v1107
    %1303 = vmatprep.subr.mxu0 %v1112
    %1304 = vmatpush1.msra.mxu0 %v1111
    %1305 = vmatprep.subr.mxu0 %v1116
    %1306 = vmatpush1.msra.mxu0 %v1115
    %1307 = vmatprep.subr.mxu0 %v1120
    %1308 = vmatpush1.msra.mxu0 %v1119
    %1309 = vmatprep.subr.mxu0 %v1124
    %1310 = vmatpush1.msra.mxu0 %v1123
    %1311 = vmatprep.subr.mxu0 %v1128
    %1312 = vmatpush1.msra.mxu0 %v1127
    %1313 = vmatprep.subr.mxu0 %v1132
    %1314 = vmatpush1.msra.mxu0 %v1131
    %1315 = vmatprep.subr.mxu0 %v1136
    %1316 = vmatpush1.msra.mxu0 %v1135
    %1317 = vmatprep.subr.mxu0 %v1140
    %1318 = vmatpush1.msra.mxu0 %v1139
    %1319 = vmatprep.subr.mxu0 %v1144
    %1320 = vmatpush1.msra.mxu0 %v1143
    %1321 = vmatprep.subr.mxu0 %v1148
    %1322 = vmatpush1.msra.mxu0 %v1147
    %1323 = vmatprep.subr.mxu0 %v1152
    %1324 = vmatpush1.msra.mxu0 %v1151
    %1325 = vmatprep.subr.mxu0 %v1156
    %1326 = vmatpush1.msra.mxu0 %v1155
    %1327 = vmatprep.subr.mxu0 %v1160
    %1328 = vmatpush1.msra.mxu0 %v1159
    %1329 = vmatprep.subr.mxu0 %v1164
    %1330 = vmatpush1.msra.mxu0 %v1163
    %1331 = vmatprep.subr.mxu0 %v1168
    %1332 = vmatpush1.msra.mxu0 %v1167
    %1333 = vmatprep.subr.mxu0 %v1172
    %1334 = vmatpush1.msra.mxu0 %v1171
    %1335 = vmatprep.subr.mxu0 %v1176
    %1336 = vmatpush1.msra.mxu0 %v1175
    %1337 = vmatprep.subr.mxu0 %v1180
    %1338 = vmatpush1.msra.mxu0 %v1179
    %1339 = vmatprep.subr.mxu0 %v1184
    %1340 = vmatpush1.msra.mxu0 %v1183
    %1341 = vmatprep.mubr.f32.mxu0 %v1055
    %1342 = vmatmul.mubr.f32.gmra.mrb[0].mxu0 %v1051
    %v1343 = vpop.f32.mrb[0].mxu0
    %v1344 = vadd.f32 %v1197, %v1343
    %v1345 = vpop.f32.mrb[0].mxu0
    %v1346 = vadd.f32 %v1201, %v1345
    %1347 = vdwg.mxu0
    %v1348 = vxor.u32 %v1273, 2147483648
    %v1349 = vxor.u32 %v1275, 2147483648
    %v1350 = vxor.u32 %v1344, 2147483648
    %v1351 = vmul.f32 %v1348, 1.442695
    %v1352 = vpow.pop %v1351
    %v1353 = vmul.f32 %v1349, 1.442695
    %v1354 = vpow.pop %v1353
    %v1355 = vmul.f32 %v1350, 1.442695
    %v1356 = vpow.pop %v1355
    %v1357 = vadd.f32 %v1352, 1.0
    %v1358 = vadd.f32 %v1354, 1.0
    %v1359 = vadd.f32 %v1356, 1.0
    %v1360 = vrcp.pop %v1357
    %v1361 = vmul.f32 1.0, %v1360
    %v1362 = vrcp.pop %v1358
    %v1363 = vmul.f32 1.0, %v1362
    %v1364 = vrcp.pop %v1359
    %v1365 = vmul.f32 1.0, %v1364
    %v1366 = vtanh.pop %v1346
    %v1367 = vmul.f32 %v1056, %v1361
    %v1368 = vmul.f32 %v1363, %v1366
    %v1369 = vadd.f32 %v1367, %v1368
    %v1370 = vtanh.pop %v1369
    %v1371 = vmul.f32 %v1365, %v1370
    %v1372 = vsel %vm1049, %v1369, %v1056
    %v1373 = vsel %vm1049, %v1371, %v1055
    %1374 = vst [vmem:[%s404] sm:$0xff] %v1372
    %1375 = vst [vmem:[%s402] sm:$0xff] %v1373
    %s1376 = sadd.s32 %s73, 2
    %p1377 = scmp.lt.s32.totalorder %s1376, 8
    %s1378 = scalar_lea.vmem [#allocation2], 16
    %v1379 = vld [vmem:[%s1378] sm:$0xff]
    %v1380 = vld [vmem:[%s2] sm:$0xf]
    %v1381 = vld [vmem:[#allocation9] sm:$0xff]
    %v1382 = vld [vmem:[#allocation8] sm:$0xff]
    %v1383 = vld [vmem:[#allocation5] sm:$0xff]
    %v1384 = vld [vmem:[#allocation5 + $0x8] sm:$0xff]
    %v1385 = vld [vmem:[#allocation5 + $0x10] sm:$0xff]
    %v1386 = vld [vmem:[#allocation5 + $0x18] sm:$0xff]
    %v1387 = vld [vmem:[#allocation5 + $0x20] sm:$0xff]
    %v1388 = vld [vmem:[#allocation5 + $0x28] sm:$0xff]
    %v1389 = vld [vmem:[#allocation5 + $0x30] sm:$0xff]
    %v1390 = vld [vmem:[#allocation5 + $0x38] sm:$0xff]
    %v1391 = vld [vmem:[#allocation5 + $0x40] sm:$0xff]
    %v1392 = vld [vmem:[#allocation5 + $0x48] sm:$0xff]
    %v1393 = vld [vmem:[#allocation5 + $0x50] sm:$0xff]
    %v1394 = vld [vmem:[#allocation5 + $0x58] sm:$0xff]
    %v1395 = vld [vmem:[#allocation5 + $0x60] sm:$0xff]
    %v1396 = vld [vmem:[#allocation5 + $0x68] sm:$0xff]
    %v1397 = vld [vmem:[#allocation5 + $0x70] sm:$0xff]
    %v1398 = vld [vmem:[#allocation5 + $0x78] sm:$0xff]
    %v1399 = vld [vmem:[#allocation5 + $0x80] sm:$0xff]
    %v1400 = vld [vmem:[#allocation5 + $0x88] sm:$0xff]
    %v1401 = vld [vmem:[#allocation5 + $0x90] sm:$0xff]
    %v1402 = vld [vmem:[#allocation5 + $0x98] sm:$0xff]
    %v1403 = vld [vmem:[#allocation5 + $0xa0] sm:$0xff]
    %v1404 = vld [vmem:[#allocation5 + $0xa8] sm:$0xff]
    %v1405 = vld [vmem:[#allocation5 + $0xb0] sm:$0xff]
    %v1406 = vld [vmem:[#allocation5 + $0xb8] sm:$0xff]
    %v1407 = vld [vmem:[#allocation5 + $0xc0] sm:$0xff]
    %v1408 = vld [vmem:[#allocation5 + $0xc8] sm:$0xff]
    %v1409 = vld [vmem:[#allocation5 + $0xd0] sm:$0xff]
    %v1410 = vld [vmem:[#allocation5 + $0xd8] sm:$0xff]
    %v1411 = vld [vmem:[#allocation5 + $0xe0] sm:$0xff]
    %v1412 = vld [vmem:[#allocation5 + $0xe8] sm:$0xff]
    %v1413 = vld [vmem:[#allocation5 + $0xf0] sm:$0xff]
    %v1414 = vld [vmem:[#allocation5 + $0xf8] sm:$0xff]
    %v1415 = vld [vmem:[#allocation5 + $0x100] sm:$0xff]
    %v1416 = vld [vmem:[#allocation5 + $0x108] sm:$0xff]
    %v1417 = vld [vmem:[#allocation5 + $0x110] sm:$0xff]
    %v1418 = vld [vmem:[#allocation5 + $0x118] sm:$0xff]
    %v1419 = vld [vmem:[#allocation5 + $0x120] sm:$0xff]
    %v1420 = vld [vmem:[#allocation5 + $0x128] sm:$0xff]
    %v1421 = vld [vmem:[#allocation5 + $0x130] sm:$0xff]
    %v1422 = vld [vmem:[#allocation5 + $0x138] sm:$0xff]
    %v1423 = vld [vmem:[#allocation5 + $0x140] sm:$0xff]
    %v1424 = vld [vmem:[#allocation5 + $0x148] sm:$0xff]
    %v1425 = vld [vmem:[#allocation5 + $0x150] sm:$0xff]
    %v1426 = vld [vmem:[#allocation5 + $0x158] sm:$0xff]
    %v1427 = vld [vmem:[#allocation5 + $0x160] sm:$0xff]
    %v1428 = vld [vmem:[#allocation5 + $0x168] sm:$0xff]
    %v1429 = vld [vmem:[#allocation5 + $0x170] sm:$0xff]
    %v1430 = vld [vmem:[#allocation5 + $0x178] sm:$0xff]
    %v1431 = vld [vmem:[#allocation5 + $0x180] sm:$0xff]
    %v1432 = vld [vmem:[#allocation5 + $0x188] sm:$0xff]
    %v1433 = vld [vmem:[#allocation5 + $0x190] sm:$0xff]
    %v1434 = vld [vmem:[#allocation5 + $0x198] sm:$0xff]
    %v1435 = vld [vmem:[#allocation5 + $0x1a0] sm:$0xff]
    %v1436 = vld [vmem:[#allocation5 + $0x1a8] sm:$0xff]
    %v1437 = vld [vmem:[#allocation5 + $0x1b0] sm:$0xff]
    %v1438 = vld [vmem:[#allocation5 + $0x1b8] sm:$0xff]
    %v1439 = vld [vmem:[#allocation5 + $0x1c0] sm:$0xff]
    %v1440 = vld [vmem:[#allocation5 + $0x1c8] sm:$0xff]
    %v1441 = vld [vmem:[#allocation5 + $0x1d0] sm:$0xff]
    %v1442 = vld [vmem:[#allocation5 + $0x1d8] sm:$0xff]
    %v1443 = vld [vmem:[#allocation5 + $0x1e0] sm:$0xff]
    %v1444 = vld [vmem:[#allocation5 + $0x1e8] sm:$0xff]
    %v1445 = vld [vmem:[#allocation5 + $0x1f0] sm:$0xff]
    %v1446 = vld [vmem:[#allocation5 + $0x1f8] sm:$0xff]
    %v1447 = vld [vmem:[#allocation5 + $0x200] sm:$0xff]
    %v1448 = vld [vmem:[#allocation5 + $0x208] sm:$0xff]
    %v1449 = vld [vmem:[#allocation5 + $0x210] sm:$0xff]
    %v1450 = vld [vmem:[#allocation5 + $0x218] sm:$0xff]
    %v1451 = vld [vmem:[#allocation5 + $0x220] sm:$0xff]
    %v1452 = vld [vmem:[#allocation5 + $0x228] sm:$0xff]
    %v1453 = vld [vmem:[#allocation5 + $0x230] sm:$0xff]
    %v1454 = vld [vmem:[#allocation5 + $0x238] sm:$0xff]
    %v1455 = vld [vmem:[#allocation5 + $0x240] sm:$0xff]
    %v1456 = vld [vmem:[#allocation5 + $0x248] sm:$0xff]
    %v1457 = vld [vmem:[#allocation5 + $0x250] sm:$0xff]
    %v1458 = vld [vmem:[#allocation5 + $0x258] sm:$0xff]
    %v1459 = vld [vmem:[#allocation5 + $0x260] sm:$0xff]
    %v1460 = vld [vmem:[#allocation5 + $0x268] sm:$0xff]
    %v1461 = vld [vmem:[#allocation5 + $0x270] sm:$0xff]
    %v1462 = vld [vmem:[#allocation5 + $0x278] sm:$0xff]
    %v1463 = vld [vmem:[#allocation5 + $0x280] sm:$0xff]
    %v1464 = vld [vmem:[#allocation5 + $0x288] sm:$0xff]
    %v1465 = vld [vmem:[#allocation5 + $0x290] sm:$0xff]
    %v1466 = vld [vmem:[#allocation5 + $0x298] sm:$0xff]
    %v1467 = vld [vmem:[#allocation5 + $0x2a0] sm:$0xff]
    %v1468 = vld [vmem:[#allocation5 + $0x2a8] sm:$0xff]
    %v1469 = vld [vmem:[#allocation5 + $0x2b0] sm:$0xff]
    %v1470 = vld [vmem:[#allocation5 + $0x2b8] sm:$0xff]
    %v1471 = vld [vmem:[#allocation5 + $0x2c0] sm:$0xff]
    %v1472 = vld [vmem:[#allocation5 + $0x2c8] sm:$0xff]
    %v1473 = vld [vmem:[#allocation5 + $0x2d0] sm:$0xff]
    %v1474 = vld [vmem:[#allocation5 + $0x2d8] sm:$0xff]
    %v1475 = vld [vmem:[#allocation5 + $0x2e0] sm:$0xff]
    %v1476 = vld [vmem:[#allocation5 + $0x2e8] sm:$0xff]
    %v1477 = vld [vmem:[#allocation5 + $0x2f0] sm:$0xff]
    %v1478 = vld [vmem:[#allocation5 + $0x2f8] sm:$0xff]
    %v1479 = vld [vmem:[#allocation5 + $0x300] sm:$0xff]
    %v1480 = vld [vmem:[#allocation5 + $0x308] sm:$0xff]
    %v1481 = vld [vmem:[#allocation5 + $0x310] sm:$0xff]
    %v1482 = vld [vmem:[#allocation5 + $0x318] sm:$0xff]
    %v1483 = vld [vmem:[#allocation5 + $0x320] sm:$0xff]
    %v1484 = vld [vmem:[#allocation5 + $0x328] sm:$0xff]
    %v1485 = vld [vmem:[#allocation5 + $0x330] sm:$0xff]
    %v1486 = vld [vmem:[#allocation5 + $0x338] sm:$0xff]
    %v1487 = vld [vmem:[#allocation5 + $0x340] sm:$0xff]
    %v1488 = vld [vmem:[#allocation5 + $0x348] sm:$0xff]
    %v1489 = vld [vmem:[#allocation5 + $0x350] sm:$0xff]
    %v1490 = vld [vmem:[#allocation5 + $0x358] sm:$0xff]
    %v1491 = vld [vmem:[#allocation5 + $0x360] sm:$0xff]
    %v1492 = vld [vmem:[#allocation5 + $0x368] sm:$0xff]
    %v1493 = vld [vmem:[#allocation5 + $0x370] sm:$0xff]
    %v1494 = vld [vmem:[#allocation5 + $0x378] sm:$0xff]
    %v1495 = vld [vmem:[#allocation5 + $0x380] sm:$0xff]
    %v1496 = vld [vmem:[#allocation5 + $0x388] sm:$0xff]
    %v1497 = vld [vmem:[#allocation5 + $0x390] sm:$0xff]
    %v1498 = vld [vmem:[#allocation5 + $0x398] sm:$0xff]
    %v1499 = vld [vmem:[#allocation5 + $0x3a0] sm:$0xff]
    %v1500 = vld [vmem:[#allocation5 + $0x3a8] sm:$0xff]
    %v1501 = vld [vmem:[#allocation5 + $0x3b0] sm:$0xff]
    %v1502 = vld [vmem:[#allocation5 + $0x3b8] sm:$0xff]
    %v1503 = vld [vmem:[#allocation5 + $0x3c0] sm:$0xff]
    %v1504 = vld [vmem:[#allocation5 + $0x3c8] sm:$0xff]
    %v1505 = vld [vmem:[#allocation5 + $0x3d0] sm:$0xff]
    %v1506 = vld [vmem:[#allocation5 + $0x3d8] sm:$0xff]
    %v1507 = vld [vmem:[#allocation5 + $0x3e0] sm:$0xff]
    %v1508 = vld [vmem:[#allocation5 + $0x3e8] sm:$0xff]
    %v1509 = vld [vmem:[#allocation5 + $0x3f0] sm:$0xff]
    %v1510 = vld [vmem:[#allocation5 + $0x3f8] sm:$0xff]
    %v1512 = vlaneseq
    %v1513 = vshrl.u32 %v1512, 7
    %v1514 = vsub.s32 0, %v1513
    %v1515 = vrot.slane %v1380, %v1514
    %v1516 = vlaneseq
    %v1517 = vshrl.u32 %v1516, 7
    %v1518 = vsub.s32 1, %v1517
    %v1519 = vrot.slane %v1380, %v1518
    %v1520 = vlaneseq
    %v1521 = vshrl.u32 %v1520, 7
    %v1522 = vsub.s32 2, %v1521
    %v1523 = vrot.slane %v1380, %v1522
    %v1524 = vlaneseq
    %v1525 = vshrl.u32 %v1524, 7
    %v1526 = vsub.s32 3, %v1525
    %v1527 = vrot.slane %v1380, %v1526
    %1532 = vmatprep.subr.mxu0 %v1384
    %1533 = vmatpush1.msra.mxu0 %v1383
    %1534 = vmatprep.subr.mxu0 %v1388
    %1535 = vmatpush1.msra.mxu0 %v1387
    %1536 = vmatprep.subr.mxu0 %v1392
    %1537 = vmatpush1.msra.mxu0 %v1391
    %1538 = vmatprep.subr.mxu0 %v1396
    %1539 = vmatpush1.msra.mxu0 %v1395
    %1540 = vmatprep.subr.mxu0 %v1400
    %1541 = vmatpush1.msra.mxu0 %v1399
    %1542 = vmatprep.subr.mxu0 %v1404
    %1543 = vmatpush1.msra.mxu0 %v1403
    %1544 = vmatprep.subr.mxu0 %v1408
    %1545 = vmatpush1.msra.mxu0 %v1407
    %1546 = vmatprep.subr.mxu0 %v1412
    %1547 = vmatpush1.msra.mxu0 %v1411
    %1548 = vmatprep.subr.mxu0 %v1416
    %1549 = vmatpush1.msra.mxu0 %v1415
    %1550 = vmatprep.subr.mxu0 %v1420
    %1551 = vmatpush1.msra.mxu0 %v1419
    %1552 = vmatprep.subr.mxu0 %v1424
    %1553 = vmatpush1.msra.mxu0 %v1423
    %1554 = vmatprep.subr.mxu0 %v1428
    %1555 = vmatpush1.msra.mxu0 %v1427
    %1556 = vmatprep.subr.mxu0 %v1432
    %1557 = vmatpush1.msra.mxu0 %v1431
    %1558 = vmatprep.subr.mxu0 %v1436
    %1559 = vmatpush1.msra.mxu0 %v1435
    %1560 = vmatprep.subr.mxu0 %v1440
    %1561 = vmatpush1.msra.mxu0 %v1439
    %1562 = vmatprep.subr.mxu0 %v1444
    %1563 = vmatpush1.msra.mxu0 %v1443
    %1564 = vmatprep.subr.mxu0 %v1448
    %1565 = vmatpush1.msra.mxu0 %v1447
    %1566 = vmatprep.subr.mxu0 %v1452
    %1567 = vmatpush1.msra.mxu0 %v1451
    %1568 = vmatprep.subr.mxu0 %v1456
    %1569 = vmatpush1.msra.mxu0 %v1455
    %1570 = vmatprep.subr.mxu0 %v1460
    %1571 = vmatpush1.msra.mxu0 %v1459
    %1572 = vmatprep.subr.mxu0 %v1464
    %1573 = vmatpush1.msra.mxu0 %v1463
    %1574 = vmatprep.subr.mxu0 %v1468
    %1575 = vmatpush1.msra.mxu0 %v1467
    %1576 = vmatprep.subr.mxu0 %v1472
    %1577 = vmatpush1.msra.mxu0 %v1471
    %1578 = vmatprep.subr.mxu0 %v1476
    %1579 = vmatpush1.msra.mxu0 %v1475
    %1580 = vmatprep.subr.mxu0 %v1480
    %1581 = vmatpush1.msra.mxu0 %v1479
    %1582 = vmatprep.subr.mxu0 %v1484
    %1583 = vmatpush1.msra.mxu0 %v1483
    %1584 = vmatprep.subr.mxu0 %v1488
    %1585 = vmatpush1.msra.mxu0 %v1487
    %1586 = vmatprep.subr.mxu0 %v1492
    %1587 = vmatpush1.msra.mxu0 %v1491
    %1588 = vmatprep.subr.mxu0 %v1496
    %1589 = vmatpush1.msra.mxu0 %v1495
    %1590 = vmatprep.subr.mxu0 %v1500
    %1591 = vmatpush1.msra.mxu0 %v1499
    %1592 = vmatprep.subr.mxu0 %v1504
    %1593 = vmatpush1.msra.mxu0 %v1503
    %1594 = vmatprep.subr.mxu0 %v1508
    %1595 = vmatpush1.msra.mxu0 %v1507
    %1596 = vmatprep.mubr.f32.mxu0 %v1381
    %1597 = vmatmul.mubr.f32.gmra.mrb[0].mxu0 %v1379
    %v1598 = vpop.f32.mrb[0].mxu0
    %v1599 = vadd.f32 %v1515, %v1598
    %v1600 = vpop.f32.mrb[0].mxu0
    %v1601 = vadd.f32 %v1519, %v1600
    %1602 = vdwg.mxu0
    %1603 = vmatprep.subr.mxu0 %v1386
    %1604 = vmatpush1.msra.mxu0 %v1385
    %1605 = vmatprep.subr.mxu0 %v1390
    %1606 = vmatpush1.msra.mxu0 %v1389
    %1607 = vmatprep.subr.mxu0 %v1394
    %1608 = vmatpush1.msra.mxu0 %v1393
    %1609 = vmatprep.subr.mxu0 %v1398
    %1610 = vmatpush1.msra.mxu0 %v1397
    %1611 = vmatprep.subr.mxu0 %v1402
    %1612 = vmatpush1.msra.mxu0 %v1401
    %1613 = vmatprep.subr.mxu0 %v1406
    %1614 = vmatpush1.msra.mxu0 %v1405
    %1615 = vmatprep.subr.mxu0 %v1410
    %1616 = vmatpush1.msra.mxu0 %v1409
    %1617 = vmatprep.subr.mxu0 %v1414
    %1618 = vmatpush1.msra.mxu0 %v1413
    %1619 = vmatprep.subr.mxu0 %v1418
    %1620 = vmatpush1.msra.mxu0 %v1417
    %1621 = vmatprep.subr.mxu0 %v1422
    %1622 = vmatpush1.msra.mxu0 %v1421
    %1623 = vmatprep.subr.mxu0 %v1426
    %1624 = vmatpush1.msra.mxu0 %v1425
    %1625 = vmatprep.subr.mxu0 %v1430
    %1626 = vmatpush1.msra.mxu0 %v1429
    %1627 = vmatprep.subr.mxu0 %v1434
    %1628 = vmatpush1.msra.mxu0 %v1433
    %1629 = vmatprep.subr.mxu0 %v1438
    %1630 = vmatpush1.msra.mxu0 %v1437
    %1631 = vmatprep.subr.mxu0 %v1442
    %1632 = vmatpush1.msra.mxu0 %v1441
    %1633 = vmatprep.subr.mxu0 %v1446
    %1634 = vmatpush1.msra.mxu0 %v1445
    %1635 = vmatprep.subr.mxu0 %v1450
    %1636 = vmatpush1.msra.mxu0 %v1449
    %1637 = vmatprep.subr.mxu0 %v1454
    %1638 = vmatpush1.msra.mxu0 %v1453
    %1639 = vmatprep.subr.mxu0 %v1458
    %1640 = vmatpush1.msra.mxu0 %v1457
    %1641 = vmatprep.subr.mxu0 %v1462
    %1642 = vmatpush1.msra.mxu0 %v1461
    %1643 = vmatprep.subr.mxu0 %v1466
    %1644 = vmatpush1.msra.mxu0 %v1465
    %1645 = vmatprep.subr.mxu0 %v1470
    %1646 = vmatpush1.msra.mxu0 %v1469
    %1647 = vmatprep.subr.mxu0 %v1474
    %1648 = vmatpush1.msra.mxu0 %v1473
    %1649 = vmatprep.subr.mxu0 %v1478
    %1650 = vmatpush1.msra.mxu0 %v1477
    %1651 = vmatprep.subr.mxu0 %v1482
    %1652 = vmatpush1.msra.mxu0 %v1481
    %1653 = vmatprep.subr.mxu0 %v1486
    %1654 = vmatpush1.msra.mxu0 %v1485
    %1655 = vmatprep.subr.mxu0 %v1490
    %1656 = vmatpush1.msra.mxu0 %v1489
    %1657 = vmatprep.subr.mxu0 %v1494
    %1658 = vmatpush1.msra.mxu0 %v1493
    %1659 = vmatprep.subr.mxu0 %v1498
    %1660 = vmatpush1.msra.mxu0 %v1497
    %1661 = vmatprep.subr.mxu0 %v1502
    %1662 = vmatpush1.msra.mxu0 %v1501
    %1663 = vmatprep.subr.mxu0 %v1506
    %1664 = vmatpush1.msra.mxu0 %v1505
    %1665 = vmatprep.subr.mxu0 %v1510
    %1666 = vmatpush1.msra.mxu0 %v1509
    %1667 = vmatprep.mubr.f32.mxu0 %v1381
    %1668 = vmatmul.mubr.f32.gmra.mrb[0].mxu0 %v1379
    %v1669 = vpop.f32.mrb[0].mxu0
    %v1670 = vadd.f32 %v1523, %v1669
    %v1671 = vpop.f32.mrb[0].mxu0
    %v1672 = vadd.f32 %v1527, %v1671
    %1673 = vdwg.mxu0
    %v1674 = vxor.u32 %v1599, 2147483648
    %v1675 = vxor.u32 %v1601, 2147483648
    %v1676 = vxor.u32 %v1670, 2147483648
    %v1677 = vmul.f32 %v1674, 1.442695
    %v1678 = vpow.pop %v1677
    %v1679 = vmul.f32 %v1675, 1.442695
    %v1680 = vpow.pop %v1679
    %v1681 = vmul.f32 %v1676, 1.442695
    %v1682 = vpow.pop %v1681
    %v1683 = vadd.f32 %v1678, 1.0
    %v1684 = vadd.f32 %v1680, 1.0
    %v1685 = vadd.f32 %v1682, 1.0
    %v1686 = vrcp.pop %v1683
    %v1687 = vmul.f32 1.0, %v1686
    %v1688 = vrcp.pop %v1684
    %v1689 = vmul.f32 1.0, %v1688
    %v1690 = vrcp.pop %v1685
    %v1691 = vmul.f32 1.0, %v1690
    %v1692 = vtanh.pop %v1672
    %v1693 = vmul.f32 %v1382, %v1687
    %v1694 = vmul.f32 %v1689, %v1692
    %v1695 = vadd.f32 %v1693, %v1694
    %v1696 = vtanh.pop %v1695
    %v1697 = vmul.f32 %v1691, %v1696
    %s1698 = scalar_select %p1377, 1, 0
    %v1699 = vstv %s1698
    %vm1700 = vcmp.eq.s32.totalorder %v1699, 1
    %v1701 = vsel %vm1700, %v1695, %v1382
    %v1702 = vsel %vm1700, %v1697, %v1381
    %1703 = vst [vmem:[#allocation8] sm:$0xff] %v1701
    %1704 = vst [vmem:[#allocation9] sm:$0xff] %v1702
    %v1705 = vld [vmem:[%s4] sm:$0xf]
    %v1706 = vld [vmem:[%s402] sm:$0xff]
    %v1707 = vld [vmem:[%s404] sm:$0xff]
    %v1708 = vld [vmem:[#allocation7] sm:$0xff]
    %v1709 = vld [vmem:[#allocation7 + $0x8] sm:$0xff]
    %v1710 = vld [vmem:[#allocation7 + $0x10] sm:$0xff]
    %v1711 = vld [vmem:[#allocation7 + $0x18] sm:$0xff]
    %v1712 = vld [vmem:[#allocation7 + $0x20] sm:$0xff]
    %v1713 = vld [vmem:[#allocation7 + $0x28] sm:$0xff]
    %v1714 = vld [vmem:[#allocation7 + $0x30] sm:$0xff]
    %v1715 = vld [vmem:[#allocation7 + $0x38] sm:$0xff]
    %v1716 = vld [vmem:[#allocation7 + $0x40] sm:$0xff]
    %v1717 = vld [vmem:[#allocation7 + $0x48] sm:$0xff]
    %v1718 = vld [vmem:[#allocation7 + $0x50] sm:$0xff]
    %v1719 = vld [vmem:[#allocation7 + $0x58] sm:$0xff]
    %v1720 = vld [vmem:[#allocation7 + $0x60] sm:$0xff]
    %v1721 = vld [vmem:[#allocation7 + $0x68] sm:$0xff]
    %v1722 = vld [vmem:[#allocation7 + $0x70] sm:$0xff]
    %v1723 = vld [vmem:[#allocation7 + $0x78] sm:$0xff]
    %v1724 = vld [vmem:[#allocation7 + $0x80] sm:$0xff]
    %v1725 = vld [vmem:[#allocation7 + $0x88] sm:$0xff]
    %v1726 = vld [vmem:[#allocation7 + $0x90] sm:$0xff]
    %v1727 = vld [vmem:[#allocation7 + $0x98] sm:$0xff]
    %v1728 = vld [vmem:[#allocation7 + $0xa0] sm:$0xff]
    %v1729 = vld [vmem:[#allocation7 + $0xa8] sm:$0xff]
    %v1730 = vld [vmem:[#allocation7 + $0xb0] sm:$0xff]
    %v1731 = vld [vmem:[#allocation7 + $0xb8] sm:$0xff]
    %v1732 = vld [vmem:[#allocation7 + $0xc0] sm:$0xff]
    %v1733 = vld [vmem:[#allocation7 + $0xc8] sm:$0xff]
    %v1734 = vld [vmem:[#allocation7 + $0xd0] sm:$0xff]
    %v1735 = vld [vmem:[#allocation7 + $0xd8] sm:$0xff]
    %v1736 = vld [vmem:[#allocation7 + $0xe0] sm:$0xff]
    %v1737 = vld [vmem:[#allocation7 + $0xe8] sm:$0xff]
    %v1738 = vld [vmem:[#allocation7 + $0xf0] sm:$0xff]
    %v1739 = vld [vmem:[#allocation7 + $0xf8] sm:$0xff]
    %v1740 = vld [vmem:[#allocation7 + $0x100] sm:$0xff]
    %v1741 = vld [vmem:[#allocation7 + $0x108] sm:$0xff]
    %v1742 = vld [vmem:[#allocation7 + $0x110] sm:$0xff]
    %v1743 = vld [vmem:[#allocation7 + $0x118] sm:$0xff]
    %v1744 = vld [vmem:[#allocation7 + $0x120] sm:$0xff]
    %v1745 = vld [vmem:[#allocation7 + $0x128] sm:$0xff]
    %v1746 = vld [vmem:[#allocation7 + $0x130] sm:$0xff]
    %v1747 = vld [vmem:[#allocation7 + $0x138] sm:$0xff]
    %v1748 = vld [vmem:[#allocation7 + $0x140] sm:$0xff]
    %v1749 = vld [vmem:[#allocation7 + $0x148] sm:$0xff]
    %v1750 = vld [vmem:[#allocation7 + $0x150] sm:$0xff]
    %v1751 = vld [vmem:[#allocation7 + $0x158] sm:$0xff]
    %v1752 = vld [vmem:[#allocation7 + $0x160] sm:$0xff]
    %v1753 = vld [vmem:[#allocation7 + $0x168] sm:$0xff]
    %v1754 = vld [vmem:[#allocation7 + $0x170] sm:$0xff]
    %v1755 = vld [vmem:[#allocation7 + $0x178] sm:$0xff]
    %v1756 = vld [vmem:[#allocation7 + $0x180] sm:$0xff]
    %v1757 = vld [vmem:[#allocation7 + $0x188] sm:$0xff]
    %v1758 = vld [vmem:[#allocation7 + $0x190] sm:$0xff]
    %v1759 = vld [vmem:[#allocation7 + $0x198] sm:$0xff]
    %v1760 = vld [vmem:[#allocation7 + $0x1a0] sm:$0xff]
    %v1761 = vld [vmem:[#allocation7 + $0x1a8] sm:$0xff]
    %v1762 = vld [vmem:[#allocation7 + $0x1b0] sm:$0xff]
    %v1763 = vld [vmem:[#allocation7 + $0x1b8] sm:$0xff]
    %v1764 = vld [vmem:[#allocation7 + $0x1c0] sm:$0xff]
    %v1765 = vld [vmem:[#allocation7 + $0x1c8] sm:$0xff]
    %v1766 = vld [vmem:[#allocation7 + $0x1d0] sm:$0xff]
    %v1767 = vld [vmem:[#allocation7 + $0x1d8] sm:$0xff]
    %v1768 = vld [vmem:[#allocation7 + $0x1e0] sm:$0xff]
    %v1769 = vld [vmem:[#allocation7 + $0x1e8] sm:$0xff]
    %v1770 = vld [vmem:[#allocation7 + $0x1f0] sm:$0xff]
    %v1771 = vld [vmem:[#allocation7 + $0x1f8] sm:$0xff]
    %v1772 = vld [vmem:[#allocation7 + $0x200] sm:$0xff]
    %v1773 = vld [vmem:[#allocation7 + $0x208] sm:$0xff]
    %v1774 = vld [vmem:[#allocation7 + $0x210] sm:$0xff]
    %v1775 = vld [vmem:[#allocation7 + $0x218] sm:$0xff]
    %v1776 = vld [vmem:[#allocation7 + $0x220] sm:$0xff]
    %v1777 = vld [vmem:[#allocation7 + $0x228] sm:$0xff]
    %v1778 = vld [vmem:[#allocation7 + $0x230] sm:$0xff]
    %v1779 = vld [vmem:[#allocation7 + $0x238] sm:$0xff]
    %v1780 = vld [vmem:[#allocation7 + $0x240] sm:$0xff]
    %v1781 = vld [vmem:[#allocation7 + $0x248] sm:$0xff]
    %v1782 = vld [vmem:[#allocation7 + $0x250] sm:$0xff]
    %v1783 = vld [vmem:[#allocation7 + $0x258] sm:$0xff]
    %v1784 = vld [vmem:[#allocation7 + $0x260] sm:$0xff]
    %v1785 = vld [vmem:[#allocation7 + $0x268] sm:$0xff]
    %v1786 = vld [vmem:[#allocation7 + $0x270] sm:$0xff]
    %v1787 = vld [vmem:[#allocation7 + $0x278] sm:$0xff]
    %v1788 = vld [vmem:[#allocation7 + $0x280] sm:$0xff]
    %v1789 = vld [vmem:[#allocation7 + $0x288] sm:$0xff]
    %v1790 = vld [vmem:[#allocation7 + $0x290] sm:$0xff]
    %v1791 = vld [vmem:[#allocation7 + $0x298] sm:$0xff]
    %v1792 = vld [vmem:[#allocation7 + $0x2a0] sm:$0xff]
    %v1793 = vld [vmem:[#allocation7 + $0x2a8] sm:$0xff]
    %v1794 = vld [vmem:[#allocation7 + $0x2b0] sm:$0xff]
    %v1795 = vld [vmem:[#allocation7 + $0x2b8] sm:$0xff]
    %v1796 = vld [vmem:[#allocation7 + $0x2c0] sm:$0xff]
    %v1797 = vld [vmem:[#allocation7 + $0x2c8] sm:$0xff]
    %v1798 = vld [vmem:[#allocation7 + $0x2d0] sm:$0xff]
    %v1799 = vld [vmem:[#allocation7 + $0x2d8] sm:$0xff]
    %v1800 = vld [vmem:[#allocation7 + $0x2e0] sm:$0xff]
    %v1801 = vld [vmem:[#allocation7 + $0x2e8] sm:$0xff]
    %v1802 = vld [vmem:[#allocation7 + $0x2f0] sm:$0xff]
    %v1803 = vld [vmem:[#allocation7 + $0x2f8] sm:$0xff]
    %v1804 = vld [vmem:[#allocation7 + $0x300] sm:$0xff]
    %v1805 = vld [vmem:[#allocation7 + $0x308] sm:$0xff]
    %v1806 = vld [vmem:[#allocation7 + $0x310] sm:$0xff]
    %v1807 = vld [vmem:[#allocation7 + $0x318] sm:$0xff]
    %v1808 = vld [vmem:[#allocation7 + $0x320] sm:$0xff]
    %v1809 = vld [vmem:[#allocation7 + $0x328] sm:$0xff]
    %v1810 = vld [vmem:[#allocation7 + $0x330] sm:$0xff]
    %v1811 = vld [vmem:[#allocation7 + $0x338] sm:$0xff]
    %v1812 = vld [vmem:[#allocation7 + $0x340] sm:$0xff]
    %v1813 = vld [vmem:[#allocation7 + $0x348] sm:$0xff]
    %v1814 = vld [vmem:[#allocation7 + $0x350] sm:$0xff]
    %v1815 = vld [vmem:[#allocation7 + $0x358] sm:$0xff]
    %v1816 = vld [vmem:[#allocation7 + $0x360] sm:$0xff]
    %v1817 = vld [vmem:[#allocation7 + $0x368] sm:$0xff]
    %v1818 = vld [vmem:[#allocation7 + $0x370] sm:$0xff]
    %v1819 = vld [vmem:[#allocation7 + $0x378] sm:$0xff]
    %v1820 = vld [vmem:[#allocation7 + $0x380] sm:$0xff]
    %v1821 = vld [vmem:[#allocation7 + $0x388] sm:$0xff]
    %v1822 = vld [vmem:[#allocation7 + $0x390] sm:$0xff]
    %v1823 = vld [vmem:[#allocation7 + $0x398] sm:$0xff]
    %v1824 = vld [vmem:[#allocation7 + $0x3a0] sm:$0xff]
    %v1825 = vld [vmem:[#allocation7 + $0x3a8] sm:$0xff]
    %v1826 = vld [vmem:[#allocation7 + $0x3b0] sm:$0xff]
    %v1827 = vld [vmem:[#allocation7 + $0x3b8] sm:$0xff]
    %v1828 = vld [vmem:[#allocation7 + $0x3c0] sm:$0xff]
    %v1829 = vld [vmem:[#allocation7 + $0x3c8] sm:$0xff]
    %v1830 = vld [vmem:[#allocation7 + $0x3d0] sm:$0xff]
    %v1831 = vld [vmem:[#allocation7 + $0x3d8] sm:$0xff]
    %v1832 = vld [vmem:[#allocation7 + $0x3e0] sm:$0xff]
    %v1833 = vld [vmem:[#allocation7 + $0x3e8] sm:$0xff]
    %v1834 = vld [vmem:[#allocation7 + $0x3f0] sm:$0xff]
    %v1835 = vld [vmem:[#allocation7 + $0x3f8] sm:$0xff]
    %v1837 = vlaneseq
    %v1838 = vshrl.u32 %v1837, 7
    %v1839 = vsub.s32 0, %v1838
    %v1840 = vrot.slane %v1705, %v1839
    %v1841 = vlaneseq
    %v1842 = vshrl.u32 %v1841, 7
    %v1843 = vsub.s32 1, %v1842
    %v1844 = vrot.slane %v1705, %v1843
    %v1845 = vlaneseq
    %v1846 = vshrl.u32 %v1845, 7
    %v1847 = vsub.s32 2, %v1846
    %v1848 = vrot.slane %v1705, %v1847
    %v1849 = vlaneseq
    %v1850 = vshrl.u32 %v1849, 7
    %v1851 = vsub.s32 3, %v1850
    %v1852 = vrot.slane %v1705, %v1851
    %1857 = vmatprep.subr.mxu0 %v1709
    %1858 = vmatpush1.msra.mxu0 %v1708
    %1859 = vmatprep.subr.mxu0 %v1713
    %1860 = vmatpush1.msra.mxu0 %v1712
    %1861 = vmatprep.subr.mxu0 %v1717
    %1862 = vmatpush1.msra.mxu0 %v1716
    %1863 = vmatprep.subr.mxu0 %v1721
    %1864 = vmatpush1.msra.mxu0 %v1720
    %1865 = vmatprep.subr.mxu0 %v1725
    %1866 = vmatpush1.msra.mxu0 %v1724
    %1867 = vmatprep.subr.mxu0 %v1729
    %1868 = vmatpush1.msra.mxu0 %v1728
    %1869 = vmatprep.subr.mxu0 %v1733
    %1870 = vmatpush1.msra.mxu0 %v1732
    %1871 = vmatprep.subr.mxu0 %v1737
    %1872 = vmatpush1.msra.mxu0 %v1736
    %1873 = vmatprep.subr.mxu0 %v1741
    %1874 = vmatpush1.msra.mxu0 %v1740
    %1875 = vmatprep.subr.mxu0 %v1745
    %1876 = vmatpush1.msra.mxu0 %v1744
    %1877 = vmatprep.subr.mxu0 %v1749
    %1878 = vmatpush1.msra.mxu0 %v1748
    %1879 = vmatprep.subr.mxu0 %v1753
    %1880 = vmatpush1.msra.mxu0 %v1752
    %1881 = vmatprep.subr.mxu0 %v1757
    %1882 = vmatpush1.msra.mxu0 %v1756
    %1883 = vmatprep.subr.mxu0 %v1761
    %1884 = vmatpush1.msra.mxu0 %v1760
    %1885 = vmatprep.subr.mxu0 %v1765
    %1886 = vmatpush1.msra.mxu0 %v1764
    %1887 = vmatprep.subr.mxu0 %v1769
    %1888 = vmatpush1.msra.mxu0 %v1768
    %1889 = vmatprep.subr.mxu0 %v1773
    %1890 = vmatpush1.msra.mxu0 %v1772
    %1891 = vmatprep.subr.mxu0 %v1777
    %1892 = vmatpush1.msra.mxu0 %v1776
    %1893 = vmatprep.subr.mxu0 %v1781
    %1894 = vmatpush1.msra.mxu0 %v1780
    %1895 = vmatprep.subr.mxu0 %v1785
    %1896 = vmatpush1.msra.mxu0 %v1784
    %1897 = vmatprep.subr.mxu0 %v1789
    %1898 = vmatpush1.msra.mxu0 %v1788
    %1899 = vmatprep.subr.mxu0 %v1793
    %1900 = vmatpush1.msra.mxu0 %v1792
    %1901 = vmatprep.subr.mxu0 %v1797
    %1902 = vmatpush1.msra.mxu0 %v1796
    %1903 = vmatprep.subr.mxu0 %v1801
    %1904 = vmatpush1.msra.mxu0 %v1800
    %1905 = vmatprep.subr.mxu0 %v1805
    %1906 = vmatpush1.msra.mxu0 %v1804
    %1907 = vmatprep.subr.mxu0 %v1809
    %1908 = vmatpush1.msra.mxu0 %v1808
    %1909 = vmatprep.subr.mxu0 %v1813
    %1910 = vmatpush1.msra.mxu0 %v1812
    %1911 = vmatprep.subr.mxu0 %v1817
    %1912 = vmatpush1.msra.mxu0 %v1816
    %1913 = vmatprep.subr.mxu0 %v1821
    %1914 = vmatpush1.msra.mxu0 %v1820
    %1915 = vmatprep.subr.mxu0 %v1825
    %1916 = vmatpush1.msra.mxu0 %v1824
    %1917 = vmatprep.subr.mxu0 %v1829
    %1918 = vmatpush1.msra.mxu0 %v1828
    %1919 = vmatprep.subr.mxu0 %v1833
    %1920 = vmatpush1.msra.mxu0 %v1832
    %1921 = vmatprep.mubr.f32.mxu0 %v1706
    %1922 = vmatmul.mubr.f32.gmra.mrb[0].mxu0 %v1702
    %v1923 = vpop.f32.mrb[0].mxu0
    %v1924 = vadd.f32 %v1840, %v1923
    %v1925 = vpop.f32.mrb[0].mxu0
    %v1926 = vadd.f32 %v1844, %v1925
    %1927 = vdwg.mxu0
    %1928 = vmatprep.subr.mxu0 %v1711
    %1929 = vmatpush1.msra.mxu0 %v1710
    %1930 = vmatprep.subr.mxu0 %v1715
    %1931 = vmatpush1.msra.mxu0 %v1714
    %1932 = vmatprep.subr.mxu0 %v1719
    %1933 = vmatpush1.msra.mxu0 %v1718
    %1934 = vmatprep.subr.mxu0 %v1723
    %1935 = vmatpush1.msra.mxu0 %v1722
    %1936 = vmatprep.subr.mxu0 %v1727
    %1937 = vmatpush1.msra.mxu0 %v1726
    %1938 = vmatprep.subr.mxu0 %v1731
    %1939 = vmatpush1.msra.mxu0 %v1730
    %1940 = vmatprep.subr.mxu0 %v1735
    %1941 = vmatpush1.msra.mxu0 %v1734
    %1942 = vmatprep.subr.mxu0 %v1739
    %1943 = vmatpush1.msra.mxu0 %v1738
    %1944 = vmatprep.subr.mxu0 %v1743
    %1945 = vmatpush1.msra.mxu0 %v1742
    %1946 = vmatprep.subr.mxu0 %v1747
    %1947 = vmatpush1.msra.mxu0 %v1746
    %1948 = vmatprep.subr.mxu0 %v1751
    %1949 = vmatpush1.msra.mxu0 %v1750
    %1950 = vmatprep.subr.mxu0 %v1755
    %1951 = vmatpush1.msra.mxu0 %v1754
    %1952 = vmatprep.subr.mxu0 %v1759
    %1953 = vmatpush1.msra.mxu0 %v1758
    %1954 = vmatprep.subr.mxu0 %v1763
    %1955 = vmatpush1.msra.mxu0 %v1762
    %1956 = vmatprep.subr.mxu0 %v1767
    %1957 = vmatpush1.msra.mxu0 %v1766
    %1958 = vmatprep.subr.mxu0 %v1771
    %1959 = vmatpush1.msra.mxu0 %v1770
    %1960 = vmatprep.subr.mxu0 %v1775
    %1961 = vmatpush1.msra.mxu0 %v1774
    %1962 = vmatprep.subr.mxu0 %v1779
    %1963 = vmatpush1.msra.mxu0 %v1778
    %1964 = vmatprep.subr.mxu0 %v1783
    %1965 = vmatpush1.msra.mxu0 %v1782
    %1966 = vmatprep.subr.mxu0 %v1787
    %1967 = vmatpush1.msra.mxu0 %v1786
    %1968 = vmatprep.subr.mxu0 %v1791
    %1969 = vmatpush1.msra.mxu0 %v1790
    %1970 = vmatprep.subr.mxu0 %v1795
    %1971 = vmatpush1.msra.mxu0 %v1794
    %1972 = vmatprep.subr.mxu0 %v1799
    %1973 = vmatpush1.msra.mxu0 %v1798
    %1974 = vmatprep.subr.mxu0 %v1803
    %1975 = vmatpush1.msra.mxu0 %v1802
    %1976 = vmatprep.subr.mxu0 %v1807
    %1977 = vmatpush1.msra.mxu0 %v1806
    %1978 = vmatprep.subr.mxu0 %v1811
    %1979 = vmatpush1.msra.mxu0 %v1810
    %1980 = vmatprep.subr.mxu0 %v1815
    %1981 = vmatpush1.msra.mxu0 %v1814
    %1982 = vmatprep.subr.mxu0 %v1819
    %1983 = vmatpush1.msra.mxu0 %v1818
    %1984 = vmatprep.subr.mxu0 %v1823
    %1985 = vmatpush1.msra.mxu0 %v1822
    %1986 = vmatprep.subr.mxu0 %v1827
    %1987 = vmatpush1.msra.mxu0 %v1826
    %1988 = vmatprep.subr.mxu0 %v1831
    %1989 = vmatpush1.msra.mxu0 %v1830
    %1990 = vmatprep.subr.mxu0 %v1835
    %1991 = vmatpush1.msra.mxu0 %v1834
    %1992 = vmatprep.mubr.f32.mxu0 %v1706
    %1993 = vmatmul.mubr.f32.gmra.mrb[0].mxu0 %v1702
    %v1994 = vpop.f32.mrb[0].mxu0
    %v1995 = vadd.f32 %v1848, %v1994
    %v1996 = vpop.f32.mrb[0].mxu0
    %v1997 = vadd.f32 %v1852, %v1996
    %1998 = vdwg.mxu0
    %v1999 = vxor.u32 %v1924, 2147483648
    %v2000 = vxor.u32 %v1926, 2147483648
    %v2001 = vxor.u32 %v1995, 2147483648
    %v2002 = vmul.f32 %v1999, 1.442695
    %v2003 = vpow.pop %v2002
    %v2004 = vmul.f32 %v2000, 1.442695
    %v2005 = vpow.pop %v2004
    %v2006 = vmul.f32 %v2001, 1.442695
    %v2007 = vpow.pop %v2006
    %v2008 = vadd.f32 %v2003, 1.0
    %v2009 = vadd.f32 %v2005, 1.0
    %v2010 = vadd.f32 %v2007, 1.0
    %v2011 = vrcp.pop %v2008
    %v2012 = vmul.f32 1.0, %v2011
    %v2013 = vrcp.pop %v2009
    %v2014 = vmul.f32 1.0, %v2013
    %v2015 = vrcp.pop %v2010
    %v2016 = vmul.f32 1.0, %v2015
    %v2017 = vtanh.pop %v1997
    %v2018 = vmul.f32 %v1707, %v2012
    %v2019 = vmul.f32 %v2014, %v2017
    %v2020 = vadd.f32 %v2018, %v2019
    %v2021 = vtanh.pop %v2020
    %v2022 = vmul.f32 %v2016, %v2021
    %v2023 = vsel %vm1700, %v2020, %v1707
    %v2024 = vsel %vm1700, %v2022, %v1706
    %2025 = vst [vmem:[%s404] sm:$0xff] %v2023
    %2026 = vst [vmem:[%s402] sm:$0xff] %v2024
    %s2027 = sadd.s32 %s73, 3
    %p2028 = scmp.lt.s32.totalorder %s2027, 8
    %s2029 = scalar_lea.vmem [#allocation2], 24
    %v2030 = vld [vmem:[%s2029] sm:$0xff]
    %v2031 = vld [vmem:[%s2] sm:$0xf]
    %v2032 = vld [vmem:[#allocation9] sm:$0xff]
    %v2033 = vld [vmem:[#allocation8] sm:$0xff]
    %v2034 = vld [vmem:[#allocation5] sm:$0xff]
    %v2035 = vld [vmem:[#allocation5 + $0x8] sm:$0xff]
    %v2036 = vld [vmem:[#allocation5 + $0x10] sm:$0xff]
    %v2037 = vld [vmem:[#allocation5 + $0x18] sm:$0xff]
    %v2038 = vld [vmem:[#allocation5 + $0x20] sm:$0xff]
    %v2039 = vld [vmem:[#allocation5 + $0x28] sm:$0xff]
    %v2040 = vld [vmem:[#allocation5 + $0x30] sm:$0xff]
    %v2041 = vld [vmem:[#allocation5 + $0x38] sm:$0xff]
    %v2042 = vld [vmem:[#allocation5 + $0x40] sm:$0xff]
    %v2043 = vld [vmem:[#allocation5 + $0x48] sm:$0xff]
    %v2044 = vld [vmem:[#allocation5 + $0x50] sm:$0xff]
    %v2045 = vld [vmem:[#allocation5 + $0x58] sm:$0xff]
    %v2046 = vld [vmem:[#allocation5 + $0x60] sm:$0xff]
    %v2047 = vld [vmem:[#allocation5 + $0x68] sm:$0xff]
    %v2048 = vld [vmem:[#allocation5 + $0x70] sm:$0xff]
    %v2049 = vld [vmem:[#allocation5 + $0x78] sm:$0xff]
    %v2050 = vld [vmem:[#allocation5 + $0x80] sm:$0xff]
    %v2051 = vld [vmem:[#allocation5 + $0x88] sm:$0xff]
    %v2052 = vld [vmem:[#allocation5 + $0x90] sm:$0xff]
    %v2053 = vld [vmem:[#allocation5 + $0x98] sm:$0xff]
    %v2054 = vld [vmem:[#allocation5 + $0xa0] sm:$0xff]
    %v2055 = vld [vmem:[#allocation5 + $0xa8] sm:$0xff]
    %v2056 = vld [vmem:[#allocation5 + $0xb0] sm:$0xff]
    %v2057 = vld [vmem:[#allocation5 + $0xb8] sm:$0xff]
    %v2058 = vld [vmem:[#allocation5 + $0xc0] sm:$0xff]
    %v2059 = vld [vmem:[#allocation5 + $0xc8] sm:$0xff]
    %v2060 = vld [vmem:[#allocation5 + $0xd0] sm:$0xff]
    %v2061 = vld [vmem:[#allocation5 + $0xd8] sm:$0xff]
    %v2062 = vld [vmem:[#allocation5 + $0xe0] sm:$0xff]
    %v2063 = vld [vmem:[#allocation5 + $0xe8] sm:$0xff]
    %v2064 = vld [vmem:[#allocation5 + $0xf0] sm:$0xff]
    %v2065 = vld [vmem:[#allocation5 + $0xf8] sm:$0xff]
    %v2066 = vld [vmem:[#allocation5 + $0x100] sm:$0xff]
    %v2067 = vld [vmem:[#allocation5 + $0x108] sm:$0xff]
    %v2068 = vld [vmem:[#allocation5 + $0x110] sm:$0xff]
    %v2069 = vld [vmem:[#allocation5 + $0x118] sm:$0xff]
    %v2070 = vld [vmem:[#allocation5 + $0x120] sm:$0xff]
    %v2071 = vld [vmem:[#allocation5 + $0x128] sm:$0xff]
    %v2072 = vld [vmem:[#allocation5 + $0x130] sm:$0xff]
    %v2073 = vld [vmem:[#allocation5 + $0x138] sm:$0xff]
    %v2074 = vld [vmem:[#allocation5 + $0x140] sm:$0xff]
    %v2075 = vld [vmem:[#allocation5 + $0x148] sm:$0xff]
    %v2076 = vld [vmem:[#allocation5 + $0x150] sm:$0xff]
    %v2077 = vld [vmem:[#allocation5 + $0x158] sm:$0xff]
    %v2078 = vld [vmem:[#allocation5 + $0x160] sm:$0xff]
    %v2079 = vld [vmem:[#allocation5 + $0x168] sm:$0xff]
    %v2080 = vld [vmem:[#allocation5 + $0x170] sm:$0xff]
    %v2081 = vld [vmem:[#allocation5 + $0x178] sm:$0xff]
    %v2082 = vld [vmem:[#allocation5 + $0x180] sm:$0xff]
    %v2083 = vld [vmem:[#allocation5 + $0x188] sm:$0xff]
    %v2084 = vld [vmem:[#allocation5 + $0x190] sm:$0xff]
    %v2085 = vld [vmem:[#allocation5 + $0x198] sm:$0xff]
    %v2086 = vld [vmem:[#allocation5 + $0x1a0] sm:$0xff]
    %v2087 = vld [vmem:[#allocation5 + $0x1a8] sm:$0xff]
    %v2088 = vld [vmem:[#allocation5 + $0x1b0] sm:$0xff]
    %v2089 = vld [vmem:[#allocation5 + $0x1b8] sm:$0xff]
    %v2090 = vld [vmem:[#allocation5 + $0x1c0] sm:$0xff]
    %v2091 = vld [vmem:[#allocation5 + $0x1c8] sm:$0xff]
    %v2092 = vld [vmem:[#allocation5 + $0x1d0] sm:$0xff]
    %v2093 = vld [vmem:[#allocation5 + $0x1d8] sm:$0xff]
    %v2094 = vld [vmem:[#allocation5 + $0x1e0] sm:$0xff]
    %v2095 = vld [vmem:[#allocation5 + $0x1e8] sm:$0xff]
    %v2096 = vld [vmem:[#allocation5 + $0x1f0] sm:$0xff]
    %v2097 = vld [vmem:[#allocation5 + $0x1f8] sm:$0xff]
    %v2098 = vld [vmem:[#allocation5 + $0x200] sm:$0xff]
    %v2099 = vld [vmem:[#allocation5 + $0x208] sm:$0xff]
    %v2100 = vld [vmem:[#allocation5 + $0x210] sm:$0xff]
    %v2101 = vld [vmem:[#allocation5 + $0x218] sm:$0xff]
    %v2102 = vld [vmem:[#allocation5 + $0x220] sm:$0xff]
    %v2103 = vld [vmem:[#allocation5 + $0x228] sm:$0xff]
    %v2104 = vld [vmem:[#allocation5 + $0x230] sm:$0xff]
    %v2105 = vld [vmem:[#allocation5 + $0x238] sm:$0xff]
    %v2106 = vld [vmem:[#allocation5 + $0x240] sm:$0xff]
    %v2107 = vld [vmem:[#allocation5 + $0x248] sm:$0xff]
    %v2108 = vld [vmem:[#allocation5 + $0x250] sm:$0xff]
    %v2109 = vld [vmem:[#allocation5 + $0x258] sm:$0xff]
    %v2110 = vld [vmem:[#allocation5 + $0x260] sm:$0xff]
    %v2111 = vld [vmem:[#allocation5 + $0x268] sm:$0xff]
    %v2112 = vld [vmem:[#allocation5 + $0x270] sm:$0xff]
    %v2113 = vld [vmem:[#allocation5 + $0x278] sm:$0xff]
    %v2114 = vld [vmem:[#allocation5 + $0x280] sm:$0xff]
    %v2115 = vld [vmem:[#allocation5 + $0x288] sm:$0xff]
    %v2116 = vld [vmem:[#allocation5 + $0x290] sm:$0xff]
    %v2117 = vld [vmem:[#allocation5 + $0x298] sm:$0xff]
    %v2118 = vld [vmem:[#allocation5 + $0x2a0] sm:$0xff]
    %v2119 = vld [vmem:[#allocation5 + $0x2a8] sm:$0xff]
    %v2120 = vld [vmem:[#allocation5 + $0x2b0] sm:$0xff]
    %v2121 = vld [vmem:[#allocation5 + $0x2b8] sm:$0xff]
    %v2122 = vld [vmem:[#allocation5 + $0x2c0] sm:$0xff]
    %v2123 = vld [vmem:[#allocation5 + $0x2c8] sm:$0xff]
    %v2124 = vld [vmem:[#allocation5 + $0x2d0] sm:$0xff]
    %v2125 = vld [vmem:[#allocation5 + $0x2d8] sm:$0xff]
    %v2126 = vld [vmem:[#allocation5 + $0x2e0] sm:$0xff]
    %v2127 = vld [vmem:[#allocation5 + $0x2e8] sm:$0xff]
    %v2128 = vld [vmem:[#allocation5 + $0x2f0] sm:$0xff]
    %v2129 = vld [vmem:[#allocation5 + $0x2f8] sm:$0xff]
    %v2130 = vld [vmem:[#allocation5 + $0x300] sm:$0xff]
    %v2131 = vld [vmem:[#allocation5 + $0x308] sm:$0xff]
    %v2132 = vld [vmem:[#allocation5 + $0x310] sm:$0xff]
    %v2133 = vld [vmem:[#allocation5 + $0x318] sm:$0xff]
    %v2134 = vld [vmem:[#allocation5 + $0x320] sm:$0xff]
    %v2135 = vld [vmem:[#allocation5 + $0x328] sm:$0xff]
    %v2136 = vld [vmem:[#allocation5 + $0x330] sm:$0xff]
    %v2137 = vld [vmem:[#allocation5 + $0x338] sm:$0xff]
    %v2138 = vld [vmem:[#allocation5 + $0x340] sm:$0xff]
    %v2139 = vld [vmem:[#allocation5 + $0x348] sm:$0xff]
    %v2140 = vld [vmem:[#allocation5 + $0x350] sm:$0xff]
    %v2141 = vld [vmem:[#allocation5 + $0x358] sm:$0xff]
    %v2142 = vld [vmem:[#allocation5 + $0x360] sm:$0xff]
    %v2143 = vld [vmem:[#allocation5 + $0x368] sm:$0xff]
    %v2144 = vld [vmem:[#allocation5 + $0x370] sm:$0xff]
    %v2145 = vld [vmem:[#allocation5 + $0x378] sm:$0xff]
    %v2146 = vld [vmem:[#allocation5 + $0x380] sm:$0xff]
    %v2147 = vld [vmem:[#allocation5 + $0x388] sm:$0xff]
    %v2148 = vld [vmem:[#allocation5 + $0x390] sm:$0xff]
    %v2149 = vld [vmem:[#allocation5 + $0x398] sm:$0xff]
    %v2150 = vld [vmem:[#allocation5 + $0x3a0] sm:$0xff]
    %v2151 = vld [vmem:[#allocation5 + $0x3a8] sm:$0xff]
    %v2152 = vld [vmem:[#allocation5 + $0x3b0] sm:$0xff]
    %v2153 = vld [vmem:[#allocation5 + $0x3b8] sm:$0xff]
    %v2154 = vld [vmem:[#allocation5 + $0x3c0] sm:$0xff]
    %v2155 = vld [vmem:[#allocation5 + $0x3c8] sm:$0xff]
    %v2156 = vld [vmem:[#allocation5 + $0x3d0] sm:$0xff]
    %v2157 = vld [vmem:[#allocation5 + $0x3d8] sm:$0xff]
    %v2158 = vld [vmem:[#allocation5 + $0x3e0] sm:$0xff]
    %v2159 = vld [vmem:[#allocation5 + $0x3e8] sm:$0xff]
    %v2160 = vld [vmem:[#allocation5 + $0x3f0] sm:$0xff]
    %v2161 = vld [vmem:[#allocation5 + $0x3f8] sm:$0xff]
    %v2163 = vlaneseq
    %v2164 = vshrl.u32 %v2163, 7
    %v2165 = vsub.s32 0, %v2164
    %v2166 = vrot.slane %v2031, %v2165
    %v2167 = vlaneseq
    %v2168 = vshrl.u32 %v2167, 7
    %v2169 = vsub.s32 1, %v2168
    %v2170 = vrot.slane %v2031, %v2169
    %v2171 = vlaneseq
    %v2172 = vshrl.u32 %v2171, 7
    %v2173 = vsub.s32 2, %v2172
    %v2174 = vrot.slane %v2031, %v2173
    %v2175 = vlaneseq
    %v2176 = vshrl.u32 %v2175, 7
    %v2177 = vsub.s32 3, %v2176
    %v2178 = vrot.slane %v2031, %v2177
    %2183 = vmatprep.subr.mxu0 %v2035
    %2184 = vmatpush1.msra.mxu0 %v2034
    %2185 = vmatprep.subr.mxu0 %v2039
    %2186 = vmatpush1.msra.mxu0 %v2038
    %2187 = vmatprep.subr.mxu0 %v2043
    %2188 = vmatpush1.msra.mxu0 %v2042
    %2189 = vmatprep.subr.mxu0 %v2047
    %2190 = vmatpush1.msra.mxu0 %v2046
    %2191 = vmatprep.subr.mxu0 %v2051
    %2192 = vmatpush1.msra.mxu0 %v2050
    %2193 = vmatprep.subr.mxu0 %v2055
    %2194 = vmatpush1.msra.mxu0 %v2054
    %2195 = vmatprep.subr.mxu0 %v2059
    %2196 = vmatpush1.msra.mxu0 %v2058
    %2197 = vmatprep.subr.mxu0 %v2063
    %2198 = vmatpush1.msra.mxu0 %v2062
    %2199 = vmatprep.subr.mxu0 %v2067
    %2200 = vmatpush1.msra.mxu0 %v2066
    %2201 = vmatprep.subr.mxu0 %v2071
    %2202 = vmatpush1.msra.mxu0 %v2070
    %2203 = vmatprep.subr.mxu0 %v2075
    %2204 = vmatpush1.msra.mxu0 %v2074
    %2205 = vmatprep.subr.mxu0 %v2079
    %2206 = vmatpush1.msra.mxu0 %v2078
    %2207 = vmatprep.subr.mxu0 %v2083
    %2208 = vmatpush1.msra.mxu0 %v2082
    %2209 = vmatprep.subr.mxu0 %v2087
    %2210 = vmatpush1.msra.mxu0 %v2086
    %2211 = vmatprep.subr.mxu0 %v2091
    %2212 = vmatpush1.msra.mxu0 %v2090
    %2213 = vmatprep.subr.mxu0 %v2095
    %2214 = vmatpush1.msra.mxu0 %v2094
    %2215 = vmatprep.subr.mxu0 %v2099
    %2216 = vmatpush1.msra.mxu0 %v2098
    %2217 = vmatprep.subr.mxu0 %v2103
    %2218 = vmatpush1.msra.mxu0 %v2102
    %2219 = vmatprep.subr.mxu0 %v2107
    %2220 = vmatpush1.msra.mxu0 %v2106
    %2221 = vmatprep.subr.mxu0 %v2111
    %2222 = vmatpush1.msra.mxu0 %v2110
    %2223 = vmatprep.subr.mxu0 %v2115
    %2224 = vmatpush1.msra.mxu0 %v2114
    %2225 = vmatprep.subr.mxu0 %v2119
    %2226 = vmatpush1.msra.mxu0 %v2118
    %2227 = vmatprep.subr.mxu0 %v2123
    %2228 = vmatpush1.msra.mxu0 %v2122
    %2229 = vmatprep.subr.mxu0 %v2127
    %2230 = vmatpush1.msra.mxu0 %v2126
    %2231 = vmatprep.subr.mxu0 %v2131
    %2232 = vmatpush1.msra.mxu0 %v2130
    %2233 = vmatprep.subr.mxu0 %v2135
    %2234 = vmatpush1.msra.mxu0 %v2134
    %2235 = vmatprep.subr.mxu0 %v2139
    %2236 = vmatpush1.msra.mxu0 %v2138
    %2237 = vmatprep.subr.mxu0 %v2143
    %2238 = vmatpush1.msra.mxu0 %v2142
    %2239 = vmatprep.subr.mxu0 %v2147
    %2240 = vmatpush1.msra.mxu0 %v2146
    %2241 = vmatprep.subr.mxu0 %v2151
    %2242 = vmatpush1.msra.mxu0 %v2150
    %2243 = vmatprep.subr.mxu0 %v2155
    %2244 = vmatpush1.msra.mxu0 %v2154
    %2245 = vmatprep.subr.mxu0 %v2159
    %2246 = vmatpush1.msra.mxu0 %v2158
    %2247 = vmatprep.mubr.f32.mxu0 %v2032
    %2248 = vmatmul.mubr.f32.gmra.mrb[0].mxu0 %v2030
    %v2249 = vpop.f32.mrb[0].mxu0
    %v2250 = vadd.f32 %v2166, %v2249
    %v2251 = vpop.f32.mrb[0].mxu0
    %v2252 = vadd.f32 %v2170, %v2251
    %2253 = vdwg.mxu0
    %2254 = vmatprep.subr.mxu0 %v2037
    %2255 = vmatpush1.msra.mxu0 %v2036
    %2256 = vmatprep.subr.mxu0 %v2041
    %2257 = vmatpush1.msra.mxu0 %v2040
    %2258 = vmatprep.subr.mxu0 %v2045
    %2259 = vmatpush1.msra.mxu0 %v2044
    %2260 = vmatprep.subr.mxu0 %v2049
    %2261 = vmatpush1.msra.mxu0 %v2048
    %2262 = vmatprep.subr.mxu0 %v2053
    %2263 = vmatpush1.msra.mxu0 %v2052
    %2264 = vmatprep.subr.mxu0 %v2057
    %2265 = vmatpush1.msra.mxu0 %v2056
    %2266 = vmatprep.subr.mxu0 %v2061
    %2267 = vmatpush1.msra.mxu0 %v2060
    %2268 = vmatprep.subr.mxu0 %v2065
    %2269 = vmatpush1.msra.mxu0 %v2064
    %2270 = vmatprep.subr.mxu0 %v2069
    %2271 = vmatpush1.msra.mxu0 %v2068
    %2272 = vmatprep.subr.mxu0 %v2073
    %2273 = vmatpush1.msra.mxu0 %v2072
    %2274 = vmatprep.subr.mxu0 %v2077
    %2275 = vmatpush1.msra.mxu0 %v2076
    %2276 = vmatprep.subr.mxu0 %v2081
    %2277 = vmatpush1.msra.mxu0 %v2080
    %2278 = vmatprep.subr.mxu0 %v2085
    %2279 = vmatpush1.msra.mxu0 %v2084
    %2280 = vmatprep.subr.mxu0 %v2089
    %2281 = vmatpush1.msra.mxu0 %v2088
    %2282 = vmatprep.subr.mxu0 %v2093
    %2283 = vmatpush1.msra.mxu0 %v2092
    %2284 = vmatprep.subr.mxu0 %v2097
    %2285 = vmatpush1.msra.mxu0 %v2096
    %2286 = vmatprep.subr.mxu0 %v2101
    %2287 = vmatpush1.msra.mxu0 %v2100
    %2288 = vmatprep.subr.mxu0 %v2105
    %2289 = vmatpush1.msra.mxu0 %v2104
    %2290 = vmatprep.subr.mxu0 %v2109
    %2291 = vmatpush1.msra.mxu0 %v2108
    %2292 = vmatprep.subr.mxu0 %v2113
    %2293 = vmatpush1.msra.mxu0 %v2112
    %2294 = vmatprep.subr.mxu0 %v2117
    %2295 = vmatpush1.msra.mxu0 %v2116
    %2296 = vmatprep.subr.mxu0 %v2121
    %2297 = vmatpush1.msra.mxu0 %v2120
    %2298 = vmatprep.subr.mxu0 %v2125
    %2299 = vmatpush1.msra.mxu0 %v2124
    %2300 = vmatprep.subr.mxu0 %v2129
    %2301 = vmatpush1.msra.mxu0 %v2128
    %2302 = vmatprep.subr.mxu0 %v2133
    %2303 = vmatpush1.msra.mxu0 %v2132
    %2304 = vmatprep.subr.mxu0 %v2137
    %2305 = vmatpush1.msra.mxu0 %v2136
    %2306 = vmatprep.subr.mxu0 %v2141
    %2307 = vmatpush1.msra.mxu0 %v2140
    %2308 = vmatprep.subr.mxu0 %v2145
    %2309 = vmatpush1.msra.mxu0 %v2144
    %2310 = vmatprep.subr.mxu0 %v2149
    %2311 = vmatpush1.msra.mxu0 %v2148
    %2312 = vmatprep.subr.mxu0 %v2153
    %2313 = vmatpush1.msra.mxu0 %v2152
    %2314 = vmatprep.subr.mxu0 %v2157
    %2315 = vmatpush1.msra.mxu0 %v2156
    %2316 = vmatprep.subr.mxu0 %v2161
    %2317 = vmatpush1.msra.mxu0 %v2160
    %2318 = vmatprep.mubr.f32.mxu0 %v2032
    %2319 = vmatmul.mubr.f32.gmra.mrb[0].mxu0 %v2030
    %v2320 = vpop.f32.mrb[0].mxu0
    %v2321 = vadd.f32 %v2174, %v2320
    %v2322 = vpop.f32.mrb[0].mxu0
    %v2323 = vadd.f32 %v2178, %v2322
    %2324 = vdwg.mxu0
    %v2325 = vxor.u32 %v2250, 2147483648
    %v2326 = vxor.u32 %v2252, 2147483648
    %v2327 = vxor.u32 %v2321, 2147483648
    %v2328 = vmul.f32 %v2325, 1.442695
    %v2329 = vpow.pop %v2328
    %v2330 = vmul.f32 %v2326, 1.442695
    %v2331 = vpow.pop %v2330
    %v2332 = vmul.f32 %v2327, 1.442695
    %v2333 = vpow.pop %v2332
    %v2334 = vadd.f32 %v2329, 1.0
    %v2335 = vadd.f32 %v2331, 1.0
    %v2336 = vadd.f32 %v2333, 1.0
    %v2337 = vrcp.pop %v2334
    %v2338 = vmul.f32 1.0, %v2337
    %v2339 = vrcp.pop %v2335
    %v2340 = vmul.f32 1.0, %v2339
    %v2341 = vrcp.pop %v2336
    %v2342 = vmul.f32 1.0, %v2341
    %v2343 = vtanh.pop %v2323
    %v2344 = vmul.f32 %v2033, %v2338
    %v2345 = vmul.f32 %v2340, %v2343
    %v2346 = vadd.f32 %v2344, %v2345
    %v2347 = vtanh.pop %v2346
    %v2348 = vmul.f32 %v2342, %v2347
    %s2349 = scalar_select %p2028, 1, 0
    %v2350 = vstv %s2349
    %vm2351 = vcmp.eq.s32.totalorder %v2350, 1
    %v2352 = vsel %vm2351, %v2346, %v2033
    %v2353 = vsel %vm2351, %v2348, %v2032
    %2354 = vst [vmem:[#allocation8] sm:$0xff] %v2352
    %2355 = vst [vmem:[#allocation9] sm:$0xff] %v2353
    %v2356 = vld [vmem:[%s4] sm:$0xf]
    %v2357 = vld [vmem:[%s402] sm:$0xff]
    %v2358 = vld [vmem:[%s404] sm:$0xff]
    %v2359 = vld [vmem:[#allocation7] sm:$0xff]
    %v2360 = vld [vmem:[#allocation7 + $0x8] sm:$0xff]
    %v2361 = vld [vmem:[#allocation7 + $0x10] sm:$0xff]
    %v2362 = vld [vmem:[#allocation7 + $0x18] sm:$0xff]
    %v2363 = vld [vmem:[#allocation7 + $0x20] sm:$0xff]
    %v2364 = vld [vmem:[#allocation7 + $0x28] sm:$0xff]
    %v2365 = vld [vmem:[#allocation7 + $0x30] sm:$0xff]
    %v2366 = vld [vmem:[#allocation7 + $0x38] sm:$0xff]
    %v2367 = vld [vmem:[#allocation7 + $0x40] sm:$0xff]
    %v2368 = vld [vmem:[#allocation7 + $0x48] sm:$0xff]
    %v2369 = vld [vmem:[#allocation7 + $0x50] sm:$0xff]
    %v2370 = vld [vmem:[#allocation7 + $0x58] sm:$0xff]
    %v2371 = vld [vmem:[#allocation7 + $0x60] sm:$0xff]
    %v2372 = vld [vmem:[#allocation7 + $0x68] sm:$0xff]
    %v2373 = vld [vmem:[#allocation7 + $0x70] sm:$0xff]
    %v2374 = vld [vmem:[#allocation7 + $0x78] sm:$0xff]
    %v2375 = vld [vmem:[#allocation7 + $0x80] sm:$0xff]
    %v2376 = vld [vmem:[#allocation7 + $0x88] sm:$0xff]
    %v2377 = vld [vmem:[#allocation7 + $0x90] sm:$0xff]
    %v2378 = vld [vmem:[#allocation7 + $0x98] sm:$0xff]
    %v2379 = vld [vmem:[#allocation7 + $0xa0] sm:$0xff]
    %v2380 = vld [vmem:[#allocation7 + $0xa8] sm:$0xff]
    %v2381 = vld [vmem:[#allocation7 + $0xb0] sm:$0xff]
    %v2382 = vld [vmem:[#allocation7 + $0xb8] sm:$0xff]
    %v2383 = vld [vmem:[#allocation7 + $0xc0] sm:$0xff]
    %v2384 = vld [vmem:[#allocation7 + $0xc8] sm:$0xff]
    %v2385 = vld [vmem:[#allocation7 + $0xd0] sm:$0xff]
    %v2386 = vld [vmem:[#allocation7 + $0xd8] sm:$0xff]
    %v2387 = vld [vmem:[#allocation7 + $0xe0] sm:$0xff]
    %v2388 = vld [vmem:[#allocation7 + $0xe8] sm:$0xff]
    %v2389 = vld [vmem:[#allocation7 + $0xf0] sm:$0xff]
    %v2390 = vld [vmem:[#allocation7 + $0xf8] sm:$0xff]
    %v2391 = vld [vmem:[#allocation7 + $0x100] sm:$0xff]
    %v2392 = vld [vmem:[#allocation7 + $0x108] sm:$0xff]
    %v2393 = vld [vmem:[#allocation7 + $0x110] sm:$0xff]
    %v2394 = vld [vmem:[#allocation7 + $0x118] sm:$0xff]
    %v2395 = vld [vmem:[#allocation7 + $0x120] sm:$0xff]
    %v2396 = vld [vmem:[#allocation7 + $0x128] sm:$0xff]
    %v2397 = vld [vmem:[#allocation7 + $0x130] sm:$0xff]
    %v2398 = vld [vmem:[#allocation7 + $0x138] sm:$0xff]
    %v2399 = vld [vmem:[#allocation7 + $0x140] sm:$0xff]
    %v2400 = vld [vmem:[#allocation7 + $0x148] sm:$0xff]
    %v2401 = vld [vmem:[#allocation7 + $0x150] sm:$0xff]
    %v2402 = vld [vmem:[#allocation7 + $0x158] sm:$0xff]
    %v2403 = vld [vmem:[#allocation7 + $0x160] sm:$0xff]
    %v2404 = vld [vmem:[#allocation7 + $0x168] sm:$0xff]
    %v2405 = vld [vmem:[#allocation7 + $0x170] sm:$0xff]
    %v2406 = vld [vmem:[#allocation7 + $0x178] sm:$0xff]
    %v2407 = vld [vmem:[#allocation7 + $0x180] sm:$0xff]
    %v2408 = vld [vmem:[#allocation7 + $0x188] sm:$0xff]
    %v2409 = vld [vmem:[#allocation7 + $0x190] sm:$0xff]
    %v2410 = vld [vmem:[#allocation7 + $0x198] sm:$0xff]
    %v2411 = vld [vmem:[#allocation7 + $0x1a0] sm:$0xff]
    %v2412 = vld [vmem:[#allocation7 + $0x1a8] sm:$0xff]
    %v2413 = vld [vmem:[#allocation7 + $0x1b0] sm:$0xff]
    %v2414 = vld [vmem:[#allocation7 + $0x1b8] sm:$0xff]
    %v2415 = vld [vmem:[#allocation7 + $0x1c0] sm:$0xff]
    %v2416 = vld [vmem:[#allocation7 + $0x1c8] sm:$0xff]
    %v2417 = vld [vmem:[#allocation7 + $0x1d0] sm:$0xff]
    %v2418 = vld [vmem:[#allocation7 + $0x1d8] sm:$0xff]
    %v2419 = vld [vmem:[#allocation7 + $0x1e0] sm:$0xff]
    %v2420 = vld [vmem:[#allocation7 + $0x1e8] sm:$0xff]
    %v2421 = vld [vmem:[#allocation7 + $0x1f0] sm:$0xff]
    %v2422 = vld [vmem:[#allocation7 + $0x1f8] sm:$0xff]
    %v2423 = vld [vmem:[#allocation7 + $0x200] sm:$0xff]
    %v2424 = vld [vmem:[#allocation7 + $0x208] sm:$0xff]
    %v2425 = vld [vmem:[#allocation7 + $0x210] sm:$0xff]
    %v2426 = vld [vmem:[#allocation7 + $0x218] sm:$0xff]
    %v2427 = vld [vmem:[#allocation7 + $0x220] sm:$0xff]
    %v2428 = vld [vmem:[#allocation7 + $0x228] sm:$0xff]
    %v2429 = vld [vmem:[#allocation7 + $0x230] sm:$0xff]
    %v2430 = vld [vmem:[#allocation7 + $0x238] sm:$0xff]
    %v2431 = vld [vmem:[#allocation7 + $0x240] sm:$0xff]
    %v2432 = vld [vmem:[#allocation7 + $0x248] sm:$0xff]
    %v2433 = vld [vmem:[#allocation7 + $0x250] sm:$0xff]
    %v2434 = vld [vmem:[#allocation7 + $0x258] sm:$0xff]
    %v2435 = vld [vmem:[#allocation7 + $0x260] sm:$0xff]
    %v2436 = vld [vmem:[#allocation7 + $0x268] sm:$0xff]
    %v2437 = vld [vmem:[#allocation7 + $0x270] sm:$0xff]
    %v2438 = vld [vmem:[#allocation7 + $0x278] sm:$0xff]
    %v2439 = vld [vmem:[#allocation7 + $0x280] sm:$0xff]
    %v2440 = vld [vmem:[#allocation7 + $0x288] sm:$0xff]
    %v2441 = vld [vmem:[#allocation7 + $0x290] sm:$0xff]
    %v2442 = vld [vmem:[#allocation7 + $0x298] sm:$0xff]
    %v2443 = vld [vmem:[#allocation7 + $0x2a0] sm:$0xff]
    %v2444 = vld [vmem:[#allocation7 + $0x2a8] sm:$0xff]
    %v2445 = vld [vmem:[#allocation7 + $0x2b0] sm:$0xff]
    %v2446 = vld [vmem:[#allocation7 + $0x2b8] sm:$0xff]
    %v2447 = vld [vmem:[#allocation7 + $0x2c0] sm:$0xff]
    %v2448 = vld [vmem:[#allocation7 + $0x2c8] sm:$0xff]
    %v2449 = vld [vmem:[#allocation7 + $0x2d0] sm:$0xff]
    %v2450 = vld [vmem:[#allocation7 + $0x2d8] sm:$0xff]
    %v2451 = vld [vmem:[#allocation7 + $0x2e0] sm:$0xff]
    %v2452 = vld [vmem:[#allocation7 + $0x2e8] sm:$0xff]
    %v2453 = vld [vmem:[#allocation7 + $0x2f0] sm:$0xff]
    %v2454 = vld [vmem:[#allocation7 + $0x2f8] sm:$0xff]
    %v2455 = vld [vmem:[#allocation7 + $0x300] sm:$0xff]
    %v2456 = vld [vmem:[#allocation7 + $0x308] sm:$0xff]
    %v2457 = vld [vmem:[#allocation7 + $0x310] sm:$0xff]
    %v2458 = vld [vmem:[#allocation7 + $0x318] sm:$0xff]
    %v2459 = vld [vmem:[#allocation7 + $0x320] sm:$0xff]
    %v2460 = vld [vmem:[#allocation7 + $0x328] sm:$0xff]
    %v2461 = vld [vmem:[#allocation7 + $0x330] sm:$0xff]
    %v2462 = vld [vmem:[#allocation7 + $0x338] sm:$0xff]
    %v2463 = vld [vmem:[#allocation7 + $0x340] sm:$0xff]
    %v2464 = vld [vmem:[#allocation7 + $0x348] sm:$0xff]
    %v2465 = vld [vmem:[#allocation7 + $0x350] sm:$0xff]
    %v2466 = vld [vmem:[#allocation7 + $0x358] sm:$0xff]
    %v2467 = vld [vmem:[#allocation7 + $0x360] sm:$0xff]
    %v2468 = vld [vmem:[#allocation7 + $0x368] sm:$0xff]
    %v2469 = vld [vmem:[#allocation7 + $0x370] sm:$0xff]
    %v2470 = vld [vmem:[#allocation7 + $0x378] sm:$0xff]
    %v2471 = vld [vmem:[#allocation7 + $0x380] sm:$0xff]
    %v2472 = vld [vmem:[#allocation7 + $0x388] sm:$0xff]
    %v2473 = vld [vmem:[#allocation7 + $0x390] sm:$0xff]
    %v2474 = vld [vmem:[#allocation7 + $0x398] sm:$0xff]
    %v2475 = vld [vmem:[#allocation7 + $0x3a0] sm:$0xff]
    %v2476 = vld [vmem:[#allocation7 + $0x3a8] sm:$0xff]
    %v2477 = vld [vmem:[#allocation7 + $0x3b0] sm:$0xff]
    %v2478 = vld [vmem:[#allocation7 + $0x3b8] sm:$0xff]
    %v2479 = vld [vmem:[#allocation7 + $0x3c0] sm:$0xff]
    %v2480 = vld [vmem:[#allocation7 + $0x3c8] sm:$0xff]
    %v2481 = vld [vmem:[#allocation7 + $0x3d0] sm:$0xff]
    %v2482 = vld [vmem:[#allocation7 + $0x3d8] sm:$0xff]
    %v2483 = vld [vmem:[#allocation7 + $0x3e0] sm:$0xff]
    %v2484 = vld [vmem:[#allocation7 + $0x3e8] sm:$0xff]
    %v2485 = vld [vmem:[#allocation7 + $0x3f0] sm:$0xff]
    %v2486 = vld [vmem:[#allocation7 + $0x3f8] sm:$0xff]
    %v2488 = vlaneseq
    %v2489 = vshrl.u32 %v2488, 7
    %v2490 = vsub.s32 0, %v2489
    %v2491 = vrot.slane %v2356, %v2490
    %v2492 = vlaneseq
    %v2493 = vshrl.u32 %v2492, 7
    %v2494 = vsub.s32 1, %v2493
    %v2495 = vrot.slane %v2356, %v2494
    %v2496 = vlaneseq
    %v2497 = vshrl.u32 %v2496, 7
    %v2498 = vsub.s32 2, %v2497
    %v2499 = vrot.slane %v2356, %v2498
    %v2500 = vlaneseq
    %v2501 = vshrl.u32 %v2500, 7
    %v2502 = vsub.s32 3, %v2501
    %v2503 = vrot.slane %v2356, %v2502
    %2508 = vmatprep.subr.mxu0 %v2360
    %2509 = vmatpush1.msra.mxu0 %v2359
    %2510 = vmatprep.subr.mxu0 %v2364
    %2511 = vmatpush1.msra.mxu0 %v2363
    %2512 = vmatprep.subr.mxu0 %v2368
    %2513 = vmatpush1.msra.mxu0 %v2367
    %2514 = vmatprep.subr.mxu0 %v2372
    %2515 = vmatpush1.msra.mxu0 %v2371
    %2516 = vmatprep.subr.mxu0 %v2376
    %2517 = vmatpush1.msra.mxu0 %v2375
    %2518 = vmatprep.subr.mxu0 %v2380
    %2519 = vmatpush1.msra.mxu0 %v2379
    %2520 = vmatprep.subr.mxu0 %v2384
    %2521 = vmatpush1.msra.mxu0 %v2383
    %2522 = vmatprep.subr.mxu0 %v2388
    %2523 = vmatpush1.msra.mxu0 %v2387
    %2524 = vmatprep.subr.mxu0 %v2392
    %2525 = vmatpush1.msra.mxu0 %v2391
    %2526 = vmatprep.subr.mxu0 %v2396
    %2527 = vmatpush1.msra.mxu0 %v2395
    %2528 = vmatprep.subr.mxu0 %v2400
    %2529 = vmatpush1.msra.mxu0 %v2399
    %2530 = vmatprep.subr.mxu0 %v2404
    %2531 = vmatpush1.msra.mxu0 %v2403
    %2532 = vmatprep.subr.mxu0 %v2408
    %2533 = vmatpush1.msra.mxu0 %v2407
    %2534 = vmatprep.subr.mxu0 %v2412
    %2535 = vmatpush1.msra.mxu0 %v2411
    %2536 = vmatprep.subr.mxu0 %v2416
    %2537 = vmatpush1.msra.mxu0 %v2415
    %2538 = vmatprep.subr.mxu0 %v2420
    %2539 = vmatpush1.msra.mxu0 %v2419
    %2540 = vmatprep.subr.mxu0 %v2424
    %2541 = vmatpush1.msra.mxu0 %v2423
    %2542 = vmatprep.subr.mxu0 %v2428
    %2543 = vmatpush1.msra.mxu0 %v2427
    %2544 = vmatprep.subr.mxu0 %v2432
    %2545 = vmatpush1.msra.mxu0 %v2431
    %2546 = vmatprep.subr.mxu0 %v2436
    %2547 = vmatpush1.msra.mxu0 %v2435
    %2548 = vmatprep.subr.mxu0 %v2440
    %2549 = vmatpush1.msra.mxu0 %v2439
    %2550 = vmatprep.subr.mxu0 %v2444
    %2551 = vmatpush1.msra.mxu0 %v2443
    %2552 = vmatprep.subr.mxu0 %v2448
    %2553 = vmatpush1.msra.mxu0 %v2447
    %2554 = vmatprep.subr.mxu0 %v2452
    %2555 = vmatpush1.msra.mxu0 %v2451
    %2556 = vmatprep.subr.mxu0 %v2456
    %2557 = vmatpush1.msra.mxu0 %v2455
    %2558 = vmatprep.subr.mxu0 %v2460
    %2559 = vmatpush1.msra.mxu0 %v2459
    %2560 = vmatprep.subr.mxu0 %v2464
    %2561 = vmatpush1.msra.mxu0 %v2463
    %2562 = vmatprep.subr.mxu0 %v2468
    %2563 = vmatpush1.msra.mxu0 %v2467
    %2564 = vmatprep.subr.mxu0 %v2472
    %2565 = vmatpush1.msra.mxu0 %v2471
    %2566 = vmatprep.subr.mxu0 %v2476
    %2567 = vmatpush1.msra.mxu0 %v2475
    %2568 = vmatprep.subr.mxu0 %v2480
    %2569 = vmatpush1.msra.mxu0 %v2479
    %2570 = vmatprep.subr.mxu0 %v2484
    %2571 = vmatpush1.msra.mxu0 %v2483
    %2572 = vmatprep.mubr.f32.mxu0 %v2357
    %2573 = vmatmul.mubr.f32.gmra.mrb[0].mxu0 %v2353
    %v2574 = vpop.f32.mrb[0].mxu0
    %v2575 = vadd.f32 %v2491, %v2574
    %v2576 = vpop.f32.mrb[0].mxu0
    %v2577 = vadd.f32 %v2495, %v2576
    %2578 = vdwg.mxu0
    %2579 = vmatprep.subr.mxu0 %v2362
    %2580 = vmatpush1.msra.mxu0 %v2361
    %2581 = vmatprep.subr.mxu0 %v2366
    %2582 = vmatpush1.msra.mxu0 %v2365
    %2583 = vmatprep.subr.mxu0 %v2370
    %2584 = vmatpush1.msra.mxu0 %v2369
    %2585 = vmatprep.subr.mxu0 %v2374
    %2586 = vmatpush1.msra.mxu0 %v2373
    %2587 = vmatprep.subr.mxu0 %v2378
    %2588 = vmatpush1.msra.mxu0 %v2377
    %2589 = vmatprep.subr.mxu0 %v2382
    %2590 = vmatpush1.msra.mxu0 %v2381
    %2591 = vmatprep.subr.mxu0 %v2386
    %2592 = vmatpush1.msra.mxu0 %v2385
    %2593 = vmatprep.subr.mxu0 %v2390
    %2594 = vmatpush1.msra.mxu0 %v2389
    %2595 = vmatprep.subr.mxu0 %v2394
    %2596 = vmatpush1.msra.mxu0 %v2393
    %2597 = vmatprep.subr.mxu0 %v2398
    %2598 = vmatpush1.msra.mxu0 %v2397
    %2599 = vmatprep.subr.mxu0 %v2402
    %2600 = vmatpush1.msra.mxu0 %v2401
    %2601 = vmatprep.subr.mxu0 %v2406
    %2602 = vmatpush1.msra.mxu0 %v2405
    %2603 = vmatprep.subr.mxu0 %v2410
    %2604 = vmatpush1.msra.mxu0 %v2409
    %2605 = vmatprep.subr.mxu0 %v2414
    %2606 = vmatpush1.msra.mxu0 %v2413
    %2607 = vmatprep.subr.mxu0 %v2418
    %2608 = vmatpush1.msra.mxu0 %v2417
    %2609 = vmatprep.subr.mxu0 %v2422
    %2610 = vmatpush1.msra.mxu0 %v2421
    %2611 = vmatprep.subr.mxu0 %v2426
    %2612 = vmatpush1.msra.mxu0 %v2425
    %2613 = vmatprep.subr.mxu0 %v2430
    %2614 = vmatpush1.msra.mxu0 %v2429
    %2615 = vmatprep.subr.mxu0 %v2434
    %2616 = vmatpush1.msra.mxu0 %v2433
    %2617 = vmatprep.subr.mxu0 %v2438
    %2618 = vmatpush1.msra.mxu0 %v2437
    %2619 = vmatprep.subr.mxu0 %v2442
    %2620 = vmatpush1.msra.mxu0 %v2441
    %2621 = vmatprep.subr.mxu0 %v2446
    %2622 = vmatpush1.msra.mxu0 %v2445
    %2623 = vmatprep.subr.mxu0 %v2450
    %2624 = vmatpush1.msra.mxu0 %v2449
    %2625 = vmatprep.subr.mxu0 %v2454
    %2626 = vmatpush1.msra.mxu0 %v2453
    %2627 = vmatprep.subr.mxu0 %v2458
    %2628 = vmatpush1.msra.mxu0 %v2457
    %2629 = vmatprep.subr.mxu0 %v2462
    %2630 = vmatpush1.msra.mxu0 %v2461
    %2631 = vmatprep.subr.mxu0 %v2466
    %2632 = vmatpush1.msra.mxu0 %v2465
    %2633 = vmatprep.subr.mxu0 %v2470
    %2634 = vmatpush1.msra.mxu0 %v2469
    %2635 = vmatprep.subr.mxu0 %v2474
    %2636 = vmatpush1.msra.mxu0 %v2473
    %2637 = vmatprep.subr.mxu0 %v2478
    %2638 = vmatpush1.msra.mxu0 %v2477
    %2639 = vmatprep.subr.mxu0 %v2482
    %2640 = vmatpush1.msra.mxu0 %v2481
    %2641 = vmatprep.subr.mxu0 %v2486
    %2642 = vmatpush1.msra.mxu0 %v2485
    %2643 = vmatprep.mubr.f32.mxu0 %v2357
    %2644 = vmatmul.mubr.f32.gmra.mrb[0].mxu0 %v2353
    %v2645 = vpop.f32.mrb[0].mxu0
    %v2646 = vadd.f32 %v2499, %v2645
    %v2647 = vpop.f32.mrb[0].mxu0
    %v2648 = vadd.f32 %v2503, %v2647
    %2649 = vdwg.mxu0
    %v2650 = vxor.u32 %v2575, 2147483648
    %v2651 = vxor.u32 %v2577, 2147483648
    %v2652 = vxor.u32 %v2646, 2147483648
    %v2653 = vmul.f32 %v2650, 1.442695
    %v2654 = vpow.pop %v2653
    %v2655 = vmul.f32 %v2651, 1.442695
    %v2656 = vpow.pop %v2655
    %v2657 = vmul.f32 %v2652, 1.442695
    %v2658 = vpow.pop %v2657
    %v2659 = vadd.f32 %v2654, 1.0
    %v2660 = vadd.f32 %v2656, 1.0
    %v2661 = vadd.f32 %v2658, 1.0
    %v2662 = vrcp.pop %v2659
    %v2663 = vmul.f32 1.0, %v2662
    %v2664 = vrcp.pop %v2660
    %v2665 = vmul.f32 1.0, %v2664
    %v2666 = vrcp.pop %v2661
    %v2667 = vmul.f32 1.0, %v2666
    %v2668 = vtanh.pop %v2648
    %v2669 = vmul.f32 %v2358, %v2663
    %v2670 = vmul.f32 %v2665, %v2668
    %v2671 = vadd.f32 %v2669, %v2670
    %v2672 = vtanh.pop %v2671
    %v2673 = vmul.f32 %v2667, %v2672
    %v2674 = vsel %vm2351, %v2671, %v2358
    %v2675 = vsel %vm2351, %v2673, %v2357
    %2676 = vst [vmem:[%s404] sm:$0xff] %v2674
    %2677 = vst [vmem:[%s402] sm:$0xff] %v2675
    %s2678 = sadd.s32 %s73, 4
    %p2679 = scmp.lt.s32.totalorder %s2678, 8
    %s2680 = scalar_lea.vmem [#allocation2], 32
    %v2681 = vld [vmem:[%s2680] sm:$0xff]
    %v2682 = vld [vmem:[%s2] sm:$0xf]
    %v2683 = vld [vmem:[#allocation9] sm:$0xff]
    %v2684 = vld [vmem:[#allocation8] sm:$0xff]
    %v2685 = vld [vmem:[#allocation5] sm:$0xff]
    %v2686 = vld [vmem:[#allocation5 + $0x8] sm:$0xff]
    %v2687 = vld [vmem:[#allocation5 + $0x10] sm:$0xff]
    %v2688 = vld [vmem:[#allocation5 + $0x18] sm:$0xff]
    %v2689 = vld [vmem:[#allocation5 + $0x20] sm:$0xff]
    %v2690 = vld [vmem:[#allocation5 + $0x28] sm:$0xff]
    %v2691 = vld [vmem:[#allocation5 + $0x30] sm:$0xff]
    %v2692 = vld [vmem:[#allocation5 + $0x38] sm:$0xff]
    %v2693 = vld [vmem:[#allocation5 + $0x40] sm:$0xff]
    %v2694 = vld [vmem:[#allocation5 + $0x48] sm:$0xff]
    %v2695 = vld [vmem:[#allocation5 + $0x50] sm:$0xff]
    %v2696 = vld [vmem:[#allocation5 + $0x58] sm:$0xff]
    %v2697 = vld [vmem:[#allocation5 + $0x60] sm:$0xff]
    %v2698 = vld [vmem:[#allocation5 + $0x68] sm:$0xff]
    %v2699 = vld [vmem:[#allocation5 + $0x70] sm:$0xff]
    %v2700 = vld [vmem:[#allocation5 + $0x78] sm:$0xff]
    %v2701 = vld [vmem:[#allocation5 + $0x80] sm:$0xff]
    %v2702 = vld [vmem:[#allocation5 + $0x88] sm:$0xff]
    %v2703 = vld [vmem:[#allocation5 + $0x90] sm:$0xff]
    %v2704 = vld [vmem:[#allocation5 + $0x98] sm:$0xff]
    %v2705 = vld [vmem:[#allocation5 + $0xa0] sm:$0xff]
    %v2706 = vld [vmem:[#allocation5 + $0xa8] sm:$0xff]
    %v2707 = vld [vmem:[#allocation5 + $0xb0] sm:$0xff]
    %v2708 = vld [vmem:[#allocation5 + $0xb8] sm:$0xff]
    %v2709 = vld [vmem:[#allocation5 + $0xc0] sm:$0xff]
    %v2710 = vld [vmem:[#allocation5 + $0xc8] sm:$0xff]
    %v2711 = vld [vmem:[#allocation5 + $0xd0] sm:$0xff]
    %v2712 = vld [vmem:[#allocation5 + $0xd8] sm:$0xff]
    %v2713 = vld [vmem:[#allocation5 + $0xe0] sm:$0xff]
    %v2714 = vld [vmem:[#allocation5 + $0xe8] sm:$0xff]
    %v2715 = vld [vmem:[#allocation5 + $0xf0] sm:$0xff]
    %v2716 = vld [vmem:[#allocation5 + $0xf8] sm:$0xff]
    %v2717 = vld [vmem:[#allocation5 + $0x100] sm:$0xff]
    %v2718 = vld [vmem:[#allocation5 + $0x108] sm:$0xff]
    %v2719 = vld [vmem:[#allocation5 + $0x110] sm:$0xff]
    %v2720 = vld [vmem:[#allocation5 + $0x118] sm:$0xff]
    %v2721 = vld [vmem:[#allocation5 + $0x120] sm:$0xff]
    %v2722 = vld [vmem:[#allocation5 + $0x128] sm:$0xff]
    %v2723 = vld [vmem:[#allocation5 + $0x130] sm:$0xff]
    %v2724 = vld [vmem:[#allocation5 + $0x138] sm:$0xff]
    %v2725 = vld [vmem:[#allocation5 + $0x140] sm:$0xff]
    %v2726 = vld [vmem:[#allocation5 + $0x148] sm:$0xff]
    %v2727 = vld [vmem:[#allocation5 + $0x150] sm:$0xff]
    %v2728 = vld [vmem:[#allocation5 + $0x158] sm:$0xff]
    %v2729 = vld [vmem:[#allocation5 + $0x160] sm:$0xff]
    %v2730 = vld [vmem:[#allocation5 + $0x168] sm:$0xff]
    %v2731 = vld [vmem:[#allocation5 + $0x170] sm:$0xff]
    %v2732 = vld [vmem:[#allocation5 + $0x178] sm:$0xff]
    %v2733 = vld [vmem:[#allocation5 + $0x180] sm:$0xff]
    %v2734 = vld [vmem:[#allocation5 + $0x188] sm:$0xff]
    %v2735 = vld [vmem:[#allocation5 + $0x190] sm:$0xff]
    %v2736 = vld [vmem:[#allocation5 + $0x198] sm:$0xff]
    %v2737 = vld [vmem:[#allocation5 + $0x1a0] sm:$0xff]
    %v2738 = vld [vmem:[#allocation5 + $0x1a8] sm:$0xff]
    %v2739 = vld [vmem:[#allocation5 + $0x1b0] sm:$0xff]
    %v2740 = vld [vmem:[#allocation5 + $0x1b8] sm:$0xff]
    %v2741 = vld [vmem:[#allocation5 + $0x1c0] sm:$0xff]
    %v2742 = vld [vmem:[#allocation5 + $0x1c8] sm:$0xff]
    %v2743 = vld [vmem:[#allocation5 + $0x1d0] sm:$0xff]
    %v2744 = vld [vmem:[#allocation5 + $0x1d8] sm:$0xff]
    %v2745 = vld [vmem:[#allocation5 + $0x1e0] sm:$0xff]
    %v2746 = vld [vmem:[#allocation5 + $0x1e8] sm:$0xff]
    %v2747 = vld [vmem:[#allocation5 + $0x1f0] sm:$0xff]
    %v2748 = vld [vmem:[#allocation5 + $0x1f8] sm:$0xff]
    %v2749 = vld [vmem:[#allocation5 + $0x200] sm:$0xff]
    %v2750 = vld [vmem:[#allocation5 + $0x208] sm:$0xff]
    %v2751 = vld [vmem:[#allocation5 + $0x210] sm:$0xff]
    %v2752 = vld [vmem:[#allocation5 + $0x218] sm:$0xff]
    %v2753 = vld [vmem:[#allocation5 + $0x220] sm:$0xff]
    %v2754 = vld [vmem:[#allocation5 + $0x228] sm:$0xff]
    %v2755 = vld [vmem:[#allocation5 + $0x230] sm:$0xff]
    %v2756 = vld [vmem:[#allocation5 + $0x238] sm:$0xff]
    %v2757 = vld [vmem:[#allocation5 + $0x240] sm:$0xff]
    %v2758 = vld [vmem:[#allocation5 + $0x248] sm:$0xff]
    %v2759 = vld [vmem:[#allocation5 + $0x250] sm:$0xff]
    %v2760 = vld [vmem:[#allocation5 + $0x258] sm:$0xff]
    %v2761 = vld [vmem:[#allocation5 + $0x260] sm:$0xff]
    %v2762 = vld [vmem:[#allocation5 + $0x268] sm:$0xff]
    %v2763 = vld [vmem:[#allocation5 + $0x270] sm:$0xff]
    %v2764 = vld [vmem:[#allocation5 + $0x278] sm:$0xff]
    %v2765 = vld [vmem:[#allocation5 + $0x280] sm:$0xff]
    %v2766 = vld [vmem:[#allocation5 + $0x288] sm:$0xff]
    %v2767 = vld [vmem:[#allocation5 + $0x290] sm:$0xff]
    %v2768 = vld [vmem:[#allocation5 + $0x298] sm:$0xff]
    %v2769 = vld [vmem:[#allocation5 + $0x2a0] sm:$0xff]
    %v2770 = vld [vmem:[#allocation5 + $0x2a8] sm:$0xff]
    %v2771 = vld [vmem:[#allocation5 + $0x2b0] sm:$0xff]
    %v2772 = vld [vmem:[#allocation5 + $0x2b8] sm:$0xff]
    %v2773 = vld [vmem:[#allocation5 + $0x2c0] sm:$0xff]
    %v2774 = vld [vmem:[#allocation5 + $0x2c8] sm:$0xff]
    %v2775 = vld [vmem:[#allocation5 + $0x2d0] sm:$0xff]
    %v2776 = vld [vmem:[#allocation5 + $0x2d8] sm:$0xff]
    %v2777 = vld [vmem:[#allocation5 + $0x2e0] sm:$0xff]
    %v2778 = vld [vmem:[#allocation5 + $0x2e8] sm:$0xff]
    %v2779 = vld [vmem:[#allocation5 + $0x2f0] sm:$0xff]
    %v2780 = vld [vmem:[#allocation5 + $0x2f8] sm:$0xff]
    %v2781 = vld [vmem:[#allocation5 + $0x300] sm:$0xff]
    %v2782 = vld [vmem:[#allocation5 + $0x308] sm:$0xff]
    %v2783 = vld [vmem:[#allocation5 + $0x310] sm:$0xff]
    %v2784 = vld [vmem:[#allocation5 + $0x318] sm:$0xff]
    %v2785 = vld [vmem:[#allocation5 + $0x320] sm:$0xff]
    %v2786 = vld [vmem:[#allocation5 + $0x328] sm:$0xff]
    %v2787 = vld [vmem:[#allocation5 + $0x330] sm:$0xff]
    %v2788 = vld [vmem:[#allocation5 + $0x338] sm:$0xff]
    %v2789 = vld [vmem:[#allocation5 + $0x340] sm:$0xff]
    %v2790 = vld [vmem:[#allocation5 + $0x348] sm:$0xff]
    %v2791 = vld [vmem:[#allocation5 + $0x350] sm:$0xff]
    %v2792 = vld [vmem:[#allocation5 + $0x358] sm:$0xff]
    %v2793 = vld [vmem:[#allocation5 + $0x360] sm:$0xff]
    %v2794 = vld [vmem:[#allocation5 + $0x368] sm:$0xff]
    %v2795 = vld [vmem:[#allocation5 + $0x370] sm:$0xff]
    %v2796 = vld [vmem:[#allocation5 + $0x378] sm:$0xff]
    %v2797 = vld [vmem:[#allocation5 + $0x380] sm:$0xff]
    %v2798 = vld [vmem:[#allocation5 + $0x388] sm:$0xff]
    %v2799 = vld [vmem:[#allocation5 + $0x390] sm:$0xff]
    %v2800 = vld [vmem:[#allocation5 + $0x398] sm:$0xff]
    %v2801 = vld [vmem:[#allocation5 + $0x3a0] sm:$0xff]
    %v2802 = vld [vmem:[#allocation5 + $0x3a8] sm:$0xff]
    %v2803 = vld [vmem:[#allocation5 + $0x3b0] sm:$0xff]
    %v2804 = vld [vmem:[#allocation5 + $0x3b8] sm:$0xff]
    %v2805 = vld [vmem:[#allocation5 + $0x3c0] sm:$0xff]
    %v2806 = vld [vmem:[#allocation5 + $0x3c8] sm:$0xff]
    %v2807 = vld [vmem:[#allocation5 + $0x3d0] sm:$0xff]
    %v2808 = vld [vmem:[#allocation5 + $0x3d8] sm:$0xff]
    %v2809 = vld [vmem:[#allocation5 + $0x3e0] sm:$0xff]
    %v2810 = vld [vmem:[#allocation5 + $0x3e8] sm:$0xff]
    %v2811 = vld [vmem:[#allocation5 + $0x3f0] sm:$0xff]
    %v2812 = vld [vmem:[#allocation5 + $0x3f8] sm:$0xff]
    %v2814 = vlaneseq
    %v2815 = vshrl.u32 %v2814, 7
    %v2816 = vsub.s32 0, %v2815
    %v2817 = vrot.slane %v2682, %v2816
    %v2818 = vlaneseq
    %v2819 = vshrl.u32 %v2818, 7
    %v2820 = vsub.s32 1, %v2819
    %v2821 = vrot.slane %v2682, %v2820
    %v2822 = vlaneseq
    %v2823 = vshrl.u32 %v2822, 7
    %v2824 = vsub.s32 2, %v2823
    %v2825 = vrot.slane %v2682, %v2824
    %v2826 = vlaneseq
    %v2827 = vshrl.u32 %v2826, 7
    %v2828 = vsub.s32 3, %v2827
    %v2829 = vrot.slane %v2682, %v2828
    %2834 = vmatprep.subr.mxu0 %v2686
    %2835 = vmatpush1.msra.mxu0 %v2685
    %2836 = vmatprep.subr.mxu0 %v2690
    %2837 = vmatpush1.msra.mxu0 %v2689
    %2838 = vmatprep.subr.mxu0 %v2694
    %2839 = vmatpush1.msra.mxu0 %v2693
    %2840 = vmatprep.subr.mxu0 %v2698
    %2841 = vmatpush1.msra.mxu0 %v2697
    %2842 = vmatprep.subr.mxu0 %v2702
    %2843 = vmatpush1.msra.mxu0 %v2701
    %2844 = vmatprep.subr.mxu0 %v2706
    %2845 = vmatpush1.msra.mxu0 %v2705
    %2846 = vmatprep.subr.mxu0 %v2710
    %2847 = vmatpush1.msra.mxu0 %v2709
    %2848 = vmatprep.subr.mxu0 %v2714
    %2849 = vmatpush1.msra.mxu0 %v2713
    %2850 = vmatprep.subr.mxu0 %v2718
    %2851 = vmatpush1.msra.mxu0 %v2717
    %2852 = vmatprep.subr.mxu0 %v2722
    %2853 = vmatpush1.msra.mxu0 %v2721
    %2854 = vmatprep.subr.mxu0 %v2726
    %2855 = vmatpush1.msra.mxu0 %v2725
    %2856 = vmatprep.subr.mxu0 %v2730
    %2857 = vmatpush1.msra.mxu0 %v2729
    %2858 = vmatprep.subr.mxu0 %v2734
    %2859 = vmatpush1.msra.mxu0 %v2733
    %2860 = vmatprep.subr.mxu0 %v2738
    %2861 = vmatpush1.msra.mxu0 %v2737
    %2862 = vmatprep.subr.mxu0 %v2742
    %2863 = vmatpush1.msra.mxu0 %v2741
    %2864 = vmatprep.subr.mxu0 %v2746
    %2865 = vmatpush1.msra.mxu0 %v2745
    %2866 = vmatprep.subr.mxu0 %v2750
    %2867 = vmatpush1.msra.mxu0 %v2749
    %2868 = vmatprep.subr.mxu0 %v2754
    %2869 = vmatpush1.msra.mxu0 %v2753
    %2870 = vmatprep.subr.mxu0 %v2758
    %2871 = vmatpush1.msra.mxu0 %v2757
    %2872 = vmatprep.subr.mxu0 %v2762
    %2873 = vmatpush1.msra.mxu0 %v2761
    %2874 = vmatprep.subr.mxu0 %v2766
    %2875 = vmatpush1.msra.mxu0 %v2765
    %2876 = vmatprep.subr.mxu0 %v2770
    %2877 = vmatpush1.msra.mxu0 %v2769
    %2878 = vmatprep.subr.mxu0 %v2774
    %2879 = vmatpush1.msra.mxu0 %v2773
    %2880 = vmatprep.subr.mxu0 %v2778
    %2881 = vmatpush1.msra.mxu0 %v2777
    %2882 = vmatprep.subr.mxu0 %v2782
    %2883 = vmatpush1.msra.mxu0 %v2781
    %2884 = vmatprep.subr.mxu0 %v2786
    %2885 = vmatpush1.msra.mxu0 %v2785
    %2886 = vmatprep.subr.mxu0 %v2790
    %2887 = vmatpush1.msra.mxu0 %v2789
    %2888 = vmatprep.subr.mxu0 %v2794
    %2889 = vmatpush1.msra.mxu0 %v2793
    %2890 = vmatprep.subr.mxu0 %v2798
    %2891 = vmatpush1.msra.mxu0 %v2797
    %2892 = vmatprep.subr.mxu0 %v2802
    %2893 = vmatpush1.msra.mxu0 %v2801
    %2894 = vmatprep.subr.mxu0 %v2806
    %2895 = vmatpush1.msra.mxu0 %v2805
    %2896 = vmatprep.subr.mxu0 %v2810
    %2897 = vmatpush1.msra.mxu0 %v2809
    %2898 = vmatprep.mubr.f32.mxu0 %v2683
    %2899 = vmatmul.mubr.f32.gmra.mrb[0].mxu0 %v2681
    %v2900 = vpop.f32.mrb[0].mxu0
    %v2901 = vadd.f32 %v2817, %v2900
    %v2902 = vpop.f32.mrb[0].mxu0
    %v2903 = vadd.f32 %v2821, %v2902
    %2904 = vdwg.mxu0
    %2905 = vmatprep.subr.mxu0 %v2688
    %2906 = vmatpush1.msra.mxu0 %v2687
    %2907 = vmatprep.subr.mxu0 %v2692
    %2908 = vmatpush1.msra.mxu0 %v2691
    %2909 = vmatprep.subr.mxu0 %v2696
    %2910 = vmatpush1.msra.mxu0 %v2695
    %2911 = vmatprep.subr.mxu0 %v2700
    %2912 = vmatpush1.msra.mxu0 %v2699
    %2913 = vmatprep.subr.mxu0 %v2704
    %2914 = vmatpush1.msra.mxu0 %v2703
    %2915 = vmatprep.subr.mxu0 %v2708
    %2916 = vmatpush1.msra.mxu0 %v2707
    %2917 = vmatprep.subr.mxu0 %v2712
    %2918 = vmatpush1.msra.mxu0 %v2711
    %2919 = vmatprep.subr.mxu0 %v2716
    %2920 = vmatpush1.msra.mxu0 %v2715
    %2921 = vmatprep.subr.mxu0 %v2720
    %2922 = vmatpush1.msra.mxu0 %v2719
    %2923 = vmatprep.subr.mxu0 %v2724
    %2924 = vmatpush1.msra.mxu0 %v2723
    %2925 = vmatprep.subr.mxu0 %v2728
    %2926 = vmatpush1.msra.mxu0 %v2727
    %2927 = vmatprep.subr.mxu0 %v2732
    %2928 = vmatpush1.msra.mxu0 %v2731
    %2929 = vmatprep.subr.mxu0 %v2736
    %2930 = vmatpush1.msra.mxu0 %v2735
    %2931 = vmatprep.subr.mxu0 %v2740
    %2932 = vmatpush1.msra.mxu0 %v2739
    %2933 = vmatprep.subr.mxu0 %v2744
    %2934 = vmatpush1.msra.mxu0 %v2743
    %2935 = vmatprep.subr.mxu0 %v2748
    %2936 = vmatpush1.msra.mxu0 %v2747
    %2937 = vmatprep.subr.mxu0 %v2752
    %2938 = vmatpush1.msra.mxu0 %v2751
    %2939 = vmatprep.subr.mxu0 %v2756
    %2940 = vmatpush1.msra.mxu0 %v2755
    %2941 = vmatprep.subr.mxu0 %v2760
    %2942 = vmatpush1.msra.mxu0 %v2759
    %2943 = vmatprep.subr.mxu0 %v2764
    %2944 = vmatpush1.msra.mxu0 %v2763
    %2945 = vmatprep.subr.mxu0 %v2768
    %2946 = vmatpush1.msra.mxu0 %v2767
    %2947 = vmatprep.subr.mxu0 %v2772
    %2948 = vmatpush1.msra.mxu0 %v2771
    %2949 = vmatprep.subr.mxu0 %v2776
    %2950 = vmatpush1.msra.mxu0 %v2775
    %2951 = vmatprep.subr.mxu0 %v2780
    %2952 = vmatpush1.msra.mxu0 %v2779
    %2953 = vmatprep.subr.mxu0 %v2784
    %2954 = vmatpush1.msra.mxu0 %v2783
    %2955 = vmatprep.subr.mxu0 %v2788
    %2956 = vmatpush1.msra.mxu0 %v2787
    %2957 = vmatprep.subr.mxu0 %v2792
    %2958 = vmatpush1.msra.mxu0 %v2791
    %2959 = vmatprep.subr.mxu0 %v2796
    %2960 = vmatpush1.msra.mxu0 %v2795
    %2961 = vmatprep.subr.mxu0 %v2800
    %2962 = vmatpush1.msra.mxu0 %v2799
    %2963 = vmatprep.subr.mxu0 %v2804
    %2964 = vmatpush1.msra.mxu0 %v2803
    %2965 = vmatprep.subr.mxu0 %v2808
    %2966 = vmatpush1.msra.mxu0 %v2807
    %2967 = vmatprep.subr.mxu0 %v2812
    %2968 = vmatpush1.msra.mxu0 %v2811
    %2969 = vmatprep.mubr.f32.mxu0 %v2683
    %2970 = vmatmul.mubr.f32.gmra.mrb[0].mxu0 %v2681
    %v2971 = vpop.f32.mrb[0].mxu0
    %v2972 = vadd.f32 %v2825, %v2971
    %v2973 = vpop.f32.mrb[0].mxu0
    %v2974 = vadd.f32 %v2829, %v2973
    %2975 = vdwg.mxu0
    %v2976 = vxor.u32 %v2901, 2147483648
    %v2977 = vxor.u32 %v2903, 2147483648
    %v2978 = vxor.u32 %v2972, 2147483648
    %v2979 = vmul.f32 %v2976, 1.442695
    %v2980 = vpow.pop %v2979
    %v2981 = vmul.f32 %v2977, 1.442695
    %v2982 = vpow.pop %v2981
    %v2983 = vmul.f32 %v2978, 1.442695
    %v2984 = vpow.pop %v2983
    %v2985 = vadd.f32 %v2980, 1.0
    %v2986 = vadd.f32 %v2982, 1.0
    %v2987 = vadd.f32 %v2984, 1.0
    %v2988 = vrcp.pop %v2985
    %v2989 = vmul.f32 1.0, %v2988
    %v2990 = vrcp.pop %v2986
    %v2991 = vmul.f32 1.0, %v2990
    %v2992 = vrcp.pop %v2987
    %v2993 = vmul.f32 1.0, %v2992
    %v2994 = vtanh.pop %v2974
    %v2995 = vmul.f32 %v2684, %v2989
    %v2996 = vmul.f32 %v2991, %v2994
    %v2997 = vadd.f32 %v2995, %v2996
    %v2998 = vtanh.pop %v2997
    %v2999 = vmul.f32 %v2993, %v2998
    %s3000 = scalar_select %p2679, 1, 0
    %v3001 = vstv %s3000
    %vm3002 = vcmp.eq.s32.totalorder %v3001, 1
    %v3003 = vsel %vm3002, %v2997, %v2684
    %v3004 = vsel %vm3002, %v2999, %v2683
    %3005 = vst [vmem:[#allocation8] sm:$0xff] %v3003
    %3006 = vst [vmem:[#allocation9] sm:$0xff] %v3004
    %v3007 = vld [vmem:[%s4] sm:$0xf]
    %v3008 = vld [vmem:[%s402] sm:$0xff]
    %v3009 = vld [vmem:[%s404] sm:$0xff]
    %v3010 = vld [vmem:[#allocation7] sm:$0xff]
    %v3011 = vld [vmem:[#allocation7 + $0x8] sm:$0xff]
    %v3012 = vld [vmem:[#allocation7 + $0x10] sm:$0xff]
    %v3013 = vld [vmem:[#allocation7 + $0x18] sm:$0xff]
    %v3014 = vld [vmem:[#allocation7 + $0x20] sm:$0xff]
    %v3015 = vld [vmem:[#allocation7 + $0x28] sm:$0xff]
    %v3016 = vld [vmem:[#allocation7 + $0x30] sm:$0xff]
    %v3017 = vld [vmem:[#allocation7 + $0x38] sm:$0xff]
    %v3018 = vld [vmem:[#allocation7 + $0x40] sm:$0xff]
    %v3019 = vld [vmem:[#allocation7 + $0x48] sm:$0xff]
    %v3020 = vld [vmem:[#allocation7 + $0x50] sm:$0xff]
    %v3021 = vld [vmem:[#allocation7 + $0x58] sm:$0xff]
    %v3022 = vld [vmem:[#allocation7 + $0x60] sm:$0xff]
    %v3023 = vld [vmem:[#allocation7 + $0x68] sm:$0xff]
    %v3024 = vld [vmem:[#allocation7 + $0x70] sm:$0xff]
    %v3025 = vld [vmem:[#allocation7 + $0x78] sm:$0xff]
    %v3026 = vld [vmem:[#allocation7 + $0x80] sm:$0xff]
    %v3027 = vld [vmem:[#allocation7 + $0x88] sm:$0xff]
    %v3028 = vld [vmem:[#allocation7 + $0x90] sm:$0xff]
    %v3029 = vld [vmem:[#allocation7 + $0x98] sm:$0xff]
    %v3030 = vld [vmem:[#allocation7 + $0xa0] sm:$0xff]
    %v3031 = vld [vmem:[#allocation7 + $0xa8] sm:$0xff]
    %v3032 = vld [vmem:[#allocation7 + $0xb0] sm:$0xff]
    %v3033 = vld [vmem:[#allocation7 + $0xb8] sm:$0xff]
    %v3034 = vld [vmem:[#allocation7 + $0xc0] sm:$0xff]
    %v3035 = vld [vmem:[#allocation7 + $0xc8] sm:$0xff]
    %v3036 = vld [vmem:[#allocation7 + $0xd0] sm:$0xff]
    %v3037 = vld [vmem:[#allocation7 + $0xd8] sm:$0xff]
    %v3038 = vld [vmem:[#allocation7 + $0xe0] sm:$0xff]
    %v3039 = vld [vmem:[#allocation7 + $0xe8] sm:$0xff]
    %v3040 = vld [vmem:[#allocation7 + $0xf0] sm:$0xff]
    %v3041 = vld [vmem:[#allocation7 + $0xf8] sm:$0xff]
    %v3042 = vld [vmem:[#allocation7 + $0x100] sm:$0xff]
    %v3043 = vld [vmem:[#allocation7 + $0x108] sm:$0xff]
    %v3044 = vld [vmem:[#allocation7 + $0x110] sm:$0xff]
    %v3045 = vld [vmem:[#allocation7 + $0x118] sm:$0xff]
    %v3046 = vld [vmem:[#allocation7 + $0x120] sm:$0xff]
    %v3047 = vld [vmem:[#allocation7 + $0x128] sm:$0xff]
    %v3048 = vld [vmem:[#allocation7 + $0x130] sm:$0xff]
    %v3049 = vld [vmem:[#allocation7 + $0x138] sm:$0xff]
    %v3050 = vld [vmem:[#allocation7 + $0x140] sm:$0xff]
    %v3051 = vld [vmem:[#allocation7 + $0x148] sm:$0xff]
    %v3052 = vld [vmem:[#allocation7 + $0x150] sm:$0xff]
    %v3053 = vld [vmem:[#allocation7 + $0x158] sm:$0xff]
    %v3054 = vld [vmem:[#allocation7 + $0x160] sm:$0xff]
    %v3055 = vld [vmem:[#allocation7 + $0x168] sm:$0xff]
    %v3056 = vld [vmem:[#allocation7 + $0x170] sm:$0xff]
    %v3057 = vld [vmem:[#allocation7 + $0x178] sm:$0xff]
    %v3058 = vld [vmem:[#allocation7 + $0x180] sm:$0xff]
    %v3059 = vld [vmem:[#allocation7 + $0x188] sm:$0xff]
    %v3060 = vld [vmem:[#allocation7 + $0x190] sm:$0xff]
    %v3061 = vld [vmem:[#allocation7 + $0x198] sm:$0xff]
    %v3062 = vld [vmem:[#allocation7 + $0x1a0] sm:$0xff]
    %v3063 = vld [vmem:[#allocation7 + $0x1a8] sm:$0xff]
    %v3064 = vld [vmem:[#allocation7 + $0x1b0] sm:$0xff]
    %v3065 = vld [vmem:[#allocation7 + $0x1b8] sm:$0xff]
    %v3066 = vld [vmem:[#allocation7 + $0x1c0] sm:$0xff]
    %v3067 = vld [vmem:[#allocation7 + $0x1c8] sm:$0xff]
    %v3068 = vld [vmem:[#allocation7 + $0x1d0] sm:$0xff]
    %v3069 = vld [vmem:[#allocation7 + $0x1d8] sm:$0xff]
    %v3070 = vld [vmem:[#allocation7 + $0x1e0] sm:$0xff]
    %v3071 = vld [vmem:[#allocation7 + $0x1e8] sm:$0xff]
    %v3072 = vld [vmem:[#allocation7 + $0x1f0] sm:$0xff]
    %v3073 = vld [vmem:[#allocation7 + $0x1f8] sm:$0xff]
    %v3074 = vld [vmem:[#allocation7 + $0x200] sm:$0xff]
    %v3075 = vld [vmem:[#allocation7 + $0x208] sm:$0xff]
    %v3076 = vld [vmem:[#allocation7 + $0x210] sm:$0xff]
    %v3077 = vld [vmem:[#allocation7 + $0x218] sm:$0xff]
    %v3078 = vld [vmem:[#allocation7 + $0x220] sm:$0xff]
    %v3079 = vld [vmem:[#allocation7 + $0x228] sm:$0xff]
    %v3080 = vld [vmem:[#allocation7 + $0x230] sm:$0xff]
    %v3081 = vld [vmem:[#allocation7 + $0x238] sm:$0xff]
    %v3082 = vld [vmem:[#allocation7 + $0x240] sm:$0xff]
    %v3083 = vld [vmem:[#allocation7 + $0x248] sm:$0xff]
    %v3084 = vld [vmem:[#allocation7 + $0x250] sm:$0xff]
    %v3085 = vld [vmem:[#allocation7 + $0x258] sm:$0xff]
    %v3086 = vld [vmem:[#allocation7 + $0x260] sm:$0xff]
    %v3087 = vld [vmem:[#allocation7 + $0x268] sm:$0xff]
    %v3088 = vld [vmem:[#allocation7 + $0x270] sm:$0xff]
    %v3089 = vld [vmem:[#allocation7 + $0x278] sm:$0xff]
    %v3090 = vld [vmem:[#allocation7 + $0x280] sm:$0xff]
    %v3091 = vld [vmem:[#allocation7 + $0x288] sm:$0xff]
    %v3092 = vld [vmem:[#allocation7 + $0x290] sm:$0xff]
    %v3093 = vld [vmem:[#allocation7 + $0x298] sm:$0xff]
    %v3094 = vld [vmem:[#allocation7 + $0x2a0] sm:$0xff]
    %v3095 = vld [vmem:[#allocation7 + $0x2a8] sm:$0xff]
    %v3096 = vld [vmem:[#allocation7 + $0x2b0] sm:$0xff]
    %v3097 = vld [vmem:[#allocation7 + $0x2b8] sm:$0xff]
    %v3098 = vld [vmem:[#allocation7 + $0x2c0] sm:$0xff]
    %v3099 = vld [vmem:[#allocation7 + $0x2c8] sm:$0xff]
    %v3100 = vld [vmem:[#allocation7 + $0x2d0] sm:$0xff]
    %v3101 = vld [vmem:[#allocation7 + $0x2d8] sm:$0xff]
    %v3102 = vld [vmem:[#allocation7 + $0x2e0] sm:$0xff]
    %v3103 = vld [vmem:[#allocation7 + $0x2e8] sm:$0xff]
    %v3104 = vld [vmem:[#allocation7 + $0x2f0] sm:$0xff]
    %v3105 = vld [vmem:[#allocation7 + $0x2f8] sm:$0xff]
    %v3106 = vld [vmem:[#allocation7 + $0x300] sm:$0xff]
    %v3107 = vld [vmem:[#allocation7 + $0x308] sm:$0xff]
    %v3108 = vld [vmem:[#allocation7 + $0x310] sm:$0xff]
    %v3109 = vld [vmem:[#allocation7 + $0x318] sm:$0xff]
    %v3110 = vld [vmem:[#allocation7 + $0x320] sm:$0xff]
    %v3111 = vld [vmem:[#allocation7 + $0x328] sm:$0xff]
    %v3112 = vld [vmem:[#allocation7 + $0x330] sm:$0xff]
    %v3113 = vld [vmem:[#allocation7 + $0x338] sm:$0xff]
    %v3114 = vld [vmem:[#allocation7 + $0x340] sm:$0xff]
    %v3115 = vld [vmem:[#allocation7 + $0x348] sm:$0xff]
    %v3116 = vld [vmem:[#allocation7 + $0x350] sm:$0xff]
    %v3117 = vld [vmem:[#allocation7 + $0x358] sm:$0xff]
    %v3118 = vld [vmem:[#allocation7 + $0x360] sm:$0xff]
    %v3119 = vld [vmem:[#allocation7 + $0x368] sm:$0xff]
    %v3120 = vld [vmem:[#allocation7 + $0x370] sm:$0xff]
    %v3121 = vld [vmem:[#allocation7 + $0x378] sm:$0xff]
    %v3122 = vld [vmem:[#allocation7 + $0x380] sm:$0xff]
    %v3123 = vld [vmem:[#allocation7 + $0x388] sm:$0xff]
    %v3124 = vld [vmem:[#allocation7 + $0x390] sm:$0xff]
    %v3125 = vld [vmem:[#allocation7 + $0x398] sm:$0xff]
    %v3126 = vld [vmem:[#allocation7 + $0x3a0] sm:$0xff]
    %v3127 = vld [vmem:[#allocation7 + $0x3a8] sm:$0xff]
    %v3128 = vld [vmem:[#allocation7 + $0x3b0] sm:$0xff]
    %v3129 = vld [vmem:[#allocation7 + $0x3b8] sm:$0xff]
    %v3130 = vld [vmem:[#allocation7 + $0x3c0] sm:$0xff]
    %v3131 = vld [vmem:[#allocation7 + $0x3c8] sm:$0xff]
    %v3132 = vld [vmem:[#allocation7 + $0x3d0] sm:$0xff]
    %v3133 = vld [vmem:[#allocation7 + $0x3d8] sm:$0xff]
    %v3134 = vld [vmem:[#allocation7 + $0x3e0] sm:$0xff]
    %v3135 = vld [vmem:[#allocation7 + $0x3e8] sm:$0xff]
    %v3136 = vld [vmem:[#allocation7 + $0x3f0] sm:$0xff]
    %v3137 = vld [vmem:[#allocation7 + $0x3f8] sm:$0xff]
    %v3139 = vlaneseq
    %v3140 = vshrl.u32 %v3139, 7
    %v3141 = vsub.s32 0, %v3140
    %v3142 = vrot.slane %v3007, %v3141
    %v3143 = vlaneseq
    %v3144 = vshrl.u32 %v3143, 7
    %v3145 = vsub.s32 1, %v3144
    %v3146 = vrot.slane %v3007, %v3145
    %v3147 = vlaneseq
    %v3148 = vshrl.u32 %v3147, 7
    %v3149 = vsub.s32 2, %v3148
    %v3150 = vrot.slane %v3007, %v3149
    %v3151 = vlaneseq
    %v3152 = vshrl.u32 %v3151, 7
    %v3153 = vsub.s32 3, %v3152
    %v3154 = vrot.slane %v3007, %v3153
    %3159 = vmatprep.subr.mxu0 %v3011
    %3160 = vmatpush1.msra.mxu0 %v3010
    %3161 = vmatprep.subr.mxu0 %v3015
    %3162 = vmatpush1.msra.mxu0 %v3014
    %3163 = vmatprep.subr.mxu0 %v3019
    %3164 = vmatpush1.msra.mxu0 %v3018
    %3165 = vmatprep.subr.mxu0 %v3023
    %3166 = vmatpush1.msra.mxu0 %v3022
    %3167 = vmatprep.subr.mxu0 %v3027
    %3168 = vmatpush1.msra.mxu0 %v3026
    %3169 = vmatprep.subr.mxu0 %v3031
    %3170 = vmatpush1.msra.mxu0 %v3030
    %3171 = vmatprep.subr.mxu0 %v3035
    %3172 = vmatpush1.msra.mxu0 %v3034
    %3173 = vmatprep.subr.mxu0 %v3039
    %3174 = vmatpush1.msra.mxu0 %v3038
    %3175 = vmatprep.subr.mxu0 %v3043
    %3176 = vmatpush1.msra.mxu0 %v3042
    %3177 = vmatprep.subr.mxu0 %v3047
    %3178 = vmatpush1.msra.mxu0 %v3046
    %3179 = vmatprep.subr.mxu0 %v3051
    %3180 = vmatpush1.msra.mxu0 %v3050
    %3181 = vmatprep.subr.mxu0 %v3055
    %3182 = vmatpush1.msra.mxu0 %v3054
    %3183 = vmatprep.subr.mxu0 %v3059
    %3184 = vmatpush1.msra.mxu0 %v3058
    %3185 = vmatprep.subr.mxu0 %v3063
    %3186 = vmatpush1.msra.mxu0 %v3062
    %3187 = vmatprep.subr.mxu0 %v3067
    %3188 = vmatpush1.msra.mxu0 %v3066
    %3189 = vmatprep.subr.mxu0 %v3071
    %3190 = vmatpush1.msra.mxu0 %v3070
    %3191 = vmatprep.subr.mxu0 %v3075
    %3192 = vmatpush1.msra.mxu0 %v3074
    %3193 = vmatprep.subr.mxu0 %v3079
    %3194 = vmatpush1.msra.mxu0 %v3078
    %3195 = vmatprep.subr.mxu0 %v3083
    %3196 = vmatpush1.msra.mxu0 %v3082
    %3197 = vmatprep.subr.mxu0 %v3087
    %3198 = vmatpush1.msra.mxu0 %v3086
    %3199 = vmatprep.subr.mxu0 %v3091
    %3200 = vmatpush1.msra.mxu0 %v3090
    %3201 = vmatprep.subr.mxu0 %v3095
    %3202 = vmatpush1.msra.mxu0 %v3094
    %3203 = vmatprep.subr.mxu0 %v3099
    %3204 = vmatpush1.msra.mxu0 %v3098
    %3205 = vmatprep.subr.mxu0 %v3103
    %3206 = vmatpush1.msra.mxu0 %v3102
    %3207 = vmatprep.subr.mxu0 %v3107
    %3208 = vmatpush1.msra.mxu0 %v3106
    %3209 = vmatprep.subr.mxu0 %v3111
    %3210 = vmatpush1.msra.mxu0 %v3110
    %3211 = vmatprep.subr.mxu0 %v3115
    %3212 = vmatpush1.msra.mxu0 %v3114
    %3213 = vmatprep.subr.mxu0 %v3119
    %3214 = vmatpush1.msra.mxu0 %v3118
    %3215 = vmatprep.subr.mxu0 %v3123
    %3216 = vmatpush1.msra.mxu0 %v3122
    %3217 = vmatprep.subr.mxu0 %v3127
    %3218 = vmatpush1.msra.mxu0 %v3126
    %3219 = vmatprep.subr.mxu0 %v3131
    %3220 = vmatpush1.msra.mxu0 %v3130
    %3221 = vmatprep.subr.mxu0 %v3135
    %3222 = vmatpush1.msra.mxu0 %v3134
    %3223 = vmatprep.mubr.f32.mxu0 %v3008
    %3224 = vmatmul.mubr.f32.gmra.mrb[0].mxu0 %v3004
    %v3225 = vpop.f32.mrb[0].mxu0
    %v3226 = vadd.f32 %v3142, %v3225
    %v3227 = vpop.f32.mrb[0].mxu0
    %v3228 = vadd.f32 %v3146, %v3227
    %3229 = vdwg.mxu0
    %3230 = vmatprep.subr.mxu0 %v3013
    %3231 = vmatpush1.msra.mxu0 %v3012
    %3232 = vmatprep.subr.mxu0 %v3017
    %3233 = vmatpush1.msra.mxu0 %v3016
    %3234 = vmatprep.subr.mxu0 %v3021
    %3235 = vmatpush1.msra.mxu0 %v3020
    %3236 = vmatprep.subr.mxu0 %v3025
    %3237 = vmatpush1.msra.mxu0 %v3024
    %3238 = vmatprep.subr.mxu0 %v3029
    %3239 = vmatpush1.msra.mxu0 %v3028
    %3240 = vmatprep.subr.mxu0 %v3033
    %3241 = vmatpush1.msra.mxu0 %v3032
    %3242 = vmatprep.subr.mxu0 %v3037
    %3243 = vmatpush1.msra.mxu0 %v3036
    %3244 = vmatprep.subr.mxu0 %v3041
    %3245 = vmatpush1.msra.mxu0 %v3040
    %3246 = vmatprep.subr.mxu0 %v3045
    %3247 = vmatpush1.msra.mxu0 %v3044
    %3248 = vmatprep.subr.mxu0 %v3049
    %3249 = vmatpush1.msra.mxu0 %v3048
    %3250 = vmatprep.subr.mxu0 %v3053
    %3251 = vmatpush1.msra.mxu0 %v3052
    %3252 = vmatprep.subr.mxu0 %v3057
    %3253 = vmatpush1.msra.mxu0 %v3056
    %3254 = vmatprep.subr.mxu0 %v3061
    %3255 = vmatpush1.msra.mxu0 %v3060
    %3256 = vmatprep.subr.mxu0 %v3065
    %3257 = vmatpush1.msra.mxu0 %v3064
    %3258 = vmatprep.subr.mxu0 %v3069
    %3259 = vmatpush1.msra.mxu0 %v3068
    %3260 = vmatprep.subr.mxu0 %v3073
    %3261 = vmatpush1.msra.mxu0 %v3072
    %3262 = vmatprep.subr.mxu0 %v3077
    %3263 = vmatpush1.msra.mxu0 %v3076
    %3264 = vmatprep.subr.mxu0 %v3081
    %3265 = vmatpush1.msra.mxu0 %v3080
    %3266 = vmatprep.subr.mxu0 %v3085
    %3267 = vmatpush1.msra.mxu0 %v3084
    %3268 = vmatprep.subr.mxu0 %v3089
    %3269 = vmatpush1.msra.mxu0 %v3088
    %3270 = vmatprep.subr.mxu0 %v3093
    %3271 = vmatpush1.msra.mxu0 %v3092
    %3272 = vmatprep.subr.mxu0 %v3097
    %3273 = vmatpush1.msra.mxu0 %v3096
    %3274 = vmatprep.subr.mxu0 %v3101
    %3275 = vmatpush1.msra.mxu0 %v3100
    %3276 = vmatprep.subr.mxu0 %v3105
    %3277 = vmatpush1.msra.mxu0 %v3104
    %3278 = vmatprep.subr.mxu0 %v3109
    %3279 = vmatpush1.msra.mxu0 %v3108
    %3280 = vmatprep.subr.mxu0 %v3113
    %3281 = vmatpush1.msra.mxu0 %v3112
    %3282 = vmatprep.subr.mxu0 %v3117
    %3283 = vmatpush1.msra.mxu0 %v3116
    %3284 = vmatprep.subr.mxu0 %v3121
    %3285 = vmatpush1.msra.mxu0 %v3120
    %3286 = vmatprep.subr.mxu0 %v3125
    %3287 = vmatpush1.msra.mxu0 %v3124
    %3288 = vmatprep.subr.mxu0 %v3129
    %3289 = vmatpush1.msra.mxu0 %v3128
    %3290 = vmatprep.subr.mxu0 %v3133
    %3291 = vmatpush1.msra.mxu0 %v3132
    %3292 = vmatprep.subr.mxu0 %v3137
    %3293 = vmatpush1.msra.mxu0 %v3136
    %3294 = vmatprep.mubr.f32.mxu0 %v3008
    %3295 = vmatmul.mubr.f32.gmra.mrb[0].mxu0 %v3004
    %v3296 = vpop.f32.mrb[0].mxu0
    %v3297 = vadd.f32 %v3150, %v3296
    %v3298 = vpop.f32.mrb[0].mxu0
    %v3299 = vadd.f32 %v3154, %v3298
    %3300 = vdwg.mxu0
    %v3301 = vxor.u32 %v3226, 2147483648
    %v3302 = vxor.u32 %v3228, 2147483648
    %v3303 = vxor.u32 %v3297, 2147483648
    %v3304 = vmul.f32 %v3301, 1.442695
    %v3305 = vpow.pop %v3304
    %v3306 = vmul.f32 %v3302, 1.442695
    %v3307 = vpow.pop %v3306
    %v3308 = vmul.f32 %v3303, 1.442695
    %v3309 = vpow.pop %v3308
    %v3310 = vadd.f32 %v3305, 1.0
    %v3311 = vadd.f32 %v3307, 1.0
    %v3312 = vadd.f32 %v3309, 1.0
    %v3313 = vrcp.pop %v3310
    %v3314 = vmul.f32 1.0, %v3313
    %v3315 = vrcp.pop %v3311
    %v3316 = vmul.f32 1.0, %v3315
    %v3317 = vrcp.pop %v3312
    %v3318 = vmul.f32 1.0, %v3317
    %v3319 = vtanh.pop %v3299
    %v3320 = vmul.f32 %v3009, %v3314
    %v3321 = vmul.f32 %v3316, %v3319
    %v3322 = vadd.f32 %v3320, %v3321
    %v3323 = vtanh.pop %v3322
    %v3324 = vmul.f32 %v3318, %v3323
    %v3325 = vsel %vm3002, %v3322, %v3009
    %v3326 = vsel %vm3002, %v3324, %v3008
    %3327 = vst [vmem:[%s404] sm:$0xff] %v3325
    %3328 = vst [vmem:[%s402] sm:$0xff] %v3326
    %s3329 = sadd.s32 %s73, 5
    %p3330 = scmp.lt.s32.totalorder %s3329, 8
    %s3331 = scalar_lea.vmem [#allocation2], 40
    %v3332 = vld [vmem:[%s3331] sm:$0xff]
    %v3333 = vld [vmem:[%s2] sm:$0xf]
    %v3334 = vld [vmem:[#allocation9] sm:$0xff]
    %v3335 = vld [vmem:[#allocation8] sm:$0xff]
    %v3336 = vld [vmem:[#allocation5] sm:$0xff]
    %v3337 = vld [vmem:[#allocation5 + $0x8] sm:$0xff]
    %v3338 = vld [vmem:[#allocation5 + $0x10] sm:$0xff]
    %v3339 = vld [vmem:[#allocation5 + $0x18] sm:$0xff]
    %v3340 = vld [vmem:[#allocation5 + $0x20] sm:$0xff]
    %v3341 = vld [vmem:[#allocation5 + $0x28] sm:$0xff]
    %v3342 = vld [vmem:[#allocation5 + $0x30] sm:$0xff]
    %v3343 = vld [vmem:[#allocation5 + $0x38] sm:$0xff]
    %v3344 = vld [vmem:[#allocation5 + $0x40] sm:$0xff]
    %v3345 = vld [vmem:[#allocation5 + $0x48] sm:$0xff]
    %v3346 = vld [vmem:[#allocation5 + $0x50] sm:$0xff]
    %v3347 = vld [vmem:[#allocation5 + $0x58] sm:$0xff]
    %v3348 = vld [vmem:[#allocation5 + $0x60] sm:$0xff]
    %v3349 = vld [vmem:[#allocation5 + $0x68] sm:$0xff]
    %v3350 = vld [vmem:[#allocation5 + $0x70] sm:$0xff]
    %v3351 = vld [vmem:[#allocation5 + $0x78] sm:$0xff]
    %v3352 = vld [vmem:[#allocation5 + $0x80] sm:$0xff]
    %v3353 = vld [vmem:[#allocation5 + $0x88] sm:$0xff]
    %v3354 = vld [vmem:[#allocation5 + $0x90] sm:$0xff]
    %v3355 = vld [vmem:[#allocation5 + $0x98] sm:$0xff]
    %v3356 = vld [vmem:[#allocation5 + $0xa0] sm:$0xff]
    %v3357 = vld [vmem:[#allocation5 + $0xa8] sm:$0xff]
    %v3358 = vld [vmem:[#allocation5 + $0xb0] sm:$0xff]
    %v3359 = vld [vmem:[#allocation5 + $0xb8] sm:$0xff]
    %v3360 = vld [vmem:[#allocation5 + $0xc0] sm:$0xff]
    %v3361 = vld [vmem:[#allocation5 + $0xc8] sm:$0xff]
    %v3362 = vld [vmem:[#allocation5 + $0xd0] sm:$0xff]
    %v3363 = vld [vmem:[#allocation5 + $0xd8] sm:$0xff]
    %v3364 = vld [vmem:[#allocation5 + $0xe0] sm:$0xff]
    %v3365 = vld [vmem:[#allocation5 + $0xe8] sm:$0xff]
    %v3366 = vld [vmem:[#allocation5 + $0xf0] sm:$0xff]
    %v3367 = vld [vmem:[#allocation5 + $0xf8] sm:$0xff]
    %v3368 = vld [vmem:[#allocation5 + $0x100] sm:$0xff]
    %v3369 = vld [vmem:[#allocation5 + $0x108] sm:$0xff]
    %v3370 = vld [vmem:[#allocation5 + $0x110] sm:$0xff]
    %v3371 = vld [vmem:[#allocation5 + $0x118] sm:$0xff]
    %v3372 = vld [vmem:[#allocation5 + $0x120] sm:$0xff]
    %v3373 = vld [vmem:[#allocation5 + $0x128] sm:$0xff]
    %v3374 = vld [vmem:[#allocation5 + $0x130] sm:$0xff]
    %v3375 = vld [vmem:[#allocation5 + $0x138] sm:$0xff]
    %v3376 = vld [vmem:[#allocation5 + $0x140] sm:$0xff]
    %v3377 = vld [vmem:[#allocation5 + $0x148] sm:$0xff]
    %v3378 = vld [vmem:[#allocation5 + $0x150] sm:$0xff]
    %v3379 = vld [vmem:[#allocation5 + $0x158] sm:$0xff]
    %v3380 = vld [vmem:[#allocation5 + $0x160] sm:$0xff]
    %v3381 = vld [vmem:[#allocation5 + $0x168] sm:$0xff]
    %v3382 = vld [vmem:[#allocation5 + $0x170] sm:$0xff]
    %v3383 = vld [vmem:[#allocation5 + $0x178] sm:$0xff]
    %v3384 = vld [vmem:[#allocation5 + $0x180] sm:$0xff]
    %v3385 = vld [vmem:[#allocation5 + $0x188] sm:$0xff]
    %v3386 = vld [vmem:[#allocation5 + $0x190] sm:$0xff]
    %v3387 = vld [vmem:[#allocation5 + $0x198] sm:$0xff]
    %v3388 = vld [vmem:[#allocation5 + $0x1a0] sm:$0xff]
    %v3389 = vld [vmem:[#allocation5 + $0x1a8] sm:$0xff]
    %v3390 = vld [vmem:[#allocation5 + $0x1b0] sm:$0xff]
    %v3391 = vld [vmem:[#allocation5 + $0x1b8] sm:$0xff]
    %v3392 = vld [vmem:[#allocation5 + $0x1c0] sm:$0xff]
    %v3393 = vld [vmem:[#allocation5 + $0x1c8] sm:$0xff]
    %v3394 = vld [vmem:[#allocation5 + $0x1d0] sm:$0xff]
    %v3395 = vld [vmem:[#allocation5 + $0x1d8] sm:$0xff]
    %v3396 = vld [vmem:[#allocation5 + $0x1e0] sm:$0xff]
    %v3397 = vld [vmem:[#allocation5 + $0x1e8] sm:$0xff]
    %v3398 = vld [vmem:[#allocation5 + $0x1f0] sm:$0xff]
    %v3399 = vld [vmem:[#allocation5 + $0x1f8] sm:$0xff]
    %v3400 = vld [vmem:[#allocation5 + $0x200] sm:$0xff]
    %v3401 = vld [vmem:[#allocation5 + $0x208] sm:$0xff]
    %v3402 = vld [vmem:[#allocation5 + $0x210] sm:$0xff]
    %v3403 = vld [vmem:[#allocation5 + $0x218] sm:$0xff]
    %v3404 = vld [vmem:[#allocation5 + $0x220] sm:$0xff]
    %v3405 = vld [vmem:[#allocation5 + $0x228] sm:$0xff]
    %v3406 = vld [vmem:[#allocation5 + $0x230] sm:$0xff]
    %v3407 = vld [vmem:[#allocation5 + $0x238] sm:$0xff]
    %v3408 = vld [vmem:[#allocation5 + $0x240] sm:$0xff]
    %v3409 = vld [vmem:[#allocation5 + $0x248] sm:$0xff]
    %v3410 = vld [vmem:[#allocation5 + $0x250] sm:$0xff]
    %v3411 = vld [vmem:[#allocation5 + $0x258] sm:$0xff]
    %v3412 = vld [vmem:[#allocation5 + $0x260] sm:$0xff]
    %v3413 = vld [vmem:[#allocation5 + $0x268] sm:$0xff]
    %v3414 = vld [vmem:[#allocation5 + $0x270] sm:$0xff]
    %v3415 = vld [vmem:[#allocation5 + $0x278] sm:$0xff]
    %v3416 = vld [vmem:[#allocation5 + $0x280] sm:$0xff]
    %v3417 = vld [vmem:[#allocation5 + $0x288] sm:$0xff]
    %v3418 = vld [vmem:[#allocation5 + $0x290] sm:$0xff]
    %v3419 = vld [vmem:[#allocation5 + $0x298] sm:$0xff]
    %v3420 = vld [vmem:[#allocation5 + $0x2a0] sm:$0xff]
    %v3421 = vld [vmem:[#allocation5 + $0x2a8] sm:$0xff]
    %v3422 = vld [vmem:[#allocation5 + $0x2b0] sm:$0xff]
    %v3423 = vld [vmem:[#allocation5 + $0x2b8] sm:$0xff]
    %v3424 = vld [vmem:[#allocation5 + $0x2c0] sm:$0xff]
    %v3425 = vld [vmem:[#allocation5 + $0x2c8] sm:$0xff]
    %v3426 = vld [vmem:[#allocation5 + $0x2d0] sm:$0xff]
    %v3427 = vld [vmem:[#allocation5 + $0x2d8] sm:$0xff]
    %v3428 = vld [vmem:[#allocation5 + $0x2e0] sm:$0xff]
    %v3429 = vld [vmem:[#allocation5 + $0x2e8] sm:$0xff]
    %v3430 = vld [vmem:[#allocation5 + $0x2f0] sm:$0xff]
    %v3431 = vld [vmem:[#allocation5 + $0x2f8] sm:$0xff]
    %v3432 = vld [vmem:[#allocation5 + $0x300] sm:$0xff]
    %v3433 = vld [vmem:[#allocation5 + $0x308] sm:$0xff]
    %v3434 = vld [vmem:[#allocation5 + $0x310] sm:$0xff]
    %v3435 = vld [vmem:[#allocation5 + $0x318] sm:$0xff]
    %v3436 = vld [vmem:[#allocation5 + $0x320] sm:$0xff]
    %v3437 = vld [vmem:[#allocation5 + $0x328] sm:$0xff]
    %v3438 = vld [vmem:[#allocation5 + $0x330] sm:$0xff]
    %v3439 = vld [vmem:[#allocation5 + $0x338] sm:$0xff]
    %v3440 = vld [vmem:[#allocation5 + $0x340] sm:$0xff]
    %v3441 = vld [vmem:[#allocation5 + $0x348] sm:$0xff]
    %v3442 = vld [vmem:[#allocation5 + $0x350] sm:$0xff]
    %v3443 = vld [vmem:[#allocation5 + $0x358] sm:$0xff]
    %v3444 = vld [vmem:[#allocation5 + $0x360] sm:$0xff]
    %v3445 = vld [vmem:[#allocation5 + $0x368] sm:$0xff]
    %v3446 = vld [vmem:[#allocation5 + $0x370] sm:$0xff]
    %v3447 = vld [vmem:[#allocation5 + $0x378] sm:$0xff]
    %v3448 = vld [vmem:[#allocation5 + $0x380] sm:$0xff]
    %v3449 = vld [vmem:[#allocation5 + $0x388] sm:$0xff]
    %v3450 = vld [vmem:[#allocation5 + $0x390] sm:$0xff]
    %v3451 = vld [vmem:[#allocation5 + $0x398] sm:$0xff]
    %v3452 = vld [vmem:[#allocation5 + $0x3a0] sm:$0xff]
    %v3453 = vld [vmem:[#allocation5 + $0x3a8] sm:$0xff]
    %v3454 = vld [vmem:[#allocation5 + $0x3b0] sm:$0xff]
    %v3455 = vld [vmem:[#allocation5 + $0x3b8] sm:$0xff]
    %v3456 = vld [vmem:[#allocation5 + $0x3c0] sm:$0xff]
    %v3457 = vld [vmem:[#allocation5 + $0x3c8] sm:$0xff]
    %v3458 = vld [vmem:[#allocation5 + $0x3d0] sm:$0xff]
    %v3459 = vld [vmem:[#allocation5 + $0x3d8] sm:$0xff]
    %v3460 = vld [vmem:[#allocation5 + $0x3e0] sm:$0xff]
    %v3461 = vld [vmem:[#allocation5 + $0x3e8] sm:$0xff]
    %v3462 = vld [vmem:[#allocation5 + $0x3f0] sm:$0xff]
    %v3463 = vld [vmem:[#allocation5 + $0x3f8] sm:$0xff]
    %v3465 = vlaneseq
    %v3466 = vshrl.u32 %v3465, 7
    %v3467 = vsub.s32 0, %v3466
    %v3468 = vrot.slane %v3333, %v3467
    %v3469 = vlaneseq
    %v3470 = vshrl.u32 %v3469, 7
    %v3471 = vsub.s32 1, %v3470
    %v3472 = vrot.slane %v3333, %v3471
    %v3473 = vlaneseq
    %v3474 = vshrl.u32 %v3473, 7
    %v3475 = vsub.s32 2, %v3474
    %v3476 = vrot.slane %v3333, %v3475
    %v3477 = vlaneseq
    %v3478 = vshrl.u32 %v3477, 7
    %v3479 = vsub.s32 3, %v3478
    %v3480 = vrot.slane %v3333, %v3479
    %3485 = vmatprep.subr.mxu0 %v3337
    %3486 = vmatpush1.msra.mxu0 %v3336
    %3487 = vmatprep.subr.mxu0 %v3341
    %3488 = vmatpush1.msra.mxu0 %v3340
    %3489 = vmatprep.subr.mxu0 %v3345
    %3490 = vmatpush1.msra.mxu0 %v3344
    %3491 = vmatprep.subr.mxu0 %v3349
    %3492 = vmatpush1.msra.mxu0 %v3348
    %3493 = vmatprep.subr.mxu0 %v3353
    %3494 = vmatpush1.msra.mxu0 %v3352
    %3495 = vmatprep.subr.mxu0 %v3357
    %3496 = vmatpush1.msra.mxu0 %v3356
    %3497 = vmatprep.subr.mxu0 %v3361
    %3498 = vmatpush1.msra.mxu0 %v3360
    %3499 = vmatprep.subr.mxu0 %v3365
    %3500 = vmatpush1.msra.mxu0 %v3364
    %3501 = vmatprep.subr.mxu0 %v3369
    %3502 = vmatpush1.msra.mxu0 %v3368
    %3503 = vmatprep.subr.mxu0 %v3373
    %3504 = vmatpush1.msra.mxu0 %v3372
    %3505 = vmatprep.subr.mxu0 %v3377
    %3506 = vmatpush1.msra.mxu0 %v3376
    %3507 = vmatprep.subr.mxu0 %v3381
    %3508 = vmatpush1.msra.mxu0 %v3380
    %3509 = vmatprep.subr.mxu0 %v3385
    %3510 = vmatpush1.msra.mxu0 %v3384
    %3511 = vmatprep.subr.mxu0 %v3389
    %3512 = vmatpush1.msra.mxu0 %v3388
    %3513 = vmatprep.subr.mxu0 %v3393
    %3514 = vmatpush1.msra.mxu0 %v3392
    %3515 = vmatprep.subr.mxu0 %v3397
    %3516 = vmatpush1.msra.mxu0 %v3396
    %3517 = vmatprep.subr.mxu0 %v3401
    %3518 = vmatpush1.msra.mxu0 %v3400
    %3519 = vmatprep.subr.mxu0 %v3405
    %3520 = vmatpush1.msra.mxu0 %v3404
    %3521 = vmatprep.subr.mxu0 %v3409
    %3522 = vmatpush1.msra.mxu0 %v3408
    %3523 = vmatprep.subr.mxu0 %v3413
    %3524 = vmatpush1.msra.mxu0 %v3412
    %3525 = vmatprep.subr.mxu0 %v3417
    %3526 = vmatpush1.msra.mxu0 %v3416
    %3527 = vmatprep.subr.mxu0 %v3421
    %3528 = vmatpush1.msra.mxu0 %v3420
    %3529 = vmatprep.subr.mxu0 %v3425
    %3530 = vmatpush1.msra.mxu0 %v3424
    %3531 = vmatprep.subr.mxu0 %v3429
    %3532 = vmatpush1.msra.mxu0 %v3428
    %3533 = vmatprep.subr.mxu0 %v3433
    %3534 = vmatpush1.msra.mxu0 %v3432
    %3535 = vmatprep.subr.mxu0 %v3437
    %3536 = vmatpush1.msra.mxu0 %v3436
    %3537 = vmatprep.subr.mxu0 %v3441
    %3538 = vmatpush1.msra.mxu0 %v3440
    %3539 = vmatprep.subr.mxu0 %v3445
    %3540 = vmatpush1.msra.mxu0 %v3444
    %3541 = vmatprep.subr.mxu0 %v3449
    %3542 = vmatpush1.msra.mxu0 %v3448
    %3543 = vmatprep.subr.mxu0 %v3453
    %3544 = vmatpush1.msra.mxu0 %v3452
    %3545 = vmatprep.subr.mxu0 %v3457
    %3546 = vmatpush1.msra.mxu0 %v3456
    %3547 = vmatprep.subr.mxu0 %v3461
    %3548 = vmatpush1.msra.mxu0 %v3460
    %3549 = vmatprep.mubr.f32.mxu0 %v3334
    %3550 = vmatmul.mubr.f32.gmra.mrb[0].mxu0 %v3332
    %v3551 = vpop.f32.mrb[0].mxu0
    %v3552 = vadd.f32 %v3468, %v3551
    %v3553 = vpop.f32.mrb[0].mxu0
    %v3554 = vadd.f32 %v3472, %v3553
    %3555 = vdwg.mxu0
    %3556 = vmatprep.subr.mxu0 %v3339
    %3557 = vmatpush1.msra.mxu0 %v3338
    %3558 = vmatprep.subr.mxu0 %v3343
    %3559 = vmatpush1.msra.mxu0 %v3342
    %3560 = vmatprep.subr.mxu0 %v3347
    %3561 = vmatpush1.msra.mxu0 %v3346
    %3562 = vmatprep.subr.mxu0 %v3351
    %3563 = vmatpush1.msra.mxu0 %v3350
    %3564 = vmatprep.subr.mxu0 %v3355
    %3565 = vmatpush1.msra.mxu0 %v3354
    %3566 = vmatprep.subr.mxu0 %v3359
    %3567 = vmatpush1.msra.mxu0 %v3358
    %3568 = vmatprep.subr.mxu0 %v3363
    %3569 = vmatpush1.msra.mxu0 %v3362
    %3570 = vmatprep.subr.mxu0 %v3367
    %3571 = vmatpush1.msra.mxu0 %v3366
    %3572 = vmatprep.subr.mxu0 %v3371
    %3573 = vmatpush1.msra.mxu0 %v3370
    %3574 = vmatprep.subr.mxu0 %v3375
    %3575 = vmatpush1.msra.mxu0 %v3374
    %3576 = vmatprep.subr.mxu0 %v3379
    %3577 = vmatpush1.msra.mxu0 %v3378
    %3578 = vmatprep.subr.mxu0 %v3383
    %3579 = vmatpush1.msra.mxu0 %v3382
    %3580 = vmatprep.subr.mxu0 %v3387
    %3581 = vmatpush1.msra.mxu0 %v3386
    %3582 = vmatprep.subr.mxu0 %v3391
    %3583 = vmatpush1.msra.mxu0 %v3390
    %3584 = vmatprep.subr.mxu0 %v3395
    %3585 = vmatpush1.msra.mxu0 %v3394
    %3586 = vmatprep.subr.mxu0 %v3399
    %3587 = vmatpush1.msra.mxu0 %v3398
    %3588 = vmatprep.subr.mxu0 %v3403
    %3589 = vmatpush1.msra.mxu0 %v3402
    %3590 = vmatprep.subr.mxu0 %v3407
    %3591 = vmatpush1.msra.mxu0 %v3406
    %3592 = vmatprep.subr.mxu0 %v3411
    %3593 = vmatpush1.msra.mxu0 %v3410
    %3594 = vmatprep.subr.mxu0 %v3415
    %3595 = vmatpush1.msra.mxu0 %v3414
    %3596 = vmatprep.subr.mxu0 %v3419
    %3597 = vmatpush1.msra.mxu0 %v3418
    %3598 = vmatprep.subr.mxu0 %v3423
    %3599 = vmatpush1.msra.mxu0 %v3422
    %3600 = vmatprep.subr.mxu0 %v3427
    %3601 = vmatpush1.msra.mxu0 %v3426
    %3602 = vmatprep.subr.mxu0 %v3431
    %3603 = vmatpush1.msra.mxu0 %v3430
    %3604 = vmatprep.subr.mxu0 %v3435
    %3605 = vmatpush1.msra.mxu0 %v3434
    %3606 = vmatprep.subr.mxu0 %v3439
    %3607 = vmatpush1.msra.mxu0 %v3438
    %3608 = vmatprep.subr.mxu0 %v3443
    %3609 = vmatpush1.msra.mxu0 %v3442
    %3610 = vmatprep.subr.mxu0 %v3447
    %3611 = vmatpush1.msra.mxu0 %v3446
    %3612 = vmatprep.subr.mxu0 %v3451
    %3613 = vmatpush1.msra.mxu0 %v3450
    %3614 = vmatprep.subr.mxu0 %v3455
    %3615 = vmatpush1.msra.mxu0 %v3454
    %3616 = vmatprep.subr.mxu0 %v3459
    %3617 = vmatpush1.msra.mxu0 %v3458
    %3618 = vmatprep.subr.mxu0 %v3463
    %3619 = vmatpush1.msra.mxu0 %v3462
    %3620 = vmatprep.mubr.f32.mxu0 %v3334
    %3621 = vmatmul.mubr.f32.gmra.mrb[0].mxu0 %v3332
    %v3622 = vpop.f32.mrb[0].mxu0
    %v3623 = vadd.f32 %v3476, %v3622
    %v3624 = vpop.f32.mrb[0].mxu0
    %v3625 = vadd.f32 %v3480, %v3624
    %3626 = vdwg.mxu0
    %v3627 = vxor.u32 %v3552, 2147483648
    %v3628 = vxor.u32 %v3554, 2147483648
    %v3629 = vxor.u32 %v3623, 2147483648
    %v3630 = vmul.f32 %v3627, 1.442695
    %v3631 = vpow.pop %v3630
    %v3632 = vmul.f32 %v3628, 1.442695
    %v3633 = vpow.pop %v3632
    %v3634 = vmul.f32 %v3629, 1.442695
    %v3635 = vpow.pop %v3634
    %v3636 = vadd.f32 %v3631, 1.0
    %v3637 = vadd.f32 %v3633, 1.0
    %v3638 = vadd.f32 %v3635, 1.0
    %v3639 = vrcp.pop %v3636
    %v3640 = vmul.f32 1.0, %v3639
    %v3641 = vrcp.pop %v3637
    %v3642 = vmul.f32 1.0, %v3641
    %v3643 = vrcp.pop %v3638
    %v3644 = vmul.f32 1.0, %v3643
    %v3645 = vtanh.pop %v3625
    %v3646 = vmul.f32 %v3335, %v3640
    %v3647 = vmul.f32 %v3642, %v3645
    %v3648 = vadd.f32 %v3646, %v3647
    %v3649 = vtanh.pop %v3648
    %v3650 = vmul.f32 %v3644, %v3649
    %s3651 = scalar_select %p3330, 1, 0
    %v3652 = vstv %s3651
    %vm3653 = vcmp.eq.s32.totalorder %v3652, 1
    %v3654 = vsel %vm3653, %v3648, %v3335
    %v3655 = vsel %vm3653, %v3650, %v3334
    %3656 = vst [vmem:[#allocation8] sm:$0xff] %v3654
    %3657 = vst [vmem:[#allocation9] sm:$0xff] %v3655
    %v3658 = vld [vmem:[%s4] sm:$0xf]
    %v3659 = vld [vmem:[%s402] sm:$0xff]
    %v3660 = vld [vmem:[%s404] sm:$0xff]
    %v3661 = vld [vmem:[#allocation7] sm:$0xff]
    %v3662 = vld [vmem:[#allocation7 + $0x8] sm:$0xff]
    %v3663 = vld [vmem:[#allocation7 + $0x10] sm:$0xff]
    %v3664 = vld [vmem:[#allocation7 + $0x18] sm:$0xff]
    %v3665 = vld [vmem:[#allocation7 + $0x20] sm:$0xff]
    %v3666 = vld [vmem:[#allocation7 + $0x28] sm:$0xff]
    %v3667 = vld [vmem:[#allocation7 + $0x30] sm:$0xff]
    %v3668 = vld [vmem:[#allocation7 + $0x38] sm:$0xff]
    %v3669 = vld [vmem:[#allocation7 + $0x40] sm:$0xff]
    %v3670 = vld [vmem:[#allocation7 + $0x48] sm:$0xff]
    %v3671 = vld [vmem:[#allocation7 + $0x50] sm:$0xff]
    %v3672 = vld [vmem:[#allocation7 + $0x58] sm:$0xff]
    %v3673 = vld [vmem:[#allocation7 + $0x60] sm:$0xff]
    %v3674 = vld [vmem:[#allocation7 + $0x68] sm:$0xff]
    %v3675 = vld [vmem:[#allocation7 + $0x70] sm:$0xff]
    %v3676 = vld [vmem:[#allocation7 + $0x78] sm:$0xff]
    %v3677 = vld [vmem:[#allocation7 + $0x80] sm:$0xff]
    %v3678 = vld [vmem:[#allocation7 + $0x88] sm:$0xff]
    %v3679 = vld [vmem:[#allocation7 + $0x90] sm:$0xff]
    %v3680 = vld [vmem:[#allocation7 + $0x98] sm:$0xff]
    %v3681 = vld [vmem:[#allocation7 + $0xa0] sm:$0xff]
    %v3682 = vld [vmem:[#allocation7 + $0xa8] sm:$0xff]
    %v3683 = vld [vmem:[#allocation7 + $0xb0] sm:$0xff]
    %v3684 = vld [vmem:[#allocation7 + $0xb8] sm:$0xff]
    %v3685 = vld [vmem:[#allocation7 + $0xc0] sm:$0xff]
    %v3686 = vld [vmem:[#allocation7 + $0xc8] sm:$0xff]
    %v3687 = vld [vmem:[#allocation7 + $0xd0] sm:$0xff]
    %v3688 = vld [vmem:[#allocation7 + $0xd8] sm:$0xff]
    %v3689 = vld [vmem:[#allocation7 + $0xe0] sm:$0xff]
    %v3690 = vld [vmem:[#allocation7 + $0xe8] sm:$0xff]
    %v3691 = vld [vmem:[#allocation7 + $0xf0] sm:$0xff]
    %v3692 = vld [vmem:[#allocation7 + $0xf8] sm:$0xff]
    %v3693 = vld [vmem:[#allocation7 + $0x100] sm:$0xff]
    %v3694 = vld [vmem:[#allocation7 + $0x108] sm:$0xff]
    %v3695 = vld [vmem:[#allocation7 + $0x110] sm:$0xff]
    %v3696 = vld [vmem:[#allocation7 + $0x118] sm:$0xff]
    %v3697 = vld [vmem:[#allocation7 + $0x120] sm:$0xff]
    %v3698 = vld [vmem:[#allocation7 + $0x128] sm:$0xff]
    %v3699 = vld [vmem:[#allocation7 + $0x130] sm:$0xff]
    %v3700 = vld [vmem:[#allocation7 + $0x138] sm:$0xff]
    %v3701 = vld [vmem:[#allocation7 + $0x140] sm:$0xff]
    %v3702 = vld [vmem:[#allocation7 + $0x148] sm:$0xff]
    %v3703 = vld [vmem:[#allocation7 + $0x150] sm:$0xff]
    %v3704 = vld [vmem:[#allocation7 + $0x158] sm:$0xff]
    %v3705 = vld [vmem:[#allocation7 + $0x160] sm:$0xff]
    %v3706 = vld [vmem:[#allocation7 + $0x168] sm:$0xff]
    %v3707 = vld [vmem:[#allocation7 + $0x170] sm:$0xff]
    %v3708 = vld [vmem:[#allocation7 + $0x178] sm:$0xff]
    %v3709 = vld [vmem:[#allocation7 + $0x180] sm:$0xff]
    %v3710 = vld [vmem:[#allocation7 + $0x188] sm:$0xff]
    %v3711 = vld [vmem:[#allocation7 + $0x190] sm:$0xff]
    %v3712 = vld [vmem:[#allocation7 + $0x198] sm:$0xff]
    %v3713 = vld [vmem:[#allocation7 + $0x1a0] sm:$0xff]
    %v3714 = vld [vmem:[#allocation7 + $0x1a8] sm:$0xff]
    %v3715 = vld [vmem:[#allocation7 + $0x1b0] sm:$0xff]
    %v3716 = vld [vmem:[#allocation7 + $0x1b8] sm:$0xff]
    %v3717 = vld [vmem:[#allocation7 + $0x1c0] sm:$0xff]
    %v3718 = vld [vmem:[#allocation7 + $0x1c8] sm:$0xff]
    %v3719 = vld [vmem:[#allocation7 + $0x1d0] sm:$0xff]
    %v3720 = vld [vmem:[#allocation7 + $0x1d8] sm:$0xff]
    %v3721 = vld [vmem:[#allocation7 + $0x1e0] sm:$0xff]
    %v3722 = vld [vmem:[#allocation7 + $0x1e8] sm:$0xff]
    %v3723 = vld [vmem:[#allocation7 + $0x1f0] sm:$0xff]
    %v3724 = vld [vmem:[#allocation7 + $0x1f8] sm:$0xff]
    %v3725 = vld [vmem:[#allocation7 + $0x200] sm:$0xff]
    %v3726 = vld [vmem:[#allocation7 + $0x208] sm:$0xff]
    %v3727 = vld [vmem:[#allocation7 + $0x210] sm:$0xff]
    %v3728 = vld [vmem:[#allocation7 + $0x218] sm:$0xff]
    %v3729 = vld [vmem:[#allocation7 + $0x220] sm:$0xff]
    %v3730 = vld [vmem:[#allocation7 + $0x228] sm:$0xff]
    %v3731 = vld [vmem:[#allocation7 + $0x230] sm:$0xff]
    %v3732 = vld [vmem:[#allocation7 + $0x238] sm:$0xff]
    %v3733 = vld [vmem:[#allocation7 + $0x240] sm:$0xff]
    %v3734 = vld [vmem:[#allocation7 + $0x248] sm:$0xff]
    %v3735 = vld [vmem:[#allocation7 + $0x250] sm:$0xff]
    %v3736 = vld [vmem:[#allocation7 + $0x258] sm:$0xff]
    %v3737 = vld [vmem:[#allocation7 + $0x260] sm:$0xff]
    %v3738 = vld [vmem:[#allocation7 + $0x268] sm:$0xff]
    %v3739 = vld [vmem:[#allocation7 + $0x270] sm:$0xff]
    %v3740 = vld [vmem:[#allocation7 + $0x278] sm:$0xff]
    %v3741 = vld [vmem:[#allocation7 + $0x280] sm:$0xff]
    %v3742 = vld [vmem:[#allocation7 + $0x288] sm:$0xff]
    %v3743 = vld [vmem:[#allocation7 + $0x290] sm:$0xff]
    %v3744 = vld [vmem:[#allocation7 + $0x298] sm:$0xff]
    %v3745 = vld [vmem:[#allocation7 + $0x2a0] sm:$0xff]
    %v3746 = vld [vmem:[#allocation7 + $0x2a8] sm:$0xff]
    %v3747 = vld [vmem:[#allocation7 + $0x2b0] sm:$0xff]
    %v3748 = vld [vmem:[#allocation7 + $0x2b8] sm:$0xff]
    %v3749 = vld [vmem:[#allocation7 + $0x2c0] sm:$0xff]
    %v3750 = vld [vmem:[#allocation7 + $0x2c8] sm:$0xff]
    %v3751 = vld [vmem:[#allocation7 + $0x2d0] sm:$0xff]
    %v3752 = vld [vmem:[#allocation7 + $0x2d8] sm:$0xff]
    %v3753 = vld [vmem:[#allocation7 + $0x2e0] sm:$0xff]
    %v3754 = vld [vmem:[#allocation7 + $0x2e8] sm:$0xff]
    %v3755 = vld [vmem:[#allocation7 + $0x2f0] sm:$0xff]
    %v3756 = vld [vmem:[#allocation7 + $0x2f8] sm:$0xff]
    %v3757 = vld [vmem:[#allocation7 + $0x300] sm:$0xff]
    %v3758 = vld [vmem:[#allocation7 + $0x308] sm:$0xff]
    %v3759 = vld [vmem:[#allocation7 + $0x310] sm:$0xff]
    %v3760 = vld [vmem:[#allocation7 + $0x318] sm:$0xff]
    %v3761 = vld [vmem:[#allocation7 + $0x320] sm:$0xff]
    %v3762 = vld [vmem:[#allocation7 + $0x328] sm:$0xff]
    %v3763 = vld [vmem:[#allocation7 + $0x330] sm:$0xff]
    %v3764 = vld [vmem:[#allocation7 + $0x338] sm:$0xff]
    %v3765 = vld [vmem:[#allocation7 + $0x340] sm:$0xff]
    %v3766 = vld [vmem:[#allocation7 + $0x348] sm:$0xff]
    %v3767 = vld [vmem:[#allocation7 + $0x350] sm:$0xff]
    %v3768 = vld [vmem:[#allocation7 + $0x358] sm:$0xff]
    %v3769 = vld [vmem:[#allocation7 + $0x360] sm:$0xff]
    %v3770 = vld [vmem:[#allocation7 + $0x368] sm:$0xff]
    %v3771 = vld [vmem:[#allocation7 + $0x370] sm:$0xff]
    %v3772 = vld [vmem:[#allocation7 + $0x378] sm:$0xff]
    %v3773 = vld [vmem:[#allocation7 + $0x380] sm:$0xff]
    %v3774 = vld [vmem:[#allocation7 + $0x388] sm:$0xff]
    %v3775 = vld [vmem:[#allocation7 + $0x390] sm:$0xff]
    %v3776 = vld [vmem:[#allocation7 + $0x398] sm:$0xff]
    %v3777 = vld [vmem:[#allocation7 + $0x3a0] sm:$0xff]
    %v3778 = vld [vmem:[#allocation7 + $0x3a8] sm:$0xff]
    %v3779 = vld [vmem:[#allocation7 + $0x3b0] sm:$0xff]
    %v3780 = vld [vmem:[#allocation7 + $0x3b8] sm:$0xff]
    %v3781 = vld [vmem:[#allocation7 + $0x3c0] sm:$0xff]
    %v3782 = vld [vmem:[#allocation7 + $0x3c8] sm:$0xff]
    %v3783 = vld [vmem:[#allocation7 + $0x3d0] sm:$0xff]
    %v3784 = vld [vmem:[#allocation7 + $0x3d8] sm:$0xff]
    %v3785 = vld [vmem:[#allocation7 + $0x3e0] sm:$0xff]
    %v3786 = vld [vmem:[#allocation7 + $0x3e8] sm:$0xff]
    %v3787 = vld [vmem:[#allocation7 + $0x3f0] sm:$0xff]
    %v3788 = vld [vmem:[#allocation7 + $0x3f8] sm:$0xff]
    %v3790 = vlaneseq
    %v3791 = vshrl.u32 %v3790, 7
    %v3792 = vsub.s32 0, %v3791
    %v3793 = vrot.slane %v3658, %v3792
    %v3794 = vlaneseq
    %v3795 = vshrl.u32 %v3794, 7
    %v3796 = vsub.s32 1, %v3795
    %v3797 = vrot.slane %v3658, %v3796
    %v3798 = vlaneseq
    %v3799 = vshrl.u32 %v3798, 7
    %v3800 = vsub.s32 2, %v3799
    %v3801 = vrot.slane %v3658, %v3800
    %v3802 = vlaneseq
    %v3803 = vshrl.u32 %v3802, 7
    %v3804 = vsub.s32 3, %v3803
    %v3805 = vrot.slane %v3658, %v3804
    %3810 = vmatprep.subr.mxu0 %v3662
    %3811 = vmatpush1.msra.mxu0 %v3661
    %3812 = vmatprep.subr.mxu0 %v3666
    %3813 = vmatpush1.msra.mxu0 %v3665
    %3814 = vmatprep.subr.mxu0 %v3670
    %3815 = vmatpush1.msra.mxu0 %v3669
    %3816 = vmatprep.subr.mxu0 %v3674
    %3817 = vmatpush1.msra.mxu0 %v3673
    %3818 = vmatprep.subr.mxu0 %v3678
    %3819 = vmatpush1.msra.mxu0 %v3677
    %3820 = vmatprep.subr.mxu0 %v3682
    %3821 = vmatpush1.msra.mxu0 %v3681
    %3822 = vmatprep.subr.mxu0 %v3686
    %3823 = vmatpush1.msra.mxu0 %v3685
    %3824 = vmatprep.subr.mxu0 %v3690
    %3825 = vmatpush1.msra.mxu0 %v3689
    %3826 = vmatprep.subr.mxu0 %v3694
    %3827 = vmatpush1.msra.mxu0 %v3693
    %3828 = vmatprep.subr.mxu0 %v3698
    %3829 = vmatpush1.msra.mxu0 %v3697
    %3830 = vmatprep.subr.mxu0 %v3702
    %3831 = vmatpush1.msra.mxu0 %v3701
    %3832 = vmatprep.subr.mxu0 %v3706
    %3833 = vmatpush1.msra.mxu0 %v3705
    %3834 = vmatprep.subr.mxu0 %v3710
    %3835 = vmatpush1.msra.mxu0 %v3709
    %3836 = vmatprep.subr.mxu0 %v3714
    %3837 = vmatpush1.msra.mxu0 %v3713
    %3838 = vmatprep.subr.mxu0 %v3718
    %3839 = vmatpush1.msra.mxu0 %v3717
    %3840 = vmatprep.subr.mxu0 %v3722
    %3841 = vmatpush1.msra.mxu0 %v3721
    %3842 = vmatprep.subr.mxu0 %v3726
    %3843 = vmatpush1.msra.mxu0 %v3725
    %3844 = vmatprep.subr.mxu0 %v3730
    %3845 = vmatpush1.msra.mxu0 %v3729
    %3846 = vmatprep.subr.mxu0 %v3734
    %3847 = vmatpush1.msra.mxu0 %v3733
    %3848 = vmatprep.subr.mxu0 %v3738
    %3849 = vmatpush1.msra.mxu0 %v3737
    %3850 = vmatprep.subr.mxu0 %v3742
    %3851 = vmatpush1.msra.mxu0 %v3741
    %3852 = vmatprep.subr.mxu0 %v3746
    %3853 = vmatpush1.msra.mxu0 %v3745
    %3854 = vmatprep.subr.mxu0 %v3750
    %3855 = vmatpush1.msra.mxu0 %v3749
    %3856 = vmatprep.subr.mxu0 %v3754
    %3857 = vmatpush1.msra.mxu0 %v3753
    %3858 = vmatprep.subr.mxu0 %v3758
    %3859 = vmatpush1.msra.mxu0 %v3757
    %3860 = vmatprep.subr.mxu0 %v3762
    %3861 = vmatpush1.msra.mxu0 %v3761
    %3862 = vmatprep.subr.mxu0 %v3766
    %3863 = vmatpush1.msra.mxu0 %v3765
    %3864 = vmatprep.subr.mxu0 %v3770
    %3865 = vmatpush1.msra.mxu0 %v3769
    %3866 = vmatprep.subr.mxu0 %v3774
    %3867 = vmatpush1.msra.mxu0 %v3773
    %3868 = vmatprep.subr.mxu0 %v3778
    %3869 = vmatpush1.msra.mxu0 %v3777
    %3870 = vmatprep.subr.mxu0 %v3782
    %3871 = vmatpush1.msra.mxu0 %v3781
    %3872 = vmatprep.subr.mxu0 %v3786
    %3873 = vmatpush1.msra.mxu0 %v3785
    %3874 = vmatprep.mubr.f32.mxu0 %v3659
    %3875 = vmatmul.mubr.f32.gmra.mrb[0].mxu0 %v3655
    %v3876 = vpop.f32.mrb[0].mxu0
    %v3877 = vadd.f32 %v3793, %v3876
    %v3878 = vpop.f32.mrb[0].mxu0
    %v3879 = vadd.f32 %v3797, %v3878
    %3880 = vdwg.mxu0
    %3881 = vmatprep.subr.mxu0 %v3664
    %3882 = vmatpush1.msra.mxu0 %v3663
    %3883 = vmatprep.subr.mxu0 %v3668
    %3884 = vmatpush1.msra.mxu0 %v3667
    %3885 = vmatprep.subr.mxu0 %v3672
    %3886 = vmatpush1.msra.mxu0 %v3671
    %3887 = vmatprep.subr.mxu0 %v3676
    %3888 = vmatpush1.msra.mxu0 %v3675
    %3889 = vmatprep.subr.mxu0 %v3680
    %3890 = vmatpush1.msra.mxu0 %v3679
    %3891 = vmatprep.subr.mxu0 %v3684
    %3892 = vmatpush1.msra.mxu0 %v3683
    %3893 = vmatprep.subr.mxu0 %v3688
    %3894 = vmatpush1.msra.mxu0 %v3687
    %3895 = vmatprep.subr.mxu0 %v3692
    %3896 = vmatpush1.msra.mxu0 %v3691
    %3897 = vmatprep.subr.mxu0 %v3696
    %3898 = vmatpush1.msra.mxu0 %v3695
    %3899 = vmatprep.subr.mxu0 %v3700
    %3900 = vmatpush1.msra.mxu0 %v3699
    %3901 = vmatprep.subr.mxu0 %v3704
    %3902 = vmatpush1.msra.mxu0 %v3703
    %3903 = vmatprep.subr.mxu0 %v3708
    %3904 = vmatpush1.msra.mxu0 %v3707
    %3905 = vmatprep.subr.mxu0 %v3712
    %3906 = vmatpush1.msra.mxu0 %v3711
    %3907 = vmatprep.subr.mxu0 %v3716
    %3908 = vmatpush1.msra.mxu0 %v3715
    %3909 = vmatprep.subr.mxu0 %v3720
    %3910 = vmatpush1.msra.mxu0 %v3719
    %3911 = vmatprep.subr.mxu0 %v3724
    %3912 = vmatpush1.msra.mxu0 %v3723
    %3913 = vmatprep.subr.mxu0 %v3728
    %3914 = vmatpush1.msra.mxu0 %v3727
    %3915 = vmatprep.subr.mxu0 %v3732
    %3916 = vmatpush1.msra.mxu0 %v3731
    %3917 = vmatprep.subr.mxu0 %v3736
    %3918 = vmatpush1.msra.mxu0 %v3735
    %3919 = vmatprep.subr.mxu0 %v3740
    %3920 = vmatpush1.msra.mxu0 %v3739
    %3921 = vmatprep.subr.mxu0 %v3744
    %3922 = vmatpush1.msra.mxu0 %v3743
    %3923 = vmatprep.subr.mxu0 %v3748
    %3924 = vmatpush1.msra.mxu0 %v3747
    %3925 = vmatprep.subr.mxu0 %v3752
    %3926 = vmatpush1.msra.mxu0 %v3751
    %3927 = vmatprep.subr.mxu0 %v3756
    %3928 = vmatpush1.msra.mxu0 %v3755
    %3929 = vmatprep.subr.mxu0 %v3760
    %3930 = vmatpush1.msra.mxu0 %v3759
    %3931 = vmatprep.subr.mxu0 %v3764
    %3932 = vmatpush1.msra.mxu0 %v3763
    %3933 = vmatprep.subr.mxu0 %v3768
    %3934 = vmatpush1.msra.mxu0 %v3767
    %3935 = vmatprep.subr.mxu0 %v3772
    %3936 = vmatpush1.msra.mxu0 %v3771
    %3937 = vmatprep.subr.mxu0 %v3776
    %3938 = vmatpush1.msra.mxu0 %v3775
    %3939 = vmatprep.subr.mxu0 %v3780
    %3940 = vmatpush1.msra.mxu0 %v3779
    %3941 = vmatprep.subr.mxu0 %v3784
    %3942 = vmatpush1.msra.mxu0 %v3783
    %3943 = vmatprep.subr.mxu0 %v3788
    %3944 = vmatpush1.msra.mxu0 %v3787
    %3945 = vmatprep.mubr.f32.mxu0 %v3659
    %3946 = vmatmul.mubr.f32.gmra.mrb[0].mxu0 %v3655
    %v3947 = vpop.f32.mrb[0].mxu0
    %v3948 = vadd.f32 %v3801, %v3947
    %v3949 = vpop.f32.mrb[0].mxu0
    %v3950 = vadd.f32 %v3805, %v3949
    %3951 = vdwg.mxu0
    %v3952 = vxor.u32 %v3877, 2147483648
    %v3953 = vxor.u32 %v3879, 2147483648
    %v3954 = vxor.u32 %v3948, 2147483648
    %v3955 = vmul.f32 %v3952, 1.442695
    %v3956 = vpow.pop %v3955
    %v3957 = vmul.f32 %v3953, 1.442695
    %v3958 = vpow.pop %v3957
    %v3959 = vmul.f32 %v3954, 1.442695
    %v3960 = vpow.pop %v3959
    %v3961 = vadd.f32 %v3956, 1.0
    %v3962 = vadd.f32 %v3958, 1.0
    %v3963 = vadd.f32 %v3960, 1.0
    %v3964 = vrcp.pop %v3961
    %v3965 = vmul.f32 1.0, %v3964
    %v3966 = vrcp.pop %v3962
    %v3967 = vmul.f32 1.0, %v3966
    %v3968 = vrcp.pop %v3963
    %v3969 = vmul.f32 1.0, %v3968
    %v3970 = vtanh.pop %v3950
    %v3971 = vmul.f32 %v3660, %v3965
    %v3972 = vmul.f32 %v3967, %v3970
    %v3973 = vadd.f32 %v3971, %v3972
    %v3974 = vtanh.pop %v3973
    %v3975 = vmul.f32 %v3969, %v3974
    %v3976 = vsel %vm3653, %v3973, %v3660
    %v3977 = vsel %vm3653, %v3975, %v3659
    %3978 = vst [vmem:[%s404] sm:$0xff] %v3976
    %3979 = vst [vmem:[%s402] sm:$0xff] %v3977
    %s3980 = sadd.s32 %s73, 6
    %p3981 = scmp.lt.s32.totalorder %s3980, 8
    %s3982 = scalar_lea.vmem [#allocation2], 48
    %v3983 = vld [vmem:[%s3982] sm:$0xff]
    %v3984 = vld [vmem:[%s2] sm:$0xf]
    %v3985 = vld [vmem:[#allocation9] sm:$0xff]
    %v3986 = vld [vmem:[#allocation8] sm:$0xff]
    %v3987 = vld [vmem:[#allocation5] sm:$0xff]
    %v3988 = vld [vmem:[#allocation5 + $0x8] sm:$0xff]
    %v3989 = vld [vmem:[#allocation5 + $0x10] sm:$0xff]
    %v3990 = vld [vmem:[#allocation5 + $0x18] sm:$0xff]
    %v3991 = vld [vmem:[#allocation5 + $0x20] sm:$0xff]
    %v3992 = vld [vmem:[#allocation5 + $0x28] sm:$0xff]
    %v3993 = vld [vmem:[#allocation5 + $0x30] sm:$0xff]
    %v3994 = vld [vmem:[#allocation5 + $0x38] sm:$0xff]
    %v3995 = vld [vmem:[#allocation5 + $0x40] sm:$0xff]
    %v3996 = vld [vmem:[#allocation5 + $0x48] sm:$0xff]
    %v3997 = vld [vmem:[#allocation5 + $0x50] sm:$0xff]
    %v3998 = vld [vmem:[#allocation5 + $0x58] sm:$0xff]
    %v3999 = vld [vmem:[#allocation5 + $0x60] sm:$0xff]
    %v4000 = vld [vmem:[#allocation5 + $0x68] sm:$0xff]
    %v4001 = vld [vmem:[#allocation5 + $0x70] sm:$0xff]
    %v4002 = vld [vmem:[#allocation5 + $0x78] sm:$0xff]
    %v4003 = vld [vmem:[#allocation5 + $0x80] sm:$0xff]
    %v4004 = vld [vmem:[#allocation5 + $0x88] sm:$0xff]
    %v4005 = vld [vmem:[#allocation5 + $0x90] sm:$0xff]
    %v4006 = vld [vmem:[#allocation5 + $0x98] sm:$0xff]
    %v4007 = vld [vmem:[#allocation5 + $0xa0] sm:$0xff]
    %v4008 = vld [vmem:[#allocation5 + $0xa8] sm:$0xff]
    %v4009 = vld [vmem:[#allocation5 + $0xb0] sm:$0xff]
    %v4010 = vld [vmem:[#allocation5 + $0xb8] sm:$0xff]
    %v4011 = vld [vmem:[#allocation5 + $0xc0] sm:$0xff]
    %v4012 = vld [vmem:[#allocation5 + $0xc8] sm:$0xff]
    %v4013 = vld [vmem:[#allocation5 + $0xd0] sm:$0xff]
    %v4014 = vld [vmem:[#allocation5 + $0xd8] sm:$0xff]
    %v4015 = vld [vmem:[#allocation5 + $0xe0] sm:$0xff]
    %v4016 = vld [vmem:[#allocation5 + $0xe8] sm:$0xff]
    %v4017 = vld [vmem:[#allocation5 + $0xf0] sm:$0xff]
    %v4018 = vld [vmem:[#allocation5 + $0xf8] sm:$0xff]
    %v4019 = vld [vmem:[#allocation5 + $0x100] sm:$0xff]
    %v4020 = vld [vmem:[#allocation5 + $0x108] sm:$0xff]
    %v4021 = vld [vmem:[#allocation5 + $0x110] sm:$0xff]
    %v4022 = vld [vmem:[#allocation5 + $0x118] sm:$0xff]
    %v4023 = vld [vmem:[#allocation5 + $0x120] sm:$0xff]
    %v4024 = vld [vmem:[#allocation5 + $0x128] sm:$0xff]
    %v4025 = vld [vmem:[#allocation5 + $0x130] sm:$0xff]
    %v4026 = vld [vmem:[#allocation5 + $0x138] sm:$0xff]
    %v4027 = vld [vmem:[#allocation5 + $0x140] sm:$0xff]
    %v4028 = vld [vmem:[#allocation5 + $0x148] sm:$0xff]
    %v4029 = vld [vmem:[#allocation5 + $0x150] sm:$0xff]
    %v4030 = vld [vmem:[#allocation5 + $0x158] sm:$0xff]
    %v4031 = vld [vmem:[#allocation5 + $0x160] sm:$0xff]
    %v4032 = vld [vmem:[#allocation5 + $0x168] sm:$0xff]
    %v4033 = vld [vmem:[#allocation5 + $0x170] sm:$0xff]
    %v4034 = vld [vmem:[#allocation5 + $0x178] sm:$0xff]
    %v4035 = vld [vmem:[#allocation5 + $0x180] sm:$0xff]
    %v4036 = vld [vmem:[#allocation5 + $0x188] sm:$0xff]
    %v4037 = vld [vmem:[#allocation5 + $0x190] sm:$0xff]
    %v4038 = vld [vmem:[#allocation5 + $0x198] sm:$0xff]
    %v4039 = vld [vmem:[#allocation5 + $0x1a0] sm:$0xff]
    %v4040 = vld [vmem:[#allocation5 + $0x1a8] sm:$0xff]
    %v4041 = vld [vmem:[#allocation5 + $0x1b0] sm:$0xff]
    %v4042 = vld [vmem:[#allocation5 + $0x1b8] sm:$0xff]
    %v4043 = vld [vmem:[#allocation5 + $0x1c0] sm:$0xff]
    %v4044 = vld [vmem:[#allocation5 + $0x1c8] sm:$0xff]
    %v4045 = vld [vmem:[#allocation5 + $0x1d0] sm:$0xff]
    %v4046 = vld [vmem:[#allocation5 + $0x1d8] sm:$0xff]
    %v4047 = vld [vmem:[#allocation5 + $0x1e0] sm:$0xff]
    %v4048 = vld [vmem:[#allocation5 + $0x1e8] sm:$0xff]
    %v4049 = vld [vmem:[#allocation5 + $0x1f0] sm:$0xff]
    %v4050 = vld [vmem:[#allocation5 + $0x1f8] sm:$0xff]
    %v4051 = vld [vmem:[#allocation5 + $0x200] sm:$0xff]
    %v4052 = vld [vmem:[#allocation5 + $0x208] sm:$0xff]
    %v4053 = vld [vmem:[#allocation5 + $0x210] sm:$0xff]
    %v4054 = vld [vmem:[#allocation5 + $0x218] sm:$0xff]
    %v4055 = vld [vmem:[#allocation5 + $0x220] sm:$0xff]
    %v4056 = vld [vmem:[#allocation5 + $0x228] sm:$0xff]
    %v4057 = vld [vmem:[#allocation5 + $0x230] sm:$0xff]
    %v4058 = vld [vmem:[#allocation5 + $0x238] sm:$0xff]
    %v4059 = vld [vmem:[#allocation5 + $0x240] sm:$0xff]
    %v4060 = vld [vmem:[#allocation5 + $0x248] sm:$0xff]
    %v4061 = vld [vmem:[#allocation5 + $0x250] sm:$0xff]
    %v4062 = vld [vmem:[#allocation5 + $0x258] sm:$0xff]
    %v4063 = vld [vmem:[#allocation5 + $0x260] sm:$0xff]
    %v4064 = vld [vmem:[#allocation5 + $0x268] sm:$0xff]
    %v4065 = vld [vmem:[#allocation5 + $0x270] sm:$0xff]
    %v4066 = vld [vmem:[#allocation5 + $0x278] sm:$0xff]
    %v4067 = vld [vmem:[#allocation5 + $0x280] sm:$0xff]
    %v4068 = vld [vmem:[#allocation5 + $0x288] sm:$0xff]
    %v4069 = vld [vmem:[#allocation5 + $0x290] sm:$0xff]
    %v4070 = vld [vmem:[#allocation5 + $0x298] sm:$0xff]
    %v4071 = vld [vmem:[#allocation5 + $0x2a0] sm:$0xff]
    %v4072 = vld [vmem:[#allocation5 + $0x2a8] sm:$0xff]
    %v4073 = vld [vmem:[#allocation5 + $0x2b0] sm:$0xff]
    %v4074 = vld [vmem:[#allocation5 + $0x2b8] sm:$0xff]
    %v4075 = vld [vmem:[#allocation5 + $0x2c0] sm:$0xff]
    %v4076 = vld [vmem:[#allocation5 + $0x2c8] sm:$0xff]
    %v4077 = vld [vmem:[#allocation5 + $0x2d0] sm:$0xff]
    %v4078 = vld [vmem:[#allocation5 + $0x2d8] sm:$0xff]
    %v4079 = vld [vmem:[#allocation5 + $0x2e0] sm:$0xff]
    %v4080 = vld [vmem:[#allocation5 + $0x2e8] sm:$0xff]
    %v4081 = vld [vmem:[#allocation5 + $0x2f0] sm:$0xff]
    %v4082 = vld [vmem:[#allocation5 + $0x2f8] sm:$0xff]
    %v4083 = vld [vmem:[#allocation5 + $0x300] sm:$0xff]
    %v4084 = vld [vmem:[#allocation5 + $0x308] sm:$0xff]
    %v4085 = vld [vmem:[#allocation5 + $0x310] sm:$0xff]
    %v4086 = vld [vmem:[#allocation5 + $0x318] sm:$0xff]
    %v4087 = vld [vmem:[#allocation5 + $0x320] sm:$0xff]
    %v4088 = vld [vmem:[#allocation5 + $0x328] sm:$0xff]
    %v4089 = vld [vmem:[#allocation5 + $0x330] sm:$0xff]
    %v4090 = vld [vmem:[#allocation5 + $0x338] sm:$0xff]
    %v4091 = vld [vmem:[#allocation5 + $0x340] sm:$0xff]
    %v4092 = vld [vmem:[#allocation5 + $0x348] sm:$0xff]
    %v4093 = vld [vmem:[#allocation5 + $0x350] sm:$0xff]
    %v4094 = vld [vmem:[#allocation5 + $0x358] sm:$0xff]
    %v4095 = vld [vmem:[#allocation5 + $0x360] sm:$0xff]
    %v4096 = vld [vmem:[#allocation5 + $0x368] sm:$0xff]
    %v4097 = vld [vmem:[#allocation5 + $0x370] sm:$0xff]
    %v4098 = vld [vmem:[#allocation5 + $0x378] sm:$0xff]
    %v4099 = vld [vmem:[#allocation5 + $0x380] sm:$0xff]
    %v4100 = vld [vmem:[#allocation5 + $0x388] sm:$0xff]
    %v4101 = vld [vmem:[#allocation5 + $0x390] sm:$0xff]
    %v4102 = vld [vmem:[#allocation5 + $0x398] sm:$0xff]
    %v4103 = vld [vmem:[#allocation5 + $0x3a0] sm:$0xff]
    %v4104 = vld [vmem:[#allocation5 + $0x3a8] sm:$0xff]
    %v4105 = vld [vmem:[#allocation5 + $0x3b0] sm:$0xff]
    %v4106 = vld [vmem:[#allocation5 + $0x3b8] sm:$0xff]
    %v4107 = vld [vmem:[#allocation5 + $0x3c0] sm:$0xff]
    %v4108 = vld [vmem:[#allocation5 + $0x3c8] sm:$0xff]
    %v4109 = vld [vmem:[#allocation5 + $0x3d0] sm:$0xff]
    %v4110 = vld [vmem:[#allocation5 + $0x3d8] sm:$0xff]
    %v4111 = vld [vmem:[#allocation5 + $0x3e0] sm:$0xff]
    %v4112 = vld [vmem:[#allocation5 + $0x3e8] sm:$0xff]
    %v4113 = vld [vmem:[#allocation5 + $0x3f0] sm:$0xff]
    %v4114 = vld [vmem:[#allocation5 + $0x3f8] sm:$0xff]
    %v4116 = vlaneseq
    %v4117 = vshrl.u32 %v4116, 7
    %v4118 = vsub.s32 0, %v4117
    %v4119 = vrot.slane %v3984, %v4118
    %v4120 = vlaneseq
    %v4121 = vshrl.u32 %v4120, 7
    %v4122 = vsub.s32 1, %v4121
    %v4123 = vrot.slane %v3984, %v4122
    %v4124 = vlaneseq
    %v4125 = vshrl.u32 %v4124, 7
    %v4126 = vsub.s32 2, %v4125
    %v4127 = vrot.slane %v3984, %v4126
    %v4128 = vlaneseq
    %v4129 = vshrl.u32 %v4128, 7
    %v4130 = vsub.s32 3, %v4129
    %v4131 = vrot.slane %v3984, %v4130
    %4136 = vmatprep.subr.mxu0 %v3988
    %4137 = vmatpush1.msra.mxu0 %v3987
    %4138 = vmatprep.subr.mxu0 %v3992
    %4139 = vmatpush1.msra.mxu0 %v3991
    %4140 = vmatprep.subr.mxu0 %v3996
    %4141 = vmatpush1.msra.mxu0 %v3995
    %4142 = vmatprep.subr.mxu0 %v4000
    %4143 = vmatpush1.msra.mxu0 %v3999
    %4144 = vmatprep.subr.mxu0 %v4004
    %4145 = vmatpush1.msra.mxu0 %v4003
    %4146 = vmatprep.subr.mxu0 %v4008
    %4147 = vmatpush1.msra.mxu0 %v4007
    %4148 = vmatprep.subr.mxu0 %v4012
    %4149 = vmatpush1.msra.mxu0 %v4011
    %4150 = vmatprep.subr.mxu0 %v4016
    %4151 = vmatpush1.msra.mxu0 %v4015
    %4152 = vmatprep.subr.mxu0 %v4020
    %4153 = vmatpush1.msra.mxu0 %v4019
    %4154 = vmatprep.subr.mxu0 %v4024
    %4155 = vmatpush1.msra.mxu0 %v4023
    %4156 = vmatprep.subr.mxu0 %v4028
    %4157 = vmatpush1.msra.mxu0 %v4027
    %4158 = vmatprep.subr.mxu0 %v4032
    %4159 = vmatpush1.msra.mxu0 %v4031
    %4160 = vmatprep.subr.mxu0 %v4036
    %4161 = vmatpush1.msra.mxu0 %v4035
    %4162 = vmatprep.subr.mxu0 %v4040
    %4163 = vmatpush1.msra.mxu0 %v4039
    %4164 = vmatprep.subr.mxu0 %v4044
    %4165 = vmatpush1.msra.mxu0 %v4043
    %4166 = vmatprep.subr.mxu0 %v4048
    %4167 = vmatpush1.msra.mxu0 %v4047
    %4168 = vmatprep.subr.mxu0 %v4052
    %4169 = vmatpush1.msra.mxu0 %v4051
    %4170 = vmatprep.subr.mxu0 %v4056
    %4171 = vmatpush1.msra.mxu0 %v4055
    %4172 = vmatprep.subr.mxu0 %v4060
    %4173 = vmatpush1.msra.mxu0 %v4059
    %4174 = vmatprep.subr.mxu0 %v4064
    %4175 = vmatpush1.msra.mxu0 %v4063
    %4176 = vmatprep.subr.mxu0 %v4068
    %4177 = vmatpush1.msra.mxu0 %v4067
    %4178 = vmatprep.subr.mxu0 %v4072
    %4179 = vmatpush1.msra.mxu0 %v4071
    %4180 = vmatprep.subr.mxu0 %v4076
    %4181 = vmatpush1.msra.mxu0 %v4075
    %4182 = vmatprep.subr.mxu0 %v4080
    %4183 = vmatpush1.msra.mxu0 %v4079
    %4184 = vmatprep.subr.mxu0 %v4084
    %4185 = vmatpush1.msra.mxu0 %v4083
    %4186 = vmatprep.subr.mxu0 %v4088
    %4187 = vmatpush1.msra.mxu0 %v4087
    %4188 = vmatprep.subr.mxu0 %v4092
    %4189 = vmatpush1.msra.mxu0 %v4091
    %4190 = vmatprep.subr.mxu0 %v4096
    %4191 = vmatpush1.msra.mxu0 %v4095
    %4192 = vmatprep.subr.mxu0 %v4100
    %4193 = vmatpush1.msra.mxu0 %v4099
    %4194 = vmatprep.subr.mxu0 %v4104
    %4195 = vmatpush1.msra.mxu0 %v4103
    %4196 = vmatprep.subr.mxu0 %v4108
    %4197 = vmatpush1.msra.mxu0 %v4107
    %4198 = vmatprep.subr.mxu0 %v4112
    %4199 = vmatpush1.msra.mxu0 %v4111
    %4200 = vmatprep.mubr.f32.mxu0 %v3985
    %4201 = vmatmul.mubr.f32.gmra.mrb[0].mxu0 %v3983
    %v4202 = vpop.f32.mrb[0].mxu0
    %v4203 = vadd.f32 %v4119, %v4202
    %v4204 = vpop.f32.mrb[0].mxu0
    %v4205 = vadd.f32 %v4123, %v4204
    %4206 = vdwg.mxu0
    %4207 = vmatprep.subr.mxu0 %v3990
    %4208 = vmatpush1.msra.mxu0 %v3989
    %4209 = vmatprep.subr.mxu0 %v3994
    %4210 = vmatpush1.msra.mxu0 %v3993
    %4211 = vmatprep.subr.mxu0 %v3998
    %4212 = vmatpush1.msra.mxu0 %v3997
    %4213 = vmatprep.subr.mxu0 %v4002
    %4214 = vmatpush1.msra.mxu0 %v4001
    %4215 = vmatprep.subr.mxu0 %v4006
    %4216 = vmatpush1.msra.mxu0 %v4005
    %4217 = vmatprep.subr.mxu0 %v4010
    %4218 = vmatpush1.msra.mxu0 %v4009
    %4219 = vmatprep.subr.mxu0 %v4014
    %4220 = vmatpush1.msra.mxu0 %v4013
    %4221 = vmatprep.subr.mxu0 %v4018
    %4222 = vmatpush1.msra.mxu0 %v4017
    %4223 = vmatprep.subr.mxu0 %v4022
    %4224 = vmatpush1.msra.mxu0 %v4021
    %4225 = vmatprep.subr.mxu0 %v4026
    %4226 = vmatpush1.msra.mxu0 %v4025
    %4227 = vmatprep.subr.mxu0 %v4030
    %4228 = vmatpush1.msra.mxu0 %v4029
    %4229 = vmatprep.subr.mxu0 %v4034
    %4230 = vmatpush1.msra.mxu0 %v4033
    %4231 = vmatprep.subr.mxu0 %v4038
    %4232 = vmatpush1.msra.mxu0 %v4037
    %4233 = vmatprep.subr.mxu0 %v4042
    %4234 = vmatpush1.msra.mxu0 %v4041
    %4235 = vmatprep.subr.mxu0 %v4046
    %4236 = vmatpush1.msra.mxu0 %v4045
    %4237 = vmatprep.subr.mxu0 %v4050
    %4238 = vmatpush1.msra.mxu0 %v4049
    %4239 = vmatprep.subr.mxu0 %v4054
    %4240 = vmatpush1.msra.mxu0 %v4053
    %4241 = vmatprep.subr.mxu0 %v4058
    %4242 = vmatpush1.msra.mxu0 %v4057
    %4243 = vmatprep.subr.mxu0 %v4062
    %4244 = vmatpush1.msra.mxu0 %v4061
    %4245 = vmatprep.subr.mxu0 %v4066
    %4246 = vmatpush1.msra.mxu0 %v4065
    %4247 = vmatprep.subr.mxu0 %v4070
    %4248 = vmatpush1.msra.mxu0 %v4069
    %4249 = vmatprep.subr.mxu0 %v4074
    %4250 = vmatpush1.msra.mxu0 %v4073
    %4251 = vmatprep.subr.mxu0 %v4078
    %4252 = vmatpush1.msra.mxu0 %v4077
    %4253 = vmatprep.subr.mxu0 %v4082
    %4254 = vmatpush1.msra.mxu0 %v4081
    %4255 = vmatprep.subr.mxu0 %v4086
    %4256 = vmatpush1.msra.mxu0 %v4085
    %4257 = vmatprep.subr.mxu0 %v4090
    %4258 = vmatpush1.msra.mxu0 %v4089
    %4259 = vmatprep.subr.mxu0 %v4094
    %4260 = vmatpush1.msra.mxu0 %v4093
    %4261 = vmatprep.subr.mxu0 %v4098
    %4262 = vmatpush1.msra.mxu0 %v4097
    %4263 = vmatprep.subr.mxu0 %v4102
    %4264 = vmatpush1.msra.mxu0 %v4101
    %4265 = vmatprep.subr.mxu0 %v4106
    %4266 = vmatpush1.msra.mxu0 %v4105
    %4267 = vmatprep.subr.mxu0 %v4110
    %4268 = vmatpush1.msra.mxu0 %v4109
    %4269 = vmatprep.subr.mxu0 %v4114
    %4270 = vmatpush1.msra.mxu0 %v4113
    %4271 = vmatprep.mubr.f32.mxu0 %v3985
    %4272 = vmatmul.mubr.f32.gmra.mrb[0].mxu0 %v3983
    %v4273 = vpop.f32.mrb[0].mxu0
    %v4274 = vadd.f32 %v4127, %v4273
    %v4275 = vpop.f32.mrb[0].mxu0
    %v4276 = vadd.f32 %v4131, %v4275
    %4277 = vdwg.mxu0
    %v4278 = vxor.u32 %v4203, 2147483648
    %v4279 = vxor.u32 %v4205, 2147483648
    %v4280 = vxor.u32 %v4274, 2147483648
    %v4281 = vmul.f32 %v4278, 1.442695
    %v4282 = vpow.pop %v4281
    %v4283 = vmul.f32 %v4279, 1.442695
    %v4284 = vpow.pop %v4283
    %v4285 = vmul.f32 %v4280, 1.442695
    %v4286 = vpow.pop %v4285
    %v4287 = vadd.f32 %v4282, 1.0
    %v4288 = vadd.f32 %v4284, 1.0
    %v4289 = vadd.f32 %v4286, 1.0
    %v4290 = vrcp.pop %v4287
    %v4291 = vmul.f32 1.0, %v4290
    %v4292 = vrcp.pop %v4288
    %v4293 = vmul.f32 1.0, %v4292
    %v4294 = vrcp.pop %v4289
    %v4295 = vmul.f32 1.0, %v4294
    %v4296 = vtanh.pop %v4276
    %v4297 = vmul.f32 %v3986, %v4291
    %v4298 = vmul.f32 %v4293, %v4296
    %v4299 = vadd.f32 %v4297, %v4298
    %v4300 = vtanh.pop %v4299
    %v4301 = vmul.f32 %v4295, %v4300
    %s4302 = scalar_select %p3981, 1, 0
    %v4303 = vstv %s4302
    %vm4304 = vcmp.eq.s32.totalorder %v4303, 1
    %v4305 = vsel %vm4304, %v4299, %v3986
    %v4306 = vsel %vm4304, %v4301, %v3985
    %4307 = vst [vmem:[#allocation8] sm:$0xff] %v4305
    %4308 = vst [vmem:[#allocation9] sm:$0xff] %v4306
    %v4309 = vld [vmem:[%s4] sm:$0xf]
    %v4310 = vld [vmem:[%s402] sm:$0xff]
    %v4311 = vld [vmem:[%s404] sm:$0xff]
    %v4312 = vld [vmem:[#allocation7] sm:$0xff]
    %v4313 = vld [vmem:[#allocation7 + $0x8] sm:$0xff]
    %v4314 = vld [vmem:[#allocation7 + $0x10] sm:$0xff]
    %v4315 = vld [vmem:[#allocation7 + $0x18] sm:$0xff]
    %v4316 = vld [vmem:[#allocation7 + $0x20] sm:$0xff]
    %v4317 = vld [vmem:[#allocation7 + $0x28] sm:$0xff]
    %v4318 = vld [vmem:[#allocation7 + $0x30] sm:$0xff]
    %v4319 = vld [vmem:[#allocation7 + $0x38] sm:$0xff]
    %v4320 = vld [vmem:[#allocation7 + $0x40] sm:$0xff]
    %v4321 = vld [vmem:[#allocation7 + $0x48] sm:$0xff]
    %v4322 = vld [vmem:[#allocation7 + $0x50] sm:$0xff]
    %v4323 = vld [vmem:[#allocation7 + $0x58] sm:$0xff]
    %v4324 = vld [vmem:[#allocation7 + $0x60] sm:$0xff]
    %v4325 = vld [vmem:[#allocation7 + $0x68] sm:$0xff]
    %v4326 = vld [vmem:[#allocation7 + $0x70] sm:$0xff]
    %v4327 = vld [vmem:[#allocation7 + $0x78] sm:$0xff]
    %v4328 = vld [vmem:[#allocation7 + $0x80] sm:$0xff]
    %v4329 = vld [vmem:[#allocation7 + $0x88] sm:$0xff]
    %v4330 = vld [vmem:[#allocation7 + $0x90] sm:$0xff]
    %v4331 = vld [vmem:[#allocation7 + $0x98] sm:$0xff]
    %v4332 = vld [vmem:[#allocation7 + $0xa0] sm:$0xff]
    %v4333 = vld [vmem:[#allocation7 + $0xa8] sm:$0xff]
    %v4334 = vld [vmem:[#allocation7 + $0xb0] sm:$0xff]
    %v4335 = vld [vmem:[#allocation7 + $0xb8] sm:$0xff]
    %v4336 = vld [vmem:[#allocation7 + $0xc0] sm:$0xff]
    %v4337 = vld [vmem:[#allocation7 + $0xc8] sm:$0xff]
    %v4338 = vld [vmem:[#allocation7 + $0xd0] sm:$0xff]
    %v4339 = vld [vmem:[#allocation7 + $0xd8] sm:$0xff]
    %v4340 = vld [vmem:[#allocation7 + $0xe0] sm:$0xff]
    %v4341 = vld [vmem:[#allocation7 + $0xe8] sm:$0xff]
    %v4342 = vld [vmem:[#allocation7 + $0xf0] sm:$0xff]
    %v4343 = vld [vmem:[#allocation7 + $0xf8] sm:$0xff]
    %v4344 = vld [vmem:[#allocation7 + $0x100] sm:$0xff]
    %v4345 = vld [vmem:[#allocation7 + $0x108] sm:$0xff]
    %v4346 = vld [vmem:[#allocation7 + $0x110] sm:$0xff]
    %v4347 = vld [vmem:[#allocation7 + $0x118] sm:$0xff]
    %v4348 = vld [vmem:[#allocation7 + $0x120] sm:$0xff]
    %v4349 = vld [vmem:[#allocation7 + $0x128] sm:$0xff]
    %v4350 = vld [vmem:[#allocation7 + $0x130] sm:$0xff]
    %v4351 = vld [vmem:[#allocation7 + $0x138] sm:$0xff]
    %v4352 = vld [vmem:[#allocation7 + $0x140] sm:$0xff]
    %v4353 = vld [vmem:[#allocation7 + $0x148] sm:$0xff]
    %v4354 = vld [vmem:[#allocation7 + $0x150] sm:$0xff]
    %v4355 = vld [vmem:[#allocation7 + $0x158] sm:$0xff]
    %v4356 = vld [vmem:[#allocation7 + $0x160] sm:$0xff]
    %v4357 = vld [vmem:[#allocation7 + $0x168] sm:$0xff]
    %v4358 = vld [vmem:[#allocation7 + $0x170] sm:$0xff]
    %v4359 = vld [vmem:[#allocation7 + $0x178] sm:$0xff]
    %v4360 = vld [vmem:[#allocation7 + $0x180] sm:$0xff]
    %v4361 = vld [vmem:[#allocation7 + $0x188] sm:$0xff]
    %v4362 = vld [vmem:[#allocation7 + $0x190] sm:$0xff]
    %v4363 = vld [vmem:[#allocation7 + $0x198] sm:$0xff]
    %v4364 = vld [vmem:[#allocation7 + $0x1a0] sm:$0xff]
    %v4365 = vld [vmem:[#allocation7 + $0x1a8] sm:$0xff]
    %v4366 = vld [vmem:[#allocation7 + $0x1b0] sm:$0xff]
    %v4367 = vld [vmem:[#allocation7 + $0x1b8] sm:$0xff]
    %v4368 = vld [vmem:[#allocation7 + $0x1c0] sm:$0xff]
    %v4369 = vld [vmem:[#allocation7 + $0x1c8] sm:$0xff]
    %v4370 = vld [vmem:[#allocation7 + $0x1d0] sm:$0xff]
    %v4371 = vld [vmem:[#allocation7 + $0x1d8] sm:$0xff]
    %v4372 = vld [vmem:[#allocation7 + $0x1e0] sm:$0xff]
    %v4373 = vld [vmem:[#allocation7 + $0x1e8] sm:$0xff]
    %v4374 = vld [vmem:[#allocation7 + $0x1f0] sm:$0xff]
    %v4375 = vld [vmem:[#allocation7 + $0x1f8] sm:$0xff]
    %v4376 = vld [vmem:[#allocation7 + $0x200] sm:$0xff]
    %v4377 = vld [vmem:[#allocation7 + $0x208] sm:$0xff]
    %v4378 = vld [vmem:[#allocation7 + $0x210] sm:$0xff]
    %v4379 = vld [vmem:[#allocation7 + $0x218] sm:$0xff]
    %v4380 = vld [vmem:[#allocation7 + $0x220] sm:$0xff]
    %v4381 = vld [vmem:[#allocation7 + $0x228] sm:$0xff]
    %v4382 = vld [vmem:[#allocation7 + $0x230] sm:$0xff]
    %v4383 = vld [vmem:[#allocation7 + $0x238] sm:$0xff]
    %v4384 = vld [vmem:[#allocation7 + $0x240] sm:$0xff]
    %v4385 = vld [vmem:[#allocation7 + $0x248] sm:$0xff]
    %v4386 = vld [vmem:[#allocation7 + $0x250] sm:$0xff]
    %v4387 = vld [vmem:[#allocation7 + $0x258] sm:$0xff]
    %v4388 = vld [vmem:[#allocation7 + $0x260] sm:$0xff]
    %v4389 = vld [vmem:[#allocation7 + $0x268] sm:$0xff]
    %v4390 = vld [vmem:[#allocation7 + $0x270] sm:$0xff]
    %v4391 = vld [vmem:[#allocation7 + $0x278] sm:$0xff]
    %v4392 = vld [vmem:[#allocation7 + $0x280] sm:$0xff]
    %v4393 = vld [vmem:[#allocation7 + $0x288] sm:$0xff]
    %v4394 = vld [vmem:[#allocation7 + $0x290] sm:$0xff]
    %v4395 = vld [vmem:[#allocation7 + $0x298] sm:$0xff]
    %v4396 = vld [vmem:[#allocation7 + $0x2a0] sm:$0xff]
    %v4397 = vld [vmem:[#allocation7 + $0x2a8] sm:$0xff]
    %v4398 = vld [vmem:[#allocation7 + $0x2b0] sm:$0xff]
    %v4399 = vld [vmem:[#allocation7 + $0x2b8] sm:$0xff]
    %v4400 = vld [vmem:[#allocation7 + $0x2c0] sm:$0xff]
    %v4401 = vld [vmem:[#allocation7 + $0x2c8] sm:$0xff]
    %v4402 = vld [vmem:[#allocation7 + $0x2d0] sm:$0xff]
    %v4403 = vld [vmem:[#allocation7 + $0x2d8] sm:$0xff]
    %v4404 = vld [vmem:[#allocation7 + $0x2e0] sm:$0xff]
    %v4405 = vld [vmem:[#allocation7 + $0x2e8] sm:$0xff]
    %v4406 = vld [vmem:[#allocation7 + $0x2f0] sm:$0xff]
    %v4407 = vld [vmem:[#allocation7 + $0x2f8] sm:$0xff]
    %v4408 = vld [vmem:[#allocation7 + $0x300] sm:$0xff]
    %v4409 = vld [vmem:[#allocation7 + $0x308] sm:$0xff]
    %v4410 = vld [vmem:[#allocation7 + $0x310] sm:$0xff]
    %v4411 = vld [vmem:[#allocation7 + $0x318] sm:$0xff]
    %v4412 = vld [vmem:[#allocation7 + $0x320] sm:$0xff]
    %v4413 = vld [vmem:[#allocation7 + $0x328] sm:$0xff]
    %v4414 = vld [vmem:[#allocation7 + $0x330] sm:$0xff]
    %v4415 = vld [vmem:[#allocation7 + $0x338] sm:$0xff]
    %v4416 = vld [vmem:[#allocation7 + $0x340] sm:$0xff]
    %v4417 = vld [vmem:[#allocation7 + $0x348] sm:$0xff]
    %v4418 = vld [vmem:[#allocation7 + $0x350] sm:$0xff]
    %v4419 = vld [vmem:[#allocation7 + $0x358] sm:$0xff]
    %v4420 = vld [vmem:[#allocation7 + $0x360] sm:$0xff]
    %v4421 = vld [vmem:[#allocation7 + $0x368] sm:$0xff]
    %v4422 = vld [vmem:[#allocation7 + $0x370] sm:$0xff]
    %v4423 = vld [vmem:[#allocation7 + $0x378] sm:$0xff]
    %v4424 = vld [vmem:[#allocation7 + $0x380] sm:$0xff]
    %v4425 = vld [vmem:[#allocation7 + $0x388] sm:$0xff]
    %v4426 = vld [vmem:[#allocation7 + $0x390] sm:$0xff]
    %v4427 = vld [vmem:[#allocation7 + $0x398] sm:$0xff]
    %v4428 = vld [vmem:[#allocation7 + $0x3a0] sm:$0xff]
    %v4429 = vld [vmem:[#allocation7 + $0x3a8] sm:$0xff]
    %v4430 = vld [vmem:[#allocation7 + $0x3b0] sm:$0xff]
    %v4431 = vld [vmem:[#allocation7 + $0x3b8] sm:$0xff]
    %v4432 = vld [vmem:[#allocation7 + $0x3c0] sm:$0xff]
    %v4433 = vld [vmem:[#allocation7 + $0x3c8] sm:$0xff]
    %v4434 = vld [vmem:[#allocation7 + $0x3d0] sm:$0xff]
    %v4435 = vld [vmem:[#allocation7 + $0x3d8] sm:$0xff]
    %v4436 = vld [vmem:[#allocation7 + $0x3e0] sm:$0xff]
    %v4437 = vld [vmem:[#allocation7 + $0x3e8] sm:$0xff]
    %v4438 = vld [vmem:[#allocation7 + $0x3f0] sm:$0xff]
    %v4439 = vld [vmem:[#allocation7 + $0x3f8] sm:$0xff]
    %v4441 = vlaneseq
    %v4442 = vshrl.u32 %v4441, 7
    %v4443 = vsub.s32 0, %v4442
    %v4444 = vrot.slane %v4309, %v4443
    %v4445 = vlaneseq
    %v4446 = vshrl.u32 %v4445, 7
    %v4447 = vsub.s32 1, %v4446
    %v4448 = vrot.slane %v4309, %v4447
    %v4449 = vlaneseq
    %v4450 = vshrl.u32 %v4449, 7
    %v4451 = vsub.s32 2, %v4450
    %v4452 = vrot.slane %v4309, %v4451
    %v4453 = vlaneseq
    %v4454 = vshrl.u32 %v4453, 7
    %v4455 = vsub.s32 3, %v4454
    %v4456 = vrot.slane %v4309, %v4455
    %4461 = vmatprep.subr.mxu0 %v4313
    %4462 = vmatpush1.msra.mxu0 %v4312
    %4463 = vmatprep.subr.mxu0 %v4317
    %4464 = vmatpush1.msra.mxu0 %v4316
    %4465 = vmatprep.subr.mxu0 %v4321
    %4466 = vmatpush1.msra.mxu0 %v4320
    %4467 = vmatprep.subr.mxu0 %v4325
    %4468 = vmatpush1.msra.mxu0 %v4324
    %4469 = vmatprep.subr.mxu0 %v4329
    %4470 = vmatpush1.msra.mxu0 %v4328
    %4471 = vmatprep.subr.mxu0 %v4333
    %4472 = vmatpush1.msra.mxu0 %v4332
    %4473 = vmatprep.subr.mxu0 %v4337
    %4474 = vmatpush1.msra.mxu0 %v4336
    %4475 = vmatprep.subr.mxu0 %v4341
    %4476 = vmatpush1.msra.mxu0 %v4340
    %4477 = vmatprep.subr.mxu0 %v4345
    %4478 = vmatpush1.msra.mxu0 %v4344
    %4479 = vmatprep.subr.mxu0 %v4349
    %4480 = vmatpush1.msra.mxu0 %v4348
    %4481 = vmatprep.subr.mxu0 %v4353
    %4482 = vmatpush1.msra.mxu0 %v4352
    %4483 = vmatprep.subr.mxu0 %v4357
    %4484 = vmatpush1.msra.mxu0 %v4356
    %4485 = vmatprep.subr.mxu0 %v4361
    %4486 = vmatpush1.msra.mxu0 %v4360
    %4487 = vmatprep.subr.mxu0 %v4365
    %4488 = vmatpush1.msra.mxu0 %v4364
    %4489 = vmatprep.subr.mxu0 %v4369
    %4490 = vmatpush1.msra.mxu0 %v4368
    %4491 = vmatprep.subr.mxu0 %v4373
    %4492 = vmatpush1.msra.mxu0 %v4372
    %4493 = vmatprep.subr.mxu0 %v4377
    %4494 = vmatpush1.msra.mxu0 %v4376
    %4495 = vmatprep.subr.mxu0 %v4381
    %4496 = vmatpush1.msra.mxu0 %v4380
    %4497 = vmatprep.subr.mxu0 %v4385
    %4498 = vmatpush1.msra.mxu0 %v4384
    %4499 = vmatprep.subr.mxu0 %v4389
    %4500 = vmatpush1.msra.mxu0 %v4388
    %4501 = vmatprep.subr.mxu0 %v4393
    %4502 = vmatpush1.msra.mxu0 %v4392
    %4503 = vmatprep.subr.mxu0 %v4397
    %4504 = vmatpush1.msra.mxu0 %v4396
    %4505 = vmatprep.subr.mxu0 %v4401
    %4506 = vmatpush1.msra.mxu0 %v4400
    %4507 = vmatprep.subr.mxu0 %v4405
    %4508 = vmatpush1.msra.mxu0 %v4404
    %4509 = vmatprep.subr.mxu0 %v4409
    %4510 = vmatpush1.msra.mxu0 %v4408
    %4511 = vmatprep.subr.mxu0 %v4413
    %4512 = vmatpush1.msra.mxu0 %v4412
    %4513 = vmatprep.subr.mxu0 %v4417
    %4514 = vmatpush1.msra.mxu0 %v4416
    %4515 = vmatprep.subr.mxu0 %v4421
    %4516 = vmatpush1.msra.mxu0 %v4420
    %4517 = vmatprep.subr.mxu0 %v4425
    %4518 = vmatpush1.msra.mxu0 %v4424
    %4519 = vmatprep.subr.mxu0 %v4429
    %4520 = vmatpush1.msra.mxu0 %v4428
    %4521 = vmatprep.subr.mxu0 %v4433
    %4522 = vmatpush1.msra.mxu0 %v4432
    %4523 = vmatprep.subr.mxu0 %v4437
    %4524 = vmatpush1.msra.mxu0 %v4436
    %4525 = vmatprep.mubr.f32.mxu0 %v4310
    %4526 = vmatmul.mubr.f32.gmra.mrb[0].mxu0 %v4306
    %v4527 = vpop.f32.mrb[0].mxu0
    %v4528 = vadd.f32 %v4444, %v4527
    %v4529 = vpop.f32.mrb[0].mxu0
    %v4530 = vadd.f32 %v4448, %v4529
    %4531 = vdwg.mxu0
    %4532 = vmatprep.subr.mxu0 %v4315
    %4533 = vmatpush1.msra.mxu0 %v4314
    %4534 = vmatprep.subr.mxu0 %v4319
    %4535 = vmatpush1.msra.mxu0 %v4318
    %4536 = vmatprep.subr.mxu0 %v4323
    %4537 = vmatpush1.msra.mxu0 %v4322
    %4538 = vmatprep.subr.mxu0 %v4327
    %4539 = vmatpush1.msra.mxu0 %v4326
    %4540 = vmatprep.subr.mxu0 %v4331
    %4541 = vmatpush1.msra.mxu0 %v4330
    %4542 = vmatprep.subr.mxu0 %v4335
    %4543 = vmatpush1.msra.mxu0 %v4334
    %4544 = vmatprep.subr.mxu0 %v4339
    %4545 = vmatpush1.msra.mxu0 %v4338
    %4546 = vmatprep.subr.mxu0 %v4343
    %4547 = vmatpush1.msra.mxu0 %v4342
    %4548 = vmatprep.subr.mxu0 %v4347
    %4549 = vmatpush1.msra.mxu0 %v4346
    %4550 = vmatprep.subr.mxu0 %v4351
    %4551 = vmatpush1.msra.mxu0 %v4350
    %4552 = vmatprep.subr.mxu0 %v4355
    %4553 = vmatpush1.msra.mxu0 %v4354
    %4554 = vmatprep.subr.mxu0 %v4359
    %4555 = vmatpush1.msra.mxu0 %v4358
    %4556 = vmatprep.subr.mxu0 %v4363
    %4557 = vmatpush1.msra.mxu0 %v4362
    %4558 = vmatprep.subr.mxu0 %v4367
    %4559 = vmatpush1.msra.mxu0 %v4366
    %4560 = vmatprep.subr.mxu0 %v4371
    %4561 = vmatpush1.msra.mxu0 %v4370
    %4562 = vmatprep.subr.mxu0 %v4375
    %4563 = vmatpush1.msra.mxu0 %v4374
    %4564 = vmatprep.subr.mxu0 %v4379
    %4565 = vmatpush1.msra.mxu0 %v4378
    %4566 = vmatprep.subr.mxu0 %v4383
    %4567 = vmatpush1.msra.mxu0 %v4382
    %4568 = vmatprep.subr.mxu0 %v4387
    %4569 = vmatpush1.msra.mxu0 %v4386
    %4570 = vmatprep.subr.mxu0 %v4391
    %4571 = vmatpush1.msra.mxu0 %v4390
    %4572 = vmatprep.subr.mxu0 %v4395
    %4573 = vmatpush1.msra.mxu0 %v4394
    %4574 = vmatprep.subr.mxu0 %v4399
    %4575 = vmatpush1.msra.mxu0 %v4398
    %4576 = vmatprep.subr.mxu0 %v4403
    %4577 = vmatpush1.msra.mxu0 %v4402
    %4578 = vmatprep.subr.mxu0 %v4407
    %4579 = vmatpush1.msra.mxu0 %v4406
    %4580 = vmatprep.subr.mxu0 %v4411
    %4581 = vmatpush1.msra.mxu0 %v4410
    %4582 = vmatprep.subr.mxu0 %v4415
    %4583 = vmatpush1.msra.mxu0 %v4414
    %4584 = vmatprep.subr.mxu0 %v4419
    %4585 = vmatpush1.msra.mxu0 %v4418
    %4586 = vmatprep.subr.mxu0 %v4423
    %4587 = vmatpush1.msra.mxu0 %v4422
    %4588 = vmatprep.subr.mxu0 %v4427
    %4589 = vmatpush1.msra.mxu0 %v4426
    %4590 = vmatprep.subr.mxu0 %v4431
    %4591 = vmatpush1.msra.mxu0 %v4430
    %4592 = vmatprep.subr.mxu0 %v4435
    %4593 = vmatpush1.msra.mxu0 %v4434
    %4594 = vmatprep.subr.mxu0 %v4439
    %4595 = vmatpush1.msra.mxu0 %v4438
    %4596 = vmatprep.mubr.f32.mxu0 %v4310
    %4597 = vmatmul.mubr.f32.gmra.mrb[0].mxu0 %v4306
    %v4598 = vpop.f32.mrb[0].mxu0
    %v4599 = vadd.f32 %v4452, %v4598
    %v4600 = vpop.f32.mrb[0].mxu0
    %v4601 = vadd.f32 %v4456, %v4600
    %4602 = vdwg.mxu0
    %v4603 = vxor.u32 %v4528, 2147483648
    %v4604 = vxor.u32 %v4530, 2147483648
    %v4605 = vxor.u32 %v4599, 2147483648
    %v4606 = vmul.f32 %v4603, 1.442695
    %v4607 = vpow.pop %v4606
    %v4608 = vmul.f32 %v4604, 1.442695
    %v4609 = vpow.pop %v4608
    %v4610 = vmul.f32 %v4605, 1.442695
    %v4611 = vpow.pop %v4610
    %v4612 = vadd.f32 %v4607, 1.0
    %v4613 = vadd.f32 %v4609, 1.0
    %v4614 = vadd.f32 %v4611, 1.0
    %v4615 = vrcp.pop %v4612
    %v4616 = vmul.f32 1.0, %v4615
    %v4617 = vrcp.pop %v4613
    %v4618 = vmul.f32 1.0, %v4617
    %v4619 = vrcp.pop %v4614
    %v4620 = vmul.f32 1.0, %v4619
    %v4621 = vtanh.pop %v4601
    %v4622 = vmul.f32 %v4311, %v4616
    %v4623 = vmul.f32 %v4618, %v4621
    %v4624 = vadd.f32 %v4622, %v4623
    %v4625 = vtanh.pop %v4624
    %v4626 = vmul.f32 %v4620, %v4625
    %v4627 = vsel %vm4304, %v4624, %v4311
    %v4628 = vsel %vm4304, %v4626, %v4310
    %4629 = vst [vmem:[%s404] sm:$0xff] %v4627
    %4630 = vst [vmem:[%s402] sm:$0xff] %v4628
    %s4631 = sadd.s32 %s73, 7
    %p4632 = scmp.lt.s32.totalorder %s4631, 8
    %s4633 = scalar_lea.vmem [#allocation2], 56
    %v4634 = vld [vmem:[%s4633] sm:$0xff]
    %v4635 = vld [vmem:[%s2] sm:$0xf]
    %v4636 = vld [vmem:[#allocation9] sm:$0xff]
    %v4637 = vld [vmem:[#allocation8] sm:$0xff]
    %v4638 = vld [vmem:[#allocation5] sm:$0xff]
    %v4639 = vld [vmem:[#allocation5 + $0x8] sm:$0xff]
    %v4640 = vld [vmem:[#allocation5 + $0x10] sm:$0xff]
    %v4641 = vld [vmem:[#allocation5 + $0x18] sm:$0xff]
    %v4642 = vld [vmem:[#allocation5 + $0x20] sm:$0xff]
    %v4643 = vld [vmem:[#allocation5 + $0x28] sm:$0xff]
    %v4644 = vld [vmem:[#allocation5 + $0x30] sm:$0xff]
    %v4645 = vld [vmem:[#allocation5 + $0x38] sm:$0xff]
    %v4646 = vld [vmem:[#allocation5 + $0x40] sm:$0xff]
    %v4647 = vld [vmem:[#allocation5 + $0x48] sm:$0xff]
    %v4648 = vld [vmem:[#allocation5 + $0x50] sm:$0xff]
    %v4649 = vld [vmem:[#allocation5 + $0x58] sm:$0xff]
    %v4650 = vld [vmem:[#allocation5 + $0x60] sm:$0xff]
    %v4651 = vld [vmem:[#allocation5 + $0x68] sm:$0xff]
    %v4652 = vld [vmem:[#allocation5 + $0x70] sm:$0xff]
    %v4653 = vld [vmem:[#allocation5 + $0x78] sm:$0xff]
    %v4654 = vld [vmem:[#allocation5 + $0x80] sm:$0xff]
    %v4655 = vld [vmem:[#allocation5 + $0x88] sm:$0xff]
    %v4656 = vld [vmem:[#allocation5 + $0x90] sm:$0xff]
    %v4657 = vld [vmem:[#allocation5 + $0x98] sm:$0xff]
    %v4658 = vld [vmem:[#allocation5 + $0xa0] sm:$0xff]
    %v4659 = vld [vmem:[#allocation5 + $0xa8] sm:$0xff]
    %v4660 = vld [vmem:[#allocation5 + $0xb0] sm:$0xff]
    %v4661 = vld [vmem:[#allocation5 + $0xb8] sm:$0xff]
    %v4662 = vld [vmem:[#allocation5 + $0xc0] sm:$0xff]
    %v4663 = vld [vmem:[#allocation5 + $0xc8] sm:$0xff]
    %v4664 = vld [vmem:[#allocation5 + $0xd0] sm:$0xff]
    %v4665 = vld [vmem:[#allocation5 + $0xd8] sm:$0xff]
    %v4666 = vld [vmem:[#allocation5 + $0xe0] sm:$0xff]
    %v4667 = vld [vmem:[#allocation5 + $0xe8] sm:$0xff]
    %v4668 = vld [vmem:[#allocation5 + $0xf0] sm:$0xff]
    %v4669 = vld [vmem:[#allocation5 + $0xf8] sm:$0xff]
    %v4670 = vld [vmem:[#allocation5 + $0x100] sm:$0xff]
    %v4671 = vld [vmem:[#allocation5 + $0x108] sm:$0xff]
    %v4672 = vld [vmem:[#allocation5 + $0x110] sm:$0xff]
    %v4673 = vld [vmem:[#allocation5 + $0x118] sm:$0xff]
    %v4674 = vld [vmem:[#allocation5 + $0x120] sm:$0xff]
    %v4675 = vld [vmem:[#allocation5 + $0x128] sm:$0xff]
    %v4676 = vld [vmem:[#allocation5 + $0x130] sm:$0xff]
    %v4677 = vld [vmem:[#allocation5 + $0x138] sm:$0xff]
    %v4678 = vld [vmem:[#allocation5 + $0x140] sm:$0xff]
    %v4679 = vld [vmem:[#allocation5 + $0x148] sm:$0xff]
    %v4680 = vld [vmem:[#allocation5 + $0x150] sm:$0xff]
    %v4681 = vld [vmem:[#allocation5 + $0x158] sm:$0xff]
    %v4682 = vld [vmem:[#allocation5 + $0x160] sm:$0xff]
    %v4683 = vld [vmem:[#allocation5 + $0x168] sm:$0xff]
    %v4684 = vld [vmem:[#allocation5 + $0x170] sm:$0xff]
    %v4685 = vld [vmem:[#allocation5 + $0x178] sm:$0xff]
    %v4686 = vld [vmem:[#allocation5 + $0x180] sm:$0xff]
    %v4687 = vld [vmem:[#allocation5 + $0x188] sm:$0xff]
    %v4688 = vld [vmem:[#allocation5 + $0x190] sm:$0xff]
    %v4689 = vld [vmem:[#allocation5 + $0x198] sm:$0xff]
    %v4690 = vld [vmem:[#allocation5 + $0x1a0] sm:$0xff]
    %v4691 = vld [vmem:[#allocation5 + $0x1a8] sm:$0xff]
    %v4692 = vld [vmem:[#allocation5 + $0x1b0] sm:$0xff]
    %v4693 = vld [vmem:[#allocation5 + $0x1b8] sm:$0xff]
    %v4694 = vld [vmem:[#allocation5 + $0x1c0] sm:$0xff]
    %v4695 = vld [vmem:[#allocation5 + $0x1c8] sm:$0xff]
    %v4696 = vld [vmem:[#allocation5 + $0x1d0] sm:$0xff]
    %v4697 = vld [vmem:[#allocation5 + $0x1d8] sm:$0xff]
    %v4698 = vld [vmem:[#allocation5 + $0x1e0] sm:$0xff]
    %v4699 = vld [vmem:[#allocation5 + $0x1e8] sm:$0xff]
    %v4700 = vld [vmem:[#allocation5 + $0x1f0] sm:$0xff]
    %v4701 = vld [vmem:[#allocation5 + $0x1f8] sm:$0xff]
    %v4702 = vld [vmem:[#allocation5 + $0x200] sm:$0xff]
    %v4703 = vld [vmem:[#allocation5 + $0x208] sm:$0xff]
    %v4704 = vld [vmem:[#allocation5 + $0x210] sm:$0xff]
    %v4705 = vld [vmem:[#allocation5 + $0x218] sm:$0xff]
    %v4706 = vld [vmem:[#allocation5 + $0x220] sm:$0xff]
    %v4707 = vld [vmem:[#allocation5 + $0x228] sm:$0xff]
    %v4708 = vld [vmem:[#allocation5 + $0x230] sm:$0xff]
    %v4709 = vld [vmem:[#allocation5 + $0x238] sm:$0xff]
    %v4710 = vld [vmem:[#allocation5 + $0x240] sm:$0xff]
    %v4711 = vld [vmem:[#allocation5 + $0x248] sm:$0xff]
    %v4712 = vld [vmem:[#allocation5 + $0x250] sm:$0xff]
    %v4713 = vld [vmem:[#allocation5 + $0x258] sm:$0xff]
    %v4714 = vld [vmem:[#allocation5 + $0x260] sm:$0xff]
    %v4715 = vld [vmem:[#allocation5 + $0x268] sm:$0xff]
    %v4716 = vld [vmem:[#allocation5 + $0x270] sm:$0xff]
    %v4717 = vld [vmem:[#allocation5 + $0x278] sm:$0xff]
    %v4718 = vld [vmem:[#allocation5 + $0x280] sm:$0xff]
    %v4719 = vld [vmem:[#allocation5 + $0x288] sm:$0xff]
    %v4720 = vld [vmem:[#allocation5 + $0x290] sm:$0xff]
    %v4721 = vld [vmem:[#allocation5 + $0x298] sm:$0xff]
    %v4722 = vld [vmem:[#allocation5 + $0x2a0] sm:$0xff]
    %v4723 = vld [vmem:[#allocation5 + $0x2a8] sm:$0xff]
    %v4724 = vld [vmem:[#allocation5 + $0x2b0] sm:$0xff]
    %v4725 = vld [vmem:[#allocation5 + $0x2b8] sm:$0xff]
    %v4726 = vld [vmem:[#allocation5 + $0x2c0] sm:$0xff]
    %v4727 = vld [vmem:[#allocation5 + $0x2c8] sm:$0xff]
    %v4728 = vld [vmem:[#allocation5 + $0x2d0] sm:$0xff]
    %v4729 = vld [vmem:[#allocation5 + $0x2d8] sm:$0xff]
    %v4730 = vld [vmem:[#allocation5 + $0x2e0] sm:$0xff]
    %v4731 = vld [vmem:[#allocation5 + $0x2e8] sm:$0xff]
    %v4732 = vld [vmem:[#allocation5 + $0x2f0] sm:$0xff]
    %v4733 = vld [vmem:[#allocation5 + $0x2f8] sm:$0xff]
    %v4734 = vld [vmem:[#allocation5 + $0x300] sm:$0xff]
    %v4735 = vld [vmem:[#allocation5 + $0x308] sm:$0xff]
    %v4736 = vld [vmem:[#allocation5 + $0x310] sm:$0xff]
    %v4737 = vld [vmem:[#allocation5 + $0x318] sm:$0xff]
    %v4738 = vld [vmem:[#allocation5 + $0x320] sm:$0xff]
    %v4739 = vld [vmem:[#allocation5 + $0x328] sm:$0xff]
    %v4740 = vld [vmem:[#allocation5 + $0x330] sm:$0xff]
    %v4741 = vld [vmem:[#allocation5 + $0x338] sm:$0xff]
    %v4742 = vld [vmem:[#allocation5 + $0x340] sm:$0xff]
    %v4743 = vld [vmem:[#allocation5 + $0x348] sm:$0xff]
    %v4744 = vld [vmem:[#allocation5 + $0x350] sm:$0xff]
    %v4745 = vld [vmem:[#allocation5 + $0x358] sm:$0xff]
    %v4746 = vld [vmem:[#allocation5 + $0x360] sm:$0xff]
    %v4747 = vld [vmem:[#allocation5 + $0x368] sm:$0xff]
    %v4748 = vld [vmem:[#allocation5 + $0x370] sm:$0xff]
    %v4749 = vld [vmem:[#allocation5 + $0x378] sm:$0xff]
    %v4750 = vld [vmem:[#allocation5 + $0x380] sm:$0xff]
    %v4751 = vld [vmem:[#allocation5 + $0x388] sm:$0xff]
    %v4752 = vld [vmem:[#allocation5 + $0x390] sm:$0xff]
    %v4753 = vld [vmem:[#allocation5 + $0x398] sm:$0xff]
    %v4754 = vld [vmem:[#allocation5 + $0x3a0] sm:$0xff]
    %v4755 = vld [vmem:[#allocation5 + $0x3a8] sm:$0xff]
    %v4756 = vld [vmem:[#allocation5 + $0x3b0] sm:$0xff]
    %v4757 = vld [vmem:[#allocation5 + $0x3b8] sm:$0xff]
    %v4758 = vld [vmem:[#allocation5 + $0x3c0] sm:$0xff]
    %v4759 = vld [vmem:[#allocation5 + $0x3c8] sm:$0xff]
    %v4760 = vld [vmem:[#allocation5 + $0x3d0] sm:$0xff]
    %v4761 = vld [vmem:[#allocation5 + $0x3d8] sm:$0xff]
    %v4762 = vld [vmem:[#allocation5 + $0x3e0] sm:$0xff]
    %v4763 = vld [vmem:[#allocation5 + $0x3e8] sm:$0xff]
    %v4764 = vld [vmem:[#allocation5 + $0x3f0] sm:$0xff]
    %v4765 = vld [vmem:[#allocation5 + $0x3f8] sm:$0xff]
    %v4767 = vlaneseq
    %v4768 = vshrl.u32 %v4767, 7
    %v4769 = vsub.s32 0, %v4768
    %v4770 = vrot.slane %v4635, %v4769
    %v4771 = vlaneseq
    %v4772 = vshrl.u32 %v4771, 7
    %v4773 = vsub.s32 1, %v4772
    %v4774 = vrot.slane %v4635, %v4773
    %v4775 = vlaneseq
    %v4776 = vshrl.u32 %v4775, 7
    %v4777 = vsub.s32 2, %v4776
    %v4778 = vrot.slane %v4635, %v4777
    %v4779 = vlaneseq
    %v4780 = vshrl.u32 %v4779, 7
    %v4781 = vsub.s32 3, %v4780
    %v4782 = vrot.slane %v4635, %v4781
    %4787 = vmatprep.subr.mxu0 %v4639
    %4788 = vmatpush1.msra.mxu0 %v4638
    %4789 = vmatprep.subr.mxu0 %v4643
    %4790 = vmatpush1.msra.mxu0 %v4642
    %4791 = vmatprep.subr.mxu0 %v4647
    %4792 = vmatpush1.msra.mxu0 %v4646
    %4793 = vmatprep.subr.mxu0 %v4651
    %4794 = vmatpush1.msra.mxu0 %v4650
    %4795 = vmatprep.subr.mxu0 %v4655
    %4796 = vmatpush1.msra.mxu0 %v4654
    %4797 = vmatprep.subr.mxu0 %v4659
    %4798 = vmatpush1.msra.mxu0 %v4658
    %4799 = vmatprep.subr.mxu0 %v4663
    %4800 = vmatpush1.msra.mxu0 %v4662
    %4801 = vmatprep.subr.mxu0 %v4667
    %4802 = vmatpush1.msra.mxu0 %v4666
    %4803 = vmatprep.subr.mxu0 %v4671
    %4804 = vmatpush1.msra.mxu0 %v4670
    %4805 = vmatprep.subr.mxu0 %v4675
    %4806 = vmatpush1.msra.mxu0 %v4674
    %4807 = vmatprep.subr.mxu0 %v4679
    %4808 = vmatpush1.msra.mxu0 %v4678
    %4809 = vmatprep.subr.mxu0 %v4683
    %4810 = vmatpush1.msra.mxu0 %v4682
    %4811 = vmatprep.subr.mxu0 %v4687
    %4812 = vmatpush1.msra.mxu0 %v4686
    %4813 = vmatprep.subr.mxu0 %v4691
    %4814 = vmatpush1.msra.mxu0 %v4690
    %4815 = vmatprep.subr.mxu0 %v4695
    %4816 = vmatpush1.msra.mxu0 %v4694
    %4817 = vmatprep.subr.mxu0 %v4699
    %4818 = vmatpush1.msra.mxu0 %v4698
    %4819 = vmatprep.subr.mxu0 %v4703
    %4820 = vmatpush1.msra.mxu0 %v4702
    %4821 = vmatprep.subr.mxu0 %v4707
    %4822 = vmatpush1.msra.mxu0 %v4706
    %4823 = vmatprep.subr.mxu0 %v4711
    %4824 = vmatpush1.msra.mxu0 %v4710
    %4825 = vmatprep.subr.mxu0 %v4715
    %4826 = vmatpush1.msra.mxu0 %v4714
    %4827 = vmatprep.subr.mxu0 %v4719
    %4828 = vmatpush1.msra.mxu0 %v4718
    %4829 = vmatprep.subr.mxu0 %v4723
    %4830 = vmatpush1.msra.mxu0 %v4722
    %4831 = vmatprep.subr.mxu0 %v4727
    %4832 = vmatpush1.msra.mxu0 %v4726
    %4833 = vmatprep.subr.mxu0 %v4731
    %4834 = vmatpush1.msra.mxu0 %v4730
    %4835 = vmatprep.subr.mxu0 %v4735
    %4836 = vmatpush1.msra.mxu0 %v4734
    %4837 = vmatprep.subr.mxu0 %v4739
    %4838 = vmatpush1.msra.mxu0 %v4738
    %4839 = vmatprep.subr.mxu0 %v4743
    %4840 = vmatpush1.msra.mxu0 %v4742
    %4841 = vmatprep.subr.mxu0 %v4747
    %4842 = vmatpush1.msra.mxu0 %v4746
    %4843 = vmatprep.subr.mxu0 %v4751
    %4844 = vmatpush1.msra.mxu0 %v4750
    %4845 = vmatprep.subr.mxu0 %v4755
    %4846 = vmatpush1.msra.mxu0 %v4754
    %4847 = vmatprep.subr.mxu0 %v4759
    %4848 = vmatpush1.msra.mxu0 %v4758
    %4849 = vmatprep.subr.mxu0 %v4763
    %4850 = vmatpush1.msra.mxu0 %v4762
    %4851 = vmatprep.mubr.f32.mxu0 %v4636
    %4852 = vmatmul.mubr.f32.gmra.mrb[0].mxu0 %v4634
    %v4853 = vpop.f32.mrb[0].mxu0
    %v4854 = vadd.f32 %v4770, %v4853
    %v4855 = vpop.f32.mrb[0].mxu0
    %v4856 = vadd.f32 %v4774, %v4855
    %4857 = vdwg.mxu0
    %4858 = vmatprep.subr.mxu0 %v4641
    %4859 = vmatpush1.msra.mxu0 %v4640
    %4860 = vmatprep.subr.mxu0 %v4645
    %4861 = vmatpush1.msra.mxu0 %v4644
    %4862 = vmatprep.subr.mxu0 %v4649
    %4863 = vmatpush1.msra.mxu0 %v4648
    %4864 = vmatprep.subr.mxu0 %v4653
    %4865 = vmatpush1.msra.mxu0 %v4652
    %4866 = vmatprep.subr.mxu0 %v4657
    %4867 = vmatpush1.msra.mxu0 %v4656
    %4868 = vmatprep.subr.mxu0 %v4661
    %4869 = vmatpush1.msra.mxu0 %v4660
    %4870 = vmatprep.subr.mxu0 %v4665
    %4871 = vmatpush1.msra.mxu0 %v4664
    %4872 = vmatprep.subr.mxu0 %v4669
    %4873 = vmatpush1.msra.mxu0 %v4668
    %4874 = vmatprep.subr.mxu0 %v4673
    %4875 = vmatpush1.msra.mxu0 %v4672
    %4876 = vmatprep.subr.mxu0 %v4677
    %4877 = vmatpush1.msra.mxu0 %v4676
    %4878 = vmatprep.subr.mxu0 %v4681
    %4879 = vmatpush1.msra.mxu0 %v4680
    %4880 = vmatprep.subr.mxu0 %v4685
    %4881 = vmatpush1.msra.mxu0 %v4684
    %4882 = vmatprep.subr.mxu0 %v4689
    %4883 = vmatpush1.msra.mxu0 %v4688
    %4884 = vmatprep.subr.mxu0 %v4693
    %4885 = vmatpush1.msra.mxu0 %v4692
    %4886 = vmatprep.subr.mxu0 %v4697
    %4887 = vmatpush1.msra.mxu0 %v4696
    %4888 = vmatprep.subr.mxu0 %v4701
    %4889 = vmatpush1.msra.mxu0 %v4700
    %4890 = vmatprep.subr.mxu0 %v4705
    %4891 = vmatpush1.msra.mxu0 %v4704
    %4892 = vmatprep.subr.mxu0 %v4709
    %4893 = vmatpush1.msra.mxu0 %v4708
    %4894 = vmatprep.subr.mxu0 %v4713
    %4895 = vmatpush1.msra.mxu0 %v4712
    %4896 = vmatprep.subr.mxu0 %v4717
    %4897 = vmatpush1.msra.mxu0 %v4716
    %4898 = vmatprep.subr.mxu0 %v4721
    %4899 = vmatpush1.msra.mxu0 %v4720
    %4900 = vmatprep.subr.mxu0 %v4725
    %4901 = vmatpush1.msra.mxu0 %v4724
    %4902 = vmatprep.subr.mxu0 %v4729
    %4903 = vmatpush1.msra.mxu0 %v4728
    %4904 = vmatprep.subr.mxu0 %v4733
    %4905 = vmatpush1.msra.mxu0 %v4732
    %4906 = vmatprep.subr.mxu0 %v4737
    %4907 = vmatpush1.msra.mxu0 %v4736
    %4908 = vmatprep.subr.mxu0 %v4741
    %4909 = vmatpush1.msra.mxu0 %v4740
    %4910 = vmatprep.subr.mxu0 %v4745
    %4911 = vmatpush1.msra.mxu0 %v4744
    %4912 = vmatprep.subr.mxu0 %v4749
    %4913 = vmatpush1.msra.mxu0 %v4748
    %4914 = vmatprep.subr.mxu0 %v4753
    %4915 = vmatpush1.msra.mxu0 %v4752
    %4916 = vmatprep.subr.mxu0 %v4757
    %4917 = vmatpush1.msra.mxu0 %v4756
    %4918 = vmatprep.subr.mxu0 %v4761
    %4919 = vmatpush1.msra.mxu0 %v4760
    %4920 = vmatprep.subr.mxu0 %v4765
    %4921 = vmatpush1.msra.mxu0 %v4764
    %4922 = vmatprep.mubr.f32.mxu0 %v4636
    %4923 = vmatmul.mubr.f32.gmra.mrb[0].mxu0 %v4634
    %v4924 = vpop.f32.mrb[0].mxu0
    %v4925 = vadd.f32 %v4778, %v4924
    %v4926 = vpop.f32.mrb[0].mxu0
    %v4927 = vadd.f32 %v4782, %v4926
    %4928 = vdwg.mxu0
    %v4929 = vxor.u32 %v4854, 2147483648
    %v4930 = vxor.u32 %v4856, 2147483648
    %v4931 = vxor.u32 %v4925, 2147483648
    %v4932 = vmul.f32 %v4929, 1.442695
    %v4933 = vpow.pop %v4932
    %v4934 = vmul.f32 %v4930, 1.442695
    %v4935 = vpow.pop %v4934
    %v4936 = vmul.f32 %v4931, 1.442695
    %v4937 = vpow.pop %v4936
    %v4938 = vadd.f32 %v4933, 1.0
    %v4939 = vadd.f32 %v4935, 1.0
    %v4940 = vadd.f32 %v4937, 1.0
    %v4941 = vrcp.pop %v4938
    %v4942 = vmul.f32 1.0, %v4941
    %v4943 = vrcp.pop %v4939
    %v4944 = vmul.f32 1.0, %v4943
    %v4945 = vrcp.pop %v4940
    %v4946 = vmul.f32 1.0, %v4945
    %v4947 = vtanh.pop %v4927
    %v4948 = vmul.f32 %v4637, %v4942
    %v4949 = vmul.f32 %v4944, %v4947
    %v4950 = vadd.f32 %v4948, %v4949
    %v4951 = vtanh.pop %v4950
    %v4952 = vmul.f32 %v4946, %v4951
    %s4953 = scalar_select %p4632, 1, 0
    %v4954 = vstv %s4953
    %vm4955 = vcmp.eq.s32.totalorder %v4954, 1
    %v4956 = vsel %vm4955, %v4950, %v4637
    %v4957 = vsel %vm4955, %v4952, %v4636
    %4958 = vst [vmem:[#allocation8] sm:$0xff] %v4956
    %4959 = vst [vmem:[#allocation9] sm:$0xff] %v4957
    %v4960 = vld [vmem:[%s4] sm:$0xf]
    %v4961 = vld [vmem:[%s402] sm:$0xff]
    %v4962 = vld [vmem:[%s404] sm:$0xff]
    %v4963 = vld [vmem:[#allocation7] sm:$0xff]
    %v4964 = vld [vmem:[#allocation7 + $0x8] sm:$0xff]
    %v4965 = vld [vmem:[#allocation7 + $0x10] sm:$0xff]
    %v4966 = vld [vmem:[#allocation7 + $0x18] sm:$0xff]
    %v4967 = vld [vmem:[#allocation7 + $0x20] sm:$0xff]
    %v4968 = vld [vmem:[#allocation7 + $0x28] sm:$0xff]
    %v4969 = vld [vmem:[#allocation7 + $0x30] sm:$0xff]
    %v4970 = vld [vmem:[#allocation7 + $0x38] sm:$0xff]
    %v4971 = vld [vmem:[#allocation7 + $0x40] sm:$0xff]
    %v4972 = vld [vmem:[#allocation7 + $0x48] sm:$0xff]
    %v4973 = vld [vmem:[#allocation7 + $0x50] sm:$0xff]
    %v4974 = vld [vmem:[#allocation7 + $0x58] sm:$0xff]
    %v4975 = vld [vmem:[#allocation7 + $0x60] sm:$0xff]
    %v4976 = vld [vmem:[#allocation7 + $0x68] sm:$0xff]
    %v4977 = vld [vmem:[#allocation7 + $0x70] sm:$0xff]
    %v4978 = vld [vmem:[#allocation7 + $0x78] sm:$0xff]
    %v4979 = vld [vmem:[#allocation7 + $0x80] sm:$0xff]
    %v4980 = vld [vmem:[#allocation7 + $0x88] sm:$0xff]
    %v4981 = vld [vmem:[#allocation7 + $0x90] sm:$0xff]
    %v4982 = vld [vmem:[#allocation7 + $0x98] sm:$0xff]
    %v4983 = vld [vmem:[#allocation7 + $0xa0] sm:$0xff]
    %v4984 = vld [vmem:[#allocation7 + $0xa8] sm:$0xff]
    %v4985 = vld [vmem:[#allocation7 + $0xb0] sm:$0xff]
    %v4986 = vld [vmem:[#allocation7 + $0xb8] sm:$0xff]
    %v4987 = vld [vmem:[#allocation7 + $0xc0] sm:$0xff]
    %v4988 = vld [vmem:[#allocation7 + $0xc8] sm:$0xff]
    %v4989 = vld [vmem:[#allocation7 + $0xd0] sm:$0xff]
    %v4990 = vld [vmem:[#allocation7 + $0xd8] sm:$0xff]
    %v4991 = vld [vmem:[#allocation7 + $0xe0] sm:$0xff]
    %v4992 = vld [vmem:[#allocation7 + $0xe8] sm:$0xff]
    %v4993 = vld [vmem:[#allocation7 + $0xf0] sm:$0xff]
    %v4994 = vld [vmem:[#allocation7 + $0xf8] sm:$0xff]
    %v4995 = vld [vmem:[#allocation7 + $0x100] sm:$0xff]
    %v4996 = vld [vmem:[#allocation7 + $0x108] sm:$0xff]
    %v4997 = vld [vmem:[#allocation7 + $0x110] sm:$0xff]
    %v4998 = vld [vmem:[#allocation7 + $0x118] sm:$0xff]
    %v4999 = vld [vmem:[#allocation7 + $0x120] sm:$0xff]
    %v5000 = vld [vmem:[#allocation7 + $0x128] sm:$0xff]
    %v5001 = vld [vmem:[#allocation7 + $0x130] sm:$0xff]
    %v5002 = vld [vmem:[#allocation7 + $0x138] sm:$0xff]
    %v5003 = vld [vmem:[#allocation7 + $0x140] sm:$0xff]
    %v5004 = vld [vmem:[#allocation7 + $0x148] sm:$0xff]
    %v5005 = vld [vmem:[#allocation7 + $0x150] sm:$0xff]
    %v5006 = vld [vmem:[#allocation7 + $0x158] sm:$0xff]
    %v5007 = vld [vmem:[#allocation7 + $0x160] sm:$0xff]
    %v5008 = vld [vmem:[#allocation7 + $0x168] sm:$0xff]
    %v5009 = vld [vmem:[#allocation7 + $0x170] sm:$0xff]
    %v5010 = vld [vmem:[#allocation7 + $0x178] sm:$0xff]
    %v5011 = vld [vmem:[#allocation7 + $0x180] sm:$0xff]
    %v5012 = vld [vmem:[#allocation7 + $0x188] sm:$0xff]
    %v5013 = vld [vmem:[#allocation7 + $0x190] sm:$0xff]
    %v5014 = vld [vmem:[#allocation7 + $0x198] sm:$0xff]
    %v5015 = vld [vmem:[#allocation7 + $0x1a0] sm:$0xff]
    %v5016 = vld [vmem:[#allocation7 + $0x1a8] sm:$0xff]
    %v5017 = vld [vmem:[#allocation7 + $0x1b0] sm:$0xff]
    %v5018 = vld [vmem:[#allocation7 + $0x1b8] sm:$0xff]
    %v5019 = vld [vmem:[#allocation7 + $0x1c0] sm:$0xff]
    %v5020 = vld [vmem:[#allocation7 + $0x1c8] sm:$0xff]
    %v5021 = vld [vmem:[#allocation7 + $0x1d0] sm:$0xff]
    %v5022 = vld [vmem:[#allocation7 + $0x1d8] sm:$0xff]
    %v5023 = vld [vmem:[#allocation7 + $0x1e0] sm:$0xff]
    %v5024 = vld [vmem:[#allocation7 + $0x1e8] sm:$0xff]
    %v5025 = vld [vmem:[#allocation7 + $0x1f0] sm:$0xff]
    %v5026 = vld [vmem:[#allocation7 + $0x1f8] sm:$0xff]
    %v5027 = vld [vmem:[#allocation7 + $0x200] sm:$0xff]
    %v5028 = vld [vmem:[#allocation7 + $0x208] sm:$0xff]
    %v5029 = vld [vmem:[#allocation7 + $0x210] sm:$0xff]
    %v5030 = vld [vmem:[#allocation7 + $0x218] sm:$0xff]
    %v5031 = vld [vmem:[#allocation7 + $0x220] sm:$0xff]
    %v5032 = vld [vmem:[#allocation7 + $0x228] sm:$0xff]
    %v5033 = vld [vmem:[#allocation7 + $0x230] sm:$0xff]
    %v5034 = vld [vmem:[#allocation7 + $0x238] sm:$0xff]
    %v5035 = vld [vmem:[#allocation7 + $0x240] sm:$0xff]
    %v5036 = vld [vmem:[#allocation7 + $0x248] sm:$0xff]
    %v5037 = vld [vmem:[#allocation7 + $0x250] sm:$0xff]
    %v5038 = vld [vmem:[#allocation7 + $0x258] sm:$0xff]
    %v5039 = vld [vmem:[#allocation7 + $0x260] sm:$0xff]
    %v5040 = vld [vmem:[#allocation7 + $0x268] sm:$0xff]
    %v5041 = vld [vmem:[#allocation7 + $0x270] sm:$0xff]
    %v5042 = vld [vmem:[#allocation7 + $0x278] sm:$0xff]
    %v5043 = vld [vmem:[#allocation7 + $0x280] sm:$0xff]
    %v5044 = vld [vmem:[#allocation7 + $0x288] sm:$0xff]
    %v5045 = vld [vmem:[#allocation7 + $0x290] sm:$0xff]
    %v5046 = vld [vmem:[#allocation7 + $0x298] sm:$0xff]
    %v5047 = vld [vmem:[#allocation7 + $0x2a0] sm:$0xff]
    %v5048 = vld [vmem:[#allocation7 + $0x2a8] sm:$0xff]
    %v5049 = vld [vmem:[#allocation7 + $0x2b0] sm:$0xff]
    %v5050 = vld [vmem:[#allocation7 + $0x2b8] sm:$0xff]
    %v5051 = vld [vmem:[#allocation7 + $0x2c0] sm:$0xff]
    %v5052 = vld [vmem:[#allocation7 + $0x2c8] sm:$0xff]
    %v5053 = vld [vmem:[#allocation7 + $0x2d0] sm:$0xff]
    %v5054 = vld [vmem:[#allocation7 + $0x2d8] sm:$0xff]
    %v5055 = vld [vmem:[#allocation7 + $0x2e0] sm:$0xff]
    %v5056 = vld [vmem:[#allocation7 + $0x2e8] sm:$0xff]
    %v5057 = vld [vmem:[#allocation7 + $0x2f0] sm:$0xff]
    %v5058 = vld [vmem:[#allocation7 + $0x2f8] sm:$0xff]
    %v5059 = vld [vmem:[#allocation7 + $0x300] sm:$0xff]
    %v5060 = vld [vmem:[#allocation7 + $0x308] sm:$0xff]
    %v5061 = vld [vmem:[#allocation7 + $0x310] sm:$0xff]
    %v5062 = vld [vmem:[#allocation7 + $0x318] sm:$0xff]
    %v5063 = vld [vmem:[#allocation7 + $0x320] sm:$0xff]
    %v5064 = vld [vmem:[#allocation7 + $0x328] sm:$0xff]
    %v5065 = vld [vmem:[#allocation7 + $0x330] sm:$0xff]
    %v5066 = vld [vmem:[#allocation7 + $0x338] sm:$0xff]
    %v5067 = vld [vmem:[#allocation7 + $0x340] sm:$0xff]
    %v5068 = vld [vmem:[#allocation7 + $0x348] sm:$0xff]
    %v5069 = vld [vmem:[#allocation7 + $0x350] sm:$0xff]
    %v5070 = vld [vmem:[#allocation7 + $0x358] sm:$0xff]
    %v5071 = vld [vmem:[#allocation7 + $0x360] sm:$0xff]
    %v5072 = vld [vmem:[#allocation7 + $0x368] sm:$0xff]
    %v5073 = vld [vmem:[#allocation7 + $0x370] sm:$0xff]
    %v5074 = vld [vmem:[#allocation7 + $0x378] sm:$0xff]
    %v5075 = vld [vmem:[#allocation7 + $0x380] sm:$0xff]
    %v5076 = vld [vmem:[#allocation7 + $0x388] sm:$0xff]
    %v5077 = vld [vmem:[#allocation7 + $0x390] sm:$0xff]
    %v5078 = vld [vmem:[#allocation7 + $0x398] sm:$0xff]
    %v5079 = vld [vmem:[#allocation7 + $0x3a0] sm:$0xff]
    %v5080 = vld [vmem:[#allocation7 + $0x3a8] sm:$0xff]
    %v5081 = vld [vmem:[#allocation7 + $0x3b0] sm:$0xff]
    %v5082 = vld [vmem:[#allocation7 + $0x3b8] sm:$0xff]
    %v5083 = vld [vmem:[#allocation7 + $0x3c0] sm:$0xff]
    %v5084 = vld [vmem:[#allocation7 + $0x3c8] sm:$0xff]
    %v5085 = vld [vmem:[#allocation7 + $0x3d0] sm:$0xff]
    %v5086 = vld [vmem:[#allocation7 + $0x3d8] sm:$0xff]
    %v5087 = vld [vmem:[#allocation7 + $0x3e0] sm:$0xff]
    %v5088 = vld [vmem:[#allocation7 + $0x3e8] sm:$0xff]
    %v5089 = vld [vmem:[#allocation7 + $0x3f0] sm:$0xff]
    %v5090 = vld [vmem:[#allocation7 + $0x3f8] sm:$0xff]
    %v5092 = vlaneseq
    %v5093 = vshrl.u32 %v5092, 7
    %v5094 = vsub.s32 0, %v5093
    %v5095 = vrot.slane %v4960, %v5094
    %v5096 = vlaneseq
    %v5097 = vshrl.u32 %v5096, 7
    %v5098 = vsub.s32 1, %v5097
    %v5099 = vrot.slane %v4960, %v5098
    %v5100 = vlaneseq
    %v5101 = vshrl.u32 %v5100, 7
    %v5102 = vsub.s32 2, %v5101
    %v5103 = vrot.slane %v4960, %v5102
    %v5104 = vlaneseq
    %v5105 = vshrl.u32 %v5104, 7
    %v5106 = vsub.s32 3, %v5105
    %v5107 = vrot.slane %v4960, %v5106
    %5112 = vmatprep.subr.mxu0 %v4964
    %5113 = vmatpush1.msra.mxu0 %v4963
    %5114 = vmatprep.subr.mxu0 %v4968
    %5115 = vmatpush1.msra.mxu0 %v4967
    %5116 = vmatprep.subr.mxu0 %v4972
    %5117 = vmatpush1.msra.mxu0 %v4971
    %5118 = vmatprep.subr.mxu0 %v4976
    %5119 = vmatpush1.msra.mxu0 %v4975
    %5120 = vmatprep.subr.mxu0 %v4980
    %5121 = vmatpush1.msra.mxu0 %v4979
    %5122 = vmatprep.subr.mxu0 %v4984
    %5123 = vmatpush1.msra.mxu0 %v4983
    %5124 = vmatprep.subr.mxu0 %v4988
    %5125 = vmatpush1.msra.mxu0 %v4987
    %5126 = vmatprep.subr.mxu0 %v4992
    %5127 = vmatpush1.msra.mxu0 %v4991
    %5128 = vmatprep.subr.mxu0 %v4996
    %5129 = vmatpush1.msra.mxu0 %v4995
    %5130 = vmatprep.subr.mxu0 %v5000
    %5131 = vmatpush1.msra.mxu0 %v4999
    %5132 = vmatprep.subr.mxu0 %v5004
    %5133 = vmatpush1.msra.mxu0 %v5003
    %5134 = vmatprep.subr.mxu0 %v5008
    %5135 = vmatpush1.msra.mxu0 %v5007
    %5136 = vmatprep.subr.mxu0 %v5012
    %5137 = vmatpush1.msra.mxu0 %v5011
    %5138 = vmatprep.subr.mxu0 %v5016
    %5139 = vmatpush1.msra.mxu0 %v5015
    %5140 = vmatprep.subr.mxu0 %v5020
    %5141 = vmatpush1.msra.mxu0 %v5019
    %5142 = vmatprep.subr.mxu0 %v5024
    %5143 = vmatpush1.msra.mxu0 %v5023
    %5144 = vmatprep.subr.mxu0 %v5028
    %5145 = vmatpush1.msra.mxu0 %v5027
    %5146 = vmatprep.subr.mxu0 %v5032
    %5147 = vmatpush1.msra.mxu0 %v5031
    %5148 = vmatprep.subr.mxu0 %v5036
    %5149 = vmatpush1.msra.mxu0 %v5035
    %5150 = vmatprep.subr.mxu0 %v5040
    %5151 = vmatpush1.msra.mxu0 %v5039
    %5152 = vmatprep.subr.mxu0 %v5044
    %5153 = vmatpush1.msra.mxu0 %v5043
    %5154 = vmatprep.subr.mxu0 %v5048
    %5155 = vmatpush1.msra.mxu0 %v5047
    %5156 = vmatprep.subr.mxu0 %v5052
    %5157 = vmatpush1.msra.mxu0 %v5051
    %5158 = vmatprep.subr.mxu0 %v5056
    %5159 = vmatpush1.msra.mxu0 %v5055
    %5160 = vmatprep.subr.mxu0 %v5060
    %5161 = vmatpush1.msra.mxu0 %v5059
    %5162 = vmatprep.subr.mxu0 %v5064
    %5163 = vmatpush1.msra.mxu0 %v5063
    %5164 = vmatprep.subr.mxu0 %v5068
    %5165 = vmatpush1.msra.mxu0 %v5067
    %5166 = vmatprep.subr.mxu0 %v5072
    %5167 = vmatpush1.msra.mxu0 %v5071
    %5168 = vmatprep.subr.mxu0 %v5076
    %5169 = vmatpush1.msra.mxu0 %v5075
    %5170 = vmatprep.subr.mxu0 %v5080
    %5171 = vmatpush1.msra.mxu0 %v5079
    %5172 = vmatprep.subr.mxu0 %v5084
    %5173 = vmatpush1.msra.mxu0 %v5083
    %5174 = vmatprep.subr.mxu0 %v5088
    %5175 = vmatpush1.msra.mxu0 %v5087
    %5176 = vmatprep.mubr.f32.mxu0 %v4961
    %5177 = vmatmul.mubr.f32.gmra.mrb[0].mxu0 %v4957
    %v5178 = vpop.f32.mrb[0].mxu0
    %v5179 = vadd.f32 %v5095, %v5178
    %v5180 = vpop.f32.mrb[0].mxu0
    %v5181 = vadd.f32 %v5099, %v5180
    %5182 = vdwg.mxu0
    %5183 = vmatprep.subr.mxu0 %v4966
    %5184 = vmatpush1.msra.mxu0 %v4965
    %5185 = vmatprep.subr.mxu0 %v4970
    %5186 = vmatpush1.msra.mxu0 %v4969
    %5187 = vmatprep.subr.mxu0 %v4974
    %5188 = vmatpush1.msra.mxu0 %v4973
    %5189 = vmatprep.subr.mxu0 %v4978
    %5190 = vmatpush1.msra.mxu0 %v4977
    %5191 = vmatprep.subr.mxu0 %v4982
    %5192 = vmatpush1.msra.mxu0 %v4981
    %5193 = vmatprep.subr.mxu0 %v4986
    %5194 = vmatpush1.msra.mxu0 %v4985
    %5195 = vmatprep.subr.mxu0 %v4990
    %5196 = vmatpush1.msra.mxu0 %v4989
    %5197 = vmatprep.subr.mxu0 %v4994
    %5198 = vmatpush1.msra.mxu0 %v4993
    %5199 = vmatprep.subr.mxu0 %v4998
    %5200 = vmatpush1.msra.mxu0 %v4997
    %5201 = vmatprep.subr.mxu0 %v5002
    %5202 = vmatpush1.msra.mxu0 %v5001
    %5203 = vmatprep.subr.mxu0 %v5006
    %5204 = vmatpush1.msra.mxu0 %v5005
    %5205 = vmatprep.subr.mxu0 %v5010
    %5206 = vmatpush1.msra.mxu0 %v5009
    %5207 = vmatprep.subr.mxu0 %v5014
    %5208 = vmatpush1.msra.mxu0 %v5013
    %5209 = vmatprep.subr.mxu0 %v5018
    %5210 = vmatpush1.msra.mxu0 %v5017
    %5211 = vmatprep.subr.mxu0 %v5022
    %5212 = vmatpush1.msra.mxu0 %v5021
    %5213 = vmatprep.subr.mxu0 %v5026
    %5214 = vmatpush1.msra.mxu0 %v5025
    %5215 = vmatprep.subr.mxu0 %v5030
    %5216 = vmatpush1.msra.mxu0 %v5029
    %5217 = vmatprep.subr.mxu0 %v5034
    %5218 = vmatpush1.msra.mxu0 %v5033
    %5219 = vmatprep.subr.mxu0 %v5038
    %5220 = vmatpush1.msra.mxu0 %v5037
    %5221 = vmatprep.subr.mxu0 %v5042
    %5222 = vmatpush1.msra.mxu0 %v5041
    %5223 = vmatprep.subr.mxu0 %v5046
    %5224 = vmatpush1.msra.mxu0 %v5045
    %5225 = vmatprep.subr.mxu0 %v5050
    %5226 = vmatpush1.msra.mxu0 %v5049
    %5227 = vmatprep.subr.mxu0 %v5054
    %5228 = vmatpush1.msra.mxu0 %v5053
    %5229 = vmatprep.subr.mxu0 %v5058
    %5230 = vmatpush1.msra.mxu0 %v5057
    %5231 = vmatprep.subr.mxu0 %v5062
    %5232 = vmatpush1.msra.mxu0 %v5061
    %5233 = vmatprep.subr.mxu0 %v5066
    %5234 = vmatpush1.msra.mxu0 %v5065
    %5235 = vmatprep.subr.mxu0 %v5070
    %5236 = vmatpush1.msra.mxu0 %v5069
    %5237 = vmatprep.subr.mxu0 %v5074
    %5238 = vmatpush1.msra.mxu0 %v5073
    %5239 = vmatprep.subr.mxu0 %v5078
    %5240 = vmatpush1.msra.mxu0 %v5077
    %5241 = vmatprep.subr.mxu0 %v5082
    %5242 = vmatpush1.msra.mxu0 %v5081
    %5243 = vmatprep.subr.mxu0 %v5086
    %5244 = vmatpush1.msra.mxu0 %v5085
    %5245 = vmatprep.subr.mxu0 %v5090
    %5246 = vmatpush1.msra.mxu0 %v5089
    %5247 = vmatprep.mubr.f32.mxu0 %v4961
    %5248 = vmatmul.mubr.f32.gmra.mrb[0].mxu0 %v4957
    %v5249 = vpop.f32.mrb[0].mxu0
    %v5250 = vadd.f32 %v5103, %v5249
    %v5251 = vpop.f32.mrb[0].mxu0
    %v5252 = vadd.f32 %v5107, %v5251
    %5253 = vdwg.mxu0
    %v5254 = vxor.u32 %v5179, 2147483648
    %v5255 = vxor.u32 %v5181, 2147483648
    %v5256 = vxor.u32 %v5250, 2147483648
    %v5257 = vmul.f32 %v5254, 1.442695
    %v5258 = vpow.pop %v5257
    %v5259 = vmul.f32 %v5255, 1.442695
    %v5260 = vpow.pop %v5259
    %v5261 = vmul.f32 %v5256, 1.442695
    %v5262 = vpow.pop %v5261
    %v5263 = vadd.f32 %v5258, 1.0
    %v5264 = vadd.f32 %v5260, 1.0
    %v5265 = vadd.f32 %v5262, 1.0
    %v5266 = vrcp.pop %v5263
    %v5267 = vmul.f32 1.0, %v5266
    %v5268 = vrcp.pop %v5264
    %v5269 = vmul.f32 1.0, %v5268
    %v5270 = vrcp.pop %v5265
    %v5271 = vmul.f32 1.0, %v5270
    %v5272 = vtanh.pop %v5252
    %v5273 = vmul.f32 %v4962, %v5267
    %v5274 = vmul.f32 %v5269, %v5272
    %v5275 = vadd.f32 %v5273, %v5274
    %v5276 = vtanh.pop %v5275
    %v5277 = vmul.f32 %v5271, %v5276
    %v5278 = vsel %vm4955, %v5275, %v4962
    %v5279 = vsel %vm4955, %v5277, %v4961
    %5280 = vst [vmem:[%s404] sm:$0xff] %v5278
    %5281 = vst [vmem:[%s402] sm:$0xff] %v5279
    // Predicated region
    $region38: #{tpu_custom_call.1} parent=1 // pred_check
      _
    $region39: #{tpu_custom_call.1} parent=1 // pred_check_branch
      %5283 = sbr.rel (0) target = $region41
    $region40: #{tpu_custom_call.1} parent=1 // pred_region
      %s5285 = ssub.s32 256, 256
      %5286 = vsyncadd [#allocation4], %s5285
      %s5287 = sshll.u32 [#allocation8], 4
      %s5288 = int_to_ptr.vmem [resolvable:$true] %s5287
      %5293 = dma.vmem_to_hbm [thread:$0]  %s5288, 256, %s5, [#allocation4], 128, 128, 8
    $region41: #{tpu_custom_call.1} parent=1 // pred_fallthru
      _
    // Predicated region
    $region42: #{tpu_custom_call.1} parent=1 // pred_check
      _
    $region43: #{tpu_custom_call.1} parent=1 // pred_check_branch
      %5295 = sbr.rel (0) target = $region45
    $region44: #{tpu_custom_call.1} parent=1 // pred_region
      %s5297 = ssub.s32 256, 256
      %5298 = vsyncadd [#allocation10], %s5297
      %s5299 = sshll.u32 [#allocation9], 4
      %s5300 = int_to_ptr.vmem [resolvable:$true] %s5299
      %5305 = dma.vmem_to_hbm [thread:$0]  %s5300, 256, %s6, [#allocation10], 128, 128, 8
    $region45: #{tpu_custom_call.1} parent=1 // pred_fallthru
      _
    // Predicated region
    $region46: #{tpu_custom_call.1} parent=1 // pred_check
      _
    $region47: #{tpu_custom_call.1} parent=1 // pred_check_branch
      %5307 = sbr.rel (0) target = $region49
    $region48: #{tpu_custom_call.1} parent=1 // pred_region
      %5308 = dma.done [#allocation4], 256
    $region49: #{tpu_custom_call.1} parent=1 // pred_fallthru
      _
    // Predicated region
    $region50: #{tpu_custom_call.1} parent=1 // pred_check
      _
    $region51: #{tpu_custom_call.1} parent=1 // pred_check_branch
      %5310 = sbr.rel (0) target = $region53
    $region52: #{tpu_custom_call.1} parent=1 // pred_region
      %5311 = dma.done [#allocation10], 256
    $region53: #{tpu_custom_call.1} parent=1 // pred_fallthru
      _
    %5312 = vsyncpa [#allocation3], 1
    %5313 = vsyncpa [#allocation6], 1
    %5314 = vsyncpa [#allocation4], 1
    %5315 = vsyncpa [#allocation10], 1

</llo_original>
